<compile_context>
chip_gen: v7x
topology: tpu7x:2x2x1
jax: 0.10.0
libtpu: 0.0.40
codegen_flags: <defaults>
</compile_context>

<pallas_src>
import jax
import jax.numpy as jnp
from jax import lax
from jax.experimental import pallas as pl
from jax.experimental.pallas import tpu as pltpu

N, H, W = 2, 16, 16
HP, WP = H + 2, W + 2            # conv_in is evaluated on the padded (18,18) grid
C_IN, C_MID, C_OUT = 4, 64, 4
BN_EPS = 1e-5


def resblk_kernel(p1_ref, w1_ref, shift1_ref, w2_ref, shift2_ref, o_ref):
    # p1_ref    : (N*HP*WP, 9*C_IN) = (648, 36) bf16   im2col patches (both samples)
    # w1_ref    : (9*C_IN, C_MID)   = (36, 64)  bf16   BN-folded conv_in weights
    # shift1_ref: (1, C_MID) f32                       folded bn_in shift
    # w2_ref    : (9*C_OUT, C_MID)  = (36, 64)  bf16   BN-folded conv_out weights,
    #                                                   tap-major, C_OUT on sublanes
    # shift2_ref: (1, C_OUT) f32                       folded bn_out shift
    # o_ref     : (N*C_OUT, H*W)    = (8, 256)  f32    lane-dense output slab

    # ---- conv_in (+ folded bn_in) + ReLU: one (648,36)@(36,64) MXU matmul ----
    y = jnp.dot(p1_ref[...], w1_ref[...],
                preferred_element_type=jnp.float32)          # (648, 64) f32
    y = jnp.maximum(y + shift1_ref[...], 0.0)

    # Zero the one-pixel border of the (18,18) grid: this IS the zero "same"
    # padding conv_out needs, with no padded scratch buffer.
    y = y.reshape(N, HP, WP, C_MID)
    row = lax.broadcasted_iota(jnp.int32, (N, HP, WP, 1), 1)
    col = lax.broadcasted_iota(jnp.int32, (N, HP, WP, 1), 2)
    interior = (row >= 1) & (row <= H) & (col >= 1) & (col <= W)
    yp = jnp.where(interior, y, 0.0).astype(jnp.bfloat16)    # (N, 18, 18, 64)

    # ---- conv_out (+ folded bn_out): 9 accumulating K=64 matmuls, M=N*H*W ----
    acc = jnp.zeros((N * H * W, C_OUT), jnp.float32)
    t = 0
    for dy in range(3):
        for dx in range(3):
            tap = yp[:, dy:dy + H, dx:dx + W, :].reshape(N * H * W, C_MID)  # (512,64)
            wt = w2_ref[t * C_OUT:(t + 1) * C_OUT, :]                       # (4,64)
            acc = acc + lax.dot_general(
                tap, wt,
                dimension_numbers=(((1,), (1,)), ((), ())),
                preferred_element_type=jnp.float32)                          # (512,4)
            t += 1
    z = acc + shift2_ref[...]                                                # (512,4)

    # Lane-dense store: (N*C_OUT, H*W) = (8, 256) -> 2 fully dense f32 vregs.
    z = z.reshape(N, H * W, C_OUT)
    zt = jnp.concatenate([jnp.transpose(z[n]) for n in range(N)], axis=0)    # (8,256)
    o_ref[...] = zt.astype(o_ref.dtype)


def resblk_forward(x_nchw, params):
    """x_nchw: (N, C_IN, H, W) float32 -> (N, C_OUT, H, W) float32."""
    w1, b1, s1, t1, w2, b2, s2, t2 = params

    # Fold eval-mode BN into the conv weights / a single per-channel shift (in f32).
    w1f = w1 * s1[None, None, None, :]
    shift1 = (b1 * s1 + t1).reshape(1, C_MID)
    w2f = w2 * s2[None, None, None, :]
    shift2 = (b2 * s2 + t2).reshape(1, C_OUT)

    w1m = w1f.reshape(9 * C_IN, C_MID).astype(jnp.bfloat16)              # (36, 64)
    # (3,3,C_MID,C_OUT) -> (9, C_OUT, C_MID) -> (36, 64): lane-dense weight tile.
    w2m = jnp.transpose(w2f.reshape(9, C_MID, C_OUT), (0, 2, 1)) \
             .reshape(9 * C_OUT, C_MID).astype(jnp.bfloat16)             # (36, 64)

    # conv_in im2col built with plain XLA in the wrapper (~46 KB bf16): pad=2 so
    # conv_in is evaluated directly on the (H+2, W+2) padded-output grid.
    x = jnp.transpose(x_nchw, (0, 2, 3, 1))                              # NHWC (tiny)
    xp = jnp.pad(x, ((0, 0), (2, 2), (2, 2), (0, 0)))                    # (N,20,20,4)
    taps = [xp[:, dy:dy + HP, dx:dx + WP, :] for dy in range(3) for dx in range(3)]
    p1 = jnp.concatenate(taps, axis=-1).reshape(N * HP * WP, 9 * C_IN) \
            .astype(jnp.bfloat16)                                        # (648, 36)

    out = pl.pallas_call(
        resblk_kernel,
        out_shape=jax.ShapeDtypeStruct((N * C_OUT, H * W), jnp.float32),
        grid=(1,),
        in_specs=[
            pl.BlockSpec((N * HP * WP, 9 * C_IN), lambda i: (0, 0)),
            pl.BlockSpec((9 * C_IN, C_MID), lambda i: (0, 0)),
            pl.BlockSpec((1, C_MID), lambda i: (0, 0)),
            pl.BlockSpec((9 * C_OUT, C_MID), lambda i: (0, 0)),
            pl.BlockSpec((1, C_OUT), lambda i: (0, 0)),
        ],
        out_specs=pl.BlockSpec((N * C_OUT, H * W), lambda i: (0, 0)),
        compiler_params=pltpu.CompilerParams(
            dimension_semantics=("arbitrary",)),
    )(p1, w1m, shift1, w2m, shift2)

    # (N*C_OUT, H*W) -> (N, C_OUT, H, W): pure reshape, no transpose needed.
    return out.reshape(N, C_OUT, H, W)


def make_params(key):
    k1, k2, k3, k4 = jax.random.split(key, 4)
    # conv_in: (3,3,C_IN,C_MID) in HWIO; conv_out: (3,3,C_MID,C_OUT)
    w1 = jax.random.normal(k1, (3, 3, C_IN, C_MID), jnp.float32) * 0.1
    b1 = jax.random.normal(k2, (C_MID,), jnp.float32) * 0.05
    w2 = jax.random.normal(k3, (3, 3, C_MID, C_OUT), jnp.float32) * 0.1
    b2 = jax.random.normal(k4, (C_OUT,), jnp.float32) * 0.05
    # BatchNorm2d default init (eval mode): gamma=1, beta=0, mean=0, var=1
    # folded to scale = gamma / sqrt(var + eps), shift = beta - mean * scale.
    s1 = jnp.full((C_MID,), 1.0 / jnp.sqrt(1.0 + BN_EPS), jnp.float32)
    t1 = jnp.zeros((C_MID,), jnp.float32)
    s2 = jnp.full((C_OUT,), 1.0 / jnp.sqrt(1.0 + BN_EPS), jnp.float32)
    t2 = jnp.zeros((C_OUT,), jnp.float32)
    return (w1, b1, s1, t1, w2, b2, s2, t2)


def resblk_reference(x_nchw, params):
    """Pure-JAX f32 reference using lax.conv_general_dilated (NCHW, like PyTorch)."""
    w1, b1, s1, t1, w2, b2, s2, t2 = params
    dn = ("NCHW", "HWIO", "NCHW")
    y = lax.conv_general_dilated(x_nchw, w1, (1, 1), ((1, 1), (1, 1)),
                                 dimension_numbers=dn)
    y = y + b1[None, :, None, None]
    y = y * s1[None, :, None, None] + t1[None, :, None, None]
    y = jnp.maximum(y, 0.0)
    z = lax.conv_general_dilated(y, w2, (1, 1), ((1, 1), (1, 1)),
                                 dimension_numbers=dn)
    z = z + b2[None, :, None, None]
    z = z * s2[None, :, None, None] + t2[None, :, None, None]
    return z


if __name__ == "__main__":
    key = jax.random.PRNGKey(0)
    kx, kp = jax.random.split(key)
    x = jax.random.normal(kx, (N, C_IN, H, W), jnp.float32)
    params = make_params(kp)

    out = resblk_forward(x, params)
    out = jax.block_until_ready(out)

    ref = resblk_reference(x, params)
    assert out.shape == (N, C_OUT, H, W)
    # Kernel uses bf16 MXU operands (f32 accumulation + f32 BN fold in the
    # wrapper); reference is full f32, so allow bf16-level tolerance.
    assert jnp.allclose(out, ref, rtol=5e-2, atol=5e-2), \
        f"max abs err {jnp.max(jnp.abs(out - ref))}"
    print("KERNEL_OK")
</pallas_src>

<mosaic_0001>
module attributes {stable_mosaic.version = 11 : i64} {
  func.func @resblk_kernel(%arg0: i32, %arg1: memref<648x36xbf16, #tpu.memory_space<vmem>>, %arg2: memref<36x64xbf16, #tpu.memory_space<vmem>>, %arg3: memref<1x64xf32, #tpu.memory_space<vmem>>, %arg4: memref<36x64xbf16, #tpu.memory_space<vmem>>, %arg5: memref<1x4xf32, #tpu.memory_space<vmem>>, %arg6: memref<8x256xf32, #tpu.memory_space<vmem>>) attributes {dimension_semantics = [#tpu.dimension_semantics<arbitrary>], iteration_bounds = array<i64: 1>, scalar_prefetch = 0 : i64, scratch_operands = 0 : i64, tpu.core_type = #tpu.core_type<tc>, window_params = [{pipeline_mode = #tpu.pipeline_mode<synchronous>, transform_indices = @transform_0, window_bounds = array<i64: 648, 36>}, {pipeline_mode = #tpu.pipeline_mode<synchronous>, transform_indices = @transform_1, window_bounds = array<i64: 36, 64>}, {pipeline_mode = #tpu.pipeline_mode<synchronous>, transform_indices = @transform_2, window_bounds = array<i64: 1, 64>}, {pipeline_mode = #tpu.pipeline_mode<synchronous>, transform_indices = @transform_3, window_bounds = array<i64: 36, 64>}, {pipeline_mode = #tpu.pipeline_mode<synchronous>, transform_indices = @transform_4, window_bounds = array<i64: 1, 4>}, {pipeline_mode = #tpu.pipeline_mode<synchronous>, transform_indices = @transform_5, window_bounds = array<i64: 8, 256>}]} {
    %c0 = arith.constant 0 : index
    %c0_0 = arith.constant 0 : index
    %0 = vector.load %arg1[%c0, %c0_0] : memref<648x36xbf16, #tpu.memory_space<vmem>>, vector<648x36xbf16>
    %c0_1 = arith.constant 0 : index
    %c0_2 = arith.constant 0 : index
    %1 = vector.load %arg2[%c0_1, %c0_2] : memref<36x64xbf16, #tpu.memory_space<vmem>>, vector<36x64xbf16>
    %cst = arith.constant dense<0.000000e+00> : vector<648x64xf32>
    %2 = tpu.matmul %0, %1, %cst {dimension_numbers = #tpu.dot_dimension_numbers<[1], [0], [0], [1], [0, 0, 1, 1], [], []>} : vector<648x36xbf16>, vector<36x64xbf16>, vector<648x64xf32> -> vector<648x64xf32>
    %c0_3 = arith.constant 0 : index
    %c0_4 = arith.constant 0 : index
    %3 = vector.load %arg3[%c0_3, %c0_4] : memref<1x64xf32, #tpu.memory_space<vmem>>, vector<1x64xf32>
    %4 = vector.broadcast %3 : vector<1x64xf32> to vector<648x64xf32>
    %5 = arith.addf %2, %4 : vector<648x64xf32>
    %cst_5 = arith.constant 0.000000e+00 : f32
    %6 = vector.broadcast %cst_5 : f32 to vector<648x64xf32>
    %7 = arith.maximumf %5, %6 : vector<648x64xf32>
    %8 = vector.shape_cast %7 : vector<648x64xf32> to vector<2x18x18x64xf32>
    %9 = tpu.iota {dimensions = array<i32: 1>} : vector<2x18x18x1xi32>
    %10 = tpu.iota {dimensions = array<i32: 2>} : vector<2x18x18x1xi32>
    %c1_i32 = arith.constant 1 : i32
    %11 = vector.broadcast %c1_i32 : i32 to vector<2x18x18x1xi32>
    %12 = arith.cmpi sge, %9, %11 : vector<2x18x18x1xi32>
    %c16_i32 = arith.constant 16 : i32
    %13 = vector.broadcast %c16_i32 : i32 to vector<2x18x18x1xi32>
    %14 = arith.cmpi sle, %9, %13 : vector<2x18x18x1xi32>
    %15 = arith.andi %12, %14 : vector<2x18x18x1xi1>
    %c1_i32_6 = arith.constant 1 : i32
    %16 = vector.broadcast %c1_i32_6 : i32 to vector<2x18x18x1xi32>
    %17 = arith.cmpi sge, %10, %16 : vector<2x18x18x1xi32>
    %18 = arith.andi %15, %17 : vector<2x18x18x1xi1>
    %c16_i32_7 = arith.constant 16 : i32
    %19 = vector.broadcast %c16_i32_7 : i32 to vector<2x18x18x1xi32>
    %20 = arith.cmpi sle, %10, %19 : vector<2x18x18x1xi32>
    %21 = arith.andi %18, %20 : vector<2x18x18x1xi1>
    %cst_8 = arith.constant 0.000000e+00 : f32
    %22 = vector.shape_cast %21 : vector<2x18x18x1xi1> to vector<2x18x18x1xi1>
    %23 = vector.broadcast %22 : vector<2x18x18x1xi1> to vector<2x18x18x64xi1>
    %24 = vector.broadcast %cst_8 : f32 to vector<2x18x18x64xf32>
    %25 = arith.select %23, %8, %24 : vector<2x18x18x64xi1>, vector<2x18x18x64xf32>
    %26 = arith.truncf %25 : vector<2x18x18x64xf32> to vector<2x18x18x64xbf16>
    %cst_9 = arith.constant 0.000000e+00 : f32
    %27 = vector.broadcast %cst_9 : f32 to vector<512x4xf32>
    %28 = vector.extract_strided_slice %26 {offsets = [0, 0, 0, 0], sizes = [2, 16, 16, 64], strides = [1, 1, 1, 1]} : vector<2x18x18x64xbf16> to vector<2x16x16x64xbf16>
    %29 = vector.shape_cast %28 : vector<2x16x16x64xbf16> to vector<512x64xbf16>
    %c0_10 = arith.constant 0 : index
    %c0_11 = arith.constant 0 : index
    %30 = vector.load %arg4[%c0_10, %c0_11] : memref<36x64xbf16, #tpu.memory_space<vmem>>, vector<4x64xbf16>
    %cst_12 = arith.constant dense<0.000000e+00> : vector<512x4xf32>
    %31 = tpu.matmul %29, %30, %cst_12 {dimension_numbers = #tpu.dot_dimension_numbers<[1], [1], [0], [0], [0, 0, 1, 0], [], []>} : vector<512x64xbf16>, vector<4x64xbf16>, vector<512x4xf32> -> vector<512x4xf32>
    %32 = arith.addf %27, %31 : vector<512x4xf32>
    %33 = vector.extract_strided_slice %26 {offsets = [0, 0, 1, 0], sizes = [2, 16, 16, 64], strides = [1, 1, 1, 1]} : vector<2x18x18x64xbf16> to vector<2x16x16x64xbf16>
    %34 = vector.shape_cast %33 : vector<2x16x16x64xbf16> to vector<512x64xbf16>
    %c4 = arith.constant 4 : index
    %c0_13 = arith.constant 0 : index
    %35 = vector.load %arg4[%c4, %c0_13] : memref<36x64xbf16, #tpu.memory_space<vmem>>, vector<4x64xbf16>
    %cst_14 = arith.constant dense<0.000000e+00> : vector<512x4xf32>
    %36 = tpu.matmul %34, %35, %cst_14 {dimension_numbers = #tpu.dot_dimension_numbers<[1], [1], [0], [0], [0, 0, 1, 0], [], []>} : vector<512x64xbf16>, vector<4x64xbf16>, vector<512x4xf32> -> vector<512x4xf32>
    %37 = arith.addf %32, %36 : vector<512x4xf32>
    %38 = vector.extract_strided_slice %26 {offsets = [0, 0, 2, 0], sizes = [2, 16, 16, 64], strides = [1, 1, 1, 1]} : vector<2x18x18x64xbf16> to vector<2x16x16x64xbf16>
    %39 = vector.shape_cast %38 : vector<2x16x16x64xbf16> to vector<512x64xbf16>
    %c8 = arith.constant 8 : index
    %c0_15 = arith.constant 0 : index
    %40 = vector.load %arg4[%c8, %c0_15] : memref<36x64xbf16, #tpu.memory_space<vmem>>, vector<4x64xbf16>
    %cst_16 = arith.constant dense<0.000000e+00> : vector<512x4xf32>
    %41 = tpu.matmul %39, %40, %cst_16 {dimension_numbers = #tpu.dot_dimension_numbers<[1], [1], [0], [0], [0, 0, 1, 0], [], []>} : vector<512x64xbf16>, vector<4x64xbf16>, vector<512x4xf32> -> vector<512x4xf32>
    %42 = arith.addf %37, %41 : vector<512x4xf32>
    %43 = vector.extract_strided_slice %26 {offsets = [0, 1, 0, 0], sizes = [2, 16, 16, 64], strides = [1, 1, 1, 1]} : vector<2x18x18x64xbf16> to vector<2x16x16x64xbf16>
    %44 = vector.shape_cast %43 : vector<2x16x16x64xbf16> to vector<512x64xbf16>
    %c12 = arith.constant 12 : index
    %c0_17 = arith.constant 0 : index
    %45 = vector.load %arg4[%c12, %c0_17] : memref<36x64xbf16, #tpu.memory_space<vmem>>, vector<4x64xbf16>
    %cst_18 = arith.constant dense<0.000000e+00> : vector<512x4xf32>
    %46 = tpu.matmul %44, %45, %cst_18 {dimension_numbers = #tpu.dot_dimension_numbers<[1], [1], [0], [0], [0, 0, 1, 0], [], []>} : vector<512x64xbf16>, vector<4x64xbf16>, vector<512x4xf32> -> vector<512x4xf32>
    %47 = arith.addf %42, %46 : vector<512x4xf32>
    %48 = vector.extract_strided_slice %26 {offsets = [0, 1, 1, 0], sizes = [2, 16, 16, 64], strides = [1, 1, 1, 1]} : vector<2x18x18x64xbf16> to vector<2x16x16x64xbf16>
    %49 = vector.shape_cast %48 : vector<2x16x16x64xbf16> to vector<512x64xbf16>
    %c16 = arith.constant 16 : index
    %c0_19 = arith.constant 0 : index
    %50 = vector.load %arg4[%c16, %c0_19] : memref<36x64xbf16, #tpu.memory_space<vmem>>, vector<4x64xbf16>
    %cst_20 = arith.constant dense<0.000000e+00> : vector<512x4xf32>
    %51 = tpu.matmul %49, %50, %cst_20 {dimension_numbers = #tpu.dot_dimension_numbers<[1], [1], [0], [0], [0, 0, 1, 0], [], []>} : vector<512x64xbf16>, vector<4x64xbf16>, vector<512x4xf32> -> vector<512x4xf32>
    %52 = arith.addf %47, %51 : vector<512x4xf32>
    %53 = vector.extract_strided_slice %26 {offsets = [0, 1, 2, 0], sizes = [2, 16, 16, 64], strides = [1, 1, 1, 1]} : vector<2x18x18x64xbf16> to vector<2x16x16x64xbf16>
    %54 = vector.shape_cast %53 : vector<2x16x16x64xbf16> to vector<512x64xbf16>
    %c20 = arith.constant 20 : index
    %c0_21 = arith.constant 0 : index
    %55 = vector.load %arg4[%c20, %c0_21] : memref<36x64xbf16, #tpu.memory_space<vmem>>, vector<4x64xbf16>
    %cst_22 = arith.constant dense<0.000000e+00> : vector<512x4xf32>
    %56 = tpu.matmul %54, %55, %cst_22 {dimension_numbers = #tpu.dot_dimension_numbers<[1], [1], [0], [0], [0, 0, 1, 0], [], []>} : vector<512x64xbf16>, vector<4x64xbf16>, vector<512x4xf32> -> vector<512x4xf32>
    %57 = arith.addf %52, %56 : vector<512x4xf32>
    %58 = vector.extract_strided_slice %26 {offsets = [0, 2, 0, 0], sizes = [2, 16, 16, 64], strides = [1, 1, 1, 1]} : vector<2x18x18x64xbf16> to vector<2x16x16x64xbf16>
    %59 = vector.shape_cast %58 : vector<2x16x16x64xbf16> to vector<512x64xbf16>
    %c24 = arith.constant 24 : index
    %c0_23 = arith.constant 0 : index
    %60 = vector.load %arg4[%c24, %c0_23] : memref<36x64xbf16, #tpu.memory_space<vmem>>, vector<4x64xbf16>
    %cst_24 = arith.constant dense<0.000000e+00> : vector<512x4xf32>
    %61 = tpu.matmul %59, %60, %cst_24 {dimension_numbers = #tpu.dot_dimension_numbers<[1], [1], [0], [0], [0, 0, 1, 0], [], []>} : vector<512x64xbf16>, vector<4x64xbf16>, vector<512x4xf32> -> vector<512x4xf32>
    %62 = arith.addf %57, %61 : vector<512x4xf32>
    %63 = vector.extract_strided_slice %26 {offsets = [0, 2, 1, 0], sizes = [2, 16, 16, 64], strides = [1, 1, 1, 1]} : vector<2x18x18x64xbf16> to vector<2x16x16x64xbf16>
    %64 = vector.shape_cast %63 : vector<2x16x16x64xbf16> to vector<512x64xbf16>
    %c28 = arith.constant 28 : index
    %c0_25 = arith.constant 0 : index
    %65 = vector.load %arg4[%c28, %c0_25] : memref<36x64xbf16, #tpu.memory_space<vmem>>, vector<4x64xbf16>
    %cst_26 = arith.constant dense<0.000000e+00> : vector<512x4xf32>
    %66 = tpu.matmul %64, %65, %cst_26 {dimension_numbers = #tpu.dot_dimension_numbers<[1], [1], [0], [0], [0, 0, 1, 0], [], []>} : vector<512x64xbf16>, vector<4x64xbf16>, vector<512x4xf32> -> vector<512x4xf32>
    %67 = arith.addf %62, %66 : vector<512x4xf32>
    %68 = vector.extract_strided_slice %26 {offsets = [0, 2, 2, 0], sizes = [2, 16, 16, 64], strides = [1, 1, 1, 1]} : vector<2x18x18x64xbf16> to vector<2x16x16x64xbf16>
    %69 = vector.shape_cast %68 : vector<2x16x16x64xbf16> to vector<512x64xbf16>
    %c32 = arith.constant 32 : index
    %c0_27 = arith.constant 0 : index
    %70 = vector.load %arg4[%c32, %c0_27] : memref<36x64xbf16, #tpu.memory_space<vmem>>, vector<4x64xbf16>
    %cst_28 = arith.constant dense<0.000000e+00> : vector<512x4xf32>
    %71 = tpu.matmul %69, %70, %cst_28 {dimension_numbers = #tpu.dot_dimension_numbers<[1], [1], [0], [0], [0, 0, 1, 0], [], []>} : vector<512x64xbf16>, vector<4x64xbf16>, vector<512x4xf32> -> vector<512x4xf32>
    %72 = arith.addf %67, %71 : vector<512x4xf32>
    %c0_29 = arith.constant 0 : index
    %c0_30 = arith.constant 0 : index
    %73 = vector.load %arg5[%c0_29, %c0_30] : memref<1x4xf32, #tpu.memory_space<vmem>>, vector<1x4xf32>
    %74 = vector.broadcast %73 : vector<1x4xf32> to vector<512x4xf32>
    %75 = arith.addf %72, %74 : vector<512x4xf32>
    %76 = vector.shape_cast %75 : vector<512x4xf32> to vector<2x256x4xf32>
    %77 = vector.extract_strided_slice %76 {offsets = [0, 0, 0], sizes = [1, 256, 4], strides = [1, 1, 1]} : vector<2x256x4xf32> to vector<1x256x4xf32>
    %78 = vector.shape_cast %77 : vector<1x256x4xf32> to vector<256x4xf32>
    %79 = tpu.transpose %78, [1, 0] : vector<256x4xf32> -> vector<4x256xf32>
    %80 = vector.extract_strided_slice %76 {offsets = [1, 0, 0], sizes = [1, 256, 4], strides = [1, 1, 1]} : vector<2x256x4xf32> to vector<1x256x4xf32>
    %81 = vector.shape_cast %80 : vector<1x256x4xf32> to vector<256x4xf32>
    %82 = tpu.transpose %81, [1, 0] : vector<256x4xf32> -> vector<4x256xf32>
    %83 = tpu.concatenate %79, %82 in 0 : vector<4x256xf32>, vector<4x256xf32> -> vector<8x256xf32>
    %c0_31 = arith.constant 0 : index
    %c0_32 = arith.constant 0 : index
    %84 = vector.load %arg6[%c0_31, %c0_32] : memref<8x256xf32, #tpu.memory_space<vmem>>, vector<8x256xf32>
    tpu.vector_store %arg6[%c0_31, %c0_32], %83 {strides = array<i32>} : memref<8x256xf32, #tpu.memory_space<vmem>>, vector<8x256xf32>,
    return
  }
  func.func @transform_0(%arg0: i32) -> (i32, i32) {
    %c0_i32 = arith.constant 0 : i32
    %c0_i32_0 = arith.constant 0 : i32
    %c0_i32_1 = arith.constant 0 : i32
    return %c0_i32, %c0_i32_0 : i32, i32
  }
  func.func @transform_1(%arg0: i32) -> (i32, i32) {
    %c0_i32 = arith.constant 0 : i32
    %c0_i32_0 = arith.constant 0 : i32
    %c0_i32_1 = arith.constant 0 : i32
    return %c0_i32, %c0_i32_0 : i32, i32
  }
  func.func @transform_2(%arg0: i32) -> (i32, i32) {
    %c0_i32 = arith.constant 0 : i32
    %c0_i32_0 = arith.constant 0 : i32
    %c0_i32_1 = arith.constant 0 : i32
    return %c0_i32, %c0_i32_0 : i32, i32
  }
  func.func @transform_3(%arg0: i32) -> (i32, i32) {
    %c0_i32 = arith.constant 0 : i32
    %c0_i32_0 = arith.constant 0 : i32
    %c0_i32_1 = arith.constant 0 : i32
    return %c0_i32, %c0_i32_0 : i32, i32
  }
  func.func @transform_4(%arg0: i32) -> (i32, i32) {
    %c0_i32 = arith.constant 0 : i32
    %c0_i32_0 = arith.constant 0 : i32
    %c0_i32_1 = arith.constant 0 : i32
    return %c0_i32, %c0_i32_0 : i32, i32
  }
  func.func @transform_5(%arg0: i32) -> (i32, i32) {
    %c0_i32 = arith.constant 0 : i32
    %c0_i32_0 = arith.constant 0 : i32
    %c0_i32_1 = arith.constant 0 : i32
    return %c0_i32, %c0_i32_0 : i32, i32
  }
}

</mosaic_0001>

<llo_original>
// kernel: tpu_custom_call.1
$region0: #{tpu_custom_call.1}
  #allocation0 [shape = 'u32[]', space=smem, size = 0x4, offset = 0x4, fixed_abs, tag = 'smem constant byte address 0x4 - core index']
  #allocation1 [shape = 'u32[144,128]{1,0:T(1,128)}', space=vmem, size = 0x12000, scoped, tag = 'internal scratch']
  %s0 = inlined_call_operand.vmem [shape: bf16[648,36], index: 0, kind: input, shape index: {}]
  %s1 = inlined_call_operand.vmem [shape: bf16[36,64], index: 1, kind: input, shape index: {}]
  %s2 = inlined_call_operand.vmem [shape: f32[1,64], index: 2, kind: input, shape index: {}]
  %s3 = inlined_call_operand.vmem [shape: bf16[36,64], index: 3, kind: input, shape index: {}]
  %s4 = inlined_call_operand.vmem [shape: f32[1,4], index: 4, kind: input, shape index: {}]
  %s5 = inlined_call_operand.hbm [shape: f32[8,256], index: 5, kind: output, shape index: {}]
  %s6 = sld [smem:[#allocation0]]
  $region30: #{tpu_custom_call.1} parent=0
    _
  %s8 = ssub.s32 1, %s6
  %s9 = scalar_select 0, %s8, %s6
  $region1: #{tpu_custom_call.1} parent=0
    #allocation2 [shape = 'u8[8192]{0}', space=vmem, size = 0x2000, scoped, tag = 'output window, operand 0, single buffered']
    #allocation3 [shape = 's32[1]{0}', space=sflag, size = 0x4, scoped, tag = 'scoped memory for tpu_custom_call.1']
    %10 = vsyncpa [#allocation3], 0
    // Predicated region
    $region2: #{tpu_custom_call.1} parent=1 // pred_check
      _
    $region3: #{tpu_custom_call.1} parent=1 // pred_check_branch
      %12 = sbr.rel (0) target = $region5
    $region4: #{tpu_custom_call.1} parent=1 // pred_region
      _
    $region5: #{tpu_custom_call.1} parent=1 // pred_fallthru
      _
    // Predicated region
    $region6: #{tpu_custom_call.1} parent=1 // pred_check
      _
    $region7: #{tpu_custom_call.1} parent=1 // pred_check_branch
      %14 = sbr.rel (0) target = $region9
    $region8: #{tpu_custom_call.1} parent=1 // pred_region
      _
    $region9: #{tpu_custom_call.1} parent=1 // pred_fallthru
      _
    // Predicated region
    $region10: #{tpu_custom_call.1} parent=1 // pred_check
      _
    $region11: #{tpu_custom_call.1} parent=1 // pred_check_branch
      %16 = sbr.rel (0) target = $region13
    $region12: #{tpu_custom_call.1} parent=1 // pred_region
      _
    $region13: #{tpu_custom_call.1} parent=1 // pred_fallthru
      _
    // Predicated region
    $region14: #{tpu_custom_call.1} parent=1 // pred_check
      _
    $region15: #{tpu_custom_call.1} parent=1 // pred_check_branch
      %18 = sbr.rel (0) target = $region17
    $region16: #{tpu_custom_call.1} parent=1 // pred_region
      _
    $region17: #{tpu_custom_call.1} parent=1 // pred_fallthru
      _
    // Predicated region
    $region18: #{tpu_custom_call.1} parent=1 // pred_check
      _
    $region19: #{tpu_custom_call.1} parent=1 // pred_check_branch
      %20 = sbr.rel (0) target = $region21
    $region20: #{tpu_custom_call.1} parent=1 // pred_region
      _
    $region21: #{tpu_custom_call.1} parent=1 // pred_fallthru
      _
    %v22 = vld [vmem:[%s0] sm:$0xf]
    %v23 = vld [vmem:[%s0 + $0x4] sm:$0xf]
    %v24 = vld [vmem:[%s0 + $0x8] sm:$0xf]
    %v25 = vld [vmem:[%s0 + $0xc] sm:$0xf]
    %v26 = vld [vmem:[%s0 + $0x10] sm:$0xf]
    %v27 = vld [vmem:[%s0 + $0x14] sm:$0xf]
    %v28 = vld [vmem:[%s0 + $0x18] sm:$0xf]
    %v29 = vld [vmem:[%s0 + $0x1c] sm:$0xf]
    %v30 = vld [vmem:[%s0 + $0x20] sm:$0xf]
    %v31 = vld [vmem:[%s0 + $0x24] sm:$0xf]
    %v32 = vld [vmem:[%s0 + $0x28] sm:$0xf]
    %v33 = vld [vmem:[%s0 + $0x2c] sm:$0xf]
    %v34 = vld [vmem:[%s0 + $0x30] sm:$0xf]
    %v35 = vld [vmem:[%s0 + $0x34] sm:$0xf]
    %v36 = vld [vmem:[%s0 + $0x38] sm:$0xf]
    %v37 = vld [vmem:[%s0 + $0x3c] sm:$0xf]
    %v38 = vld [vmem:[%s0 + $0x40] sm:$0xf]
    %v39 = vld [vmem:[%s0 + $0x44] sm:$0xf]
    %v40 = vld [vmem:[%s0 + $0x48] sm:$0xf]
    %v41 = vld [vmem:[%s0 + $0x4c] sm:$0xf]
    %v42 = vld [vmem:[%s0 + $0x50] sm:$0xf]
    %v43 = vld [vmem:[%s0 + $0x54] sm:$0xf]
    %v44 = vld [vmem:[%s0 + $0x58] sm:$0xf]
    %v45 = vld [vmem:[%s0 + $0x5c] sm:$0xf]
    %v46 = vld [vmem:[%s0 + $0x60] sm:$0xf]
    %v47 = vld [vmem:[%s0 + $0x64] sm:$0xf]
    %v48 = vld [vmem:[%s0 + $0x68] sm:$0xf]
    %v49 = vld [vmem:[%s0 + $0x6c] sm:$0xf]
    %v50 = vld [vmem:[%s0 + $0x70] sm:$0xf]
    %v51 = vld [vmem:[%s0 + $0x74] sm:$0xf]
    %v52 = vld [vmem:[%s0 + $0x78] sm:$0xf]
    %v53 = vld [vmem:[%s0 + $0x7c] sm:$0xf]
    %v54 = vld [vmem:[%s0 + $0x80] sm:$0xf]
    %v55 = vld [vmem:[%s0 + $0x84] sm:$0xf]
    %v56 = vld [vmem:[%s0 + $0x88] sm:$0xf]
    %v57 = vld [vmem:[%s0 + $0x8c] sm:$0xf]
    %v58 = vld [vmem:[%s0 + $0x90] sm:$0xf]
    %v59 = vld [vmem:[%s0 + $0x94] sm:$0xf]
    %v60 = vld [vmem:[%s0 + $0x98] sm:$0xf]
    %v61 = vld [vmem:[%s0 + $0x9c] sm:$0xf]
    %v62 = vld [vmem:[%s0 + $0xa0] sm:$0xf]
    %v63 = vld [vmem:[%s0 + $0xa4] sm:$0xf]
    %v64 = vld [vmem:[%s0 + $0xa8] sm:$0xf]
    %v65 = vld [vmem:[%s0 + $0xac] sm:$0xf]
    %v66 = vld [vmem:[%s0 + $0xb0] sm:$0xf]
    %v67 = vld [vmem:[%s0 + $0xb4] sm:$0xf]
    %v68 = vld [vmem:[%s0 + $0xb8] sm:$0xf]
    %v69 = vld [vmem:[%s0 + $0xbc] sm:$0xf]
    %v70 = vld [vmem:[%s0 + $0xc0] sm:$0xf]
    %v71 = vld [vmem:[%s0 + $0xc4] sm:$0xf]
    %v72 = vld [vmem:[%s0 + $0xc8] sm:$0xf]
    %v73 = vld [vmem:[%s0 + $0xcc] sm:$0xf]
    %v74 = vld [vmem:[%s0 + $0xd0] sm:$0xf]
    %v75 = vld [vmem:[%s0 + $0xd4] sm:$0xf]
    %v76 = vld [vmem:[%s0 + $0xd8] sm:$0xf]
    %v77 = vld [vmem:[%s0 + $0xdc] sm:$0xf]
    %v78 = vld [vmem:[%s0 + $0xe0] sm:$0xf]
    %v79 = vld [vmem:[%s0 + $0xe4] sm:$0xf]
    %v80 = vld [vmem:[%s0 + $0xe8] sm:$0xf]
    %v81 = vld [vmem:[%s0 + $0xec] sm:$0xf]
    %v82 = vld [vmem:[%s0 + $0xf0] sm:$0xf]
    %v83 = vld [vmem:[%s0 + $0xf4] sm:$0xf]
    %v84 = vld [vmem:[%s0 + $0xf8] sm:$0xf]
    %v85 = vld [vmem:[%s0 + $0xfc] sm:$0xf]
    %v86 = vld [vmem:[%s0 + $0x100] sm:$0xf]
    %v87 = vld [vmem:[%s0 + $0x104] sm:$0xf]
    %v88 = vld [vmem:[%s0 + $0x108] sm:$0xf]
    %v89 = vld [vmem:[%s0 + $0x10c] sm:$0xf]
    %v90 = vld [vmem:[%s0 + $0x110] sm:$0xf]
    %v91 = vld [vmem:[%s0 + $0x114] sm:$0xf]
    %v92 = vld [vmem:[%s0 + $0x118] sm:$0xf]
    %v93 = vld [vmem:[%s0 + $0x11c] sm:$0xf]
    %v94 = vld [vmem:[%s0 + $0x120] sm:$0xf]
    %v95 = vld [vmem:[%s0 + $0x124] sm:$0xf]
    %v96 = vld [vmem:[%s0 + $0x128] sm:$0xf]
    %v97 = vld [vmem:[%s0 + $0x12c] sm:$0xf]
    %v98 = vld [vmem:[%s0 + $0x130] sm:$0xf]
    %v99 = vld [vmem:[%s0 + $0x134] sm:$0xf]
    %v100 = vld [vmem:[%s0 + $0x138] sm:$0xf]
    %v101 = vld [vmem:[%s0 + $0x13c] sm:$0xf]
    %v102 = vld [vmem:[%s0 + $0x140] sm:$0xf]
    %v103 = vld [vmem:[%s1] sm:$0xf]
    %v104 = vld [vmem:[%s1 + $0x4] sm:$0xf]
    %v105 = vld [vmem:[%s1 + $0x8] sm:$0xf]
    %v106 = vld [vmem:[%s1 + $0xc] sm:$0xf]
    %v107 = vld [vmem:[%s1 + $0x10] sm:$0x3]
    %v108 = vld [vmem:[%s2] sm:$0x1]
    %v110 = vlaneseq
    %v111 = vshrl.u32 %v110, 7
    %v112 = vsub.s32 0, %v111
    %v113 = vrot.slane %v108, %v112
    %v196 = vunpack.c.l.b16 %v22
    %v197 = vunpack.c.l.b16 %v23
    %v198 = vunpack.c.l.b16 %v24
    %v199 = vunpack.c.l.b16 %v25
    %v200 = vunpack.c.l.b16 %v26
    %v201 = vunpack.c.l.b16 %v27
    %v202 = vunpack.c.l.b16 %v28
    %v203 = vunpack.c.l.b16 %v29
    %v204 = vunpack.c.l.b16 %v30
    %v205 = vunpack.c.l.b16 %v31
    %v206 = vunpack.c.l.b16 %v32
    %v207 = vunpack.c.l.b16 %v33
    %v208 = vunpack.c.l.b16 %v34
    %v209 = vunpack.c.l.b16 %v35
    %v210 = vunpack.c.l.b16 %v36
    %v211 = vunpack.c.l.b16 %v37
    %v212 = vunpack.c.l.b16 %v38
    %v213 = vunpack.c.l.b16 %v39
    %v214 = vunpack.c.l.b16 %v40
    %v215 = vunpack.c.l.b16 %v41
    %v216 = vunpack.c.l.b16 %v42
    %v217 = vunpack.c.l.b16 %v43
    %v218 = vunpack.c.l.b16 %v44
    %v219 = vunpack.c.l.b16 %v45
    %v220 = vunpack.c.l.b16 %v46
    %v221 = vunpack.c.l.b16 %v47
    %v222 = vunpack.c.l.b16 %v48
    %v223 = vunpack.c.l.b16 %v49
    %v224 = vunpack.c.l.b16 %v50
    %v225 = vunpack.c.l.b16 %v51
    %v226 = vunpack.c.l.b16 %v52
    %v227 = vunpack.c.l.b16 %v53
    %v228 = vunpack.c.l.b16 %v54
    %v229 = vunpack.c.l.b16 %v55
    %v230 = vunpack.c.l.b16 %v56
    %v231 = vunpack.c.l.b16 %v57
    %v232 = vunpack.c.l.b16 %v58
    %v233 = vunpack.c.l.b16 %v59
    %v234 = vunpack.c.l.b16 %v60
    %v235 = vunpack.c.l.b16 %v61
    %v236 = vunpack.c.l.b16 %v62
    %v237 = vunpack.c.l.b16 %v63
    %v238 = vunpack.c.l.b16 %v64
    %v239 = vunpack.c.l.b16 %v65
    %v240 = vunpack.c.l.b16 %v66
    %v241 = vunpack.c.l.b16 %v67
    %v242 = vunpack.c.l.b16 %v68
    %v243 = vunpack.c.l.b16 %v69
    %v244 = vunpack.c.l.b16 %v70
    %v245 = vunpack.c.l.b16 %v71
    %v246 = vunpack.c.l.b16 %v72
    %v247 = vunpack.c.l.b16 %v73
    %v248 = vunpack.c.l.b16 %v74
    %v249 = vunpack.c.l.b16 %v75
    %v250 = vunpack.c.l.b16 %v76
    %v251 = vunpack.c.l.b16 %v77
    %v252 = vunpack.c.l.b16 %v78
    %v253 = vunpack.c.l.b16 %v79
    %v254 = vunpack.c.l.b16 %v80
    %v255 = vunpack.c.l.b16 %v81
    %v256 = vunpack.c.l.b16 %v82
    %v257 = vunpack.c.l.b16 %v83
    %v258 = vunpack.c.l.b16 %v84
    %v259 = vunpack.c.l.b16 %v85
    %v260 = vunpack.c.l.b16 %v86
    %v261 = vunpack.c.l.b16 %v87
    %v262 = vunpack.c.l.b16 %v88
    %v263 = vunpack.c.l.b16 %v89
    %v264 = vunpack.c.l.b16 %v90
    %v265 = vunpack.c.l.b16 %v91
    %v266 = vunpack.c.l.b16 %v92
    %v267 = vunpack.c.l.b16 %v93
    %v268 = vunpack.c.l.b16 %v94
    %v269 = vunpack.c.l.b16 %v95
    %v270 = vunpack.c.l.b16 %v96
    %v271 = vunpack.c.l.b16 %v97
    %v272 = vunpack.c.l.b16 %v98
    %v273 = vunpack.c.l.b16 %v99
    %v274 = vunpack.c.l.b16 %v100
    %v275 = vunpack.c.l.b16 %v101
    %v276 = vunpack.c.l.b16 %v102
    %v277 = vpack.c.b16 %v197, %v196
    %v278 = vpack.c.b16 %v199, %v198
    %v279 = vpack.c.b16 %v201, %v200
    %v280 = vpack.c.b16 %v203, %v202
    %v281 = vpack.c.b16 %v205, %v204
    %v282 = vpack.c.b16 %v207, %v206
    %v283 = vpack.c.b16 %v209, %v208
    %v284 = vpack.c.b16 %v211, %v210
    %v285 = vpack.c.b16 %v213, %v212
    %v286 = vpack.c.b16 %v215, %v214
    %v287 = vpack.c.b16 %v217, %v216
    %v288 = vpack.c.b16 %v219, %v218
    %v289 = vpack.c.b16 %v221, %v220
    %v290 = vpack.c.b16 %v223, %v222
    %v291 = vpack.c.b16 %v225, %v224
    %v292 = vpack.c.b16 %v227, %v226
    %v293 = vpack.c.b16 %v229, %v228
    %v294 = vpack.c.b16 %v231, %v230
    %v295 = vpack.c.b16 %v233, %v232
    %v296 = vpack.c.b16 %v235, %v234
    %v297 = vpack.c.b16 %v237, %v236
    %v298 = vpack.c.b16 %v239, %v238
    %v299 = vpack.c.b16 %v241, %v240
    %v300 = vpack.c.b16 %v243, %v242
    %v301 = vpack.c.b16 %v245, %v244
    %v302 = vpack.c.b16 %v247, %v246
    %v303 = vpack.c.b16 %v249, %v248
    %v304 = vpack.c.b16 %v251, %v250
    %v305 = vpack.c.b16 %v253, %v252
    %v306 = vpack.c.b16 %v255, %v254
    %v307 = vpack.c.b16 %v257, %v256
    %v308 = vpack.c.b16 %v259, %v258
    %v309 = vpack.c.b16 %v261, %v260
    %v310 = vpack.c.b16 %v263, %v262
    %v311 = vpack.c.b16 %v265, %v264
    %v312 = vpack.c.b16 %v267, %v266
    %v313 = vpack.c.b16 %v269, %v268
    %v314 = vpack.c.b16 %v271, %v270
    %v315 = vpack.c.b16 %v273, %v272
    %v316 = vpack.c.b16 %v275, %v274
    %v317 = vpack.c.b16 %v276, %v276
    %v323 = vunpack.c.l.b16 %v103
    %v324 = vunpack.c.l.b16 %v104
    %v325 = vunpack.c.l.b16 %v105
    %v326 = vunpack.c.l.b16 %v106
    %v327 = vunpack.c.l.b16 %v107
    %v328 = vpack.c.b16 %v324, %v323
    %v329 = vpack.c.b16 %v326, %v325
    %v330 = vpack.c.b16 %v327, %v327
    %vm333 = vcmask 293888
    %v335 = vsel %vm333, %v277, 0
    %v338 = vsel %vm333, %v278, 0
    %v341 = vsel %vm333, %v279, 0
    %v344 = vsel %vm333, %v280, 0
    %v347 = vsel %vm333, %v281, 0
    %v350 = vsel %vm333, %v282, 0
    %v353 = vsel %vm333, %v283, 0
    %v356 = vsel %vm333, %v284, 0
    %v359 = vsel %vm333, %v285, 0
    %v362 = vsel %vm333, %v286, 0
    %v365 = vsel %vm333, %v287, 0
    %v368 = vsel %vm333, %v288, 0
    %v371 = vsel %vm333, %v289, 0
    %v374 = vsel %vm333, %v290, 0
    %v377 = vsel %vm333, %v291, 0
    %v380 = vsel %vm333, %v292, 0
    %v383 = vsel %vm333, %v293, 0
    %v386 = vsel %vm333, %v294, 0
    %v389 = vsel %vm333, %v295, 0
    %v392 = vsel %vm333, %v296, 0
    %v395 = vsel %vm333, %v297, 0
    %v398 = vsel %vm333, %v298, 0
    %v401 = vsel %vm333, %v299, 0
    %v404 = vsel %vm333, %v300, 0
    %v407 = vsel %vm333, %v301, 0
    %v410 = vsel %vm333, %v302, 0
    %v413 = vsel %vm333, %v303, 0
    %v416 = vsel %vm333, %v304, 0
    %v419 = vsel %vm333, %v305, 0
    %v422 = vsel %vm333, %v306, 0
    %v425 = vsel %vm333, %v307, 0
    %v428 = vsel %vm333, %v308, 0
    %v431 = vsel %vm333, %v309, 0
    %v434 = vsel %vm333, %v310, 0
    %v437 = vsel %vm333, %v311, 0
    %v440 = vsel %vm333, %v312, 0
    %v443 = vsel %vm333, %v313, 0
    %v446 = vsel %vm333, %v314, 0
    %v449 = vsel %vm333, %v315, 0
    %v452 = vsel %vm333, %v316, 0
    %v455 = vsel %vm333, %v317, 0
    %vm457 = vcmask 1041408
    %v459 = vsel %vm457, %v330, 0
    %461 = vmatprep.subr.bf16.mxu0 0
    %462 = vmatpush1.bf16.msra.mxu0 %v328
    %463 = vmatprep.subr.bf16.mxu0 0
    %464 = vmatpush1.bf16.msra.mxu0 %v329
    %465 = vmatprep.subr.bf16.mxu0 0
    %466 = vmatpush1.bf16.msra.mxu0 %v459
    %467 = vmatprep.subr.bf16.mxu0 0
    %468 = vmatpush1.bf16.msra.mxu0 0
    %469 = vmatprep.subr.bf16.mxu0 0
    %470 = vmatpush1.bf16.msra.mxu0 0
    %471 = vmatprep.subr.bf16.mxu0 0
    %472 = vmatpush1.bf16.msra.mxu0 0
    %473 = vmatprep.subr.bf16.mxu0 0
    %474 = vmatpush1.bf16.msra.mxu0 0
    %475 = vmatprep.subr.bf16.mxu0 0
    %476 = vmatpush1.bf16.msra.mxu0 0
    %477 = vmatprep.subr.bf16.mxu0 0
    %478 = vmatpush1.bf16.msra.mxu0 0
    %479 = vmatprep.subr.bf16.mxu0 0
    %480 = vmatpush1.bf16.msra.mxu0 0
    %481 = vmatprep.subr.bf16.mxu0 0
    %482 = vmatpush1.bf16.msra.mxu0 0
    %483 = vmatprep.subr.bf16.mxu0 0
    %484 = vmatpush1.bf16.msra.mxu0 0
    %485 = vmatprep.subr.bf16.mxu0 0
    %486 = vmatpush1.bf16.msra.mxu0 0
    %487 = vmatprep.subr.bf16.mxu0 0
    %488 = vmatpush1.bf16.msra.mxu0 0
    %489 = vmatprep.subr.bf16.mxu0 0
    %490 = vmatpush1.bf16.msra.mxu0 0
    %491 = vmatprep.subr.bf16.mxu0 0
    %492 = vmatpush1.bf16.msra.mxu0 0
    %493 = vmatprep.mubr.bf16.mxu0 0
    %494 = vmatmul.mubr.bf16.gmra.mrb[0].mxu0 %v335
    %v495 = vpop.f32.mrb[0].mxu0
    %v496 = vadd.f32 %v113, %v495
    %v497 = vpop.f32.mrb[0].mxu0
    %v498 = vpop.f32.mrb[0].mxu0
    %v499 = vadd.f32 %v113, %v498
    %v500 = vpop.f32.mrb[0].mxu0
    %501 = vmatprep.mubr.bf16.mxu0 0
    %502 = vmatmul.mubr.bf16.gmra.mrb[0].mxu0 %v338
    %v503 = vpop.f32.mrb[0].mxu0
    %v504 = vadd.f32 %v113, %v503
    %v505 = vpop.f32.mrb[0].mxu0
    %v506 = vpop.f32.mrb[0].mxu0
    %v507 = vadd.f32 %v113, %v506
    %v508 = vpop.f32.mrb[0].mxu0
    %509 = vmatprep.mubr.bf16.mxu0 0
    %510 = vmatmul.mubr.bf16.gmra.mrb[0].mxu0 %v341
    %v511 = vpop.f32.mrb[0].mxu0
    %v512 = vadd.f32 %v113, %v511
    %v513 = vpop.f32.mrb[0].mxu0
    %v514 = vpop.f32.mrb[0].mxu0
    %v515 = vadd.f32 %v113, %v514
    %v516 = vpop.f32.mrb[0].mxu0
    %517 = vmatprep.mubr.bf16.mxu0 0
    %518 = vmatmul.mubr.bf16.gmra.mrb[0].mxu0 %v344
    %v519 = vpop.f32.mrb[0].mxu0
    %v520 = vadd.f32 %v113, %v519
    %v521 = vpop.f32.mrb[0].mxu0
    %v522 = vpop.f32.mrb[0].mxu0
    %v523 = vadd.f32 %v113, %v522
    %v524 = vpop.f32.mrb[0].mxu0
    %525 = vmatprep.mubr.bf16.mxu0 0
    %526 = vmatmul.mubr.bf16.gmra.mrb[0].mxu0 %v347
    %v527 = vpop.f32.mrb[0].mxu0
    %v528 = vadd.f32 %v113, %v527
    %v529 = vpop.f32.mrb[0].mxu0
    %v530 = vpop.f32.mrb[0].mxu0
    %v531 = vadd.f32 %v113, %v530
    %v532 = vpop.f32.mrb[0].mxu0
    %533 = vmatprep.mubr.bf16.mxu0 0
    %534 = vmatmul.mubr.bf16.gmra.mrb[0].mxu0 %v350
    %v535 = vpop.f32.mrb[0].mxu0
    %v536 = vadd.f32 %v113, %v535
    %v537 = vpop.f32.mrb[0].mxu0
    %v538 = vpop.f32.mrb[0].mxu0
    %v539 = vadd.f32 %v113, %v538
    %v540 = vpop.f32.mrb[0].mxu0
    %541 = vmatprep.mubr.bf16.mxu0 0
    %542 = vmatmul.mubr.bf16.gmra.mrb[0].mxu0 %v353
    %v543 = vpop.f32.mrb[0].mxu0
    %v544 = vadd.f32 %v113, %v543
    %v545 = vpop.f32.mrb[0].mxu0
    %v546 = vpop.f32.mrb[0].mxu0
    %v547 = vadd.f32 %v113, %v546
    %v548 = vpop.f32.mrb[0].mxu0
    %549 = vmatprep.mubr.bf16.mxu0 0
    %550 = vmatmul.mubr.bf16.gmra.mrb[0].mxu0 %v356
    %v551 = vpop.f32.mrb[0].mxu0
    %v552 = vadd.f32 %v113, %v551
    %v553 = vpop.f32.mrb[0].mxu0
    %v554 = vpop.f32.mrb[0].mxu0
    %v555 = vadd.f32 %v113, %v554
    %v556 = vpop.f32.mrb[0].mxu0
    %557 = vmatprep.mubr.bf16.mxu0 0
    %558 = vmatmul.mubr.bf16.gmra.mrb[0].mxu0 %v359
    %v559 = vpop.f32.mrb[0].mxu0
    %v560 = vadd.f32 %v113, %v559
    %v561 = vpop.f32.mrb[0].mxu0
    %v562 = vpop.f32.mrb[0].mxu0
    %v563 = vadd.f32 %v113, %v562
    %v564 = vpop.f32.mrb[0].mxu0
    %565 = vmatprep.mubr.bf16.mxu0 0
    %566 = vmatmul.mubr.bf16.gmra.mrb[0].mxu0 %v362
    %v567 = vpop.f32.mrb[0].mxu0
    %v568 = vadd.f32 %v113, %v567
    %v569 = vpop.f32.mrb[0].mxu0
    %v570 = vpop.f32.mrb[0].mxu0
    %v571 = vadd.f32 %v113, %v570
    %v572 = vpop.f32.mrb[0].mxu0
    %573 = vmatprep.mubr.bf16.mxu0 0
    %574 = vmatmul.mubr.bf16.gmra.mrb[0].mxu0 %v365
    %v575 = vpop.f32.mrb[0].mxu0
    %v576 = vadd.f32 %v113, %v575
    %v577 = vpop.f32.mrb[0].mxu0
    %v578 = vpop.f32.mrb[0].mxu0
    %v579 = vadd.f32 %v113, %v578
    %v580 = vpop.f32.mrb[0].mxu0
    %581 = vmatprep.mubr.bf16.mxu0 0
    %582 = vmatmul.mubr.bf16.gmra.mrb[0].mxu0 %v368
    %v583 = vpop.f32.mrb[0].mxu0
    %v584 = vadd.f32 %v113, %v583
    %v585 = vpop.f32.mrb[0].mxu0
    %v586 = vpop.f32.mrb[0].mxu0
    %v587 = vadd.f32 %v113, %v586
    %v588 = vpop.f32.mrb[0].mxu0
    %589 = vmatprep.mubr.bf16.mxu0 0
    %590 = vmatmul.mubr.bf16.gmra.mrb[0].mxu0 %v371
    %v591 = vpop.f32.mrb[0].mxu0
    %v592 = vadd.f32 %v113, %v591
    %v593 = vpop.f32.mrb[0].mxu0
    %v594 = vpop.f32.mrb[0].mxu0
    %v595 = vadd.f32 %v113, %v594
    %v596 = vpop.f32.mrb[0].mxu0
    %597 = vmatprep.mubr.bf16.mxu0 0
    %598 = vmatmul.mubr.bf16.gmra.mrb[0].mxu0 %v374
    %v599 = vpop.f32.mrb[0].mxu0
    %v600 = vadd.f32 %v113, %v599
    %v601 = vpop.f32.mrb[0].mxu0
    %v602 = vpop.f32.mrb[0].mxu0
    %v603 = vadd.f32 %v113, %v602
    %v604 = vpop.f32.mrb[0].mxu0
    %605 = vmatprep.mubr.bf16.mxu0 0
    %606 = vmatmul.mubr.bf16.gmra.mrb[0].mxu0 %v377
    %v607 = vpop.f32.mrb[0].mxu0
    %v608 = vadd.f32 %v113, %v607
    %v609 = vpop.f32.mrb[0].mxu0
    %v610 = vpop.f32.mrb[0].mxu0
    %v611 = vadd.f32 %v113, %v610
    %v612 = vpop.f32.mrb[0].mxu0
    %613 = vmatprep.mubr.bf16.mxu0 0
    %614 = vmatmul.mubr.bf16.gmra.mrb[0].mxu0 %v380
    %v615 = vpop.f32.mrb[0].mxu0
    %v616 = vadd.f32 %v113, %v615
    %v617 = vpop.f32.mrb[0].mxu0
    %v618 = vpop.f32.mrb[0].mxu0
    %v619 = vadd.f32 %v113, %v618
    %v620 = vpop.f32.mrb[0].mxu0
    %621 = vmatprep.mubr.bf16.mxu0 0
    %622 = vmatmul.mubr.bf16.gmra.mrb[0].mxu0 %v383
    %v623 = vpop.f32.mrb[0].mxu0
    %v624 = vadd.f32 %v113, %v623
    %v625 = vpop.f32.mrb[0].mxu0
    %v626 = vpop.f32.mrb[0].mxu0
    %v627 = vadd.f32 %v113, %v626
    %v628 = vpop.f32.mrb[0].mxu0
    %629 = vmatprep.mubr.bf16.mxu0 0
    %630 = vmatmul.mubr.bf16.gmra.mrb[0].mxu0 %v386
    %v631 = vpop.f32.mrb[0].mxu0
    %v632 = vadd.f32 %v113, %v631
    %v633 = vpop.f32.mrb[0].mxu0
    %v634 = vpop.f32.mrb[0].mxu0
    %v635 = vadd.f32 %v113, %v634
    %v636 = vpop.f32.mrb[0].mxu0
    %637 = vmatprep.mubr.bf16.mxu0 0
    %638 = vmatmul.mubr.bf16.gmra.mrb[0].mxu0 %v389
    %v639 = vpop.f32.mrb[0].mxu0
    %v640 = vadd.f32 %v113, %v639
    %v641 = vpop.f32.mrb[0].mxu0
    %v642 = vpop.f32.mrb[0].mxu0
    %v643 = vadd.f32 %v113, %v642
    %v644 = vpop.f32.mrb[0].mxu0
    %645 = vmatprep.mubr.bf16.mxu0 0
    %646 = vmatmul.mubr.bf16.gmra.mrb[0].mxu0 %v392
    %v647 = vpop.f32.mrb[0].mxu0
    %v648 = vadd.f32 %v113, %v647
    %v649 = vpop.f32.mrb[0].mxu0
    %v650 = vpop.f32.mrb[0].mxu0
    %v651 = vadd.f32 %v113, %v650
    %v652 = vpop.f32.mrb[0].mxu0
    %653 = vmatprep.mubr.bf16.mxu0 0
    %654 = vmatmul.mubr.bf16.gmra.mrb[0].mxu0 %v395
    %v655 = vpop.f32.mrb[0].mxu0
    %v656 = vadd.f32 %v113, %v655
    %v657 = vpop.f32.mrb[0].mxu0
    %v658 = vpop.f32.mrb[0].mxu0
    %v659 = vadd.f32 %v113, %v658
    %v660 = vpop.f32.mrb[0].mxu0
    %661 = vmatprep.mubr.bf16.mxu0 0
    %662 = vmatmul.mubr.bf16.gmra.mrb[0].mxu0 %v398
    %v663 = vpop.f32.mrb[0].mxu0
    %v664 = vadd.f32 %v113, %v663
    %v665 = vpop.f32.mrb[0].mxu0
    %v666 = vpop.f32.mrb[0].mxu0
    %v667 = vadd.f32 %v113, %v666
    %v668 = vpop.f32.mrb[0].mxu0
    %669 = vmatprep.mubr.bf16.mxu0 0
    %670 = vmatmul.mubr.bf16.gmra.mrb[0].mxu0 %v401
    %v671 = vpop.f32.mrb[0].mxu0
    %v672 = vadd.f32 %v113, %v671
    %v673 = vpop.f32.mrb[0].mxu0
    %v674 = vpop.f32.mrb[0].mxu0
    %v675 = vadd.f32 %v113, %v674
    %v676 = vpop.f32.mrb[0].mxu0
    %677 = vmatprep.mubr.bf16.mxu0 0
    %678 = vmatmul.mubr.bf16.gmra.mrb[0].mxu0 %v404
    %v679 = vpop.f32.mrb[0].mxu0
    %v680 = vadd.f32 %v113, %v679
    %v681 = vpop.f32.mrb[0].mxu0
    %v682 = vpop.f32.mrb[0].mxu0
    %v683 = vadd.f32 %v113, %v682
    %v684 = vpop.f32.mrb[0].mxu0
    %685 = vmatprep.mubr.bf16.mxu0 0
    %686 = vmatmul.mubr.bf16.gmra.mrb[0].mxu0 %v407
    %v687 = vpop.f32.mrb[0].mxu0
    %v688 = vadd.f32 %v113, %v687
    %v689 = vpop.f32.mrb[0].mxu0
    %v690 = vpop.f32.mrb[0].mxu0
    %v691 = vadd.f32 %v113, %v690
    %v692 = vpop.f32.mrb[0].mxu0
    %693 = vmatprep.mubr.bf16.mxu0 0
    %694 = vmatmul.mubr.bf16.gmra.mrb[0].mxu0 %v410
    %v695 = vpop.f32.mrb[0].mxu0
    %v696 = vadd.f32 %v113, %v695
    %v697 = vpop.f32.mrb[0].mxu0
    %v698 = vpop.f32.mrb[0].mxu0
    %v699 = vadd.f32 %v113, %v698
    %v700 = vpop.f32.mrb[0].mxu0
    %701 = vmatprep.mubr.bf16.mxu0 0
    %702 = vmatmul.mubr.bf16.gmra.mrb[0].mxu0 %v413
    %v703 = vpop.f32.mrb[0].mxu0
    %v704 = vadd.f32 %v113, %v703
    %v705 = vpop.f32.mrb[0].mxu0
    %v706 = vpop.f32.mrb[0].mxu0
    %v707 = vadd.f32 %v113, %v706
    %v708 = vpop.f32.mrb[0].mxu0
    %709 = vmatprep.mubr.bf16.mxu0 0
    %710 = vmatmul.mubr.bf16.gmra.mrb[0].mxu0 %v416
    %v711 = vpop.f32.mrb[0].mxu0
    %v712 = vadd.f32 %v113, %v711
    %v713 = vpop.f32.mrb[0].mxu0
    %v714 = vpop.f32.mrb[0].mxu0
    %v715 = vadd.f32 %v113, %v714
    %v716 = vpop.f32.mrb[0].mxu0
    %717 = vmatprep.mubr.bf16.mxu0 0
    %718 = vmatmul.mubr.bf16.gmra.mrb[0].mxu0 %v419
    %v719 = vpop.f32.mrb[0].mxu0
    %v720 = vadd.f32 %v113, %v719
    %v721 = vpop.f32.mrb[0].mxu0
    %v722 = vpop.f32.mrb[0].mxu0
    %v723 = vadd.f32 %v113, %v722
    %v724 = vpop.f32.mrb[0].mxu0
    %725 = vmatprep.mubr.bf16.mxu0 0
    %726 = vmatmul.mubr.bf16.gmra.mrb[0].mxu0 %v422
    %v727 = vpop.f32.mrb[0].mxu0
    %v728 = vadd.f32 %v113, %v727
    %v729 = vpop.f32.mrb[0].mxu0
    %v730 = vpop.f32.mrb[0].mxu0
    %v731 = vadd.f32 %v113, %v730
    %v732 = vpop.f32.mrb[0].mxu0
    %733 = vmatprep.mubr.bf16.mxu0 0
    %734 = vmatmul.mubr.bf16.gmra.mrb[0].mxu0 %v425
    %v735 = vpop.f32.mrb[0].mxu0
    %v736 = vadd.f32 %v113, %v735
    %v737 = vpop.f32.mrb[0].mxu0
    %v738 = vpop.f32.mrb[0].mxu0
    %v739 = vadd.f32 %v113, %v738
    %v740 = vpop.f32.mrb[0].mxu0
    %741 = vmatprep.mubr.bf16.mxu0 0
    %742 = vmatmul.mubr.bf16.gmra.mrb[0].mxu0 %v428
    %v743 = vpop.f32.mrb[0].mxu0
    %v744 = vadd.f32 %v113, %v743
    %v745 = vpop.f32.mrb[0].mxu0
    %v746 = vpop.f32.mrb[0].mxu0
    %v747 = vadd.f32 %v113, %v746
    %v748 = vpop.f32.mrb[0].mxu0
    %749 = vmatprep.mubr.bf16.mxu0 0
    %750 = vmatmul.mubr.bf16.gmra.mrb[0].mxu0 %v431
    %v751 = vpop.f32.mrb[0].mxu0
    %v752 = vadd.f32 %v113, %v751
    %v753 = vpop.f32.mrb[0].mxu0
    %v754 = vpop.f32.mrb[0].mxu0
    %v755 = vadd.f32 %v113, %v754
    %v756 = vpop.f32.mrb[0].mxu0
    %757 = vmatprep.mubr.bf16.mxu0 0
    %758 = vmatmul.mubr.bf16.gmra.mrb[0].mxu0 %v434
    %v759 = vpop.f32.mrb[0].mxu0
    %v760 = vadd.f32 %v113, %v759
    %v761 = vpop.f32.mrb[0].mxu0
    %v762 = vpop.f32.mrb[0].mxu0
    %v763 = vadd.f32 %v113, %v762
    %v764 = vpop.f32.mrb[0].mxu0
    %765 = vmatprep.mubr.bf16.mxu0 0
    %766 = vmatmul.mubr.bf16.gmra.mrb[0].mxu0 %v437
    %v767 = vpop.f32.mrb[0].mxu0
    %v768 = vadd.f32 %v113, %v767
    %v769 = vpop.f32.mrb[0].mxu0
    %v770 = vpop.f32.mrb[0].mxu0
    %v771 = vadd.f32 %v113, %v770
    %v772 = vpop.f32.mrb[0].mxu0
    %773 = vmatprep.mubr.bf16.mxu0 0
    %774 = vmatmul.mubr.bf16.gmra.mrb[0].mxu0 %v440
    %v775 = vpop.f32.mrb[0].mxu0
    %v776 = vadd.f32 %v113, %v775
    %v777 = vpop.f32.mrb[0].mxu0
    %v778 = vpop.f32.mrb[0].mxu0
    %v779 = vadd.f32 %v113, %v778
    %v780 = vpop.f32.mrb[0].mxu0
    %781 = vmatprep.mubr.bf16.mxu0 0
    %782 = vmatmul.mubr.bf16.gmra.mrb[0].mxu0 %v443
    %v783 = vpop.f32.mrb[0].mxu0
    %v784 = vadd.f32 %v113, %v783
    %v785 = vpop.f32.mrb[0].mxu0
    %v786 = vpop.f32.mrb[0].mxu0
    %v787 = vadd.f32 %v113, %v786
    %v788 = vpop.f32.mrb[0].mxu0
    %789 = vmatprep.mubr.bf16.mxu0 0
    %790 = vmatmul.mubr.bf16.gmra.mrb[0].mxu0 %v446
    %v791 = vpop.f32.mrb[0].mxu0
    %v792 = vadd.f32 %v113, %v791
    %v793 = vpop.f32.mrb[0].mxu0
    %v794 = vpop.f32.mrb[0].mxu0
    %v795 = vadd.f32 %v113, %v794
    %v796 = vpop.f32.mrb[0].mxu0
    %797 = vmatprep.mubr.bf16.mxu0 0
    %798 = vmatmul.mubr.bf16.gmra.mrb[0].mxu0 %v449
    %v799 = vpop.f32.mrb[0].mxu0
    %v800 = vadd.f32 %v113, %v799
    %v801 = vpop.f32.mrb[0].mxu0
    %v802 = vpop.f32.mrb[0].mxu0
    %v803 = vadd.f32 %v113, %v802
    %v804 = vpop.f32.mrb[0].mxu0
    %805 = vmatprep.mubr.bf16.mxu0 0
    %806 = vmatmul.mubr.bf16.gmra.mrb[0].mxu0 %v452
    %v807 = vpop.f32.mrb[0].mxu0
    %v808 = vadd.f32 %v113, %v807
    %v809 = vpop.f32.mrb[0].mxu0
    %v810 = vpop.f32.mrb[0].mxu0
    %v811 = vadd.f32 %v113, %v810
    %v812 = vpop.f32.mrb[0].mxu0
    %813 = vmatprep.mubr.bf16.mxu0 0
    %814 = vmatmul.mubr.bf16.gmra.mrb[0].mxu0 %v455
    %v815 = vpop.f32.mrb[0].mxu0
    %v816 = vadd.f32 %v113, %v815
    %v817 = vpop.f32.mrb[0].mxu0
    %v818 = vpop.f32.mrb[0].mxu0
    %v819 = vpop.f32.mrb[0].mxu0
    %820 = vdwg.mxu0
    %v821 = vmax.f32 %v496, 0.0
    %v822 = vmax.f32 %v499, 0.0
    %v823 = vmax.f32 %v504, 0.0
    %v824 = vmax.f32 %v507, 0.0
    %v825 = vmax.f32 %v512, 0.0
    %v826 = vmax.f32 %v515, 0.0
    %v827 = vmax.f32 %v520, 0.0
    %v828 = vmax.f32 %v523, 0.0
    %v829 = vmax.f32 %v528, 0.0
    %v830 = vmax.f32 %v531, 0.0
    %v831 = vmax.f32 %v536, 0.0
    %v832 = vmax.f32 %v539, 0.0
    %v833 = vmax.f32 %v544, 0.0
    %v834 = vmax.f32 %v547, 0.0
    %v835 = vmax.f32 %v552, 0.0
    %v836 = vmax.f32 %v555, 0.0
    %v837 = vmax.f32 %v560, 0.0
    %v838 = vmax.f32 %v563, 0.0
    %v839 = vmax.f32 %v568, 0.0
    %v840 = vmax.f32 %v571, 0.0
    %v841 = vmax.f32 %v576, 0.0
    %v842 = vmax.f32 %v579, 0.0
    %v843 = vmax.f32 %v584, 0.0
    %v844 = vmax.f32 %v587, 0.0
    %v845 = vmax.f32 %v592, 0.0
    %v846 = vmax.f32 %v595, 0.0
    %v847 = vmax.f32 %v600, 0.0
    %v848 = vmax.f32 %v603, 0.0
    %v849 = vmax.f32 %v608, 0.0
    %v850 = vmax.f32 %v611, 0.0
    %v851 = vmax.f32 %v616, 0.0
    %v852 = vmax.f32 %v619, 0.0
    %v853 = vmax.f32 %v624, 0.0
    %v854 = vmax.f32 %v627, 0.0
    %v855 = vmax.f32 %v632, 0.0
    %v856 = vmax.f32 %v635, 0.0
    %v857 = vmax.f32 %v640, 0.0
    %v858 = vmax.f32 %v643, 0.0
    %v859 = vmax.f32 %v648, 0.0
    %v860 = vmax.f32 %v651, 0.0
    %v861 = vmax.f32 %v656, 0.0
    %v862 = vmax.f32 %v659, 0.0
    %v863 = vmax.f32 %v664, 0.0
    %v864 = vmax.f32 %v667, 0.0
    %v865 = vmax.f32 %v672, 0.0
    %v866 = vmax.f32 %v675, 0.0
    %v867 = vmax.f32 %v680, 0.0
    %v868 = vmax.f32 %v683, 0.0
    %v869 = vmax.f32 %v688, 0.0
    %v870 = vmax.f32 %v691, 0.0
    %v871 = vmax.f32 %v696, 0.0
    %v872 = vmax.f32 %v699, 0.0
    %v873 = vmax.f32 %v704, 0.0
    %v874 = vmax.f32 %v707, 0.0
    %v875 = vmax.f32 %v712, 0.0
    %v876 = vmax.f32 %v715, 0.0
    %v877 = vmax.f32 %v720, 0.0
    %v878 = vmax.f32 %v723, 0.0
    %v879 = vmax.f32 %v728, 0.0
    %v880 = vmax.f32 %v731, 0.0
    %v881 = vmax.f32 %v736, 0.0
    %v882 = vmax.f32 %v739, 0.0
    %v883 = vmax.f32 %v744, 0.0
    %v884 = vmax.f32 %v747, 0.0
    %v885 = vmax.f32 %v752, 0.0
    %v886 = vmax.f32 %v755, 0.0
    %v887 = vmax.f32 %v760, 0.0
    %v888 = vmax.f32 %v763, 0.0
    %v889 = vmax.f32 %v768, 0.0
    %v890 = vmax.f32 %v771, 0.0
    %v891 = vmax.f32 %v776, 0.0
    %v892 = vmax.f32 %v779, 0.0
    %v893 = vmax.f32 %v784, 0.0
    %v894 = vmax.f32 %v787, 0.0
    %v895 = vmax.f32 %v792, 0.0
    %v896 = vmax.f32 %v795, 0.0
    %v897 = vmax.f32 %v800, 0.0
    %v898 = vmax.f32 %v803, 0.0
    %v899 = vmax.f32 %v808, 0.0
    %v900 = vmax.f32 %v811, 0.0
    %v901 = vmax.f32 %v816, 0.0
    %v983 = vcombine.high %v821, %v821
    %v985 = vunpack.c.l.s4 1983009808
    %v986 = vunpack.c.0.s8 %v985
    %v987 = vlaneseq
    %v988 = vshrl.u32 %v987, 7
    %v989 = vsub.s32 %v986, %v988
    %v990 = vrot.slane %v821, %v989
    %v992 = vunpack.c.l.s4 1983009808
    %v993 = vunpack.c.0.s8 %v992
    %v994 = vlaneseq
    %v995 = vshrl.u32 %v994, 7
    %v996 = vsub.s32 %v993, %v995
    %v997 = vrot.slane %v983, %v996
    %v998 = vcombine.high %v990, %v990
    %v999 = vcombine.high %v997, %v997
    %v1000 = vcombine.high %v822, %v822
    %v1002 = vunpack.c.l.s4 1983009808
    %v1003 = vunpack.c.0.s8 %v1002
    %v1004 = vlaneseq
    %v1005 = vshrl.u32 %v1004, 7
    %v1006 = vsub.s32 %v1003, %v1005
    %v1007 = vrot.slane %v822, %v1006
    %v1009 = vunpack.c.l.s4 1983009808
    %v1010 = vunpack.c.0.s8 %v1009
    %v1011 = vlaneseq
    %v1012 = vshrl.u32 %v1011, 7
    %v1013 = vsub.s32 %v1010, %v1012
    %v1014 = vrot.slane %v1000, %v1013
    %v1015 = vcombine.high %v1007, %v1007
    %v1016 = vcombine.high %v1014, %v1014
    %v1017 = vcombine.high %v823, %v823
    %v1019 = vunpack.c.l.s4 1983009808
    %v1020 = vunpack.c.0.s8 %v1019
    %v1021 = vlaneseq
    %v1022 = vshrl.u32 %v1021, 7
    %v1023 = vsub.s32 %v1020, %v1022
    %v1024 = vrot.slane %v823, %v1023
    %v1026 = vunpack.c.l.s4 1983009808
    %v1027 = vunpack.c.0.s8 %v1026
    %v1028 = vlaneseq
    %v1029 = vshrl.u32 %v1028, 7
    %v1030 = vsub.s32 %v1027, %v1029
    %v1031 = vrot.slane %v1017, %v1030
    %v1032 = vcombine.high %v1024, %v1024
    %v1033 = vcombine.high %v1031, %v1031
    %v1034 = vcombine.high %v824, %v824
    %v1036 = vunpack.c.l.s4 1983009808
    %v1037 = vunpack.c.0.s8 %v1036
    %v1038 = vlaneseq
    %v1039 = vshrl.u32 %v1038, 7
    %v1040 = vsub.s32 %v1037, %v1039
    %v1041 = vrot.slane %v824, %v1040
    %v1043 = vunpack.c.l.s4 1983009808
    %v1044 = vunpack.c.0.s8 %v1043
    %v1045 = vlaneseq
    %v1046 = vshrl.u32 %v1045, 7
    %v1047 = vsub.s32 %v1044, %v1046
    %v1048 = vrot.slane %v1034, %v1047
    %v1049 = vcombine.high %v1041, %v1041
    %v1050 = vcombine.high %v1048, %v1048
    %v1051 = vcombine.high %v825, %v825
    %v1053 = vunpack.c.l.s4 1983009808
    %v1054 = vunpack.c.0.s8 %v1053
    %v1055 = vlaneseq
    %v1056 = vshrl.u32 %v1055, 7
    %v1057 = vsub.s32 %v1054, %v1056
    %v1058 = vrot.slane %v825, %v1057
    %v1060 = vunpack.c.l.s4 1983009808
    %v1061 = vunpack.c.0.s8 %v1060
    %v1062 = vlaneseq
    %v1063 = vshrl.u32 %v1062, 7
    %v1064 = vsub.s32 %v1061, %v1063
    %v1065 = vrot.slane %v1051, %v1064
    %v1066 = vcombine.high %v1058, %v1058
    %v1067 = vcombine.high %v1065, %v1065
    %v1068 = vcombine.high %v826, %v826
    %v1070 = vunpack.c.l.s4 1983009808
    %v1071 = vunpack.c.0.s8 %v1070
    %v1072 = vlaneseq
    %v1073 = vshrl.u32 %v1072, 7
    %v1074 = vsub.s32 %v1071, %v1073
    %v1075 = vrot.slane %v826, %v1074
    %v1077 = vunpack.c.l.s4 1983009808
    %v1078 = vunpack.c.0.s8 %v1077
    %v1079 = vlaneseq
    %v1080 = vshrl.u32 %v1079, 7
    %v1081 = vsub.s32 %v1078, %v1080
    %v1082 = vrot.slane %v1068, %v1081
    %v1083 = vcombine.high %v1075, %v1075
    %v1084 = vcombine.high %v1082, %v1082
    %v1085 = vcombine.high %v827, %v827
    %v1087 = vunpack.c.l.s4 1983009808
    %v1088 = vunpack.c.0.s8 %v1087
    %v1089 = vlaneseq
    %v1090 = vshrl.u32 %v1089, 7
    %v1091 = vsub.s32 %v1088, %v1090
    %v1092 = vrot.slane %v827, %v1091
    %v1094 = vunpack.c.l.s4 1983009808
    %v1095 = vunpack.c.0.s8 %v1094
    %v1096 = vlaneseq
    %v1097 = vshrl.u32 %v1096, 7
    %v1098 = vsub.s32 %v1095, %v1097
    %v1099 = vrot.slane %v1085, %v1098
    %v1100 = vcombine.high %v1092, %v1092
    %v1101 = vcombine.high %v1099, %v1099
    %v1102 = vcombine.high %v828, %v828
    %v1104 = vunpack.c.l.s4 1983009808
    %v1105 = vunpack.c.0.s8 %v1104
    %v1106 = vlaneseq
    %v1107 = vshrl.u32 %v1106, 7
    %v1108 = vsub.s32 %v1105, %v1107
    %v1109 = vrot.slane %v828, %v1108
    %v1111 = vunpack.c.l.s4 1983009808
    %v1112 = vunpack.c.0.s8 %v1111
    %v1113 = vlaneseq
    %v1114 = vshrl.u32 %v1113, 7
    %v1115 = vsub.s32 %v1112, %v1114
    %v1116 = vrot.slane %v1102, %v1115
    %v1117 = vcombine.high %v1109, %v1109
    %v1118 = vcombine.high %v1116, %v1116
    %v1119 = vcombine.high %v829, %v829
    %v1121 = vunpack.c.l.s4 1983009808
    %v1122 = vunpack.c.0.s8 %v1121
    %v1123 = vlaneseq
    %v1124 = vshrl.u32 %v1123, 7
    %v1125 = vsub.s32 %v1122, %v1124
    %v1126 = vrot.slane %v829, %v1125
    %v1128 = vunpack.c.l.s4 1983009808
    %v1129 = vunpack.c.0.s8 %v1128
    %v1130 = vlaneseq
    %v1131 = vshrl.u32 %v1130, 7
    %v1132 = vsub.s32 %v1129, %v1131
    %v1133 = vrot.slane %v1119, %v1132
    %v1134 = vcombine.high %v1126, %v1126
    %v1135 = vcombine.high %v1133, %v1133
    %v1136 = vcombine.high %v830, %v830
    %v1138 = vunpack.c.l.s4 1983009808
    %v1139 = vunpack.c.0.s8 %v1138
    %v1140 = vlaneseq
    %v1141 = vshrl.u32 %v1140, 7
    %v1142 = vsub.s32 %v1139, %v1141
    %v1143 = vrot.slane %v830, %v1142
    %v1145 = vunpack.c.l.s4 1983009808
    %v1146 = vunpack.c.0.s8 %v1145
    %v1147 = vlaneseq
    %v1148 = vshrl.u32 %v1147, 7
    %v1149 = vsub.s32 %v1146, %v1148
    %v1150 = vrot.slane %v1136, %v1149
    %v1151 = vcombine.high %v1143, %v1143
    %v1152 = vcombine.high %v1150, %v1150
    %v1153 = vcombine.high %v831, %v831
    %v1155 = vunpack.c.l.s4 1983009808
    %v1156 = vunpack.c.0.s8 %v1155
    %v1157 = vlaneseq
    %v1158 = vshrl.u32 %v1157, 7
    %v1159 = vsub.s32 %v1156, %v1158
    %v1160 = vrot.slane %v831, %v1159
    %v1162 = vunpack.c.l.s4 1983009808
    %v1163 = vunpack.c.0.s8 %v1162
    %v1164 = vlaneseq
    %v1165 = vshrl.u32 %v1164, 7
    %v1166 = vsub.s32 %v1163, %v1165
    %v1167 = vrot.slane %v1153, %v1166
    %v1168 = vcombine.high %v1160, %v1160
    %v1169 = vcombine.high %v1167, %v1167
    %v1170 = vcombine.high %v832, %v832
    %v1172 = vunpack.c.l.s4 1983009808
    %v1173 = vunpack.c.0.s8 %v1172
    %v1174 = vlaneseq
    %v1175 = vshrl.u32 %v1174, 7
    %v1176 = vsub.s32 %v1173, %v1175
    %v1177 = vrot.slane %v832, %v1176
    %v1179 = vunpack.c.l.s4 1983009808
    %v1180 = vunpack.c.0.s8 %v1179
    %v1181 = vlaneseq
    %v1182 = vshrl.u32 %v1181, 7
    %v1183 = vsub.s32 %v1180, %v1182
    %v1184 = vrot.slane %v1170, %v1183
    %v1185 = vcombine.high %v1177, %v1177
    %v1186 = vcombine.high %v1184, %v1184
    %v1187 = vcombine.high %v833, %v833
    %v1189 = vunpack.c.l.s4 1983009808
    %v1190 = vunpack.c.0.s8 %v1189
    %v1191 = vlaneseq
    %v1192 = vshrl.u32 %v1191, 7
    %v1193 = vsub.s32 %v1190, %v1192
    %v1194 = vrot.slane %v833, %v1193
    %v1196 = vunpack.c.l.s4 1983009808
    %v1197 = vunpack.c.0.s8 %v1196
    %v1198 = vlaneseq
    %v1199 = vshrl.u32 %v1198, 7
    %v1200 = vsub.s32 %v1197, %v1199
    %v1201 = vrot.slane %v1187, %v1200
    %v1202 = vcombine.high %v1194, %v1194
    %v1203 = vcombine.high %v1201, %v1201
    %v1204 = vcombine.high %v834, %v834
    %v1206 = vunpack.c.l.s4 1983009808
    %v1207 = vunpack.c.0.s8 %v1206
    %v1208 = vlaneseq
    %v1209 = vshrl.u32 %v1208, 7
    %v1210 = vsub.s32 %v1207, %v1209
    %v1211 = vrot.slane %v834, %v1210
    %v1213 = vunpack.c.l.s4 1983009808
    %v1214 = vunpack.c.0.s8 %v1213
    %v1215 = vlaneseq
    %v1216 = vshrl.u32 %v1215, 7
    %v1217 = vsub.s32 %v1214, %v1216
    %v1218 = vrot.slane %v1204, %v1217
    %v1219 = vcombine.high %v1211, %v1211
    %v1220 = vcombine.high %v1218, %v1218
    %v1221 = vcombine.high %v835, %v835
    %v1223 = vunpack.c.l.s4 1983009808
    %v1224 = vunpack.c.0.s8 %v1223
    %v1225 = vlaneseq
    %v1226 = vshrl.u32 %v1225, 7
    %v1227 = vsub.s32 %v1224, %v1226
    %v1228 = vrot.slane %v835, %v1227
    %v1230 = vunpack.c.l.s4 1983009808
    %v1231 = vunpack.c.0.s8 %v1230
    %v1232 = vlaneseq
    %v1233 = vshrl.u32 %v1232, 7
    %v1234 = vsub.s32 %v1231, %v1233
    %v1235 = vrot.slane %v1221, %v1234
    %v1236 = vcombine.high %v1228, %v1228
    %v1237 = vcombine.high %v1235, %v1235
    %v1238 = vcombine.high %v836, %v836
    %v1240 = vunpack.c.l.s4 1983009808
    %v1241 = vunpack.c.0.s8 %v1240
    %v1242 = vlaneseq
    %v1243 = vshrl.u32 %v1242, 7
    %v1244 = vsub.s32 %v1241, %v1243
    %v1245 = vrot.slane %v836, %v1244
    %v1247 = vunpack.c.l.s4 1983009808
    %v1248 = vunpack.c.0.s8 %v1247
    %v1249 = vlaneseq
    %v1250 = vshrl.u32 %v1249, 7
    %v1251 = vsub.s32 %v1248, %v1250
    %v1252 = vrot.slane %v1238, %v1251
    %v1253 = vcombine.high %v1245, %v1245
    %v1254 = vcombine.high %v1252, %v1252
    %v1255 = vcombine.high %v837, %v837
    %v1257 = vunpack.c.l.s4 1983009808
    %v1258 = vunpack.c.0.s8 %v1257
    %v1259 = vlaneseq
    %v1260 = vshrl.u32 %v1259, 7
    %v1261 = vsub.s32 %v1258, %v1260
    %v1262 = vrot.slane %v837, %v1261
    %v1264 = vunpack.c.l.s4 1983009808
    %v1265 = vunpack.c.0.s8 %v1264
    %v1266 = vlaneseq
    %v1267 = vshrl.u32 %v1266, 7
    %v1268 = vsub.s32 %v1265, %v1267
    %v1269 = vrot.slane %v1255, %v1268
    %v1270 = vcombine.high %v1262, %v1262
    %v1271 = vcombine.high %v1269, %v1269
    %v1272 = vcombine.high %v838, %v838
    %v1274 = vunpack.c.l.s4 1983009808
    %v1275 = vunpack.c.0.s8 %v1274
    %v1276 = vlaneseq
    %v1277 = vshrl.u32 %v1276, 7
    %v1278 = vsub.s32 %v1275, %v1277
    %v1279 = vrot.slane %v838, %v1278
    %v1281 = vunpack.c.l.s4 1983009808
    %v1282 = vunpack.c.0.s8 %v1281
    %v1283 = vlaneseq
    %v1284 = vshrl.u32 %v1283, 7
    %v1285 = vsub.s32 %v1282, %v1284
    %v1286 = vrot.slane %v1272, %v1285
    %v1287 = vcombine.high %v1279, %v1279
    %v1288 = vcombine.high %v1286, %v1286
    %v1289 = vcombine.high %v839, %v839
    %v1291 = vunpack.c.l.s4 1983009808
    %v1292 = vunpack.c.0.s8 %v1291
    %v1293 = vlaneseq
    %v1294 = vshrl.u32 %v1293, 7
    %v1295 = vsub.s32 %v1292, %v1294
    %v1296 = vrot.slane %v839, %v1295
    %v1298 = vunpack.c.l.s4 1983009808
    %v1299 = vunpack.c.0.s8 %v1298
    %v1300 = vlaneseq
    %v1301 = vshrl.u32 %v1300, 7
    %v1302 = vsub.s32 %v1299, %v1301
    %v1303 = vrot.slane %v1289, %v1302
    %v1304 = vcombine.high %v1296, %v1296
    %v1305 = vcombine.high %v1303, %v1303
    %v1306 = vcombine.high %v840, %v840
    %v1308 = vunpack.c.l.s4 1983009808
    %v1309 = vunpack.c.0.s8 %v1308
    %v1310 = vlaneseq
    %v1311 = vshrl.u32 %v1310, 7
    %v1312 = vsub.s32 %v1309, %v1311
    %v1313 = vrot.slane %v840, %v1312
    %v1315 = vunpack.c.l.s4 1983009808
    %v1316 = vunpack.c.0.s8 %v1315
    %v1317 = vlaneseq
    %v1318 = vshrl.u32 %v1317, 7
    %v1319 = vsub.s32 %v1316, %v1318
    %v1320 = vrot.slane %v1306, %v1319
    %v1321 = vcombine.high %v1313, %v1313
    %v1322 = vcombine.high %v1320, %v1320
    %v1323 = vcombine.high %v841, %v841
    %v1325 = vunpack.c.l.s4 1983009808
    %v1326 = vunpack.c.0.s8 %v1325
    %v1327 = vlaneseq
    %v1328 = vshrl.u32 %v1327, 7
    %v1329 = vsub.s32 %v1326, %v1328
    %v1330 = vrot.slane %v841, %v1329
    %v1332 = vunpack.c.l.s4 1983009808
    %v1333 = vunpack.c.0.s8 %v1332
    %v1334 = vlaneseq
    %v1335 = vshrl.u32 %v1334, 7
    %v1336 = vsub.s32 %v1333, %v1335
    %v1337 = vrot.slane %v1323, %v1336
    %v1338 = vcombine.high %v1330, %v1330
    %v1339 = vcombine.high %v1337, %v1337
    %v1340 = vcombine.high %v842, %v842
    %v1342 = vunpack.c.l.s4 1983009808
    %v1343 = vunpack.c.0.s8 %v1342
    %v1344 = vlaneseq
    %v1345 = vshrl.u32 %v1344, 7
    %v1346 = vsub.s32 %v1343, %v1345
    %v1347 = vrot.slane %v842, %v1346
    %v1349 = vunpack.c.l.s4 1983009808
    %v1350 = vunpack.c.0.s8 %v1349
    %v1351 = vlaneseq
    %v1352 = vshrl.u32 %v1351, 7
    %v1353 = vsub.s32 %v1350, %v1352
    %v1354 = vrot.slane %v1340, %v1353
    %v1355 = vcombine.high %v1347, %v1347
    %v1356 = vcombine.high %v1354, %v1354
    %v1357 = vcombine.high %v843, %v843
    %v1359 = vunpack.c.l.s4 1983009808
    %v1360 = vunpack.c.0.s8 %v1359
    %v1361 = vlaneseq
    %v1362 = vshrl.u32 %v1361, 7
    %v1363 = vsub.s32 %v1360, %v1362
    %v1364 = vrot.slane %v843, %v1363
    %v1366 = vunpack.c.l.s4 1983009808
    %v1367 = vunpack.c.0.s8 %v1366
    %v1368 = vlaneseq
    %v1369 = vshrl.u32 %v1368, 7
    %v1370 = vsub.s32 %v1367, %v1369
    %v1371 = vrot.slane %v1357, %v1370
    %v1372 = vcombine.high %v1364, %v1364
    %v1373 = vcombine.high %v1371, %v1371
    %v1374 = vcombine.high %v844, %v844
    %v1376 = vunpack.c.l.s4 1983009808
    %v1377 = vunpack.c.0.s8 %v1376
    %v1378 = vlaneseq
    %v1379 = vshrl.u32 %v1378, 7
    %v1380 = vsub.s32 %v1377, %v1379
    %v1381 = vrot.slane %v844, %v1380
    %v1383 = vunpack.c.l.s4 1983009808
    %v1384 = vunpack.c.0.s8 %v1383
    %v1385 = vlaneseq
    %v1386 = vshrl.u32 %v1385, 7
    %v1387 = vsub.s32 %v1384, %v1386
    %v1388 = vrot.slane %v1374, %v1387
    %v1389 = vcombine.high %v1381, %v1381
    %v1390 = vcombine.high %v1388, %v1388
    %v1391 = vcombine.high %v845, %v845
    %v1393 = vunpack.c.l.s4 1983009808
    %v1394 = vunpack.c.0.s8 %v1393
    %v1395 = vlaneseq
    %v1396 = vshrl.u32 %v1395, 7
    %v1397 = vsub.s32 %v1394, %v1396
    %v1398 = vrot.slane %v845, %v1397
    %v1400 = vunpack.c.l.s4 1983009808
    %v1401 = vunpack.c.0.s8 %v1400
    %v1402 = vlaneseq
    %v1403 = vshrl.u32 %v1402, 7
    %v1404 = vsub.s32 %v1401, %v1403
    %v1405 = vrot.slane %v1391, %v1404
    %v1406 = vcombine.high %v1398, %v1398
    %v1407 = vcombine.high %v1405, %v1405
    %v1408 = vcombine.high %v846, %v846
    %v1410 = vunpack.c.l.s4 1983009808
    %v1411 = vunpack.c.0.s8 %v1410
    %v1412 = vlaneseq
    %v1413 = vshrl.u32 %v1412, 7
    %v1414 = vsub.s32 %v1411, %v1413
    %v1415 = vrot.slane %v846, %v1414
    %v1417 = vunpack.c.l.s4 1983009808
    %v1418 = vunpack.c.0.s8 %v1417
    %v1419 = vlaneseq
    %v1420 = vshrl.u32 %v1419, 7
    %v1421 = vsub.s32 %v1418, %v1420
    %v1422 = vrot.slane %v1408, %v1421
    %v1423 = vcombine.high %v1415, %v1415
    %v1424 = vcombine.high %v1422, %v1422
    %v1425 = vcombine.high %v847, %v847
    %v1427 = vunpack.c.l.s4 1983009808
    %v1428 = vunpack.c.0.s8 %v1427
    %v1429 = vlaneseq
    %v1430 = vshrl.u32 %v1429, 7
    %v1431 = vsub.s32 %v1428, %v1430
    %v1432 = vrot.slane %v847, %v1431
    %v1434 = vunpack.c.l.s4 1983009808
    %v1435 = vunpack.c.0.s8 %v1434
    %v1436 = vlaneseq
    %v1437 = vshrl.u32 %v1436, 7
    %v1438 = vsub.s32 %v1435, %v1437
    %v1439 = vrot.slane %v1425, %v1438
    %v1440 = vcombine.high %v1432, %v1432
    %v1441 = vcombine.high %v1439, %v1439
    %v1442 = vcombine.high %v848, %v848
    %v1444 = vunpack.c.l.s4 1983009808
    %v1445 = vunpack.c.0.s8 %v1444
    %v1446 = vlaneseq
    %v1447 = vshrl.u32 %v1446, 7
    %v1448 = vsub.s32 %v1445, %v1447
    %v1449 = vrot.slane %v848, %v1448
    %v1451 = vunpack.c.l.s4 1983009808
    %v1452 = vunpack.c.0.s8 %v1451
    %v1453 = vlaneseq
    %v1454 = vshrl.u32 %v1453, 7
    %v1455 = vsub.s32 %v1452, %v1454
    %v1456 = vrot.slane %v1442, %v1455
    %v1457 = vcombine.high %v1449, %v1449
    %v1458 = vcombine.high %v1456, %v1456
    %v1459 = vcombine.high %v849, %v849
    %v1461 = vunpack.c.l.s4 1983009808
    %v1462 = vunpack.c.0.s8 %v1461
    %v1463 = vlaneseq
    %v1464 = vshrl.u32 %v1463, 7
    %v1465 = vsub.s32 %v1462, %v1464
    %v1466 = vrot.slane %v849, %v1465
    %v1468 = vunpack.c.l.s4 1983009808
    %v1469 = vunpack.c.0.s8 %v1468
    %v1470 = vlaneseq
    %v1471 = vshrl.u32 %v1470, 7
    %v1472 = vsub.s32 %v1469, %v1471
    %v1473 = vrot.slane %v1459, %v1472
    %v1474 = vcombine.high %v1466, %v1466
    %v1475 = vcombine.high %v1473, %v1473
    %v1476 = vcombine.high %v850, %v850
    %v1478 = vunpack.c.l.s4 1983009808
    %v1479 = vunpack.c.0.s8 %v1478
    %v1480 = vlaneseq
    %v1481 = vshrl.u32 %v1480, 7
    %v1482 = vsub.s32 %v1479, %v1481
    %v1483 = vrot.slane %v850, %v1482
    %v1485 = vunpack.c.l.s4 1983009808
    %v1486 = vunpack.c.0.s8 %v1485
    %v1487 = vlaneseq
    %v1488 = vshrl.u32 %v1487, 7
    %v1489 = vsub.s32 %v1486, %v1488
    %v1490 = vrot.slane %v1476, %v1489
    %v1491 = vcombine.high %v1483, %v1483
    %v1492 = vcombine.high %v1490, %v1490
    %v1493 = vcombine.high %v851, %v851
    %v1495 = vunpack.c.l.s4 1983009808
    %v1496 = vunpack.c.0.s8 %v1495
    %v1497 = vlaneseq
    %v1498 = vshrl.u32 %v1497, 7
    %v1499 = vsub.s32 %v1496, %v1498
    %v1500 = vrot.slane %v851, %v1499
    %v1502 = vunpack.c.l.s4 1983009808
    %v1503 = vunpack.c.0.s8 %v1502
    %v1504 = vlaneseq
    %v1505 = vshrl.u32 %v1504, 7
    %v1506 = vsub.s32 %v1503, %v1505
    %v1507 = vrot.slane %v1493, %v1506
    %v1508 = vcombine.high %v1500, %v1500
    %v1509 = vcombine.high %v1507, %v1507
    %v1510 = vcombine.high %v852, %v852
    %v1512 = vunpack.c.l.s4 1983009808
    %v1513 = vunpack.c.0.s8 %v1512
    %v1514 = vlaneseq
    %v1515 = vshrl.u32 %v1514, 7
    %v1516 = vsub.s32 %v1513, %v1515
    %v1517 = vrot.slane %v852, %v1516
    %v1519 = vunpack.c.l.s4 1983009808
    %v1520 = vunpack.c.0.s8 %v1519
    %v1521 = vlaneseq
    %v1522 = vshrl.u32 %v1521, 7
    %v1523 = vsub.s32 %v1520, %v1522
    %v1524 = vrot.slane %v1510, %v1523
    %v1525 = vcombine.high %v1517, %v1517
    %v1526 = vcombine.high %v1524, %v1524
    %v1527 = vcombine.high %v853, %v853
    %v1529 = vunpack.c.l.s4 1983009808
    %v1530 = vunpack.c.0.s8 %v1529
    %v1531 = vlaneseq
    %v1532 = vshrl.u32 %v1531, 7
    %v1533 = vsub.s32 %v1530, %v1532
    %v1534 = vrot.slane %v853, %v1533
    %v1536 = vunpack.c.l.s4 1983009808
    %v1537 = vunpack.c.0.s8 %v1536
    %v1538 = vlaneseq
    %v1539 = vshrl.u32 %v1538, 7
    %v1540 = vsub.s32 %v1537, %v1539
    %v1541 = vrot.slane %v1527, %v1540
    %v1542 = vcombine.high %v1534, %v1534
    %v1543 = vcombine.high %v1541, %v1541
    %v1544 = vcombine.high %v854, %v854
    %v1546 = vunpack.c.l.s4 1983009808
    %v1547 = vunpack.c.0.s8 %v1546
    %v1548 = vlaneseq
    %v1549 = vshrl.u32 %v1548, 7
    %v1550 = vsub.s32 %v1547, %v1549
    %v1551 = vrot.slane %v854, %v1550
    %v1553 = vunpack.c.l.s4 1983009808
    %v1554 = vunpack.c.0.s8 %v1553
    %v1555 = vlaneseq
    %v1556 = vshrl.u32 %v1555, 7
    %v1557 = vsub.s32 %v1554, %v1556
    %v1558 = vrot.slane %v1544, %v1557
    %v1559 = vcombine.high %v1551, %v1551
    %v1560 = vcombine.high %v1558, %v1558
    %v1561 = vcombine.high %v855, %v855
    %v1563 = vunpack.c.l.s4 1983009808
    %v1564 = vunpack.c.0.s8 %v1563
    %v1565 = vlaneseq
    %v1566 = vshrl.u32 %v1565, 7
    %v1567 = vsub.s32 %v1564, %v1566
    %v1568 = vrot.slane %v855, %v1567
    %v1570 = vunpack.c.l.s4 1983009808
    %v1571 = vunpack.c.0.s8 %v1570
    %v1572 = vlaneseq
    %v1573 = vshrl.u32 %v1572, 7
    %v1574 = vsub.s32 %v1571, %v1573
    %v1575 = vrot.slane %v1561, %v1574
    %v1576 = vcombine.high %v1568, %v1568
    %v1577 = vcombine.high %v1575, %v1575
    %v1578 = vcombine.high %v856, %v856
    %v1580 = vunpack.c.l.s4 1983009808
    %v1581 = vunpack.c.0.s8 %v1580
    %v1582 = vlaneseq
    %v1583 = vshrl.u32 %v1582, 7
    %v1584 = vsub.s32 %v1581, %v1583
    %v1585 = vrot.slane %v856, %v1584
    %v1587 = vunpack.c.l.s4 1983009808
    %v1588 = vunpack.c.0.s8 %v1587
    %v1589 = vlaneseq
    %v1590 = vshrl.u32 %v1589, 7
    %v1591 = vsub.s32 %v1588, %v1590
    %v1592 = vrot.slane %v1578, %v1591
    %v1593 = vcombine.high %v1585, %v1585
    %v1594 = vcombine.high %v1592, %v1592
    %v1595 = vcombine.high %v857, %v857
    %v1597 = vunpack.c.l.s4 1983009808
    %v1598 = vunpack.c.0.s8 %v1597
    %v1599 = vlaneseq
    %v1600 = vshrl.u32 %v1599, 7
    %v1601 = vsub.s32 %v1598, %v1600
    %v1602 = vrot.slane %v857, %v1601
    %v1604 = vunpack.c.l.s4 1983009808
    %v1605 = vunpack.c.0.s8 %v1604
    %v1606 = vlaneseq
    %v1607 = vshrl.u32 %v1606, 7
    %v1608 = vsub.s32 %v1605, %v1607
    %v1609 = vrot.slane %v1595, %v1608
    %v1610 = vcombine.high %v1602, %v1602
    %v1611 = vcombine.high %v1609, %v1609
    %v1612 = vcombine.high %v858, %v858
    %v1614 = vunpack.c.l.s4 1983009808
    %v1615 = vunpack.c.0.s8 %v1614
    %v1616 = vlaneseq
    %v1617 = vshrl.u32 %v1616, 7
    %v1618 = vsub.s32 %v1615, %v1617
    %v1619 = vrot.slane %v858, %v1618
    %v1621 = vunpack.c.l.s4 1983009808
    %v1622 = vunpack.c.0.s8 %v1621
    %v1623 = vlaneseq
    %v1624 = vshrl.u32 %v1623, 7
    %v1625 = vsub.s32 %v1622, %v1624
    %v1626 = vrot.slane %v1612, %v1625
    %v1627 = vcombine.high %v1619, %v1619
    %v1628 = vcombine.high %v1626, %v1626
    %v1629 = vcombine.high %v859, %v859
    %v1631 = vunpack.c.l.s4 1983009808
    %v1632 = vunpack.c.0.s8 %v1631
    %v1633 = vlaneseq
    %v1634 = vshrl.u32 %v1633, 7
    %v1635 = vsub.s32 %v1632, %v1634
    %v1636 = vrot.slane %v859, %v1635
    %v1638 = vunpack.c.l.s4 1983009808
    %v1639 = vunpack.c.0.s8 %v1638
    %v1640 = vlaneseq
    %v1641 = vshrl.u32 %v1640, 7
    %v1642 = vsub.s32 %v1639, %v1641
    %v1643 = vrot.slane %v1629, %v1642
    %v1644 = vcombine.high %v1636, %v1636
    %v1645 = vcombine.high %v1643, %v1643
    %v1646 = vcombine.high %v860, %v860
    %v1648 = vunpack.c.l.s4 1983009808
    %v1649 = vunpack.c.0.s8 %v1648
    %v1650 = vlaneseq
    %v1651 = vshrl.u32 %v1650, 7
    %v1652 = vsub.s32 %v1649, %v1651
    %v1653 = vrot.slane %v860, %v1652
    %v1655 = vunpack.c.l.s4 1983009808
    %v1656 = vunpack.c.0.s8 %v1655
    %v1657 = vlaneseq
    %v1658 = vshrl.u32 %v1657, 7
    %v1659 = vsub.s32 %v1656, %v1658
    %v1660 = vrot.slane %v1646, %v1659
    %v1661 = vcombine.high %v1653, %v1653
    %v1662 = vcombine.high %v1660, %v1660
    %v1663 = vcombine.high %v861, %v861
    %v1665 = vunpack.c.l.s4 1983009808
    %v1666 = vunpack.c.0.s8 %v1665
    %v1667 = vlaneseq
    %v1668 = vshrl.u32 %v1667, 7
    %v1669 = vsub.s32 %v1666, %v1668
    %v1670 = vrot.slane %v861, %v1669
    %v1672 = vunpack.c.l.s4 1983009808
    %v1673 = vunpack.c.0.s8 %v1672
    %v1674 = vlaneseq
    %v1675 = vshrl.u32 %v1674, 7
    %v1676 = vsub.s32 %v1673, %v1675
    %v1677 = vrot.slane %v1663, %v1676
    %v1678 = vcombine.high %v1670, %v1670
    %v1679 = vcombine.high %v1677, %v1677
    %v1680 = vcombine.high %v862, %v862
    %v1682 = vunpack.c.l.s4 1983009808
    %v1683 = vunpack.c.0.s8 %v1682
    %v1684 = vlaneseq
    %v1685 = vshrl.u32 %v1684, 7
    %v1686 = vsub.s32 %v1683, %v1685
    %v1687 = vrot.slane %v862, %v1686
    %v1689 = vunpack.c.l.s4 1983009808
    %v1690 = vunpack.c.0.s8 %v1689
    %v1691 = vlaneseq
    %v1692 = vshrl.u32 %v1691, 7
    %v1693 = vsub.s32 %v1690, %v1692
    %v1694 = vrot.slane %v1680, %v1693
    %v1695 = vcombine.high %v1687, %v1687
    %v1696 = vcombine.high %v1694, %v1694
    %v1697 = vcombine.high %v863, %v863
    %v1699 = vunpack.c.l.s4 1983009808
    %v1700 = vunpack.c.0.s8 %v1699
    %v1701 = vlaneseq
    %v1702 = vshrl.u32 %v1701, 7
    %v1703 = vsub.s32 %v1700, %v1702
    %v1704 = vrot.slane %v863, %v1703
    %v1706 = vunpack.c.l.s4 1983009808
    %v1707 = vunpack.c.0.s8 %v1706
    %v1708 = vlaneseq
    %v1709 = vshrl.u32 %v1708, 7
    %v1710 = vsub.s32 %v1707, %v1709
    %v1711 = vrot.slane %v1697, %v1710
    %v1712 = vcombine.high %v1704, %v1704
    %v1713 = vcombine.high %v1711, %v1711
    %v1714 = vcombine.high %v864, %v864
    %v1716 = vunpack.c.l.s4 1983009808
    %v1717 = vunpack.c.0.s8 %v1716
    %v1718 = vlaneseq
    %v1719 = vshrl.u32 %v1718, 7
    %v1720 = vsub.s32 %v1717, %v1719
    %v1721 = vrot.slane %v864, %v1720
    %v1723 = vunpack.c.l.s4 1983009808
    %v1724 = vunpack.c.0.s8 %v1723
    %v1725 = vlaneseq
    %v1726 = vshrl.u32 %v1725, 7
    %v1727 = vsub.s32 %v1724, %v1726
    %v1728 = vrot.slane %v1714, %v1727
    %v1729 = vcombine.high %v1721, %v1721
    %v1730 = vcombine.high %v1728, %v1728
    %v1731 = vcombine.high %v865, %v865
    %v1733 = vunpack.c.l.s4 1983009808
    %v1734 = vunpack.c.0.s8 %v1733
    %v1735 = vlaneseq
    %v1736 = vshrl.u32 %v1735, 7
    %v1737 = vsub.s32 %v1734, %v1736
    %v1738 = vrot.slane %v865, %v1737
    %v1740 = vunpack.c.l.s4 1983009808
    %v1741 = vunpack.c.0.s8 %v1740
    %v1742 = vlaneseq
    %v1743 = vshrl.u32 %v1742, 7
    %v1744 = vsub.s32 %v1741, %v1743
    %v1745 = vrot.slane %v1731, %v1744
    %v1746 = vcombine.high %v1738, %v1738
    %v1747 = vcombine.high %v1745, %v1745
    %v1748 = vcombine.high %v866, %v866
    %v1750 = vunpack.c.l.s4 1983009808
    %v1751 = vunpack.c.0.s8 %v1750
    %v1752 = vlaneseq
    %v1753 = vshrl.u32 %v1752, 7
    %v1754 = vsub.s32 %v1751, %v1753
    %v1755 = vrot.slane %v866, %v1754
    %v1757 = vunpack.c.l.s4 1983009808
    %v1758 = vunpack.c.0.s8 %v1757
    %v1759 = vlaneseq
    %v1760 = vshrl.u32 %v1759, 7
    %v1761 = vsub.s32 %v1758, %v1760
    %v1762 = vrot.slane %v1748, %v1761
    %v1763 = vcombine.high %v1755, %v1755
    %v1764 = vcombine.high %v1762, %v1762
    %v1765 = vcombine.high %v867, %v867
    %v1767 = vunpack.c.l.s4 1983009808
    %v1768 = vunpack.c.0.s8 %v1767
    %v1769 = vlaneseq
    %v1770 = vshrl.u32 %v1769, 7
    %v1771 = vsub.s32 %v1768, %v1770
    %v1772 = vrot.slane %v867, %v1771
    %v1774 = vunpack.c.l.s4 1983009808
    %v1775 = vunpack.c.0.s8 %v1774
    %v1776 = vlaneseq
    %v1777 = vshrl.u32 %v1776, 7
    %v1778 = vsub.s32 %v1775, %v1777
    %v1779 = vrot.slane %v1765, %v1778
    %v1780 = vcombine.high %v1772, %v1772
    %v1781 = vcombine.high %v1779, %v1779
    %v1782 = vcombine.high %v868, %v868
    %v1784 = vunpack.c.l.s4 1983009808
    %v1785 = vunpack.c.0.s8 %v1784
    %v1786 = vlaneseq
    %v1787 = vshrl.u32 %v1786, 7
    %v1788 = vsub.s32 %v1785, %v1787
    %v1789 = vrot.slane %v868, %v1788
    %v1791 = vunpack.c.l.s4 1983009808
    %v1792 = vunpack.c.0.s8 %v1791
    %v1793 = vlaneseq
    %v1794 = vshrl.u32 %v1793, 7
    %v1795 = vsub.s32 %v1792, %v1794
    %v1796 = vrot.slane %v1782, %v1795
    %v1797 = vcombine.high %v1789, %v1789
    %v1798 = vcombine.high %v1796, %v1796
    %v1799 = vcombine.high %v869, %v869
    %v1801 = vunpack.c.l.s4 1983009808
    %v1802 = vunpack.c.0.s8 %v1801
    %v1803 = vlaneseq
    %v1804 = vshrl.u32 %v1803, 7
    %v1805 = vsub.s32 %v1802, %v1804
    %v1806 = vrot.slane %v869, %v1805
    %v1808 = vunpack.c.l.s4 1983009808
    %v1809 = vunpack.c.0.s8 %v1808
    %v1810 = vlaneseq
    %v1811 = vshrl.u32 %v1810, 7
    %v1812 = vsub.s32 %v1809, %v1811
    %v1813 = vrot.slane %v1799, %v1812
    %v1814 = vcombine.high %v1806, %v1806
    %v1815 = vcombine.high %v1813, %v1813
    %v1816 = vcombine.high %v870, %v870
    %v1818 = vunpack.c.l.s4 1983009808
    %v1819 = vunpack.c.0.s8 %v1818
    %v1820 = vlaneseq
    %v1821 = vshrl.u32 %v1820, 7
    %v1822 = vsub.s32 %v1819, %v1821
    %v1823 = vrot.slane %v870, %v1822
    %v1825 = vunpack.c.l.s4 1983009808
    %v1826 = vunpack.c.0.s8 %v1825
    %v1827 = vlaneseq
    %v1828 = vshrl.u32 %v1827, 7
    %v1829 = vsub.s32 %v1826, %v1828
    %v1830 = vrot.slane %v1816, %v1829
    %v1831 = vcombine.high %v1823, %v1823
    %v1832 = vcombine.high %v1830, %v1830
    %v1833 = vcombine.high %v871, %v871
    %v1835 = vunpack.c.l.s4 1983009808
    %v1836 = vunpack.c.0.s8 %v1835
    %v1837 = vlaneseq
    %v1838 = vshrl.u32 %v1837, 7
    %v1839 = vsub.s32 %v1836, %v1838
    %v1840 = vrot.slane %v871, %v1839
    %v1842 = vunpack.c.l.s4 1983009808
    %v1843 = vunpack.c.0.s8 %v1842
    %v1844 = vlaneseq
    %v1845 = vshrl.u32 %v1844, 7
    %v1846 = vsub.s32 %v1843, %v1845
    %v1847 = vrot.slane %v1833, %v1846
    %v1848 = vcombine.high %v1840, %v1840
    %v1849 = vcombine.high %v1847, %v1847
    %v1850 = vcombine.high %v872, %v872
    %v1852 = vunpack.c.l.s4 1983009808
    %v1853 = vunpack.c.0.s8 %v1852
    %v1854 = vlaneseq
    %v1855 = vshrl.u32 %v1854, 7
    %v1856 = vsub.s32 %v1853, %v1855
    %v1857 = vrot.slane %v872, %v1856
    %v1859 = vunpack.c.l.s4 1983009808
    %v1860 = vunpack.c.0.s8 %v1859
    %v1861 = vlaneseq
    %v1862 = vshrl.u32 %v1861, 7
    %v1863 = vsub.s32 %v1860, %v1862
    %v1864 = vrot.slane %v1850, %v1863
    %v1865 = vcombine.high %v1857, %v1857
    %v1866 = vcombine.high %v1864, %v1864
    %v1867 = vcombine.high %v873, %v873
    %v1869 = vunpack.c.l.s4 1983009808
    %v1870 = vunpack.c.0.s8 %v1869
    %v1871 = vlaneseq
    %v1872 = vshrl.u32 %v1871, 7
    %v1873 = vsub.s32 %v1870, %v1872
    %v1874 = vrot.slane %v873, %v1873
    %v1876 = vunpack.c.l.s4 1983009808
    %v1877 = vunpack.c.0.s8 %v1876
    %v1878 = vlaneseq
    %v1879 = vshrl.u32 %v1878, 7
    %v1880 = vsub.s32 %v1877, %v1879
    %v1881 = vrot.slane %v1867, %v1880
    %v1882 = vcombine.high %v1874, %v1874
    %v1883 = vcombine.high %v1881, %v1881
    %v1884 = vcombine.high %v874, %v874
    %v1886 = vunpack.c.l.s4 1983009808
    %v1887 = vunpack.c.0.s8 %v1886
    %v1888 = vlaneseq
    %v1889 = vshrl.u32 %v1888, 7
    %v1890 = vsub.s32 %v1887, %v1889
    %v1891 = vrot.slane %v874, %v1890
    %v1893 = vunpack.c.l.s4 1983009808
    %v1894 = vunpack.c.0.s8 %v1893
    %v1895 = vlaneseq
    %v1896 = vshrl.u32 %v1895, 7
    %v1897 = vsub.s32 %v1894, %v1896
    %v1898 = vrot.slane %v1884, %v1897
    %v1899 = vcombine.high %v1891, %v1891
    %v1900 = vcombine.high %v1898, %v1898
    %v1901 = vcombine.high %v875, %v875
    %v1903 = vunpack.c.l.s4 1983009808
    %v1904 = vunpack.c.0.s8 %v1903
    %v1905 = vlaneseq
    %v1906 = vshrl.u32 %v1905, 7
    %v1907 = vsub.s32 %v1904, %v1906
    %v1908 = vrot.slane %v875, %v1907
    %v1910 = vunpack.c.l.s4 1983009808
    %v1911 = vunpack.c.0.s8 %v1910
    %v1912 = vlaneseq
    %v1913 = vshrl.u32 %v1912, 7
    %v1914 = vsub.s32 %v1911, %v1913
    %v1915 = vrot.slane %v1901, %v1914
    %v1916 = vcombine.high %v1908, %v1908
    %v1917 = vcombine.high %v1915, %v1915
    %v1918 = vcombine.high %v876, %v876
    %v1920 = vunpack.c.l.s4 1983009808
    %v1921 = vunpack.c.0.s8 %v1920
    %v1922 = vlaneseq
    %v1923 = vshrl.u32 %v1922, 7
    %v1924 = vsub.s32 %v1921, %v1923
    %v1925 = vrot.slane %v876, %v1924
    %v1927 = vunpack.c.l.s4 1983009808
    %v1928 = vunpack.c.0.s8 %v1927
    %v1929 = vlaneseq
    %v1930 = vshrl.u32 %v1929, 7
    %v1931 = vsub.s32 %v1928, %v1930
    %v1932 = vrot.slane %v1918, %v1931
    %v1933 = vcombine.high %v1925, %v1925
    %v1934 = vcombine.high %v1932, %v1932
    %v1935 = vcombine.high %v877, %v877
    %v1937 = vunpack.c.l.s4 1983009808
    %v1938 = vunpack.c.0.s8 %v1937
    %v1939 = vlaneseq
    %v1940 = vshrl.u32 %v1939, 7
    %v1941 = vsub.s32 %v1938, %v1940
    %v1942 = vrot.slane %v877, %v1941
    %v1944 = vunpack.c.l.s4 1983009808
    %v1945 = vunpack.c.0.s8 %v1944
    %v1946 = vlaneseq
    %v1947 = vshrl.u32 %v1946, 7
    %v1948 = vsub.s32 %v1945, %v1947
    %v1949 = vrot.slane %v1935, %v1948
    %v1950 = vcombine.high %v1942, %v1942
    %v1951 = vcombine.high %v1949, %v1949
    %v1952 = vcombine.high %v878, %v878
    %v1954 = vunpack.c.l.s4 1983009808
    %v1955 = vunpack.c.0.s8 %v1954
    %v1956 = vlaneseq
    %v1957 = vshrl.u32 %v1956, 7
    %v1958 = vsub.s32 %v1955, %v1957
    %v1959 = vrot.slane %v878, %v1958
    %v1961 = vunpack.c.l.s4 1983009808
    %v1962 = vunpack.c.0.s8 %v1961
    %v1963 = vlaneseq
    %v1964 = vshrl.u32 %v1963, 7
    %v1965 = vsub.s32 %v1962, %v1964
    %v1966 = vrot.slane %v1952, %v1965
    %v1967 = vcombine.high %v1959, %v1959
    %v1968 = vcombine.high %v1966, %v1966
    %v1969 = vcombine.high %v879, %v879
    %v1971 = vunpack.c.l.s4 1983009808
    %v1972 = vunpack.c.0.s8 %v1971
    %v1973 = vlaneseq
    %v1974 = vshrl.u32 %v1973, 7
    %v1975 = vsub.s32 %v1972, %v1974
    %v1976 = vrot.slane %v879, %v1975
    %v1978 = vunpack.c.l.s4 1983009808
    %v1979 = vunpack.c.0.s8 %v1978
    %v1980 = vlaneseq
    %v1981 = vshrl.u32 %v1980, 7
    %v1982 = vsub.s32 %v1979, %v1981
    %v1983 = vrot.slane %v1969, %v1982
    %v1984 = vcombine.high %v1976, %v1976
    %v1985 = vcombine.high %v1983, %v1983
    %v1986 = vcombine.high %v880, %v880
    %v1988 = vunpack.c.l.s4 1983009808
    %v1989 = vunpack.c.0.s8 %v1988
    %v1990 = vlaneseq
    %v1991 = vshrl.u32 %v1990, 7
    %v1992 = vsub.s32 %v1989, %v1991
    %v1993 = vrot.slane %v880, %v1992
    %v1995 = vunpack.c.l.s4 1983009808
    %v1996 = vunpack.c.0.s8 %v1995
    %v1997 = vlaneseq
    %v1998 = vshrl.u32 %v1997, 7
    %v1999 = vsub.s32 %v1996, %v1998
    %v2000 = vrot.slane %v1986, %v1999
    %v2001 = vcombine.high %v1993, %v1993
    %v2002 = vcombine.high %v2000, %v2000
    %v2003 = vcombine.high %v881, %v881
    %v2005 = vunpack.c.l.s4 1983009808
    %v2006 = vunpack.c.0.s8 %v2005
    %v2007 = vlaneseq
    %v2008 = vshrl.u32 %v2007, 7
    %v2009 = vsub.s32 %v2006, %v2008
    %v2010 = vrot.slane %v881, %v2009
    %v2012 = vunpack.c.l.s4 1983009808
    %v2013 = vunpack.c.0.s8 %v2012
    %v2014 = vlaneseq
    %v2015 = vshrl.u32 %v2014, 7
    %v2016 = vsub.s32 %v2013, %v2015
    %v2017 = vrot.slane %v2003, %v2016
    %v2018 = vcombine.high %v2010, %v2010
    %v2019 = vcombine.high %v2017, %v2017
    %v2020 = vcombine.high %v882, %v882
    %v2022 = vunpack.c.l.s4 1983009808
    %v2023 = vunpack.c.0.s8 %v2022
    %v2024 = vlaneseq
    %v2025 = vshrl.u32 %v2024, 7
    %v2026 = vsub.s32 %v2023, %v2025
    %v2027 = vrot.slane %v882, %v2026
    %v2029 = vunpack.c.l.s4 1983009808
    %v2030 = vunpack.c.0.s8 %v2029
    %v2031 = vlaneseq
    %v2032 = vshrl.u32 %v2031, 7
    %v2033 = vsub.s32 %v2030, %v2032
    %v2034 = vrot.slane %v2020, %v2033
    %v2035 = vcombine.high %v2027, %v2027
    %v2036 = vcombine.high %v2034, %v2034
    %v2037 = vcombine.high %v883, %v883
    %v2039 = vunpack.c.l.s4 1983009808
    %v2040 = vunpack.c.0.s8 %v2039
    %v2041 = vlaneseq
    %v2042 = vshrl.u32 %v2041, 7
    %v2043 = vsub.s32 %v2040, %v2042
    %v2044 = vrot.slane %v883, %v2043
    %v2046 = vunpack.c.l.s4 1983009808
    %v2047 = vunpack.c.0.s8 %v2046
    %v2048 = vlaneseq
    %v2049 = vshrl.u32 %v2048, 7
    %v2050 = vsub.s32 %v2047, %v2049
    %v2051 = vrot.slane %v2037, %v2050
    %v2052 = vcombine.high %v2044, %v2044
    %v2053 = vcombine.high %v2051, %v2051
    %v2054 = vcombine.high %v884, %v884
    %v2056 = vunpack.c.l.s4 1983009808
    %v2057 = vunpack.c.0.s8 %v2056
    %v2058 = vlaneseq
    %v2059 = vshrl.u32 %v2058, 7
    %v2060 = vsub.s32 %v2057, %v2059
    %v2061 = vrot.slane %v884, %v2060
    %v2063 = vunpack.c.l.s4 1983009808
    %v2064 = vunpack.c.0.s8 %v2063
    %v2065 = vlaneseq
    %v2066 = vshrl.u32 %v2065, 7
    %v2067 = vsub.s32 %v2064, %v2066
    %v2068 = vrot.slane %v2054, %v2067
    %v2069 = vcombine.high %v2061, %v2061
    %v2070 = vcombine.high %v2068, %v2068
    %v2071 = vcombine.high %v885, %v885
    %v2073 = vunpack.c.l.s4 1983009808
    %v2074 = vunpack.c.0.s8 %v2073
    %v2075 = vlaneseq
    %v2076 = vshrl.u32 %v2075, 7
    %v2077 = vsub.s32 %v2074, %v2076
    %v2078 = vrot.slane %v885, %v2077
    %v2080 = vunpack.c.l.s4 1983009808
    %v2081 = vunpack.c.0.s8 %v2080
    %v2082 = vlaneseq
    %v2083 = vshrl.u32 %v2082, 7
    %v2084 = vsub.s32 %v2081, %v2083
    %v2085 = vrot.slane %v2071, %v2084
    %v2086 = vcombine.high %v2078, %v2078
    %v2087 = vcombine.high %v2085, %v2085
    %v2088 = vcombine.high %v886, %v886
    %v2090 = vunpack.c.l.s4 1983009808
    %v2091 = vunpack.c.0.s8 %v2090
    %v2092 = vlaneseq
    %v2093 = vshrl.u32 %v2092, 7
    %v2094 = vsub.s32 %v2091, %v2093
    %v2095 = vrot.slane %v886, %v2094
    %v2097 = vunpack.c.l.s4 1983009808
    %v2098 = vunpack.c.0.s8 %v2097
    %v2099 = vlaneseq
    %v2100 = vshrl.u32 %v2099, 7
    %v2101 = vsub.s32 %v2098, %v2100
    %v2102 = vrot.slane %v2088, %v2101
    %v2103 = vcombine.high %v2095, %v2095
    %v2104 = vcombine.high %v2102, %v2102
    %v2105 = vcombine.high %v887, %v887
    %v2107 = vunpack.c.l.s4 1983009808
    %v2108 = vunpack.c.0.s8 %v2107
    %v2109 = vlaneseq
    %v2110 = vshrl.u32 %v2109, 7
    %v2111 = vsub.s32 %v2108, %v2110
    %v2112 = vrot.slane %v887, %v2111
    %v2114 = vunpack.c.l.s4 1983009808
    %v2115 = vunpack.c.0.s8 %v2114
    %v2116 = vlaneseq
    %v2117 = vshrl.u32 %v2116, 7
    %v2118 = vsub.s32 %v2115, %v2117
    %v2119 = vrot.slane %v2105, %v2118
    %v2120 = vcombine.high %v2112, %v2112
    %v2121 = vcombine.high %v2119, %v2119
    %v2122 = vcombine.high %v888, %v888
    %v2124 = vunpack.c.l.s4 1983009808
    %v2125 = vunpack.c.0.s8 %v2124
    %v2126 = vlaneseq
    %v2127 = vshrl.u32 %v2126, 7
    %v2128 = vsub.s32 %v2125, %v2127
    %v2129 = vrot.slane %v888, %v2128
    %v2131 = vunpack.c.l.s4 1983009808
    %v2132 = vunpack.c.0.s8 %v2131
    %v2133 = vlaneseq
    %v2134 = vshrl.u32 %v2133, 7
    %v2135 = vsub.s32 %v2132, %v2134
    %v2136 = vrot.slane %v2122, %v2135
    %v2137 = vcombine.high %v2129, %v2129
    %v2138 = vcombine.high %v2136, %v2136
    %v2139 = vcombine.high %v889, %v889
    %v2141 = vunpack.c.l.s4 1983009808
    %v2142 = vunpack.c.0.s8 %v2141
    %v2143 = vlaneseq
    %v2144 = vshrl.u32 %v2143, 7
    %v2145 = vsub.s32 %v2142, %v2144
    %v2146 = vrot.slane %v889, %v2145
    %v2148 = vunpack.c.l.s4 1983009808
    %v2149 = vunpack.c.0.s8 %v2148
    %v2150 = vlaneseq
    %v2151 = vshrl.u32 %v2150, 7
    %v2152 = vsub.s32 %v2149, %v2151
    %v2153 = vrot.slane %v2139, %v2152
    %v2154 = vcombine.high %v2146, %v2146
    %v2155 = vcombine.high %v2153, %v2153
    %v2156 = vcombine.high %v890, %v890
    %v2158 = vunpack.c.l.s4 1983009808
    %v2159 = vunpack.c.0.s8 %v2158
    %v2160 = vlaneseq
    %v2161 = vshrl.u32 %v2160, 7
    %v2162 = vsub.s32 %v2159, %v2161
    %v2163 = vrot.slane %v890, %v2162
    %v2165 = vunpack.c.l.s4 1983009808
    %v2166 = vunpack.c.0.s8 %v2165
    %v2167 = vlaneseq
    %v2168 = vshrl.u32 %v2167, 7
    %v2169 = vsub.s32 %v2166, %v2168
    %v2170 = vrot.slane %v2156, %v2169
    %v2171 = vcombine.high %v2163, %v2163
    %v2172 = vcombine.high %v2170, %v2170
    %v2173 = vcombine.high %v891, %v891
    %v2175 = vunpack.c.l.s4 1983009808
    %v2176 = vunpack.c.0.s8 %v2175
    %v2177 = vlaneseq
    %v2178 = vshrl.u32 %v2177, 7
    %v2179 = vsub.s32 %v2176, %v2178
    %v2180 = vrot.slane %v891, %v2179
    %v2182 = vunpack.c.l.s4 1983009808
    %v2183 = vunpack.c.0.s8 %v2182
    %v2184 = vlaneseq
    %v2185 = vshrl.u32 %v2184, 7
    %v2186 = vsub.s32 %v2183, %v2185
    %v2187 = vrot.slane %v2173, %v2186
    %v2188 = vcombine.high %v2180, %v2180
    %v2189 = vcombine.high %v2187, %v2187
    %v2190 = vcombine.high %v892, %v892
    %v2192 = vunpack.c.l.s4 1983009808
    %v2193 = vunpack.c.0.s8 %v2192
    %v2194 = vlaneseq
    %v2195 = vshrl.u32 %v2194, 7
    %v2196 = vsub.s32 %v2193, %v2195
    %v2197 = vrot.slane %v892, %v2196
    %v2199 = vunpack.c.l.s4 1983009808
    %v2200 = vunpack.c.0.s8 %v2199
    %v2201 = vlaneseq
    %v2202 = vshrl.u32 %v2201, 7
    %v2203 = vsub.s32 %v2200, %v2202
    %v2204 = vrot.slane %v2190, %v2203
    %v2205 = vcombine.high %v2197, %v2197
    %v2206 = vcombine.high %v2204, %v2204
    %v2207 = vcombine.high %v893, %v893
    %v2209 = vunpack.c.l.s4 1983009808
    %v2210 = vunpack.c.0.s8 %v2209
    %v2211 = vlaneseq
    %v2212 = vshrl.u32 %v2211, 7
    %v2213 = vsub.s32 %v2210, %v2212
    %v2214 = vrot.slane %v893, %v2213
    %v2216 = vunpack.c.l.s4 1983009808
    %v2217 = vunpack.c.0.s8 %v2216
    %v2218 = vlaneseq
    %v2219 = vshrl.u32 %v2218, 7
    %v2220 = vsub.s32 %v2217, %v2219
    %v2221 = vrot.slane %v2207, %v2220
    %v2222 = vcombine.high %v2214, %v2214
    %v2223 = vcombine.high %v2221, %v2221
    %v2224 = vcombine.high %v894, %v894
    %v2226 = vunpack.c.l.s4 1983009808
    %v2227 = vunpack.c.0.s8 %v2226
    %v2228 = vlaneseq
    %v2229 = vshrl.u32 %v2228, 7
    %v2230 = vsub.s32 %v2227, %v2229
    %v2231 = vrot.slane %v894, %v2230
    %v2233 = vunpack.c.l.s4 1983009808
    %v2234 = vunpack.c.0.s8 %v2233
    %v2235 = vlaneseq
    %v2236 = vshrl.u32 %v2235, 7
    %v2237 = vsub.s32 %v2234, %v2236
    %v2238 = vrot.slane %v2224, %v2237
    %v2239 = vcombine.high %v2231, %v2231
    %v2240 = vcombine.high %v2238, %v2238
    %v2241 = vcombine.high %v895, %v895
    %v2243 = vunpack.c.l.s4 1983009808
    %v2244 = vunpack.c.0.s8 %v2243
    %v2245 = vlaneseq
    %v2246 = vshrl.u32 %v2245, 7
    %v2247 = vsub.s32 %v2244, %v2246
    %v2248 = vrot.slane %v895, %v2247
    %v2250 = vunpack.c.l.s4 1983009808
    %v2251 = vunpack.c.0.s8 %v2250
    %v2252 = vlaneseq
    %v2253 = vshrl.u32 %v2252, 7
    %v2254 = vsub.s32 %v2251, %v2253
    %v2255 = vrot.slane %v2241, %v2254
    %v2256 = vcombine.high %v2248, %v2248
    %v2257 = vcombine.high %v2255, %v2255
    %v2258 = vcombine.high %v896, %v896
    %v2260 = vunpack.c.l.s4 1983009808
    %v2261 = vunpack.c.0.s8 %v2260
    %v2262 = vlaneseq
    %v2263 = vshrl.u32 %v2262, 7
    %v2264 = vsub.s32 %v2261, %v2263
    %v2265 = vrot.slane %v896, %v2264
    %v2267 = vunpack.c.l.s4 1983009808
    %v2268 = vunpack.c.0.s8 %v2267
    %v2269 = vlaneseq
    %v2270 = vshrl.u32 %v2269, 7
    %v2271 = vsub.s32 %v2268, %v2270
    %v2272 = vrot.slane %v2258, %v2271
    %v2273 = vcombine.high %v2265, %v2265
    %v2274 = vcombine.high %v2272, %v2272
    %v2275 = vcombine.high %v897, %v897
    %v2277 = vunpack.c.l.s4 1983009808
    %v2278 = vunpack.c.0.s8 %v2277
    %v2279 = vlaneseq
    %v2280 = vshrl.u32 %v2279, 7
    %v2281 = vsub.s32 %v2278, %v2280
    %v2282 = vrot.slane %v897, %v2281
    %v2284 = vunpack.c.l.s4 1983009808
    %v2285 = vunpack.c.0.s8 %v2284
    %v2286 = vlaneseq
    %v2287 = vshrl.u32 %v2286, 7
    %v2288 = vsub.s32 %v2285, %v2287
    %v2289 = vrot.slane %v2275, %v2288
    %v2290 = vcombine.high %v2282, %v2282
    %v2291 = vcombine.high %v2289, %v2289
    %v2292 = vcombine.high %v898, %v898
    %v2294 = vunpack.c.l.s4 1983009808
    %v2295 = vunpack.c.0.s8 %v2294
    %v2296 = vlaneseq
    %v2297 = vshrl.u32 %v2296, 7
    %v2298 = vsub.s32 %v2295, %v2297
    %v2299 = vrot.slane %v898, %v2298
    %v2301 = vunpack.c.l.s4 1983009808
    %v2302 = vunpack.c.0.s8 %v2301
    %v2303 = vlaneseq
    %v2304 = vshrl.u32 %v2303, 7
    %v2305 = vsub.s32 %v2302, %v2304
    %v2306 = vrot.slane %v2292, %v2305
    %v2307 = vcombine.high %v2299, %v2299
    %v2308 = vcombine.high %v2306, %v2306
    %v2309 = vcombine.high %v899, %v899
    %v2311 = vunpack.c.l.s4 1983009808
    %v2312 = vunpack.c.0.s8 %v2311
    %v2313 = vlaneseq
    %v2314 = vshrl.u32 %v2313, 7
    %v2315 = vsub.s32 %v2312, %v2314
    %v2316 = vrot.slane %v899, %v2315
    %v2318 = vunpack.c.l.s4 1983009808
    %v2319 = vunpack.c.0.s8 %v2318
    %v2320 = vlaneseq
    %v2321 = vshrl.u32 %v2320, 7
    %v2322 = vsub.s32 %v2319, %v2321
    %v2323 = vrot.slane %v2309, %v2322
    %v2324 = vcombine.high %v2316, %v2316
    %v2325 = vcombine.high %v2323, %v2323
    %v2326 = vcombine.high %v900, %v900
    %v2328 = vunpack.c.l.s4 1983009808
    %v2329 = vunpack.c.0.s8 %v2328
    %v2330 = vlaneseq
    %v2331 = vshrl.u32 %v2330, 7
    %v2332 = vsub.s32 %v2329, %v2331
    %v2333 = vrot.slane %v900, %v2332
    %v2335 = vunpack.c.l.s4 1983009808
    %v2336 = vunpack.c.0.s8 %v2335
    %v2337 = vlaneseq
    %v2338 = vshrl.u32 %v2337, 7
    %v2339 = vsub.s32 %v2336, %v2338
    %v2340 = vrot.slane %v2326, %v2339
    %v2341 = vcombine.high %v2333, %v2333
    %v2342 = vcombine.high %v2340, %v2340
    %v2343 = vcombine.high %v901, %v901
    %v2345 = vunpack.c.l.s4 1983009808
    %v2346 = vunpack.c.0.s8 %v2345
    %v2347 = vlaneseq
    %v2348 = vshrl.u32 %v2347, 7
    %v2349 = vsub.s32 %v2346, %v2348
    %v2350 = vrot.slane %v901, %v2349
    %v2352 = vunpack.c.l.s4 1983009808
    %v2353 = vunpack.c.0.s8 %v2352
    %v2354 = vlaneseq
    %v2355 = vshrl.u32 %v2354, 7
    %v2356 = vsub.s32 %v2353, %v2355
    %v2357 = vrot.slane %v2343, %v2356
    %v2358 = vcombine.high %v2350, %v2350
    %v2359 = vcombine.high %v2357, %v2357
    %v2360 = vlaneseq
    %v2361 = vshrl.u32 %v2360, 7
    %v2362 = vadd.s32 %v2361, 8
    %v2363 = vadd.s32 %v2361, 16
    %vm2364 = vcmp.ge.s32.totalorder %v2361, 1
    %vm2365 = vcmp.ge.s32.totalorder %v2362, 1
    %vm2366 = vcmp.ge.s32.totalorder %v2363, 1
    %vm2367 = vmand 0, %vm2364
    %vm2368 = vmand 0, %vm2365
    %vm2369 = vmand 0, %vm2366
    %vm2370 = vmand 1, %vm2364
    %vm2371 = vmand 1, %vm2365
    %vm2372 = vmand 1, %vm2366
    %vm2373 = vcmp.le.s32.totalorder %v2361, 16
    %vm2374 = vcmp.le.s32.totalorder %v2362, 16
    %vm2375 = vcmp.le.s32.totalorder %v2363, 16
    %vm2376 = vmand %vm2367, %vm2373
    %vm2377 = vmand %vm2368, %vm2374
    %vm2378 = vmand %vm2369, %vm2375
    %vm2379 = vmand %vm2370, %vm2373
    %vm2380 = vmand %vm2371, %vm2374
    %vm2381 = vmand %vm2372, %vm2375
    %v2382 = vsel %vm2376, 1, 0
    %v2383 = vsel %vm2377, 1, 0
    %v2384 = vsel %vm2378, 1, 0
    %v2385 = vsel %vm2379, 1, 0
    %v2386 = vsel %vm2380, 1, 0
    %v2387 = vsel %vm2381, 1, 0
    %vm2388 = vcmp.eq.s32.totalorder %v2382, 1
    %vm2389 = vcmp.eq.s32.totalorder %v2383, 1
    %vm2390 = vcmp.eq.s32.totalorder %v2384, 1
    %vm2391 = vcmp.eq.s32.totalorder %v2385, 1
    %vm2392 = vcmp.eq.s32.totalorder %v2386, 1
    %vm2393 = vcmp.eq.s32.totalorder %v2387, 1
    %v2394 = vcombine.low %v990, %v998
    %v2395 = vcombine.low %v997, %v999
    %v2397 = vunpack.c.l.s4 1983009808
    %v2398 = vunpack.c.0.s8 %v2397
    %v2399 = vlaneseq
    %v2400 = vshrl.u32 %v2399, 7
    %v2401 = vsub.s32 %v2398, %v2400
    %v2402 = vrot.slane %v2394, %v2401
    %v2404 = vunpack.c.l.s4 1983009808
    %v2405 = vunpack.c.0.s8 %v2404
    %v2406 = vlaneseq
    %v2407 = vshrl.u32 %v2406, 7
    %v2408 = vsub.s32 %v2405, %v2407
    %v2409 = vrot.slane %v2395, %v2408
    %v2410 = vcombine.low %v2402, %v2409
    %v2411 = vcombine.low %v1007, %v1015
    %v2412 = vcombine.low %v1014, %v1016
    %v2414 = vunpack.c.l.s4 1983009808
    %v2415 = vunpack.c.0.s8 %v2414
    %v2416 = vlaneseq
    %v2417 = vshrl.u32 %v2416, 7
    %v2418 = vsub.s32 %v2415, %v2417
    %v2419 = vrot.slane %v2411, %v2418
    %v2421 = vunpack.c.l.s4 1983009808
    %v2422 = vunpack.c.0.s8 %v2421
    %v2423 = vlaneseq
    %v2424 = vshrl.u32 %v2423, 7
    %v2425 = vsub.s32 %v2422, %v2424
    %v2426 = vrot.slane %v2412, %v2425
    %v2427 = vcombine.low %v2419, %v2426
    %v2429 = vunpack.c.l.s4 1983009808
    %v2430 = vunpack.c.0.s8 %v2429
    %v2431 = vlaneseq
    %v2432 = vshrl.u32 %v2431, 7
    %v2433 = vsub.s32 %v2430, %v2432
    %v2434 = vrot.slane %v1024, %v2433
    %v2435 = vcombine.low %v1032, %v1031
    %v2436 = vcombine.low %v1033, %v1041
    %v2438 = vunpack.c.l.s4 1983009808
    %v2439 = vunpack.c.0.s8 %v2438
    %v2440 = vlaneseq
    %v2441 = vshrl.u32 %v2440, 7
    %v2442 = vsub.s32 %v2439, %v2441
    %v2443 = vrot.slane %v2435, %v2442
    %v2445 = vunpack.c.l.s4 1983009808
    %v2446 = vunpack.c.0.s8 %v2445
    %v2447 = vlaneseq
    %v2448 = vshrl.u32 %v2447, 7
    %v2449 = vsub.s32 %v2446, %v2448
    %v2450 = vrot.slane %v2436, %v2449
    %v2451 = vcombine.low %v2443, %v2450
    %v2452 = vcombine.low %v1049, %v1048
    %v2453 = vcombine.low %v1050, %v1058
    %v2455 = vunpack.c.l.s4 1983009808
    %v2456 = vunpack.c.0.s8 %v2455
    %v2457 = vlaneseq
    %v2458 = vshrl.u32 %v2457, 7
    %v2459 = vsub.s32 %v2456, %v2458
    %v2460 = vrot.slane %v2452, %v2459
    %v2462 = vunpack.c.l.s4 1983009808
    %v2463 = vunpack.c.0.s8 %v2462
    %v2464 = vlaneseq
    %v2465 = vshrl.u32 %v2464, 7
    %v2466 = vsub.s32 %v2463, %v2465
    %v2467 = vrot.slane %v2453, %v2466
    %v2468 = vcombine.low %v2460, %v2467
    %v2470 = vunpack.c.l.s4 1983009808
    %v2471 = vunpack.c.0.s8 %v2470
    %v2472 = vlaneseq
    %v2473 = vshrl.u32 %v2472, 7
    %v2474 = vsub.s32 %v2471, %v2473
    %v2475 = vrot.slane %v1066, %v2474
    %v2476 = vcombine.low %v1065, %v1067
    %v2477 = vcombine.low %v1075, %v1083
    %v2479 = vunpack.c.l.s4 1983009808
    %v2480 = vunpack.c.0.s8 %v2479
    %v2481 = vlaneseq
    %v2482 = vshrl.u32 %v2481, 7
    %v2483 = vsub.s32 %v2480, %v2482
    %v2484 = vrot.slane %v2476, %v2483
    %v2486 = vunpack.c.l.s4 1983009808
    %v2487 = vunpack.c.0.s8 %v2486
    %v2488 = vlaneseq
    %v2489 = vshrl.u32 %v2488, 7
    %v2490 = vsub.s32 %v2487, %v2489
    %v2491 = vrot.slane %v2477, %v2490
    %v2492 = vcombine.low %v2484, %v2491
    %v2493 = vcombine.low %v1082, %v1084
    %v2494 = vcombine.low %v1092, %v1100
    %v2496 = vunpack.c.l.s4 1983009808
    %v2497 = vunpack.c.0.s8 %v2496
    %v2498 = vlaneseq
    %v2499 = vshrl.u32 %v2498, 7
    %v2500 = vsub.s32 %v2497, %v2499
    %v2501 = vrot.slane %v2493, %v2500
    %v2503 = vunpack.c.l.s4 1983009808
    %v2504 = vunpack.c.0.s8 %v2503
    %v2505 = vlaneseq
    %v2506 = vshrl.u32 %v2505, 7
    %v2507 = vsub.s32 %v2504, %v2506
    %v2508 = vrot.slane %v2494, %v2507
    %v2509 = vcombine.low %v2501, %v2508
    %v2511 = vunpack.c.l.s4 1983009808
    %v2512 = vunpack.c.0.s8 %v2511
    %v2513 = vlaneseq
    %v2514 = vshrl.u32 %v2513, 7
    %v2515 = vsub.s32 %v2512, %v2514
    %v2516 = vrot.slane %v1099, %v2515
    %v2517 = vcombine.low %v1101, %v1109
    %v2518 = vcombine.low %v1117, %v1116
    %v2520 = vunpack.c.l.s4 1983009808
    %v2521 = vunpack.c.0.s8 %v2520
    %v2522 = vlaneseq
    %v2523 = vshrl.u32 %v2522, 7
    %v2524 = vsub.s32 %v2521, %v2523
    %v2525 = vrot.slane %v2517, %v2524
    %v2527 = vunpack.c.l.s4 1983009808
    %v2528 = vunpack.c.0.s8 %v2527
    %v2529 = vlaneseq
    %v2530 = vshrl.u32 %v2529, 7
    %v2531 = vsub.s32 %v2528, %v2530
    %v2532 = vrot.slane %v2518, %v2531
    %v2533 = vcombine.low %v2525, %v2532
    %v2534 = vcombine.low %v1118, %v1126
    %v2535 = vcombine.low %v1134, %v1133
    %v2537 = vunpack.c.l.s4 1983009808
    %v2538 = vunpack.c.0.s8 %v2537
    %v2539 = vlaneseq
    %v2540 = vshrl.u32 %v2539, 7
    %v2541 = vsub.s32 %v2538, %v2540
    %v2542 = vrot.slane %v2534, %v2541
    %v2544 = vunpack.c.l.s4 1983009808
    %v2545 = vunpack.c.0.s8 %v2544
    %v2546 = vlaneseq
    %v2547 = vshrl.u32 %v2546, 7
    %v2548 = vsub.s32 %v2545, %v2547
    %v2549 = vrot.slane %v2535, %v2548
    %v2550 = vcombine.low %v2542, %v2549
    %v2552 = vunpack.c.l.s4 1983009808
    %v2553 = vunpack.c.0.s8 %v2552
    %v2554 = vlaneseq
    %v2555 = vshrl.u32 %v2554, 7
    %v2556 = vsub.s32 %v2553, %v2555
    %v2557 = vrot.slane %v1135, %v2556
    %v2558 = vcombine.low %v1143, %v1151
    %v2559 = vcombine.low %v1150, %v1152
    %v2561 = vunpack.c.l.s4 1983009808
    %v2562 = vunpack.c.0.s8 %v2561
    %v2563 = vlaneseq
    %v2564 = vshrl.u32 %v2563, 7
    %v2565 = vsub.s32 %v2562, %v2564
    %v2566 = vrot.slane %v2558, %v2565
    %v2568 = vunpack.c.l.s4 1983009808
    %v2569 = vunpack.c.0.s8 %v2568
    %v2570 = vlaneseq
    %v2571 = vshrl.u32 %v2570, 7
    %v2572 = vsub.s32 %v2569, %v2571
    %v2573 = vrot.slane %v2559, %v2572
    %v2574 = vcombine.low %v2566, %v2573
    %v2575 = vcombine.low %v1160, %v1168
    %v2576 = vcombine.low %v1167, %v1169
    %v2578 = vunpack.c.l.s4 1983009808
    %v2579 = vunpack.c.0.s8 %v2578
    %v2580 = vlaneseq
    %v2581 = vshrl.u32 %v2580, 7
    %v2582 = vsub.s32 %v2579, %v2581
    %v2583 = vrot.slane %v2575, %v2582
    %v2585 = vunpack.c.l.s4 1983009808
    %v2586 = vunpack.c.0.s8 %v2585
    %v2587 = vlaneseq
    %v2588 = vshrl.u32 %v2587, 7
    %v2589 = vsub.s32 %v2586, %v2588
    %v2590 = vrot.slane %v2576, %v2589
    %v2591 = vcombine.low %v2583, %v2590
    %v2593 = vunpack.c.l.s4 1983009808
    %v2594 = vunpack.c.0.s8 %v2593
    %v2595 = vlaneseq
    %v2596 = vshrl.u32 %v2595, 7
    %v2597 = vsub.s32 %v2594, %v2596
    %v2598 = vrot.slane %v1177, %v2597
    %v2599 = vcombine.low %v1185, %v1184
    %v2600 = vcombine.low %v1186, %v1194
    %v2602 = vunpack.c.l.s4 1983009808
    %v2603 = vunpack.c.0.s8 %v2602
    %v2604 = vlaneseq
    %v2605 = vshrl.u32 %v2604, 7
    %v2606 = vsub.s32 %v2603, %v2605
    %v2607 = vrot.slane %v2599, %v2606
    %v2609 = vunpack.c.l.s4 1983009808
    %v2610 = vunpack.c.0.s8 %v2609
    %v2611 = vlaneseq
    %v2612 = vshrl.u32 %v2611, 7
    %v2613 = vsub.s32 %v2610, %v2612
    %v2614 = vrot.slane %v2600, %v2613
    %v2615 = vcombine.low %v2607, %v2614
    %v2616 = vcombine.low %v1202, %v1201
    %v2617 = vcombine.low %v1203, %v1211
    %v2619 = vunpack.c.l.s4 1983009808
    %v2620 = vunpack.c.0.s8 %v2619
    %v2621 = vlaneseq
    %v2622 = vshrl.u32 %v2621, 7
    %v2623 = vsub.s32 %v2620, %v2622
    %v2624 = vrot.slane %v2616, %v2623
    %v2626 = vunpack.c.l.s4 1983009808
    %v2627 = vunpack.c.0.s8 %v2626
    %v2628 = vlaneseq
    %v2629 = vshrl.u32 %v2628, 7
    %v2630 = vsub.s32 %v2627, %v2629
    %v2631 = vrot.slane %v2617, %v2630
    %v2632 = vcombine.low %v2624, %v2631
    %v2634 = vunpack.c.l.s4 1983009808
    %v2635 = vunpack.c.0.s8 %v2634
    %v2636 = vlaneseq
    %v2637 = vshrl.u32 %v2636, 7
    %v2638 = vsub.s32 %v2635, %v2637
    %v2639 = vrot.slane %v1219, %v2638
    %v2640 = vcombine.low %v1218, %v1220
    %v2641 = vcombine.low %v1228, %v1236
    %v2643 = vunpack.c.l.s4 1983009808
    %v2644 = vunpack.c.0.s8 %v2643
    %v2645 = vlaneseq
    %v2646 = vshrl.u32 %v2645, 7
    %v2647 = vsub.s32 %v2644, %v2646
    %v2648 = vrot.slane %v2640, %v2647
    %v2650 = vunpack.c.l.s4 1983009808
    %v2651 = vunpack.c.0.s8 %v2650
    %v2652 = vlaneseq
    %v2653 = vshrl.u32 %v2652, 7
    %v2654 = vsub.s32 %v2651, %v2653
    %v2655 = vrot.slane %v2641, %v2654
    %v2656 = vcombine.low %v2648, %v2655
    %v2657 = vcombine.low %v1235, %v1237
    %v2658 = vcombine.low %v1245, %v1253
    %v2660 = vunpack.c.l.s4 1983009808
    %v2661 = vunpack.c.0.s8 %v2660
    %v2662 = vlaneseq
    %v2663 = vshrl.u32 %v2662, 7
    %v2664 = vsub.s32 %v2661, %v2663
    %v2665 = vrot.slane %v2657, %v2664
    %v2667 = vunpack.c.l.s4 1983009808
    %v2668 = vunpack.c.0.s8 %v2667
    %v2669 = vlaneseq
    %v2670 = vshrl.u32 %v2669, 7
    %v2671 = vsub.s32 %v2668, %v2670
    %v2672 = vrot.slane %v2658, %v2671
    %v2673 = vcombine.low %v2665, %v2672
    %v2675 = vunpack.c.l.s4 1983009808
    %v2676 = vunpack.c.0.s8 %v2675
    %v2677 = vlaneseq
    %v2678 = vshrl.u32 %v2677, 7
    %v2679 = vsub.s32 %v2676, %v2678
    %v2680 = vrot.slane %v1252, %v2679
    %v2681 = vcombine.low %v1254, %v1262
    %v2682 = vcombine.low %v1270, %v1269
    %v2684 = vunpack.c.l.s4 1983009808
    %v2685 = vunpack.c.0.s8 %v2684
    %v2686 = vlaneseq
    %v2687 = vshrl.u32 %v2686, 7
    %v2688 = vsub.s32 %v2685, %v2687
    %v2689 = vrot.slane %v2681, %v2688
    %v2691 = vunpack.c.l.s4 1983009808
    %v2692 = vunpack.c.0.s8 %v2691
    %v2693 = vlaneseq
    %v2694 = vshrl.u32 %v2693, 7
    %v2695 = vsub.s32 %v2692, %v2694
    %v2696 = vrot.slane %v2682, %v2695
    %v2697 = vcombine.low %v2689, %v2696
    %v2698 = vcombine.low %v1271, %v1279
    %v2699 = vcombine.low %v1287, %v1286
    %v2701 = vunpack.c.l.s4 1983009808
    %v2702 = vunpack.c.0.s8 %v2701
    %v2703 = vlaneseq
    %v2704 = vshrl.u32 %v2703, 7
    %v2705 = vsub.s32 %v2702, %v2704
    %v2706 = vrot.slane %v2698, %v2705
    %v2708 = vunpack.c.l.s4 1983009808
    %v2709 = vunpack.c.0.s8 %v2708
    %v2710 = vlaneseq
    %v2711 = vshrl.u32 %v2710, 7
    %v2712 = vsub.s32 %v2709, %v2711
    %v2713 = vrot.slane %v2699, %v2712
    %v2714 = vcombine.low %v2706, %v2713
    %v2716 = vunpack.c.l.s4 1983009808
    %v2717 = vunpack.c.0.s8 %v2716
    %v2718 = vlaneseq
    %v2719 = vshrl.u32 %v2718, 7
    %v2720 = vsub.s32 %v2717, %v2719
    %v2721 = vrot.slane %v1288, %v2720
    %v2722 = vcombine.low %v1296, %v1304
    %v2723 = vcombine.low %v1303, %v1305
    %v2725 = vunpack.c.l.s4 1983009808
    %v2726 = vunpack.c.0.s8 %v2725
    %v2727 = vlaneseq
    %v2728 = vshrl.u32 %v2727, 7
    %v2729 = vsub.s32 %v2726, %v2728
    %v2730 = vrot.slane %v2722, %v2729
    %v2732 = vunpack.c.l.s4 1983009808
    %v2733 = vunpack.c.0.s8 %v2732
    %v2734 = vlaneseq
    %v2735 = vshrl.u32 %v2734, 7
    %v2736 = vsub.s32 %v2733, %v2735
    %v2737 = vrot.slane %v2723, %v2736
    %v2738 = vcombine.low %v2730, %v2737
    %v2739 = vcombine.low %v1313, %v1321
    %v2740 = vcombine.low %v1320, %v1322
    %v2742 = vunpack.c.l.s4 1983009808
    %v2743 = vunpack.c.0.s8 %v2742
    %v2744 = vlaneseq
    %v2745 = vshrl.u32 %v2744, 7
    %v2746 = vsub.s32 %v2743, %v2745
    %v2747 = vrot.slane %v2739, %v2746
    %v2749 = vunpack.c.l.s4 1983009808
    %v2750 = vunpack.c.0.s8 %v2749
    %v2751 = vlaneseq
    %v2752 = vshrl.u32 %v2751, 7
    %v2753 = vsub.s32 %v2750, %v2752
    %v2754 = vrot.slane %v2740, %v2753
    %v2755 = vcombine.low %v2747, %v2754
    %v2757 = vunpack.c.l.s4 1983009808
    %v2758 = vunpack.c.0.s8 %v2757
    %v2759 = vlaneseq
    %v2760 = vshrl.u32 %v2759, 7
    %v2761 = vsub.s32 %v2758, %v2760
    %v2762 = vrot.slane %v1330, %v2761
    %v2763 = vcombine.low %v1338, %v1337
    %v2764 = vcombine.low %v1339, %v1347
    %v2766 = vunpack.c.l.s4 1983009808
    %v2767 = vunpack.c.0.s8 %v2766
    %v2768 = vlaneseq
    %v2769 = vshrl.u32 %v2768, 7
    %v2770 = vsub.s32 %v2767, %v2769
    %v2771 = vrot.slane %v2763, %v2770
    %v2773 = vunpack.c.l.s4 1983009808
    %v2774 = vunpack.c.0.s8 %v2773
    %v2775 = vlaneseq
    %v2776 = vshrl.u32 %v2775, 7
    %v2777 = vsub.s32 %v2774, %v2776
    %v2778 = vrot.slane %v2764, %v2777
    %v2779 = vcombine.low %v2771, %v2778
    %v2780 = vcombine.low %v1355, %v1354
    %v2781 = vcombine.low %v1356, %v1364
    %v2783 = vunpack.c.l.s4 1983009808
    %v2784 = vunpack.c.0.s8 %v2783
    %v2785 = vlaneseq
    %v2786 = vshrl.u32 %v2785, 7
    %v2787 = vsub.s32 %v2784, %v2786
    %v2788 = vrot.slane %v2780, %v2787
    %v2790 = vunpack.c.l.s4 1983009808
    %v2791 = vunpack.c.0.s8 %v2790
    %v2792 = vlaneseq
    %v2793 = vshrl.u32 %v2792, 7
    %v2794 = vsub.s32 %v2791, %v2793
    %v2795 = vrot.slane %v2781, %v2794
    %v2796 = vcombine.low %v2788, %v2795
    %v2798 = vunpack.c.l.s4 1983009808
    %v2799 = vunpack.c.0.s8 %v2798
    %v2800 = vlaneseq
    %v2801 = vshrl.u32 %v2800, 7
    %v2802 = vsub.s32 %v2799, %v2801
    %v2803 = vrot.slane %v1372, %v2802
    %v2804 = vcombine.low %v1371, %v1373
    %v2805 = vcombine.low %v1381, %v1389
    %v2807 = vunpack.c.l.s4 1983009808
    %v2808 = vunpack.c.0.s8 %v2807
    %v2809 = vlaneseq
    %v2810 = vshrl.u32 %v2809, 7
    %v2811 = vsub.s32 %v2808, %v2810
    %v2812 = vrot.slane %v2804, %v2811
    %v2814 = vunpack.c.l.s4 1983009808
    %v2815 = vunpack.c.0.s8 %v2814
    %v2816 = vlaneseq
    %v2817 = vshrl.u32 %v2816, 7
    %v2818 = vsub.s32 %v2815, %v2817
    %v2819 = vrot.slane %v2805, %v2818
    %v2820 = vcombine.low %v2812, %v2819
    %v2821 = vcombine.low %v1388, %v1390
    %v2822 = vcombine.low %v1398, %v1406
    %v2824 = vunpack.c.l.s4 1983009808
    %v2825 = vunpack.c.0.s8 %v2824
    %v2826 = vlaneseq
    %v2827 = vshrl.u32 %v2826, 7
    %v2828 = vsub.s32 %v2825, %v2827
    %v2829 = vrot.slane %v2821, %v2828
    %v2831 = vunpack.c.l.s4 1983009808
    %v2832 = vunpack.c.0.s8 %v2831
    %v2833 = vlaneseq
    %v2834 = vshrl.u32 %v2833, 7
    %v2835 = vsub.s32 %v2832, %v2834
    %v2836 = vrot.slane %v2822, %v2835
    %v2837 = vcombine.low %v2829, %v2836
    %v2839 = vunpack.c.l.s4 1983009808
    %v2840 = vunpack.c.0.s8 %v2839
    %v2841 = vlaneseq
    %v2842 = vshrl.u32 %v2841, 7
    %v2843 = vsub.s32 %v2840, %v2842
    %v2844 = vrot.slane %v1405, %v2843
    %v2845 = vcombine.low %v1407, %v1415
    %v2846 = vcombine.low %v1423, %v1422
    %v2848 = vunpack.c.l.s4 1983009808
    %v2849 = vunpack.c.0.s8 %v2848
    %v2850 = vlaneseq
    %v2851 = vshrl.u32 %v2850, 7
    %v2852 = vsub.s32 %v2849, %v2851
    %v2853 = vrot.slane %v2845, %v2852
    %v2855 = vunpack.c.l.s4 1983009808
    %v2856 = vunpack.c.0.s8 %v2855
    %v2857 = vlaneseq
    %v2858 = vshrl.u32 %v2857, 7
    %v2859 = vsub.s32 %v2856, %v2858
    %v2860 = vrot.slane %v2846, %v2859
    %v2861 = vcombine.low %v2853, %v2860
    %v2862 = vcombine.low %v1424, %v1432
    %v2863 = vcombine.low %v1440, %v1439
    %v2865 = vunpack.c.l.s4 1983009808
    %v2866 = vunpack.c.0.s8 %v2865
    %v2867 = vlaneseq
    %v2868 = vshrl.u32 %v2867, 7
    %v2869 = vsub.s32 %v2866, %v2868
    %v2870 = vrot.slane %v2862, %v2869
    %v2872 = vunpack.c.l.s4 1983009808
    %v2873 = vunpack.c.0.s8 %v2872
    %v2874 = vlaneseq
    %v2875 = vshrl.u32 %v2874, 7
    %v2876 = vsub.s32 %v2873, %v2875
    %v2877 = vrot.slane %v2863, %v2876
    %v2878 = vcombine.low %v2870, %v2877
    %v2880 = vunpack.c.l.s4 1983009808
    %v2881 = vunpack.c.0.s8 %v2880
    %v2882 = vlaneseq
    %v2883 = vshrl.u32 %v2882, 7
    %v2884 = vsub.s32 %v2881, %v2883
    %v2885 = vrot.slane %v1441, %v2884
    %v2886 = vcombine.low %v1449, %v1457
    %v2887 = vcombine.low %v1456, %v1458
    %v2889 = vunpack.c.l.s4 1983009808
    %v2890 = vunpack.c.0.s8 %v2889
    %v2891 = vlaneseq
    %v2892 = vshrl.u32 %v2891, 7
    %v2893 = vsub.s32 %v2890, %v2892
    %v2894 = vrot.slane %v2886, %v2893
    %v2896 = vunpack.c.l.s4 1983009808
    %v2897 = vunpack.c.0.s8 %v2896
    %v2898 = vlaneseq
    %v2899 = vshrl.u32 %v2898, 7
    %v2900 = vsub.s32 %v2897, %v2899
    %v2901 = vrot.slane %v2887, %v2900
    %v2902 = vcombine.low %v2894, %v2901
    %v2903 = vcombine.low %v1466, %v1474
    %v2904 = vcombine.low %v1473, %v1475
    %v2906 = vunpack.c.l.s4 1983009808
    %v2907 = vunpack.c.0.s8 %v2906
    %v2908 = vlaneseq
    %v2909 = vshrl.u32 %v2908, 7
    %v2910 = vsub.s32 %v2907, %v2909
    %v2911 = vrot.slane %v2903, %v2910
    %v2913 = vunpack.c.l.s4 1983009808
    %v2914 = vunpack.c.0.s8 %v2913
    %v2915 = vlaneseq
    %v2916 = vshrl.u32 %v2915, 7
    %v2917 = vsub.s32 %v2914, %v2916
    %v2918 = vrot.slane %v2904, %v2917
    %v2919 = vcombine.low %v2911, %v2918
    %v2921 = vunpack.c.l.s4 1983009808
    %v2922 = vunpack.c.0.s8 %v2921
    %v2923 = vlaneseq
    %v2924 = vshrl.u32 %v2923, 7
    %v2925 = vsub.s32 %v2922, %v2924
    %v2926 = vrot.slane %v1483, %v2925
    %v2927 = vcombine.low %v1491, %v1490
    %v2928 = vcombine.low %v1492, %v1500
    %v2930 = vunpack.c.l.s4 1983009808
    %v2931 = vunpack.c.0.s8 %v2930
    %v2932 = vlaneseq
    %v2933 = vshrl.u32 %v2932, 7
    %v2934 = vsub.s32 %v2931, %v2933
    %v2935 = vrot.slane %v2927, %v2934
    %v2937 = vunpack.c.l.s4 1983009808
    %v2938 = vunpack.c.0.s8 %v2937
    %v2939 = vlaneseq
    %v2940 = vshrl.u32 %v2939, 7
    %v2941 = vsub.s32 %v2938, %v2940
    %v2942 = vrot.slane %v2928, %v2941
    %v2943 = vcombine.low %v2935, %v2942
    %v2944 = vcombine.low %v1508, %v1507
    %v2945 = vcombine.low %v1509, %v1517
    %v2947 = vunpack.c.l.s4 1983009808
    %v2948 = vunpack.c.0.s8 %v2947
    %v2949 = vlaneseq
    %v2950 = vshrl.u32 %v2949, 7
    %v2951 = vsub.s32 %v2948, %v2950
    %v2952 = vrot.slane %v2944, %v2951
    %v2954 = vunpack.c.l.s4 1983009808
    %v2955 = vunpack.c.0.s8 %v2954
    %v2956 = vlaneseq
    %v2957 = vshrl.u32 %v2956, 7
    %v2958 = vsub.s32 %v2955, %v2957
    %v2959 = vrot.slane %v2945, %v2958
    %v2960 = vcombine.low %v2952, %v2959
    %v2962 = vunpack.c.l.s4 1983009808
    %v2963 = vunpack.c.0.s8 %v2962
    %v2964 = vlaneseq
    %v2965 = vshrl.u32 %v2964, 7
    %v2966 = vsub.s32 %v2963, %v2965
    %v2967 = vrot.slane %v1525, %v2966
    %v2968 = vcombine.low %v1524, %v1526
    %v2969 = vcombine.low %v1534, %v1542
    %v2971 = vunpack.c.l.s4 1983009808
    %v2972 = vunpack.c.0.s8 %v2971
    %v2973 = vlaneseq
    %v2974 = vshrl.u32 %v2973, 7
    %v2975 = vsub.s32 %v2972, %v2974
    %v2976 = vrot.slane %v2968, %v2975
    %v2978 = vunpack.c.l.s4 1983009808
    %v2979 = vunpack.c.0.s8 %v2978
    %v2980 = vlaneseq
    %v2981 = vshrl.u32 %v2980, 7
    %v2982 = vsub.s32 %v2979, %v2981
    %v2983 = vrot.slane %v2969, %v2982
    %v2984 = vcombine.low %v2976, %v2983
    %v2985 = vcombine.low %v1541, %v1543
    %v2986 = vcombine.low %v1551, %v1559
    %v2988 = vunpack.c.l.s4 1983009808
    %v2989 = vunpack.c.0.s8 %v2988
    %v2990 = vlaneseq
    %v2991 = vshrl.u32 %v2990, 7
    %v2992 = vsub.s32 %v2989, %v2991
    %v2993 = vrot.slane %v2985, %v2992
    %v2995 = vunpack.c.l.s4 1983009808
    %v2996 = vunpack.c.0.s8 %v2995
    %v2997 = vlaneseq
    %v2998 = vshrl.u32 %v2997, 7
    %v2999 = vsub.s32 %v2996, %v2998
    %v3000 = vrot.slane %v2986, %v2999
    %v3001 = vcombine.low %v2993, %v3000
    %v3003 = vunpack.c.l.s4 1983009808
    %v3004 = vunpack.c.0.s8 %v3003
    %v3005 = vlaneseq
    %v3006 = vshrl.u32 %v3005, 7
    %v3007 = vsub.s32 %v3004, %v3006
    %v3008 = vrot.slane %v1558, %v3007
    %v3009 = vcombine.low %v1560, %v1568
    %v3010 = vcombine.low %v1576, %v1575
    %v3012 = vunpack.c.l.s4 1983009808
    %v3013 = vunpack.c.0.s8 %v3012
    %v3014 = vlaneseq
    %v3015 = vshrl.u32 %v3014, 7
    %v3016 = vsub.s32 %v3013, %v3015
    %v3017 = vrot.slane %v3009, %v3016
    %v3019 = vunpack.c.l.s4 1983009808
    %v3020 = vunpack.c.0.s8 %v3019
    %v3021 = vlaneseq
    %v3022 = vshrl.u32 %v3021, 7
    %v3023 = vsub.s32 %v3020, %v3022
    %v3024 = vrot.slane %v3010, %v3023
    %v3025 = vcombine.low %v3017, %v3024
    %v3026 = vcombine.low %v1577, %v1585
    %v3027 = vcombine.low %v1593, %v1592
    %v3029 = vunpack.c.l.s4 1983009808
    %v3030 = vunpack.c.0.s8 %v3029
    %v3031 = vlaneseq
    %v3032 = vshrl.u32 %v3031, 7
    %v3033 = vsub.s32 %v3030, %v3032
    %v3034 = vrot.slane %v3026, %v3033
    %v3036 = vunpack.c.l.s4 1983009808
    %v3037 = vunpack.c.0.s8 %v3036
    %v3038 = vlaneseq
    %v3039 = vshrl.u32 %v3038, 7
    %v3040 = vsub.s32 %v3037, %v3039
    %v3041 = vrot.slane %v3027, %v3040
    %v3042 = vcombine.low %v3034, %v3041
    %v3044 = vunpack.c.l.s4 1983009808
    %v3045 = vunpack.c.0.s8 %v3044
    %v3046 = vlaneseq
    %v3047 = vshrl.u32 %v3046, 7
    %v3048 = vsub.s32 %v3045, %v3047
    %v3049 = vrot.slane %v1594, %v3048
    %v3050 = vcombine.low %v1602, %v1610
    %v3051 = vcombine.low %v1609, %v1611
    %v3053 = vunpack.c.l.s4 1983009808
    %v3054 = vunpack.c.0.s8 %v3053
    %v3055 = vlaneseq
    %v3056 = vshrl.u32 %v3055, 7
    %v3057 = vsub.s32 %v3054, %v3056
    %v3058 = vrot.slane %v3050, %v3057
    %v3060 = vunpack.c.l.s4 1983009808
    %v3061 = vunpack.c.0.s8 %v3060
    %v3062 = vlaneseq
    %v3063 = vshrl.u32 %v3062, 7
    %v3064 = vsub.s32 %v3061, %v3063
    %v3065 = vrot.slane %v3051, %v3064
    %v3066 = vcombine.low %v3058, %v3065
    %v3067 = vcombine.low %v1619, %v1627
    %v3068 = vcombine.low %v1626, %v1628
    %v3070 = vunpack.c.l.s4 1983009808
    %v3071 = vunpack.c.0.s8 %v3070
    %v3072 = vlaneseq
    %v3073 = vshrl.u32 %v3072, 7
    %v3074 = vsub.s32 %v3071, %v3073
    %v3075 = vrot.slane %v3067, %v3074
    %v3077 = vunpack.c.l.s4 1983009808
    %v3078 = vunpack.c.0.s8 %v3077
    %v3079 = vlaneseq
    %v3080 = vshrl.u32 %v3079, 7
    %v3081 = vsub.s32 %v3078, %v3080
    %v3082 = vrot.slane %v3068, %v3081
    %v3083 = vcombine.low %v3075, %v3082
    %v3085 = vunpack.c.l.s4 1983009808
    %v3086 = vunpack.c.0.s8 %v3085
    %v3087 = vlaneseq
    %v3088 = vshrl.u32 %v3087, 7
    %v3089 = vsub.s32 %v3086, %v3088
    %v3090 = vrot.slane %v1636, %v3089
    %v3091 = vcombine.low %v1644, %v1643
    %v3092 = vcombine.low %v1645, %v1653
    %v3094 = vunpack.c.l.s4 1983009808
    %v3095 = vunpack.c.0.s8 %v3094
    %v3096 = vlaneseq
    %v3097 = vshrl.u32 %v3096, 7
    %v3098 = vsub.s32 %v3095, %v3097
    %v3099 = vrot.slane %v3091, %v3098
    %v3101 = vunpack.c.l.s4 1983009808
    %v3102 = vunpack.c.0.s8 %v3101
    %v3103 = vlaneseq
    %v3104 = vshrl.u32 %v3103, 7
    %v3105 = vsub.s32 %v3102, %v3104
    %v3106 = vrot.slane %v3092, %v3105
    %v3107 = vcombine.low %v3099, %v3106
    %v3108 = vcombine.low %v1661, %v1660
    %v3109 = vcombine.low %v1662, %v1670
    %v3111 = vunpack.c.l.s4 1983009808
    %v3112 = vunpack.c.0.s8 %v3111
    %v3113 = vlaneseq
    %v3114 = vshrl.u32 %v3113, 7
    %v3115 = vsub.s32 %v3112, %v3114
    %v3116 = vrot.slane %v3108, %v3115
    %v3118 = vunpack.c.l.s4 1983009808
    %v3119 = vunpack.c.0.s8 %v3118
    %v3120 = vlaneseq
    %v3121 = vshrl.u32 %v3120, 7
    %v3122 = vsub.s32 %v3119, %v3121
    %v3123 = vrot.slane %v3109, %v3122
    %v3124 = vcombine.low %v3116, %v3123
    %v3126 = vunpack.c.l.s4 1983009808
    %v3127 = vunpack.c.0.s8 %v3126
    %v3128 = vlaneseq
    %v3129 = vshrl.u32 %v3128, 7
    %v3130 = vsub.s32 %v3127, %v3129
    %v3131 = vrot.slane %v1678, %v3130
    %v3132 = vcombine.low %v1677, %v1679
    %v3133 = vcombine.low %v1687, %v1695
    %v3135 = vunpack.c.l.s4 1983009808
    %v3136 = vunpack.c.0.s8 %v3135
    %v3137 = vlaneseq
    %v3138 = vshrl.u32 %v3137, 7
    %v3139 = vsub.s32 %v3136, %v3138
    %v3140 = vrot.slane %v3132, %v3139
    %v3142 = vunpack.c.l.s4 1983009808
    %v3143 = vunpack.c.0.s8 %v3142
    %v3144 = vlaneseq
    %v3145 = vshrl.u32 %v3144, 7
    %v3146 = vsub.s32 %v3143, %v3145
    %v3147 = vrot.slane %v3133, %v3146
    %v3148 = vcombine.low %v3140, %v3147
    %v3149 = vcombine.low %v1694, %v1696
    %v3150 = vcombine.low %v1704, %v1712
    %v3152 = vunpack.c.l.s4 1983009808
    %v3153 = vunpack.c.0.s8 %v3152
    %v3154 = vlaneseq
    %v3155 = vshrl.u32 %v3154, 7
    %v3156 = vsub.s32 %v3153, %v3155
    %v3157 = vrot.slane %v3149, %v3156
    %v3159 = vunpack.c.l.s4 1983009808
    %v3160 = vunpack.c.0.s8 %v3159
    %v3161 = vlaneseq
    %v3162 = vshrl.u32 %v3161, 7
    %v3163 = vsub.s32 %v3160, %v3162
    %v3164 = vrot.slane %v3150, %v3163
    %v3165 = vcombine.low %v3157, %v3164
    %v3167 = vunpack.c.l.s4 1983009808
    %v3168 = vunpack.c.0.s8 %v3167
    %v3169 = vlaneseq
    %v3170 = vshrl.u32 %v3169, 7
    %v3171 = vsub.s32 %v3168, %v3170
    %v3172 = vrot.slane %v1711, %v3171
    %v3173 = vcombine.low %v1713, %v1721
    %v3174 = vcombine.low %v1729, %v1728
    %v3176 = vunpack.c.l.s4 1983009808
    %v3177 = vunpack.c.0.s8 %v3176
    %v3178 = vlaneseq
    %v3179 = vshrl.u32 %v3178, 7
    %v3180 = vsub.s32 %v3177, %v3179
    %v3181 = vrot.slane %v3173, %v3180
    %v3183 = vunpack.c.l.s4 1983009808
    %v3184 = vunpack.c.0.s8 %v3183
    %v3185 = vlaneseq
    %v3186 = vshrl.u32 %v3185, 7
    %v3187 = vsub.s32 %v3184, %v3186
    %v3188 = vrot.slane %v3174, %v3187
    %v3189 = vcombine.low %v3181, %v3188
    %v3190 = vcombine.low %v1730, %v1738
    %v3191 = vcombine.low %v1746, %v1745
    %v3193 = vunpack.c.l.s4 1983009808
    %v3194 = vunpack.c.0.s8 %v3193
    %v3195 = vlaneseq
    %v3196 = vshrl.u32 %v3195, 7
    %v3197 = vsub.s32 %v3194, %v3196
    %v3198 = vrot.slane %v3190, %v3197
    %v3200 = vunpack.c.l.s4 1983009808
    %v3201 = vunpack.c.0.s8 %v3200
    %v3202 = vlaneseq
    %v3203 = vshrl.u32 %v3202, 7
    %v3204 = vsub.s32 %v3201, %v3203
    %v3205 = vrot.slane %v3191, %v3204
    %v3206 = vcombine.low %v3198, %v3205
    %v3208 = vunpack.c.l.s4 1983009808
    %v3209 = vunpack.c.0.s8 %v3208
    %v3210 = vlaneseq
    %v3211 = vshrl.u32 %v3210, 7
    %v3212 = vsub.s32 %v3209, %v3211
    %v3213 = vrot.slane %v1747, %v3212
    %v3214 = vcombine.low %v1755, %v1763
    %v3215 = vcombine.low %v1762, %v1764
    %v3217 = vunpack.c.l.s4 1983009808
    %v3218 = vunpack.c.0.s8 %v3217
    %v3219 = vlaneseq
    %v3220 = vshrl.u32 %v3219, 7
    %v3221 = vsub.s32 %v3218, %v3220
    %v3222 = vrot.slane %v3214, %v3221
    %v3224 = vunpack.c.l.s4 1983009808
    %v3225 = vunpack.c.0.s8 %v3224
    %v3226 = vlaneseq
    %v3227 = vshrl.u32 %v3226, 7
    %v3228 = vsub.s32 %v3225, %v3227
    %v3229 = vrot.slane %v3215, %v3228
    %v3230 = vcombine.low %v3222, %v3229
    %v3231 = vcombine.low %v1772, %v1780
    %v3232 = vcombine.low %v1779, %v1781
    %v3234 = vunpack.c.l.s4 1983009808
    %v3235 = vunpack.c.0.s8 %v3234
    %v3236 = vlaneseq
    %v3237 = vshrl.u32 %v3236, 7
    %v3238 = vsub.s32 %v3235, %v3237
    %v3239 = vrot.slane %v3231, %v3238
    %v3241 = vunpack.c.l.s4 1983009808
    %v3242 = vunpack.c.0.s8 %v3241
    %v3243 = vlaneseq
    %v3244 = vshrl.u32 %v3243, 7
    %v3245 = vsub.s32 %v3242, %v3244
    %v3246 = vrot.slane %v3232, %v3245
    %v3247 = vcombine.low %v3239, %v3246
    %v3249 = vunpack.c.l.s4 1983009808
    %v3250 = vunpack.c.0.s8 %v3249
    %v3251 = vlaneseq
    %v3252 = vshrl.u32 %v3251, 7
    %v3253 = vsub.s32 %v3250, %v3252
    %v3254 = vrot.slane %v1789, %v3253
    %v3255 = vcombine.low %v1797, %v1796
    %v3256 = vcombine.low %v1798, %v1806
    %v3258 = vunpack.c.l.s4 1983009808
    %v3259 = vunpack.c.0.s8 %v3258
    %v3260 = vlaneseq
    %v3261 = vshrl.u32 %v3260, 7
    %v3262 = vsub.s32 %v3259, %v3261
    %v3263 = vrot.slane %v3255, %v3262
    %v3265 = vunpack.c.l.s4 1983009808
    %v3266 = vunpack.c.0.s8 %v3265
    %v3267 = vlaneseq
    %v3268 = vshrl.u32 %v3267, 7
    %v3269 = vsub.s32 %v3266, %v3268
    %v3270 = vrot.slane %v3256, %v3269
    %v3271 = vcombine.low %v3263, %v3270
    %v3272 = vcombine.low %v1814, %v1813
    %v3273 = vcombine.low %v1815, %v1823
    %v3275 = vunpack.c.l.s4 1983009808
    %v3276 = vunpack.c.0.s8 %v3275
    %v3277 = vlaneseq
    %v3278 = vshrl.u32 %v3277, 7
    %v3279 = vsub.s32 %v3276, %v3278
    %v3280 = vrot.slane %v3272, %v3279
    %v3282 = vunpack.c.l.s4 1983009808
    %v3283 = vunpack.c.0.s8 %v3282
    %v3284 = vlaneseq
    %v3285 = vshrl.u32 %v3284, 7
    %v3286 = vsub.s32 %v3283, %v3285
    %v3287 = vrot.slane %v3273, %v3286
    %v3288 = vcombine.low %v3280, %v3287
    %v3290 = vunpack.c.l.s4 1983009808
    %v3291 = vunpack.c.0.s8 %v3290
    %v3292 = vlaneseq
    %v3293 = vshrl.u32 %v3292, 7
    %v3294 = vsub.s32 %v3291, %v3293
    %v3295 = vrot.slane %v1831, %v3294
    %v3296 = vcombine.low %v1830, %v1832
    %v3297 = vcombine.low %v1840, %v1848
    %v3299 = vunpack.c.l.s4 1983009808
    %v3300 = vunpack.c.0.s8 %v3299
    %v3301 = vlaneseq
    %v3302 = vshrl.u32 %v3301, 7
    %v3303 = vsub.s32 %v3300, %v3302
    %v3304 = vrot.slane %v3296, %v3303
    %v3306 = vunpack.c.l.s4 1983009808
    %v3307 = vunpack.c.0.s8 %v3306
    %v3308 = vlaneseq
    %v3309 = vshrl.u32 %v3308, 7
    %v3310 = vsub.s32 %v3307, %v3309
    %v3311 = vrot.slane %v3297, %v3310
    %v3312 = vcombine.low %v3304, %v3311
    %v3313 = vcombine.low %v1847, %v1849
    %v3314 = vcombine.low %v1857, %v1865
    %v3316 = vunpack.c.l.s4 1983009808
    %v3317 = vunpack.c.0.s8 %v3316
    %v3318 = vlaneseq
    %v3319 = vshrl.u32 %v3318, 7
    %v3320 = vsub.s32 %v3317, %v3319
    %v3321 = vrot.slane %v3313, %v3320
    %v3323 = vunpack.c.l.s4 1983009808
    %v3324 = vunpack.c.0.s8 %v3323
    %v3325 = vlaneseq
    %v3326 = vshrl.u32 %v3325, 7
    %v3327 = vsub.s32 %v3324, %v3326
    %v3328 = vrot.slane %v3314, %v3327
    %v3329 = vcombine.low %v3321, %v3328
    %v3331 = vunpack.c.l.s4 1983009808
    %v3332 = vunpack.c.0.s8 %v3331
    %v3333 = vlaneseq
    %v3334 = vshrl.u32 %v3333, 7
    %v3335 = vsub.s32 %v3332, %v3334
    %v3336 = vrot.slane %v1864, %v3335
    %v3337 = vcombine.low %v1866, %v1874
    %v3338 = vcombine.low %v1882, %v1881
    %v3340 = vunpack.c.l.s4 1983009808
    %v3341 = vunpack.c.0.s8 %v3340
    %v3342 = vlaneseq
    %v3343 = vshrl.u32 %v3342, 7
    %v3344 = vsub.s32 %v3341, %v3343
    %v3345 = vrot.slane %v3337, %v3344
    %v3347 = vunpack.c.l.s4 1983009808
    %v3348 = vunpack.c.0.s8 %v3347
    %v3349 = vlaneseq
    %v3350 = vshrl.u32 %v3349, 7
    %v3351 = vsub.s32 %v3348, %v3350
    %v3352 = vrot.slane %v3338, %v3351
    %v3353 = vcombine.low %v3345, %v3352
    %v3354 = vcombine.low %v1883, %v1891
    %v3355 = vcombine.low %v1899, %v1898
    %v3357 = vunpack.c.l.s4 1983009808
    %v3358 = vunpack.c.0.s8 %v3357
    %v3359 = vlaneseq
    %v3360 = vshrl.u32 %v3359, 7
    %v3361 = vsub.s32 %v3358, %v3360
    %v3362 = vrot.slane %v3354, %v3361
    %v3364 = vunpack.c.l.s4 1983009808
    %v3365 = vunpack.c.0.s8 %v3364
    %v3366 = vlaneseq
    %v3367 = vshrl.u32 %v3366, 7
    %v3368 = vsub.s32 %v3365, %v3367
    %v3369 = vrot.slane %v3355, %v3368
    %v3370 = vcombine.low %v3362, %v3369
    %v3372 = vunpack.c.l.s4 1983009808
    %v3373 = vunpack.c.0.s8 %v3372
    %v3374 = vlaneseq
    %v3375 = vshrl.u32 %v3374, 7
    %v3376 = vsub.s32 %v3373, %v3375
    %v3377 = vrot.slane %v1900, %v3376
    %v3378 = vcombine.low %v1908, %v1916
    %v3379 = vcombine.low %v1915, %v1917
    %v3381 = vunpack.c.l.s4 1983009808
    %v3382 = vunpack.c.0.s8 %v3381
    %v3383 = vlaneseq
    %v3384 = vshrl.u32 %v3383, 7
    %v3385 = vsub.s32 %v3382, %v3384
    %v3386 = vrot.slane %v3378, %v3385
    %v3388 = vunpack.c.l.s4 1983009808
    %v3389 = vunpack.c.0.s8 %v3388
    %v3390 = vlaneseq
    %v3391 = vshrl.u32 %v3390, 7
    %v3392 = vsub.s32 %v3389, %v3391
    %v3393 = vrot.slane %v3379, %v3392
    %v3394 = vcombine.low %v3386, %v3393
    %v3395 = vcombine.low %v1925, %v1933
    %v3396 = vcombine.low %v1932, %v1934
    %v3398 = vunpack.c.l.s4 1983009808
    %v3399 = vunpack.c.0.s8 %v3398
    %v3400 = vlaneseq
    %v3401 = vshrl.u32 %v3400, 7
    %v3402 = vsub.s32 %v3399, %v3401
    %v3403 = vrot.slane %v3395, %v3402
    %v3405 = vunpack.c.l.s4 1983009808
    %v3406 = vunpack.c.0.s8 %v3405
    %v3407 = vlaneseq
    %v3408 = vshrl.u32 %v3407, 7
    %v3409 = vsub.s32 %v3406, %v3408
    %v3410 = vrot.slane %v3396, %v3409
    %v3411 = vcombine.low %v3403, %v3410
    %v3413 = vunpack.c.l.s4 1983009808
    %v3414 = vunpack.c.0.s8 %v3413
    %v3415 = vlaneseq
    %v3416 = vshrl.u32 %v3415, 7
    %v3417 = vsub.s32 %v3414, %v3416
    %v3418 = vrot.slane %v1942, %v3417
    %v3419 = vcombine.low %v1950, %v1949
    %v3420 = vcombine.low %v1951, %v1959
    %v3422 = vunpack.c.l.s4 1983009808
    %v3423 = vunpack.c.0.s8 %v3422
    %v3424 = vlaneseq
    %v3425 = vshrl.u32 %v3424, 7
    %v3426 = vsub.s32 %v3423, %v3425
    %v3427 = vrot.slane %v3419, %v3426
    %v3429 = vunpack.c.l.s4 1983009808
    %v3430 = vunpack.c.0.s8 %v3429
    %v3431 = vlaneseq
    %v3432 = vshrl.u32 %v3431, 7
    %v3433 = vsub.s32 %v3430, %v3432
    %v3434 = vrot.slane %v3420, %v3433
    %v3435 = vcombine.low %v3427, %v3434
    %v3436 = vcombine.low %v1967, %v1966
    %v3437 = vcombine.low %v1968, %v1976
    %v3439 = vunpack.c.l.s4 1983009808
    %v3440 = vunpack.c.0.s8 %v3439
    %v3441 = vlaneseq
    %v3442 = vshrl.u32 %v3441, 7
    %v3443 = vsub.s32 %v3440, %v3442
    %v3444 = vrot.slane %v3436, %v3443
    %v3446 = vunpack.c.l.s4 1983009808
    %v3447 = vunpack.c.0.s8 %v3446
    %v3448 = vlaneseq
    %v3449 = vshrl.u32 %v3448, 7
    %v3450 = vsub.s32 %v3447, %v3449
    %v3451 = vrot.slane %v3437, %v3450
    %v3452 = vcombine.low %v3444, %v3451
    %v3454 = vunpack.c.l.s4 1983009808
    %v3455 = vunpack.c.0.s8 %v3454
    %v3456 = vlaneseq
    %v3457 = vshrl.u32 %v3456, 7
    %v3458 = vsub.s32 %v3455, %v3457
    %v3459 = vrot.slane %v1984, %v3458
    %v3460 = vcombine.low %v1983, %v1985
    %v3461 = vcombine.low %v1993, %v2001
    %v3463 = vunpack.c.l.s4 1983009808
    %v3464 = vunpack.c.0.s8 %v3463
    %v3465 = vlaneseq
    %v3466 = vshrl.u32 %v3465, 7
    %v3467 = vsub.s32 %v3464, %v3466
    %v3468 = vrot.slane %v3460, %v3467
    %v3470 = vunpack.c.l.s4 1983009808
    %v3471 = vunpack.c.0.s8 %v3470
    %v3472 = vlaneseq
    %v3473 = vshrl.u32 %v3472, 7
    %v3474 = vsub.s32 %v3471, %v3473
    %v3475 = vrot.slane %v3461, %v3474
    %v3476 = vcombine.low %v3468, %v3475
    %v3477 = vcombine.low %v2000, %v2002
    %v3478 = vcombine.low %v2010, %v2018
    %v3480 = vunpack.c.l.s4 1983009808
    %v3481 = vunpack.c.0.s8 %v3480
    %v3482 = vlaneseq
    %v3483 = vshrl.u32 %v3482, 7
    %v3484 = vsub.s32 %v3481, %v3483
    %v3485 = vrot.slane %v3477, %v3484
    %v3487 = vunpack.c.l.s4 1983009808
    %v3488 = vunpack.c.0.s8 %v3487
    %v3489 = vlaneseq
    %v3490 = vshrl.u32 %v3489, 7
    %v3491 = vsub.s32 %v3488, %v3490
    %v3492 = vrot.slane %v3478, %v3491
    %v3493 = vcombine.low %v3485, %v3492
    %v3495 = vunpack.c.l.s4 1983009808
    %v3496 = vunpack.c.0.s8 %v3495
    %v3497 = vlaneseq
    %v3498 = vshrl.u32 %v3497, 7
    %v3499 = vsub.s32 %v3496, %v3498
    %v3500 = vrot.slane %v2017, %v3499
    %v3501 = vcombine.low %v2019, %v2027
    %v3502 = vcombine.low %v2035, %v2034
    %v3504 = vunpack.c.l.s4 1983009808
    %v3505 = vunpack.c.0.s8 %v3504
    %v3506 = vlaneseq
    %v3507 = vshrl.u32 %v3506, 7
    %v3508 = vsub.s32 %v3505, %v3507
    %v3509 = vrot.slane %v3501, %v3508
    %v3511 = vunpack.c.l.s4 1983009808
    %v3512 = vunpack.c.0.s8 %v3511
    %v3513 = vlaneseq
    %v3514 = vshrl.u32 %v3513, 7
    %v3515 = vsub.s32 %v3512, %v3514
    %v3516 = vrot.slane %v3502, %v3515
    %v3517 = vcombine.low %v3509, %v3516
    %v3518 = vcombine.low %v2036, %v2044
    %v3519 = vcombine.low %v2052, %v2051
    %v3521 = vunpack.c.l.s4 1983009808
    %v3522 = vunpack.c.0.s8 %v3521
    %v3523 = vlaneseq
    %v3524 = vshrl.u32 %v3523, 7
    %v3525 = vsub.s32 %v3522, %v3524
    %v3526 = vrot.slane %v3518, %v3525
    %v3528 = vunpack.c.l.s4 1983009808
    %v3529 = vunpack.c.0.s8 %v3528
    %v3530 = vlaneseq
    %v3531 = vshrl.u32 %v3530, 7
    %v3532 = vsub.s32 %v3529, %v3531
    %v3533 = vrot.slane %v3519, %v3532
    %v3534 = vcombine.low %v3526, %v3533
    %v3536 = vunpack.c.l.s4 1983009808
    %v3537 = vunpack.c.0.s8 %v3536
    %v3538 = vlaneseq
    %v3539 = vshrl.u32 %v3538, 7
    %v3540 = vsub.s32 %v3537, %v3539
    %v3541 = vrot.slane %v2053, %v3540
    %v3542 = vcombine.low %v2061, %v2069
    %v3543 = vcombine.low %v2068, %v2070
    %v3545 = vunpack.c.l.s4 1983009808
    %v3546 = vunpack.c.0.s8 %v3545
    %v3547 = vlaneseq
    %v3548 = vshrl.u32 %v3547, 7
    %v3549 = vsub.s32 %v3546, %v3548
    %v3550 = vrot.slane %v3542, %v3549
    %v3552 = vunpack.c.l.s4 1983009808
    %v3553 = vunpack.c.0.s8 %v3552
    %v3554 = vlaneseq
    %v3555 = vshrl.u32 %v3554, 7
    %v3556 = vsub.s32 %v3553, %v3555
    %v3557 = vrot.slane %v3543, %v3556
    %v3558 = vcombine.low %v3550, %v3557
    %v3559 = vcombine.low %v2078, %v2086
    %v3560 = vcombine.low %v2085, %v2087
    %v3562 = vunpack.c.l.s4 1983009808
    %v3563 = vunpack.c.0.s8 %v3562
    %v3564 = vlaneseq
    %v3565 = vshrl.u32 %v3564, 7
    %v3566 = vsub.s32 %v3563, %v3565
    %v3567 = vrot.slane %v3559, %v3566
    %v3569 = vunpack.c.l.s4 1983009808
    %v3570 = vunpack.c.0.s8 %v3569
    %v3571 = vlaneseq
    %v3572 = vshrl.u32 %v3571, 7
    %v3573 = vsub.s32 %v3570, %v3572
    %v3574 = vrot.slane %v3560, %v3573
    %v3575 = vcombine.low %v3567, %v3574
    %v3577 = vunpack.c.l.s4 1983009808
    %v3578 = vunpack.c.0.s8 %v3577
    %v3579 = vlaneseq
    %v3580 = vshrl.u32 %v3579, 7
    %v3581 = vsub.s32 %v3578, %v3580
    %v3582 = vrot.slane %v2095, %v3581
    %v3583 = vcombine.low %v2103, %v2102
    %v3584 = vcombine.low %v2104, %v2112
    %v3586 = vunpack.c.l.s4 1983009808
    %v3587 = vunpack.c.0.s8 %v3586
    %v3588 = vlaneseq
    %v3589 = vshrl.u32 %v3588, 7
    %v3590 = vsub.s32 %v3587, %v3589
    %v3591 = vrot.slane %v3583, %v3590
    %v3593 = vunpack.c.l.s4 1983009808
    %v3594 = vunpack.c.0.s8 %v3593
    %v3595 = vlaneseq
    %v3596 = vshrl.u32 %v3595, 7
    %v3597 = vsub.s32 %v3594, %v3596
    %v3598 = vrot.slane %v3584, %v3597
    %v3599 = vcombine.low %v3591, %v3598
    %v3600 = vcombine.low %v2120, %v2119
    %v3601 = vcombine.low %v2121, %v2129
    %v3603 = vunpack.c.l.s4 1983009808
    %v3604 = vunpack.c.0.s8 %v3603
    %v3605 = vlaneseq
    %v3606 = vshrl.u32 %v3605, 7
    %v3607 = vsub.s32 %v3604, %v3606
    %v3608 = vrot.slane %v3600, %v3607
    %v3610 = vunpack.c.l.s4 1983009808
    %v3611 = vunpack.c.0.s8 %v3610
    %v3612 = vlaneseq
    %v3613 = vshrl.u32 %v3612, 7
    %v3614 = vsub.s32 %v3611, %v3613
    %v3615 = vrot.slane %v3601, %v3614
    %v3616 = vcombine.low %v3608, %v3615
    %v3618 = vunpack.c.l.s4 1983009808
    %v3619 = vunpack.c.0.s8 %v3618
    %v3620 = vlaneseq
    %v3621 = vshrl.u32 %v3620, 7
    %v3622 = vsub.s32 %v3619, %v3621
    %v3623 = vrot.slane %v2137, %v3622
    %v3624 = vcombine.low %v2136, %v2138
    %v3625 = vcombine.low %v2146, %v2154
    %v3627 = vunpack.c.l.s4 1983009808
    %v3628 = vunpack.c.0.s8 %v3627
    %v3629 = vlaneseq
    %v3630 = vshrl.u32 %v3629, 7
    %v3631 = vsub.s32 %v3628, %v3630
    %v3632 = vrot.slane %v3624, %v3631
    %v3634 = vunpack.c.l.s4 1983009808
    %v3635 = vunpack.c.0.s8 %v3634
    %v3636 = vlaneseq
    %v3637 = vshrl.u32 %v3636, 7
    %v3638 = vsub.s32 %v3635, %v3637
    %v3639 = vrot.slane %v3625, %v3638
    %v3640 = vcombine.low %v3632, %v3639
    %v3641 = vcombine.low %v2153, %v2155
    %v3642 = vcombine.low %v2163, %v2171
    %v3644 = vunpack.c.l.s4 1983009808
    %v3645 = vunpack.c.0.s8 %v3644
    %v3646 = vlaneseq
    %v3647 = vshrl.u32 %v3646, 7
    %v3648 = vsub.s32 %v3645, %v3647
    %v3649 = vrot.slane %v3641, %v3648
    %v3651 = vunpack.c.l.s4 1983009808
    %v3652 = vunpack.c.0.s8 %v3651
    %v3653 = vlaneseq
    %v3654 = vshrl.u32 %v3653, 7
    %v3655 = vsub.s32 %v3652, %v3654
    %v3656 = vrot.slane %v3642, %v3655
    %v3657 = vcombine.low %v3649, %v3656
    %v3659 = vunpack.c.l.s4 1983009808
    %v3660 = vunpack.c.0.s8 %v3659
    %v3661 = vlaneseq
    %v3662 = vshrl.u32 %v3661, 7
    %v3663 = vsub.s32 %v3660, %v3662
    %v3664 = vrot.slane %v2170, %v3663
    %v3665 = vcombine.low %v2172, %v2180
    %v3666 = vcombine.low %v2188, %v2187
    %v3668 = vunpack.c.l.s4 1983009808
    %v3669 = vunpack.c.0.s8 %v3668
    %v3670 = vlaneseq
    %v3671 = vshrl.u32 %v3670, 7
    %v3672 = vsub.s32 %v3669, %v3671
    %v3673 = vrot.slane %v3665, %v3672
    %v3675 = vunpack.c.l.s4 1983009808
    %v3676 = vunpack.c.0.s8 %v3675
    %v3677 = vlaneseq
    %v3678 = vshrl.u32 %v3677, 7
    %v3679 = vsub.s32 %v3676, %v3678
    %v3680 = vrot.slane %v3666, %v3679
    %v3681 = vcombine.low %v3673, %v3680
    %v3682 = vcombine.low %v2189, %v2197
    %v3683 = vcombine.low %v2205, %v2204
    %v3685 = vunpack.c.l.s4 1983009808
    %v3686 = vunpack.c.0.s8 %v3685
    %v3687 = vlaneseq
    %v3688 = vshrl.u32 %v3687, 7
    %v3689 = vsub.s32 %v3686, %v3688
    %v3690 = vrot.slane %v3682, %v3689
    %v3692 = vunpack.c.l.s4 1983009808
    %v3693 = vunpack.c.0.s8 %v3692
    %v3694 = vlaneseq
    %v3695 = vshrl.u32 %v3694, 7
    %v3696 = vsub.s32 %v3693, %v3695
    %v3697 = vrot.slane %v3683, %v3696
    %v3698 = vcombine.low %v3690, %v3697
    %v3700 = vunpack.c.l.s4 1983009808
    %v3701 = vunpack.c.0.s8 %v3700
    %v3702 = vlaneseq
    %v3703 = vshrl.u32 %v3702, 7
    %v3704 = vsub.s32 %v3701, %v3703
    %v3705 = vrot.slane %v2206, %v3704
    %v3706 = vcombine.low %v2214, %v2222
    %v3707 = vcombine.low %v2221, %v2223
    %v3709 = vunpack.c.l.s4 1983009808
    %v3710 = vunpack.c.0.s8 %v3709
    %v3711 = vlaneseq
    %v3712 = vshrl.u32 %v3711, 7
    %v3713 = vsub.s32 %v3710, %v3712
    %v3714 = vrot.slane %v3706, %v3713
    %v3716 = vunpack.c.l.s4 1983009808
    %v3717 = vunpack.c.0.s8 %v3716
    %v3718 = vlaneseq
    %v3719 = vshrl.u32 %v3718, 7
    %v3720 = vsub.s32 %v3717, %v3719
    %v3721 = vrot.slane %v3707, %v3720
    %v3722 = vcombine.low %v3714, %v3721
    %v3723 = vcombine.low %v2231, %v2239
    %v3724 = vcombine.low %v2238, %v2240
    %v3726 = vunpack.c.l.s4 1983009808
    %v3727 = vunpack.c.0.s8 %v3726
    %v3728 = vlaneseq
    %v3729 = vshrl.u32 %v3728, 7
    %v3730 = vsub.s32 %v3727, %v3729
    %v3731 = vrot.slane %v3723, %v3730
    %v3733 = vunpack.c.l.s4 1983009808
    %v3734 = vunpack.c.0.s8 %v3733
    %v3735 = vlaneseq
    %v3736 = vshrl.u32 %v3735, 7
    %v3737 = vsub.s32 %v3734, %v3736
    %v3738 = vrot.slane %v3724, %v3737
    %v3739 = vcombine.low %v3731, %v3738
    %v3741 = vunpack.c.l.s4 1983009808
    %v3742 = vunpack.c.0.s8 %v3741
    %v3743 = vlaneseq
    %v3744 = vshrl.u32 %v3743, 7
    %v3745 = vsub.s32 %v3742, %v3744
    %v3746 = vrot.slane %v2248, %v3745
    %v3747 = vcombine.low %v2256, %v2255
    %v3748 = vcombine.low %v2257, %v2265
    %v3750 = vunpack.c.l.s4 1983009808
    %v3751 = vunpack.c.0.s8 %v3750
    %v3752 = vlaneseq
    %v3753 = vshrl.u32 %v3752, 7
    %v3754 = vsub.s32 %v3751, %v3753
    %v3755 = vrot.slane %v3747, %v3754
    %v3757 = vunpack.c.l.s4 1983009808
    %v3758 = vunpack.c.0.s8 %v3757
    %v3759 = vlaneseq
    %v3760 = vshrl.u32 %v3759, 7
    %v3761 = vsub.s32 %v3758, %v3760
    %v3762 = vrot.slane %v3748, %v3761
    %v3763 = vcombine.low %v3755, %v3762
    %v3764 = vcombine.low %v2273, %v2272
    %v3765 = vcombine.low %v2274, %v2282
    %v3767 = vunpack.c.l.s4 1983009808
    %v3768 = vunpack.c.0.s8 %v3767
    %v3769 = vlaneseq
    %v3770 = vshrl.u32 %v3769, 7
    %v3771 = vsub.s32 %v3768, %v3770
    %v3772 = vrot.slane %v3764, %v3771
    %v3774 = vunpack.c.l.s4 1983009808
    %v3775 = vunpack.c.0.s8 %v3774
    %v3776 = vlaneseq
    %v3777 = vshrl.u32 %v3776, 7
    %v3778 = vsub.s32 %v3775, %v3777
    %v3779 = vrot.slane %v3765, %v3778
    %v3780 = vcombine.low %v3772, %v3779
    %v3782 = vunpack.c.l.s4 1983009808
    %v3783 = vunpack.c.0.s8 %v3782
    %v3784 = vlaneseq
    %v3785 = vshrl.u32 %v3784, 7
    %v3786 = vsub.s32 %v3783, %v3785
    %v3787 = vrot.slane %v2290, %v3786
    %v3788 = vcombine.low %v2289, %v2291
    %v3789 = vcombine.low %v2299, %v2307
    %v3791 = vunpack.c.l.s4 1983009808
    %v3792 = vunpack.c.0.s8 %v3791
    %v3793 = vlaneseq
    %v3794 = vshrl.u32 %v3793, 7
    %v3795 = vsub.s32 %v3792, %v3794
    %v3796 = vrot.slane %v3788, %v3795
    %v3798 = vunpack.c.l.s4 1983009808
    %v3799 = vunpack.c.0.s8 %v3798
    %v3800 = vlaneseq
    %v3801 = vshrl.u32 %v3800, 7
    %v3802 = vsub.s32 %v3799, %v3801
    %v3803 = vrot.slane %v3789, %v3802
    %v3804 = vcombine.low %v3796, %v3803
    %v3805 = vcombine.low %v2306, %v2308
    %v3806 = vcombine.low %v2316, %v2324
    %v3808 = vunpack.c.l.s4 1983009808
    %v3809 = vunpack.c.0.s8 %v3808
    %v3810 = vlaneseq
    %v3811 = vshrl.u32 %v3810, 7
    %v3812 = vsub.s32 %v3809, %v3811
    %v3813 = vrot.slane %v3805, %v3812
    %v3815 = vunpack.c.l.s4 1983009808
    %v3816 = vunpack.c.0.s8 %v3815
    %v3817 = vlaneseq
    %v3818 = vshrl.u32 %v3817, 7
    %v3819 = vsub.s32 %v3816, %v3818
    %v3820 = vrot.slane %v3806, %v3819
    %v3821 = vcombine.low %v3813, %v3820
    %v3823 = vunpack.c.l.s4 1983009808
    %v3824 = vunpack.c.0.s8 %v3823
    %v3825 = vlaneseq
    %v3826 = vshrl.u32 %v3825, 7
    %v3827 = vsub.s32 %v3824, %v3826
    %v3828 = vrot.slane %v2323, %v3827
    %v3829 = vcombine.low %v2325, %v2333
    %v3830 = vcombine.low %v2341, %v2340
    %v3832 = vunpack.c.l.s4 1983009808
    %v3833 = vunpack.c.0.s8 %v3832
    %v3834 = vlaneseq
    %v3835 = vshrl.u32 %v3834, 7
    %v3836 = vsub.s32 %v3833, %v3835
    %v3837 = vrot.slane %v3829, %v3836
    %v3839 = vunpack.c.l.s4 1983009808
    %v3840 = vunpack.c.0.s8 %v3839
    %v3841 = vlaneseq
    %v3842 = vshrl.u32 %v3841, 7
    %v3843 = vsub.s32 %v3840, %v3842
    %v3844 = vrot.slane %v3830, %v3843
    %v3845 = vcombine.low %v3837, %v3844
    %v3846 = vcombine.low %v2342, %v2350
    %v3847 = vcombine.low %v2358, %v2357
    %v3849 = vunpack.c.l.s4 1983009808
    %v3850 = vunpack.c.0.s8 %v3849
    %v3851 = vlaneseq
    %v3852 = vshrl.u32 %v3851, 7
    %v3853 = vsub.s32 %v3850, %v3852
    %v3854 = vrot.slane %v3846, %v3853
    %v3856 = vunpack.c.l.s4 1983009808
    %v3857 = vunpack.c.0.s8 %v3856
    %v3858 = vlaneseq
    %v3859 = vshrl.u32 %v3858, 7
    %v3860 = vsub.s32 %v3857, %v3859
    %v3861 = vrot.slane %v3847, %v3860
    %v3862 = vcombine.low %v3854, %v3861
    %v3864 = vunpack.c.l.s4 1983009808
    %v3865 = vunpack.c.0.s8 %v3864
    %v3866 = vlaneseq
    %v3867 = vshrl.u32 %v3866, 7
    %v3868 = vsub.s32 %v3865, %v3867
    %v3869 = vrot.slane %v2359, %v3868
    %v3978 = vsel %vm2388, %v2410, 0.0
    %v3979 = vsel %vm2389, %v2427, 0.0
    %v3980 = vsel %vm2390, %v2434, 0.0
    %v3981 = vsel %vm2391, %v2451, 0.0
    %v3982 = vsel %vm2392, %v2468, 0.0
    %v3983 = vsel %vm2393, %v2475, 0.0
    %v3984 = vsel %vm2391, %v2492, 0.0
    %v3985 = vsel %vm2392, %v2509, 0.0
    %v3986 = vsel %vm2393, %v2516, 0.0
    %v3987 = vsel %vm2391, %v2533, 0.0
    %v3988 = vsel %vm2392, %v2550, 0.0
    %v3989 = vsel %vm2393, %v2557, 0.0
    %v3990 = vsel %vm2391, %v2574, 0.0
    %v3991 = vsel %vm2392, %v2591, 0.0
    %v3992 = vsel %vm2393, %v2598, 0.0
    %v3993 = vsel %vm2391, %v2615, 0.0
    %v3994 = vsel %vm2392, %v2632, 0.0
    %v3995 = vsel %vm2393, %v2639, 0.0
    %v3996 = vsel %vm2391, %v2656, 0.0
    %v3997 = vsel %vm2392, %v2673, 0.0
    %v3998 = vsel %vm2393, %v2680, 0.0
    %v3999 = vsel %vm2391, %v2697, 0.0
    %v4000 = vsel %vm2392, %v2714, 0.0
    %v4001 = vsel %vm2393, %v2721, 0.0
    %v4002 = vsel %vm2391, %v2738, 0.0
    %v4003 = vsel %vm2392, %v2755, 0.0
    %v4004 = vsel %vm2393, %v2762, 0.0
    %v4005 = vsel %vm2391, %v2779, 0.0
    %v4006 = vsel %vm2392, %v2796, 0.0
    %v4007 = vsel %vm2393, %v2803, 0.0
    %v4008 = vsel %vm2391, %v2820, 0.0
    %v4009 = vsel %vm2392, %v2837, 0.0
    %v4010 = vsel %vm2393, %v2844, 0.0
    %v4011 = vsel %vm2391, %v2861, 0.0
    %v4012 = vsel %vm2392, %v2878, 0.0
    %v4013 = vsel %vm2393, %v2885, 0.0
    %v4014 = vsel %vm2391, %v2902, 0.0
    %v4015 = vsel %vm2392, %v2919, 0.0
    %v4016 = vsel %vm2393, %v2926, 0.0
    %v4017 = vsel %vm2391, %v2943, 0.0
    %v4018 = vsel %vm2392, %v2960, 0.0
    %v4019 = vsel %vm2393, %v2967, 0.0
    %v4020 = vsel %vm2391, %v2984, 0.0
    %v4021 = vsel %vm2392, %v3001, 0.0
    %v4022 = vsel %vm2393, %v3008, 0.0
    %v4023 = vsel %vm2391, %v3025, 0.0
    %v4024 = vsel %vm2392, %v3042, 0.0
    %v4025 = vsel %vm2393, %v3049, 0.0
    %v4026 = vsel %vm2391, %v3066, 0.0
    %v4027 = vsel %vm2392, %v3083, 0.0
    %v4028 = vsel %vm2393, %v3090, 0.0
    %v4029 = vsel %vm2388, %v3107, 0.0
    %v4030 = vsel %vm2389, %v3124, 0.0
    %v4031 = vsel %vm2390, %v3131, 0.0
    %v4032 = vsel %vm2388, %v3148, 0.0
    %v4033 = vsel %vm2389, %v3165, 0.0
    %v4034 = vsel %vm2390, %v3172, 0.0
    %v4035 = vsel %vm2391, %v3189, 0.0
    %v4036 = vsel %vm2392, %v3206, 0.0
    %v4037 = vsel %vm2393, %v3213, 0.0
    %v4038 = vsel %vm2391, %v3230, 0.0
    %v4039 = vsel %vm2392, %v3247, 0.0
    %v4040 = vsel %vm2393, %v3254, 0.0
    %v4041 = vsel %vm2391, %v3271, 0.0
    %v4042 = vsel %vm2392, %v3288, 0.0
    %v4043 = vsel %vm2393, %v3295, 0.0
    %v4044 = vsel %vm2391, %v3312, 0.0
    %v4045 = vsel %vm2392, %v3329, 0.0
    %v4046 = vsel %vm2393, %v3336, 0.0
    %v4047 = vsel %vm2391, %v3353, 0.0
    %v4048 = vsel %vm2392, %v3370, 0.0
    %v4049 = vsel %vm2393, %v3377, 0.0
    %v4050 = vsel %vm2391, %v3394, 0.0
    %v4051 = vsel %vm2392, %v3411, 0.0
    %v4052 = vsel %vm2393, %v3418, 0.0
    %v4053 = vsel %vm2391, %v3435, 0.0
    %v4054 = vsel %vm2392, %v3452, 0.0
    %v4055 = vsel %vm2393, %v3459, 0.0
    %v4056 = vsel %vm2391, %v3476, 0.0
    %v4057 = vsel %vm2392, %v3493, 0.0
    %v4058 = vsel %vm2393, %v3500, 0.0
    %v4059 = vsel %vm2391, %v3517, 0.0
    %v4060 = vsel %vm2392, %v3534, 0.0
    %v4061 = vsel %vm2393, %v3541, 0.0
    %v4062 = vsel %vm2391, %v3558, 0.0
    %v4063 = vsel %vm2392, %v3575, 0.0
    %v4064 = vsel %vm2393, %v3582, 0.0
    %v4065 = vsel %vm2391, %v3599, 0.0
    %v4066 = vsel %vm2392, %v3616, 0.0
    %v4067 = vsel %vm2393, %v3623, 0.0
    %v4068 = vsel %vm2391, %v3640, 0.0
    %v4069 = vsel %vm2392, %v3657, 0.0
    %v4070 = vsel %vm2393, %v3664, 0.0
    %v4071 = vsel %vm2391, %v3681, 0.0
    %v4072 = vsel %vm2392, %v3698, 0.0
    %v4073 = vsel %vm2393, %v3705, 0.0
    %v4074 = vsel %vm2391, %v3722, 0.0
    %v4075 = vsel %vm2392, %v3739, 0.0
    %v4076 = vsel %vm2393, %v3746, 0.0
    %v4077 = vsel %vm2391, %v3763, 0.0
    %v4078 = vsel %vm2392, %v3780, 0.0
    %v4079 = vsel %vm2393, %v3787, 0.0
    %v4080 = vsel %vm2391, %v3804, 0.0
    %v4081 = vsel %vm2392, %v3821, 0.0
    %v4082 = vsel %vm2393, %v3828, 0.0
    %v4083 = vsel %vm2388, %v3845, 0.0
    %v4084 = vsel %vm2389, %v3862, 0.0
    %v4085 = vsel %vm2390, %v3869, 0.0
    %v4086 = vpack.c.bf16 %v3979, %v3978
    %v4087 = vpack.c.bf16 %v3980, %v3980
    %v4088 = vpack.c.bf16 %v3982, %v3981
    %v4089 = vpack.c.bf16 %v3983, %v3983
    %v4090 = vpack.c.bf16 %v3985, %v3984
    %v4091 = vpack.c.bf16 %v3986, %v3986
    %v4092 = vpack.c.bf16 %v3988, %v3987
    %v4093 = vpack.c.bf16 %v3989, %v3989
    %v4094 = vpack.c.bf16 %v3991, %v3990
    %v4095 = vpack.c.bf16 %v3992, %v3992
    %v4096 = vpack.c.bf16 %v3994, %v3993
    %v4097 = vpack.c.bf16 %v3995, %v3995
    %v4098 = vpack.c.bf16 %v3997, %v3996
    %v4099 = vpack.c.bf16 %v3998, %v3998
    %v4100 = vpack.c.bf16 %v4000, %v3999
    %v4101 = vpack.c.bf16 %v4001, %v4001
    %v4102 = vpack.c.bf16 %v4003, %v4002
    %v4103 = vpack.c.bf16 %v4004, %v4004
    %v4104 = vpack.c.bf16 %v4006, %v4005
    %v4105 = vpack.c.bf16 %v4007, %v4007
    %v4106 = vpack.c.bf16 %v4009, %v4008
    %v4107 = vpack.c.bf16 %v4010, %v4010
    %v4108 = vpack.c.bf16 %v4012, %v4011
    %v4109 = vpack.c.bf16 %v4013, %v4013
    %v4110 = vpack.c.bf16 %v4015, %v4014
    %v4111 = vpack.c.bf16 %v4016, %v4016
    %v4112 = vpack.c.bf16 %v4018, %v4017
    %v4113 = vpack.c.bf16 %v4019, %v4019
    %v4114 = vpack.c.bf16 %v4021, %v4020
    %v4115 = vpack.c.bf16 %v4022, %v4022
    %v4116 = vpack.c.bf16 %v4024, %v4023
    %v4117 = vpack.c.bf16 %v4025, %v4025
    %v4118 = vpack.c.bf16 %v4027, %v4026
    %v4119 = vpack.c.bf16 %v4028, %v4028
    %v4120 = vpack.c.bf16 %v4030, %v4029
    %v4121 = vpack.c.bf16 %v4031, %v4031
    %v4122 = vpack.c.bf16 %v4033, %v4032
    %v4123 = vpack.c.bf16 %v4034, %v4034
    %v4124 = vpack.c.bf16 %v4036, %v4035
    %v4125 = vpack.c.bf16 %v4037, %v4037
    %v4126 = vpack.c.bf16 %v4039, %v4038
    %v4127 = vpack.c.bf16 %v4040, %v4040
    %v4128 = vpack.c.bf16 %v4042, %v4041
    %v4129 = vpack.c.bf16 %v4043, %v4043
    %v4130 = vpack.c.bf16 %v4045, %v4044
    %v4131 = vpack.c.bf16 %v4046, %v4046
    %v4132 = vpack.c.bf16 %v4048, %v4047
    %v4133 = vpack.c.bf16 %v4049, %v4049
    %v4134 = vpack.c.bf16 %v4051, %v4050
    %v4135 = vpack.c.bf16 %v4052, %v4052
    %v4136 = vpack.c.bf16 %v4054, %v4053
    %v4137 = vpack.c.bf16 %v4055, %v4055
    %v4138 = vpack.c.bf16 %v4057, %v4056
    %v4139 = vpack.c.bf16 %v4058, %v4058
    %v4140 = vpack.c.bf16 %v4060, %v4059
    %v4141 = vpack.c.bf16 %v4061, %v4061
    %v4142 = vpack.c.bf16 %v4063, %v4062
    %v4143 = vpack.c.bf16 %v4064, %v4064
    %v4144 = vpack.c.bf16 %v4066, %v4065
    %v4145 = vpack.c.bf16 %v4067, %v4067
    %v4146 = vpack.c.bf16 %v4069, %v4068
    %v4147 = vpack.c.bf16 %v4070, %v4070
    %v4148 = vpack.c.bf16 %v4072, %v4071
    %v4149 = vpack.c.bf16 %v4073, %v4073
    %v4150 = vpack.c.bf16 %v4075, %v4074
    %v4151 = vpack.c.bf16 %v4076, %v4076
    %v4152 = vpack.c.bf16 %v4078, %v4077
    %v4153 = vpack.c.bf16 %v4079, %v4079
    %v4154 = vpack.c.bf16 %v4081, %v4080
    %v4155 = vpack.c.bf16 %v4082, %v4082
    %v4156 = vpack.c.bf16 %v4084, %v4083
    %v4157 = vpack.c.bf16 %v4085, %v4085
    %v4158 = vld [vmem:[%s3] sm:$0x3]
    %vm4159 = vsmask.f32 7424
    %v4161 = vshrl.u32 %v4086, 16
    %v4163 = vshll.u32 %v4086, 16
    %v4165 = vrot.slane %v4163, 1
    %v4166 = vor.u32 %v4161, %v4165
    %v4168 = vshll.u32 %v4087, 16
    %v4170 = vrot.slane %v4168, 1
    %v4171 = vsel %vm4159, %v4166, %v4170
    %v4173 = vshrl.u32 %v4088, 16
    %v4175 = vshll.u32 %v4088, 16
    %v4177 = vrot.slane %v4175, 1
    %v4178 = vor.u32 %v4173, %v4177
    %v4180 = vshll.u32 %v4089, 16
    %v4182 = vrot.slane %v4180, 1
    %v4183 = vsel %vm4159, %v4178, %v4182
    %v4185 = vshrl.u32 %v4090, 16
    %v4187 = vshll.u32 %v4090, 16
    %v4189 = vrot.slane %v4187, 1
    %v4190 = vor.u32 %v4185, %v4189
    %v4192 = vshll.u32 %v4091, 16
    %v4194 = vrot.slane %v4192, 1
    %v4195 = vsel %vm4159, %v4190, %v4194
    %v4197 = vshrl.u32 %v4092, 16
    %v4199 = vshll.u32 %v4092, 16
    %v4201 = vrot.slane %v4199, 1
    %v4202 = vor.u32 %v4197, %v4201
    %v4204 = vshll.u32 %v4093, 16
    %v4206 = vrot.slane %v4204, 1
    %v4207 = vsel %vm4159, %v4202, %v4206
    %v4209 = vshrl.u32 %v4094, 16
    %v4211 = vshll.u32 %v4094, 16
    %v4213 = vrot.slane %v4211, 1
    %v4214 = vor.u32 %v4209, %v4213
    %v4216 = vshll.u32 %v4095, 16
    %v4218 = vrot.slane %v4216, 1
    %v4219 = vsel %vm4159, %v4214, %v4218
    %v4221 = vshrl.u32 %v4096, 16
    %v4223 = vshll.u32 %v4096, 16
    %v4225 = vrot.slane %v4223, 1
    %v4226 = vor.u32 %v4221, %v4225
    %v4228 = vshll.u32 %v4097, 16
    %v4230 = vrot.slane %v4228, 1
    %v4231 = vsel %vm4159, %v4226, %v4230
    %v4233 = vshrl.u32 %v4098, 16
    %v4235 = vshll.u32 %v4098, 16
    %v4237 = vrot.slane %v4235, 1
    %v4238 = vor.u32 %v4233, %v4237
    %v4240 = vshll.u32 %v4099, 16
    %v4242 = vrot.slane %v4240, 1
    %v4243 = vsel %vm4159, %v4238, %v4242
    %v4245 = vshrl.u32 %v4100, 16
    %v4247 = vshll.u32 %v4100, 16
    %v4249 = vrot.slane %v4247, 1
    %v4250 = vor.u32 %v4245, %v4249
    %v4252 = vshll.u32 %v4101, 16
    %v4254 = vrot.slane %v4252, 1
    %v4255 = vsel %vm4159, %v4250, %v4254
    %v4257 = vshrl.u32 %v4102, 16
    %v4259 = vshll.u32 %v4102, 16
    %v4261 = vrot.slane %v4259, 1
    %v4262 = vor.u32 %v4257, %v4261
    %v4264 = vshll.u32 %v4103, 16
    %v4266 = vrot.slane %v4264, 1
    %v4267 = vsel %vm4159, %v4262, %v4266
    %v4269 = vshrl.u32 %v4104, 16
    %v4271 = vshll.u32 %v4104, 16
    %v4273 = vrot.slane %v4271, 1
    %v4274 = vor.u32 %v4269, %v4273
    %v4276 = vshll.u32 %v4105, 16
    %v4278 = vrot.slane %v4276, 1
    %v4279 = vsel %vm4159, %v4274, %v4278
    %v4281 = vshrl.u32 %v4106, 16
    %v4283 = vshll.u32 %v4106, 16
    %v4285 = vrot.slane %v4283, 1
    %v4286 = vor.u32 %v4281, %v4285
    %v4288 = vshll.u32 %v4107, 16
    %v4290 = vrot.slane %v4288, 1
    %v4291 = vsel %vm4159, %v4286, %v4290
    %v4293 = vshrl.u32 %v4108, 16
    %v4295 = vshll.u32 %v4108, 16
    %v4297 = vrot.slane %v4295, 1
    %v4298 = vor.u32 %v4293, %v4297
    %v4300 = vshll.u32 %v4109, 16
    %v4302 = vrot.slane %v4300, 1
    %v4303 = vsel %vm4159, %v4298, %v4302
    %v4305 = vshrl.u32 %v4110, 16
    %v4307 = vshll.u32 %v4110, 16
    %v4309 = vrot.slane %v4307, 1
    %v4310 = vor.u32 %v4305, %v4309
    %v4312 = vshll.u32 %v4111, 16
    %v4314 = vrot.slane %v4312, 1
    %v4315 = vsel %vm4159, %v4310, %v4314
    %v4317 = vshrl.u32 %v4112, 16
    %v4319 = vshll.u32 %v4112, 16
    %v4321 = vrot.slane %v4319, 1
    %v4322 = vor.u32 %v4317, %v4321
    %v4324 = vshll.u32 %v4113, 16
    %v4326 = vrot.slane %v4324, 1
    %v4327 = vsel %vm4159, %v4322, %v4326
    %v4329 = vshrl.u32 %v4114, 16
    %v4331 = vshll.u32 %v4114, 16
    %v4333 = vrot.slane %v4331, 1
    %v4334 = vor.u32 %v4329, %v4333
    %v4336 = vshll.u32 %v4115, 16
    %v4338 = vrot.slane %v4336, 1
    %v4339 = vsel %vm4159, %v4334, %v4338
    %v4341 = vshrl.u32 %v4116, 16
    %v4343 = vshll.u32 %v4116, 16
    %v4345 = vrot.slane %v4343, 1
    %v4346 = vor.u32 %v4341, %v4345
    %v4348 = vshll.u32 %v4117, 16
    %v4350 = vrot.slane %v4348, 1
    %v4351 = vsel %vm4159, %v4346, %v4350
    %v4353 = vshrl.u32 %v4122, 16
    %v4355 = vshll.u32 %v4122, 16
    %v4357 = vrot.slane %v4355, 1
    %v4358 = vor.u32 %v4353, %v4357
    %v4360 = vshll.u32 %v4123, 16
    %v4362 = vrot.slane %v4360, 1
    %v4363 = vsel %vm4159, %v4358, %v4362
    %v4365 = vshrl.u32 %v4124, 16
    %v4367 = vshll.u32 %v4124, 16
    %v4369 = vrot.slane %v4367, 1
    %v4370 = vor.u32 %v4365, %v4369
    %v4372 = vshll.u32 %v4125, 16
    %v4374 = vrot.slane %v4372, 1
    %v4375 = vsel %vm4159, %v4370, %v4374
    %v4377 = vshrl.u32 %v4126, 16
    %v4379 = vshll.u32 %v4126, 16
    %v4381 = vrot.slane %v4379, 1
    %v4382 = vor.u32 %v4377, %v4381
    %v4384 = vshll.u32 %v4127, 16
    %v4386 = vrot.slane %v4384, 1
    %v4387 = vsel %vm4159, %v4382, %v4386
    %v4389 = vshrl.u32 %v4128, 16
    %v4391 = vshll.u32 %v4128, 16
    %v4393 = vrot.slane %v4391, 1
    %v4394 = vor.u32 %v4389, %v4393
    %v4396 = vshll.u32 %v4129, 16
    %v4398 = vrot.slane %v4396, 1
    %v4399 = vsel %vm4159, %v4394, %v4398
    %v4401 = vshrl.u32 %v4130, 16
    %v4403 = vshll.u32 %v4130, 16
    %v4405 = vrot.slane %v4403, 1
    %v4406 = vor.u32 %v4401, %v4405
    %v4408 = vshll.u32 %v4131, 16
    %v4410 = vrot.slane %v4408, 1
    %v4411 = vsel %vm4159, %v4406, %v4410
    %v4413 = vshrl.u32 %v4132, 16
    %v4415 = vshll.u32 %v4132, 16
    %v4417 = vrot.slane %v4415, 1
    %v4418 = vor.u32 %v4413, %v4417
    %v4420 = vshll.u32 %v4133, 16
    %v4422 = vrot.slane %v4420, 1
    %v4423 = vsel %vm4159, %v4418, %v4422
    %v4425 = vshrl.u32 %v4134, 16
    %v4427 = vshll.u32 %v4134, 16
    %v4429 = vrot.slane %v4427, 1
    %v4430 = vor.u32 %v4425, %v4429
    %v4432 = vshll.u32 %v4135, 16
    %v4434 = vrot.slane %v4432, 1
    %v4435 = vsel %vm4159, %v4430, %v4434
    %v4437 = vshrl.u32 %v4136, 16
    %v4439 = vshll.u32 %v4136, 16
    %v4441 = vrot.slane %v4439, 1
    %v4442 = vor.u32 %v4437, %v4441
    %v4444 = vshll.u32 %v4137, 16
    %v4446 = vrot.slane %v4444, 1
    %v4447 = vsel %vm4159, %v4442, %v4446
    %v4449 = vshrl.u32 %v4138, 16
    %v4451 = vshll.u32 %v4138, 16
    %v4453 = vrot.slane %v4451, 1
    %v4454 = vor.u32 %v4449, %v4453
    %v4456 = vshll.u32 %v4139, 16
    %v4458 = vrot.slane %v4456, 1
    %v4459 = vsel %vm4159, %v4454, %v4458
    %v4461 = vshrl.u32 %v4140, 16
    %v4463 = vshll.u32 %v4140, 16
    %v4465 = vrot.slane %v4463, 1
    %v4466 = vor.u32 %v4461, %v4465
    %v4468 = vshll.u32 %v4141, 16
    %v4470 = vrot.slane %v4468, 1
    %v4471 = vsel %vm4159, %v4466, %v4470
    %v4473 = vshrl.u32 %v4142, 16
    %v4475 = vshll.u32 %v4142, 16
    %v4477 = vrot.slane %v4475, 1
    %v4478 = vor.u32 %v4473, %v4477
    %v4480 = vshll.u32 %v4143, 16
    %v4482 = vrot.slane %v4480, 1
    %v4483 = vsel %vm4159, %v4478, %v4482
    %v4485 = vshrl.u32 %v4144, 16
    %v4487 = vshll.u32 %v4144, 16
    %v4489 = vrot.slane %v4487, 1
    %v4490 = vor.u32 %v4485, %v4489
    %v4492 = vshll.u32 %v4145, 16
    %v4494 = vrot.slane %v4492, 1
    %v4495 = vsel %vm4159, %v4490, %v4494
    %v4497 = vshrl.u32 %v4146, 16
    %v4499 = vshll.u32 %v4146, 16
    %v4501 = vrot.slane %v4499, 1
    %v4502 = vor.u32 %v4497, %v4501
    %v4504 = vshll.u32 %v4147, 16
    %v4506 = vrot.slane %v4504, 1
    %v4507 = vsel %vm4159, %v4502, %v4506
    %v4509 = vshrl.u32 %v4148, 16
    %v4511 = vshll.u32 %v4148, 16
    %v4513 = vrot.slane %v4511, 1
    %v4514 = vor.u32 %v4509, %v4513
    %v4516 = vshll.u32 %v4149, 16
    %v4518 = vrot.slane %v4516, 1
    %v4519 = vsel %vm4159, %v4514, %v4518
    %v4521 = vshrl.u32 %v4150, 16
    %v4523 = vshll.u32 %v4150, 16
    %v4525 = vrot.slane %v4523, 1
    %v4526 = vor.u32 %v4521, %v4525
    %v4528 = vshll.u32 %v4151, 16
    %v4530 = vrot.slane %v4528, 1
    %v4531 = vsel %vm4159, %v4526, %v4530
    %v4533 = vshrl.u32 %v4152, 16
    %v4535 = vshll.u32 %v4152, 16
    %v4537 = vrot.slane %v4535, 1
    %v4538 = vor.u32 %v4533, %v4537
    %v4540 = vshll.u32 %v4153, 16
    %v4542 = vrot.slane %v4540, 1
    %v4543 = vsel %vm4159, %v4538, %v4542
    %v4544 = vld [vmem:[%s3] sm:$0xc]
    %v4546 = vunpack.c.l.b16 %v4544
    %v4547 = vpack.c.b16 %v4546, %v4546
    %v4548 = vrot.slane %v4547, 2
    %vm4549 = vcmask 523264
    %v4551 = vsel %vm4549, %v4171, 0
    %v4554 = vsel %vm4549, %v4183, 0
    %v4557 = vsel %vm4549, %v4195, 0
    %v4560 = vsel %vm4549, %v4207, 0
    %v4563 = vsel %vm4549, %v4219, 0
    %v4566 = vsel %vm4549, %v4231, 0
    %v4569 = vsel %vm4549, %v4243, 0
    %v4572 = vsel %vm4549, %v4255, 0
    %v4575 = vsel %vm4549, %v4267, 0
    %v4578 = vsel %vm4549, %v4279, 0
    %v4581 = vsel %vm4549, %v4291, 0
    %v4584 = vsel %vm4549, %v4303, 0
    %v4587 = vsel %vm4549, %v4315, 0
    %v4590 = vsel %vm4549, %v4327, 0
    %v4593 = vsel %vm4549, %v4339, 0
    %v4596 = vsel %vm4549, %v4351, 0
    %v4599 = vsel %vm4549, %v4363, 0
    %v4602 = vsel %vm4549, %v4375, 0
    %v4605 = vsel %vm4549, %v4387, 0
    %v4608 = vsel %vm4549, %v4399, 0
    %v4611 = vsel %vm4549, %v4411, 0
    %v4614 = vsel %vm4549, %v4423, 0
    %v4617 = vsel %vm4549, %v4435, 0
    %v4620 = vsel %vm4549, %v4447, 0
    %v4623 = vsel %vm4549, %v4459, 0
    %v4626 = vsel %vm4549, %v4471, 0
    %v4629 = vsel %vm4549, %v4483, 0
    %v4632 = vsel %vm4549, %v4495, 0
    %v4635 = vsel %vm4549, %v4507, 0
    %v4638 = vsel %vm4549, %v4519, 0
    %v4641 = vsel %vm4549, %v4531, 0
    %v4644 = vsel %vm4549, %v4543, 0
    %v4647 = vsel %vm4549, %v4548, 0
    %4649 = vmatprep.subr.bf16.mxu0 0
    %4650 = vmatpush1.bf16.xpose.msra.mxu0 %v4647
    %4651 = vmatprep.subr.bf16.mxu0 0
    %4652 = vmatpush1.bf16.xpose.msra.mxu0 0
    %4653 = vmatprep.subr.bf16.mxu0 0
    %4654 = vmatpush1.bf16.xpose.msra.mxu0 0
    %4655 = vmatprep.subr.bf16.mxu0 0
    %4656 = vmatpush1.bf16.xpose.msra.mxu0 0
    %4657 = vmatprep.subr.bf16.mxu0 0
    %4658 = vmatpush1.bf16.xpose.msra.mxu0 0
    %4659 = vmatprep.subr.bf16.mxu0 0
    %4660 = vmatpush1.bf16.xpose.msra.mxu0 0
    %4661 = vmatprep.subr.bf16.mxu0 0
    %4662 = vmatpush1.bf16.xpose.msra.mxu0 0
    %4663 = vmatprep.subr.bf16.mxu0 0
    %4664 = vmatpush1.bf16.xpose.msra.mxu0 0
    %4665 = vmatprep.subr.bf16.mxu0 0
    %4666 = vmatpush1.bf16.xpose.msra.mxu0 0
    %4667 = vmatprep.subr.bf16.mxu0 0
    %4668 = vmatpush1.bf16.xpose.msra.mxu0 0
    %4669 = vmatprep.subr.bf16.mxu0 0
    %4670 = vmatpush1.bf16.xpose.msra.mxu0 0
    %4671 = vmatprep.subr.bf16.mxu0 0
    %4672 = vmatpush1.bf16.xpose.msra.mxu0 0
    %4673 = vmatprep.subr.bf16.mxu0 0
    %4674 = vmatpush1.bf16.xpose.msra.mxu0 0
    %4675 = vmatprep.subr.bf16.mxu0 0
    %4676 = vmatpush1.bf16.xpose.msra.mxu0 0
    %4677 = vmatprep.subr.bf16.mxu0 0
    %4678 = vmatpush1.bf16.xpose.msra.mxu0 0
    %4679 = vmatprep.subr.bf16.mxu0 0
    %4680 = vmatpush1.bf16.xpose.msra.mxu0 0
    %4681 = vmatprep.mubr.bf16.mxu0 0
    %4682 = vmatmul.mubr.bf16.gmra.mrb[0].mxu0 %v4551
    %v4683 = vpop.f32.mrb[0].mxu0
    %v4684 = vadd.f32 0.0, %v4683
    %v4685 = vpop.f32.mrb[0].mxu0
    %v4686 = vpop.f32.mrb[0].mxu0
    %v4687 = vadd.f32 0.0, %v4686
    %v4688 = vpop.f32.mrb[0].mxu0
    %4689 = vmatprep.mubr.bf16.mxu0 0
    %4690 = vmatmul.mubr.bf16.gmra.mrb[0].mxu0 %v4554
    %v4691 = vpop.f32.mrb[0].mxu0
    %v4692 = vadd.f32 0.0, %v4691
    %v4693 = vpop.f32.mrb[0].mxu0
    %v4694 = vpop.f32.mrb[0].mxu0
    %v4695 = vadd.f32 0.0, %v4694
    %v4696 = vpop.f32.mrb[0].mxu0
    %4697 = vmatprep.mubr.bf16.mxu0 0
    %4698 = vmatmul.mubr.bf16.gmra.mrb[0].mxu0 %v4557
    %v4699 = vpop.f32.mrb[0].mxu0
    %v4700 = vadd.f32 0.0, %v4699
    %v4701 = vpop.f32.mrb[0].mxu0
    %v4702 = vpop.f32.mrb[0].mxu0
    %v4703 = vadd.f32 0.0, %v4702
    %v4704 = vpop.f32.mrb[0].mxu0
    %4705 = vmatprep.mubr.bf16.mxu0 0
    %4706 = vmatmul.mubr.bf16.gmra.mrb[0].mxu0 %v4560
    %v4707 = vpop.f32.mrb[0].mxu0
    %v4708 = vadd.f32 0.0, %v4707
    %v4709 = vpop.f32.mrb[0].mxu0
    %v4710 = vpop.f32.mrb[0].mxu0
    %v4711 = vadd.f32 0.0, %v4710
    %v4712 = vpop.f32.mrb[0].mxu0
    %4713 = vmatprep.mubr.bf16.mxu0 0
    %4714 = vmatmul.mubr.bf16.gmra.mrb[0].mxu0 %v4563
    %v4715 = vpop.f32.mrb[0].mxu0
    %v4716 = vadd.f32 0.0, %v4715
    %v4717 = vpop.f32.mrb[0].mxu0
    %v4718 = vpop.f32.mrb[0].mxu0
    %v4719 = vadd.f32 0.0, %v4718
    %v4720 = vpop.f32.mrb[0].mxu0
    %4721 = vmatprep.mubr.bf16.mxu0 0
    %4722 = vmatmul.mubr.bf16.gmra.mrb[0].mxu0 %v4566
    %v4723 = vpop.f32.mrb[0].mxu0
    %v4724 = vadd.f32 0.0, %v4723
    %v4725 = vpop.f32.mrb[0].mxu0
    %v4726 = vpop.f32.mrb[0].mxu0
    %v4727 = vadd.f32 0.0, %v4726
    %v4728 = vpop.f32.mrb[0].mxu0
    %4729 = vmatprep.mubr.bf16.mxu0 0
    %4730 = vmatmul.mubr.bf16.gmra.mrb[0].mxu0 %v4569
    %v4731 = vpop.f32.mrb[0].mxu0
    %v4732 = vadd.f32 0.0, %v4731
    %v4733 = vpop.f32.mrb[0].mxu0
    %v4734 = vpop.f32.mrb[0].mxu0
    %v4735 = vadd.f32 0.0, %v4734
    %v4736 = vpop.f32.mrb[0].mxu0
    %4737 = vmatprep.mubr.bf16.mxu0 0
    %4738 = vmatmul.mubr.bf16.gmra.mrb[0].mxu0 %v4572
    %v4739 = vpop.f32.mrb[0].mxu0
    %v4740 = vadd.f32 0.0, %v4739
    %v4741 = vpop.f32.mrb[0].mxu0
    %v4742 = vpop.f32.mrb[0].mxu0
    %v4743 = vadd.f32 0.0, %v4742
    %v4744 = vpop.f32.mrb[0].mxu0
    %4745 = vmatprep.mubr.bf16.mxu0 0
    %4746 = vmatmul.mubr.bf16.gmra.mrb[0].mxu0 %v4575
    %v4747 = vpop.f32.mrb[0].mxu0
    %v4748 = vadd.f32 0.0, %v4747
    %v4749 = vpop.f32.mrb[0].mxu0
    %v4750 = vpop.f32.mrb[0].mxu0
    %v4751 = vadd.f32 0.0, %v4750
    %v4752 = vpop.f32.mrb[0].mxu0
    %4753 = vmatprep.mubr.bf16.mxu0 0
    %4754 = vmatmul.mubr.bf16.gmra.mrb[0].mxu0 %v4578
    %v4755 = vpop.f32.mrb[0].mxu0
    %v4756 = vadd.f32 0.0, %v4755
    %v4757 = vpop.f32.mrb[0].mxu0
    %v4758 = vpop.f32.mrb[0].mxu0
    %v4759 = vadd.f32 0.0, %v4758
    %v4760 = vpop.f32.mrb[0].mxu0
    %4761 = vmatprep.mubr.bf16.mxu0 0
    %4762 = vmatmul.mubr.bf16.gmra.mrb[0].mxu0 %v4581
    %v4763 = vpop.f32.mrb[0].mxu0
    %v4764 = vadd.f32 0.0, %v4763
    %v4765 = vpop.f32.mrb[0].mxu0
    %v4766 = vpop.f32.mrb[0].mxu0
    %v4767 = vadd.f32 0.0, %v4766
    %v4768 = vpop.f32.mrb[0].mxu0
    %4769 = vmatprep.mubr.bf16.mxu0 0
    %4770 = vmatmul.mubr.bf16.gmra.mrb[0].mxu0 %v4584
    %v4771 = vpop.f32.mrb[0].mxu0
    %v4772 = vadd.f32 0.0, %v4771
    %v4773 = vpop.f32.mrb[0].mxu0
    %v4774 = vpop.f32.mrb[0].mxu0
    %v4775 = vadd.f32 0.0, %v4774
    %v4776 = vpop.f32.mrb[0].mxu0
    %4777 = vmatprep.mubr.bf16.mxu0 0
    %4778 = vmatmul.mubr.bf16.gmra.mrb[0].mxu0 %v4587
    %v4779 = vpop.f32.mrb[0].mxu0
    %v4780 = vadd.f32 0.0, %v4779
    %v4781 = vpop.f32.mrb[0].mxu0
    %v4782 = vpop.f32.mrb[0].mxu0
    %v4783 = vadd.f32 0.0, %v4782
    %v4784 = vpop.f32.mrb[0].mxu0
    %4785 = vmatprep.mubr.bf16.mxu0 0
    %4786 = vmatmul.mubr.bf16.gmra.mrb[0].mxu0 %v4590
    %v4787 = vpop.f32.mrb[0].mxu0
    %v4788 = vadd.f32 0.0, %v4787
    %v4789 = vpop.f32.mrb[0].mxu0
    %v4790 = vpop.f32.mrb[0].mxu0
    %v4791 = vadd.f32 0.0, %v4790
    %v4792 = vpop.f32.mrb[0].mxu0
    %4793 = vmatprep.mubr.bf16.mxu0 0
    %4794 = vmatmul.mubr.bf16.gmra.mrb[0].mxu0 %v4593
    %v4795 = vpop.f32.mrb[0].mxu0
    %v4796 = vadd.f32 0.0, %v4795
    %v4797 = vpop.f32.mrb[0].mxu0
    %v4798 = vpop.f32.mrb[0].mxu0
    %v4799 = vadd.f32 0.0, %v4798
    %v4800 = vpop.f32.mrb[0].mxu0
    %4801 = vmatprep.mubr.bf16.mxu0 0
    %4802 = vmatmul.mubr.bf16.gmra.mrb[0].mxu0 %v4596
    %v4803 = vpop.f32.mrb[0].mxu0
    %v4804 = vadd.f32 0.0, %v4803
    %v4805 = vpop.f32.mrb[0].mxu0
    %v4806 = vpop.f32.mrb[0].mxu0
    %v4807 = vadd.f32 0.0, %v4806
    %v4808 = vpop.f32.mrb[0].mxu0
    %4809 = vmatprep.mubr.bf16.mxu0 0
    %4810 = vmatmul.mubr.bf16.gmra.mrb[0].mxu0 %v4599
    %v4811 = vpop.f32.mrb[0].mxu0
    %v4812 = vadd.f32 0.0, %v4811
    %v4813 = vpop.f32.mrb[0].mxu0
    %v4814 = vpop.f32.mrb[0].mxu0
    %v4815 = vadd.f32 0.0, %v4814
    %v4816 = vpop.f32.mrb[0].mxu0
    %4817 = vmatprep.mubr.bf16.mxu0 0
    %4818 = vmatmul.mubr.bf16.gmra.mrb[0].mxu0 %v4602
    %v4819 = vpop.f32.mrb[0].mxu0
    %v4820 = vadd.f32 0.0, %v4819
    %v4821 = vpop.f32.mrb[0].mxu0
    %v4822 = vpop.f32.mrb[0].mxu0
    %v4823 = vadd.f32 0.0, %v4822
    %v4824 = vpop.f32.mrb[0].mxu0
    %4825 = vmatprep.mubr.bf16.mxu0 0
    %4826 = vmatmul.mubr.bf16.gmra.mrb[0].mxu0 %v4605
    %v4827 = vpop.f32.mrb[0].mxu0
    %v4828 = vadd.f32 0.0, %v4827
    %v4829 = vpop.f32.mrb[0].mxu0
    %v4830 = vpop.f32.mrb[0].mxu0
    %v4831 = vadd.f32 0.0, %v4830
    %v4832 = vpop.f32.mrb[0].mxu0
    %4833 = vmatprep.mubr.bf16.mxu0 0
    %4834 = vmatmul.mubr.bf16.gmra.mrb[0].mxu0 %v4608
    %v4835 = vpop.f32.mrb[0].mxu0
    %v4836 = vadd.f32 0.0, %v4835
    %v4837 = vpop.f32.mrb[0].mxu0
    %v4838 = vpop.f32.mrb[0].mxu0
    %v4839 = vadd.f32 0.0, %v4838
    %v4840 = vpop.f32.mrb[0].mxu0
    %4841 = vmatprep.mubr.bf16.mxu0 0
    %4842 = vmatmul.mubr.bf16.gmra.mrb[0].mxu0 %v4611
    %v4843 = vpop.f32.mrb[0].mxu0
    %v4844 = vadd.f32 0.0, %v4843
    %v4845 = vpop.f32.mrb[0].mxu0
    %v4846 = vpop.f32.mrb[0].mxu0
    %v4847 = vadd.f32 0.0, %v4846
    %v4848 = vpop.f32.mrb[0].mxu0
    %4849 = vmatprep.mubr.bf16.mxu0 0
    %4850 = vmatmul.mubr.bf16.gmra.mrb[0].mxu0 %v4614
    %v4851 = vpop.f32.mrb[0].mxu0
    %v4852 = vadd.f32 0.0, %v4851
    %v4853 = vpop.f32.mrb[0].mxu0
    %v4854 = vpop.f32.mrb[0].mxu0
    %v4855 = vadd.f32 0.0, %v4854
    %v4856 = vpop.f32.mrb[0].mxu0
    %4857 = vmatprep.mubr.bf16.mxu0 0
    %4858 = vmatmul.mubr.bf16.gmra.mrb[0].mxu0 %v4617
    %v4859 = vpop.f32.mrb[0].mxu0
    %v4860 = vadd.f32 0.0, %v4859
    %v4861 = vpop.f32.mrb[0].mxu0
    %v4862 = vpop.f32.mrb[0].mxu0
    %v4863 = vadd.f32 0.0, %v4862
    %v4864 = vpop.f32.mrb[0].mxu0
    %4865 = vmatprep.mubr.bf16.mxu0 0
    %4866 = vmatmul.mubr.bf16.gmra.mrb[0].mxu0 %v4620
    %v4867 = vpop.f32.mrb[0].mxu0
    %v4868 = vadd.f32 0.0, %v4867
    %v4869 = vpop.f32.mrb[0].mxu0
    %v4870 = vpop.f32.mrb[0].mxu0
    %v4871 = vadd.f32 0.0, %v4870
    %v4872 = vpop.f32.mrb[0].mxu0
    %4873 = vmatprep.mubr.bf16.mxu0 0
    %4874 = vmatmul.mubr.bf16.gmra.mrb[0].mxu0 %v4623
    %v4875 = vpop.f32.mrb[0].mxu0
    %v4876 = vadd.f32 0.0, %v4875
    %v4877 = vpop.f32.mrb[0].mxu0
    %v4878 = vpop.f32.mrb[0].mxu0
    %v4879 = vadd.f32 0.0, %v4878
    %v4880 = vpop.f32.mrb[0].mxu0
    %4881 = vmatprep.mubr.bf16.mxu0 0
    %4882 = vmatmul.mubr.bf16.gmra.mrb[0].mxu0 %v4626
    %v4883 = vpop.f32.mrb[0].mxu0
    %v4884 = vadd.f32 0.0, %v4883
    %v4885 = vpop.f32.mrb[0].mxu0
    %v4886 = vpop.f32.mrb[0].mxu0
    %v4887 = vadd.f32 0.0, %v4886
    %v4888 = vpop.f32.mrb[0].mxu0
    %4889 = vmatprep.mubr.bf16.mxu0 0
    %4890 = vmatmul.mubr.bf16.gmra.mrb[0].mxu0 %v4629
    %v4891 = vpop.f32.mrb[0].mxu0
    %v4892 = vadd.f32 0.0, %v4891
    %v4893 = vpop.f32.mrb[0].mxu0
    %v4894 = vpop.f32.mrb[0].mxu0
    %v4895 = vadd.f32 0.0, %v4894
    %v4896 = vpop.f32.mrb[0].mxu0
    %4897 = vmatprep.mubr.bf16.mxu0 0
    %4898 = vmatmul.mubr.bf16.gmra.mrb[0].mxu0 %v4632
    %v4899 = vpop.f32.mrb[0].mxu0
    %v4900 = vadd.f32 0.0, %v4899
    %v4901 = vpop.f32.mrb[0].mxu0
    %v4902 = vpop.f32.mrb[0].mxu0
    %v4903 = vadd.f32 0.0, %v4902
    %v4904 = vpop.f32.mrb[0].mxu0
    %4905 = vmatprep.mubr.bf16.mxu0 0
    %4906 = vmatmul.mubr.bf16.gmra.mrb[0].mxu0 %v4635
    %v4907 = vpop.f32.mrb[0].mxu0
    %v4908 = vadd.f32 0.0, %v4907
    %v4909 = vpop.f32.mrb[0].mxu0
    %v4910 = vpop.f32.mrb[0].mxu0
    %v4911 = vadd.f32 0.0, %v4910
    %v4912 = vpop.f32.mrb[0].mxu0
    %4913 = vmatprep.mubr.bf16.mxu0 0
    %4914 = vmatmul.mubr.bf16.gmra.mrb[0].mxu0 %v4638
    %v4915 = vpop.f32.mrb[0].mxu0
    %v4916 = vadd.f32 0.0, %v4915
    %v4917 = vpop.f32.mrb[0].mxu0
    %v4918 = vpop.f32.mrb[0].mxu0
    %v4919 = vadd.f32 0.0, %v4918
    %v4920 = vpop.f32.mrb[0].mxu0
    %4921 = vmatprep.mubr.bf16.mxu0 0
    %4922 = vmatmul.mubr.bf16.gmra.mrb[0].mxu0 %v4641
    %v4923 = vpop.f32.mrb[0].mxu0
    %v4924 = vadd.f32 0.0, %v4923
    %v4925 = vpop.f32.mrb[0].mxu0
    %v4926 = vpop.f32.mrb[0].mxu0
    %v4927 = vadd.f32 0.0, %v4926
    %v4928 = vpop.f32.mrb[0].mxu0
    %4929 = vmatprep.mubr.bf16.mxu0 0
    %4930 = vmatmul.mubr.bf16.gmra.mrb[0].mxu0 %v4644
    %v4931 = vpop.f32.mrb[0].mxu0
    %v4932 = vadd.f32 0.0, %v4931
    %v4933 = vpop.f32.mrb[0].mxu0
    %v4934 = vpop.f32.mrb[0].mxu0
    %v4935 = vadd.f32 0.0, %v4934
    %v4936 = vpop.f32.mrb[0].mxu0
    %4937 = vdwg.mxu0
    %v4938 = vsel %vm4549, %v4086, 0
    %v4940 = vsel %vm4549, %v4088, 0
    %v4942 = vsel %vm4549, %v4090, 0
    %v4944 = vsel %vm4549, %v4092, 0
    %v4946 = vsel %vm4549, %v4094, 0
    %v4948 = vsel %vm4549, %v4096, 0
    %v4950 = vsel %vm4549, %v4098, 0
    %v4952 = vsel %vm4549, %v4100, 0
    %v4954 = vsel %vm4549, %v4102, 0
    %v4956 = vsel %vm4549, %v4104, 0
    %v4958 = vsel %vm4549, %v4106, 0
    %v4960 = vsel %vm4549, %v4108, 0
    %v4962 = vsel %vm4549, %v4110, 0
    %v4964 = vsel %vm4549, %v4112, 0
    %v4966 = vsel %vm4549, %v4114, 0
    %v4968 = vsel %vm4549, %v4116, 0
    %v4970 = vsel %vm4549, %v4122, 0
    %v4972 = vsel %vm4549, %v4124, 0
    %v4974 = vsel %vm4549, %v4126, 0
    %v4976 = vsel %vm4549, %v4128, 0
    %v4978 = vsel %vm4549, %v4130, 0
    %v4980 = vsel %vm4549, %v4132, 0
    %v4982 = vsel %vm4549, %v4134, 0
    %v4984 = vsel %vm4549, %v4136, 0
    %v4986 = vsel %vm4549, %v4138, 0
    %v4988 = vsel %vm4549, %v4140, 0
    %v4990 = vsel %vm4549, %v4142, 0
    %v4992 = vsel %vm4549, %v4144, 0
    %v4994 = vsel %vm4549, %v4146, 0
    %v4996 = vsel %vm4549, %v4148, 0
    %v4998 = vsel %vm4549, %v4150, 0
    %v5000 = vsel %vm4549, %v4152, 0
    %v5003 = vsel %vm4549, %v4158, 0
    %5005 = vmatprep.subr.bf16.mxu0 0
    %5006 = vmatpush1.bf16.xpose.msra.mxu0 %v5003
    %5007 = vmatprep.subr.bf16.mxu0 0
    %5008 = vmatpush1.bf16.xpose.msra.mxu0 0
    %5009 = vmatprep.subr.bf16.mxu0 0
    %5010 = vmatpush1.bf16.xpose.msra.mxu0 0
    %5011 = vmatprep.subr.bf16.mxu0 0
    %5012 = vmatpush1.bf16.xpose.msra.mxu0 0
    %5013 = vmatprep.subr.bf16.mxu0 0
    %5014 = vmatpush1.bf16.xpose.msra.mxu0 0
    %5015 = vmatprep.subr.bf16.mxu0 0
    %5016 = vmatpush1.bf16.xpose.msra.mxu0 0
    %5017 = vmatprep.subr.bf16.mxu0 0
    %5018 = vmatpush1.bf16.xpose.msra.mxu0 0
    %5019 = vmatprep.subr.bf16.mxu0 0
    %5020 = vmatpush1.bf16.xpose.msra.mxu0 0
    %5021 = vmatprep.subr.bf16.mxu0 0
    %5022 = vmatpush1.bf16.xpose.msra.mxu0 0
    %5023 = vmatprep.subr.bf16.mxu0 0
    %5024 = vmatpush1.bf16.xpose.msra.mxu0 0
    %5025 = vmatprep.subr.bf16.mxu0 0
    %5026 = vmatpush1.bf16.xpose.msra.mxu0 0
    %5027 = vmatprep.subr.bf16.mxu0 0
    %5028 = vmatpush1.bf16.xpose.msra.mxu0 0
    %5029 = vmatprep.subr.bf16.mxu0 0
    %5030 = vmatpush1.bf16.xpose.msra.mxu0 0
    %5031 = vmatprep.subr.bf16.mxu0 0
    %5032 = vmatpush1.bf16.xpose.msra.mxu0 0
    %5033 = vmatprep.subr.bf16.mxu0 0
    %5034 = vmatpush1.bf16.xpose.msra.mxu0 0
    %5035 = vmatprep.subr.bf16.mxu0 0
    %5036 = vmatpush1.bf16.xpose.msra.mxu0 0
    %5037 = vmatprep.mubr.bf16.mxu0 0
    %5038 = vmatmul.mubr.bf16.gmra.mrb[0].mxu0 %v4938
    %v5039 = vpop.f32.mrb[0].mxu0
    %v5040 = vadd.f32 %v4684, %v5039
    %v5041 = vpop.f32.mrb[0].mxu0
    %v5042 = vpop.f32.mrb[0].mxu0
    %v5043 = vadd.f32 %v4687, %v5042
    %v5044 = vpop.f32.mrb[0].mxu0
    %5045 = vmatprep.mubr.bf16.mxu0 0
    %5046 = vmatmul.mubr.bf16.gmra.mrb[0].mxu0 %v4940
    %v5047 = vpop.f32.mrb[0].mxu0
    %v5048 = vadd.f32 %v4692, %v5047
    %v5049 = vpop.f32.mrb[0].mxu0
    %v5050 = vpop.f32.mrb[0].mxu0
    %v5051 = vadd.f32 %v4695, %v5050
    %v5052 = vpop.f32.mrb[0].mxu0
    %5053 = vmatprep.mubr.bf16.mxu0 0
    %5054 = vmatmul.mubr.bf16.gmra.mrb[0].mxu0 %v4942
    %v5055 = vpop.f32.mrb[0].mxu0
    %v5056 = vadd.f32 %v4700, %v5055
    %v5057 = vpop.f32.mrb[0].mxu0
    %v5058 = vpop.f32.mrb[0].mxu0
    %v5059 = vadd.f32 %v4703, %v5058
    %v5060 = vpop.f32.mrb[0].mxu0
    %5061 = vmatprep.mubr.bf16.mxu0 0
    %5062 = vmatmul.mubr.bf16.gmra.mrb[0].mxu0 %v4944
    %v5063 = vpop.f32.mrb[0].mxu0
    %v5064 = vadd.f32 %v4708, %v5063
    %v5065 = vpop.f32.mrb[0].mxu0
    %v5066 = vpop.f32.mrb[0].mxu0
    %v5067 = vadd.f32 %v4711, %v5066
    %v5068 = vpop.f32.mrb[0].mxu0
    %5069 = vmatprep.mubr.bf16.mxu0 0
    %5070 = vmatmul.mubr.bf16.gmra.mrb[0].mxu0 %v4946
    %v5071 = vpop.f32.mrb[0].mxu0
    %v5072 = vadd.f32 %v4716, %v5071
    %v5073 = vpop.f32.mrb[0].mxu0
    %v5074 = vpop.f32.mrb[0].mxu0
    %v5075 = vadd.f32 %v4719, %v5074
    %v5076 = vpop.f32.mrb[0].mxu0
    %5077 = vmatprep.mubr.bf16.mxu0 0
    %5078 = vmatmul.mubr.bf16.gmra.mrb[0].mxu0 %v4948
    %v5079 = vpop.f32.mrb[0].mxu0
    %v5080 = vadd.f32 %v4724, %v5079
    %v5081 = vpop.f32.mrb[0].mxu0
    %v5082 = vpop.f32.mrb[0].mxu0
    %v5083 = vadd.f32 %v4727, %v5082
    %v5084 = vpop.f32.mrb[0].mxu0
    %5085 = vmatprep.mubr.bf16.mxu0 0
    %5086 = vmatmul.mubr.bf16.gmra.mrb[0].mxu0 %v4950
    %v5087 = vpop.f32.mrb[0].mxu0
    %v5088 = vadd.f32 %v4732, %v5087
    %v5089 = vpop.f32.mrb[0].mxu0
    %v5090 = vpop.f32.mrb[0].mxu0
    %v5091 = vadd.f32 %v4735, %v5090
    %v5092 = vpop.f32.mrb[0].mxu0
    %5093 = vmatprep.mubr.bf16.mxu0 0
    %5094 = vmatmul.mubr.bf16.gmra.mrb[0].mxu0 %v4952
    %v5095 = vpop.f32.mrb[0].mxu0
    %v5096 = vadd.f32 %v4740, %v5095
    %v5097 = vpop.f32.mrb[0].mxu0
    %v5098 = vpop.f32.mrb[0].mxu0
    %v5099 = vadd.f32 %v4743, %v5098
    %v5100 = vpop.f32.mrb[0].mxu0
    %5101 = vmatprep.mubr.bf16.mxu0 0
    %5102 = vmatmul.mubr.bf16.gmra.mrb[0].mxu0 %v4954
    %v5103 = vpop.f32.mrb[0].mxu0
    %v5104 = vadd.f32 %v4748, %v5103
    %v5105 = vpop.f32.mrb[0].mxu0
    %v5106 = vpop.f32.mrb[0].mxu0
    %v5107 = vadd.f32 %v4751, %v5106
    %v5108 = vpop.f32.mrb[0].mxu0
    %5109 = vmatprep.mubr.bf16.mxu0 0
    %5110 = vmatmul.mubr.bf16.gmra.mrb[0].mxu0 %v4956
    %v5111 = vpop.f32.mrb[0].mxu0
    %v5112 = vadd.f32 %v4756, %v5111
    %v5113 = vpop.f32.mrb[0].mxu0
    %v5114 = vpop.f32.mrb[0].mxu0
    %v5115 = vadd.f32 %v4759, %v5114
    %v5116 = vpop.f32.mrb[0].mxu0
    %5117 = vmatprep.mubr.bf16.mxu0 0
    %5118 = vmatmul.mubr.bf16.gmra.mrb[0].mxu0 %v4958
    %v5119 = vpop.f32.mrb[0].mxu0
    %v5120 = vadd.f32 %v4764, %v5119
    %v5121 = vpop.f32.mrb[0].mxu0
    %v5122 = vpop.f32.mrb[0].mxu0
    %v5123 = vadd.f32 %v4767, %v5122
    %v5124 = vpop.f32.mrb[0].mxu0
    %5125 = vmatprep.mubr.bf16.mxu0 0
    %5126 = vmatmul.mubr.bf16.gmra.mrb[0].mxu0 %v4960
    %v5127 = vpop.f32.mrb[0].mxu0
    %v5128 = vadd.f32 %v4772, %v5127
    %v5129 = vpop.f32.mrb[0].mxu0
    %v5130 = vpop.f32.mrb[0].mxu0
    %v5131 = vadd.f32 %v4775, %v5130
    %v5132 = vpop.f32.mrb[0].mxu0
    %5133 = vmatprep.mubr.bf16.mxu0 0
    %5134 = vmatmul.mubr.bf16.gmra.mrb[0].mxu0 %v4962
    %v5135 = vpop.f32.mrb[0].mxu0
    %v5136 = vadd.f32 %v4780, %v5135
    %v5137 = vpop.f32.mrb[0].mxu0
    %v5138 = vpop.f32.mrb[0].mxu0
    %v5139 = vadd.f32 %v4783, %v5138
    %v5140 = vpop.f32.mrb[0].mxu0
    %5141 = vmatprep.mubr.bf16.mxu0 0
    %5142 = vmatmul.mubr.bf16.gmra.mrb[0].mxu0 %v4964
    %v5143 = vpop.f32.mrb[0].mxu0
    %v5144 = vadd.f32 %v4788, %v5143
    %v5145 = vpop.f32.mrb[0].mxu0
    %v5146 = vpop.f32.mrb[0].mxu0
    %v5147 = vadd.f32 %v4791, %v5146
    %v5148 = vpop.f32.mrb[0].mxu0
    %5149 = vmatprep.mubr.bf16.mxu0 0
    %5150 = vmatmul.mubr.bf16.gmra.mrb[0].mxu0 %v4966
    %v5151 = vpop.f32.mrb[0].mxu0
    %v5152 = vadd.f32 %v4796, %v5151
    %v5153 = vpop.f32.mrb[0].mxu0
    %v5154 = vpop.f32.mrb[0].mxu0
    %v5155 = vadd.f32 %v4799, %v5154
    %v5156 = vpop.f32.mrb[0].mxu0
    %5157 = vmatprep.mubr.bf16.mxu0 0
    %5158 = vmatmul.mubr.bf16.gmra.mrb[0].mxu0 %v4968
    %v5159 = vpop.f32.mrb[0].mxu0
    %v5160 = vadd.f32 %v4804, %v5159
    %v5161 = vpop.f32.mrb[0].mxu0
    %v5162 = vpop.f32.mrb[0].mxu0
    %v5163 = vadd.f32 %v4807, %v5162
    %v5164 = vpop.f32.mrb[0].mxu0
    %5165 = vmatprep.mubr.bf16.mxu0 0
    %5166 = vmatmul.mubr.bf16.gmra.mrb[0].mxu0 %v4970
    %v5167 = vpop.f32.mrb[0].mxu0
    %v5168 = vadd.f32 %v4812, %v5167
    %v5169 = vpop.f32.mrb[0].mxu0
    %v5170 = vpop.f32.mrb[0].mxu0
    %v5171 = vadd.f32 %v4815, %v5170
    %v5172 = vpop.f32.mrb[0].mxu0
    %5173 = vmatprep.mubr.bf16.mxu0 0
    %5174 = vmatmul.mubr.bf16.gmra.mrb[0].mxu0 %v4972
    %v5175 = vpop.f32.mrb[0].mxu0
    %v5176 = vadd.f32 %v4820, %v5175
    %v5177 = vpop.f32.mrb[0].mxu0
    %v5178 = vpop.f32.mrb[0].mxu0
    %v5179 = vadd.f32 %v4823, %v5178
    %v5180 = vpop.f32.mrb[0].mxu0
    %5181 = vmatprep.mubr.bf16.mxu0 0
    %5182 = vmatmul.mubr.bf16.gmra.mrb[0].mxu0 %v4974
    %v5183 = vpop.f32.mrb[0].mxu0
    %v5184 = vadd.f32 %v4828, %v5183
    %v5185 = vpop.f32.mrb[0].mxu0
    %v5186 = vpop.f32.mrb[0].mxu0
    %v5187 = vadd.f32 %v4831, %v5186
    %v5188 = vpop.f32.mrb[0].mxu0
    %5189 = vmatprep.mubr.bf16.mxu0 0
    %5190 = vmatmul.mubr.bf16.gmra.mrb[0].mxu0 %v4976
    %v5191 = vpop.f32.mrb[0].mxu0
    %v5192 = vadd.f32 %v4836, %v5191
    %v5193 = vpop.f32.mrb[0].mxu0
    %v5194 = vpop.f32.mrb[0].mxu0
    %v5195 = vadd.f32 %v4839, %v5194
    %v5196 = vpop.f32.mrb[0].mxu0
    %5197 = vmatprep.mubr.bf16.mxu0 0
    %5198 = vmatmul.mubr.bf16.gmra.mrb[0].mxu0 %v4978
    %v5199 = vpop.f32.mrb[0].mxu0
    %v5200 = vadd.f32 %v4844, %v5199
    %v5201 = vpop.f32.mrb[0].mxu0
    %v5202 = vpop.f32.mrb[0].mxu0
    %v5203 = vadd.f32 %v4847, %v5202
    %v5204 = vpop.f32.mrb[0].mxu0
    %5205 = vmatprep.mubr.bf16.mxu0 0
    %5206 = vmatmul.mubr.bf16.gmra.mrb[0].mxu0 %v4980
    %v5207 = vpop.f32.mrb[0].mxu0
    %v5208 = vadd.f32 %v4852, %v5207
    %v5209 = vpop.f32.mrb[0].mxu0
    %v5210 = vpop.f32.mrb[0].mxu0
    %v5211 = vadd.f32 %v4855, %v5210
    %v5212 = vpop.f32.mrb[0].mxu0
    %5213 = vmatprep.mubr.bf16.mxu0 0
    %5214 = vmatmul.mubr.bf16.gmra.mrb[0].mxu0 %v4982
    %v5215 = vpop.f32.mrb[0].mxu0
    %v5216 = vadd.f32 %v4860, %v5215
    %v5217 = vpop.f32.mrb[0].mxu0
    %v5218 = vpop.f32.mrb[0].mxu0
    %v5219 = vadd.f32 %v4863, %v5218
    %v5220 = vpop.f32.mrb[0].mxu0
    %5221 = vmatprep.mubr.bf16.mxu0 0
    %5222 = vmatmul.mubr.bf16.gmra.mrb[0].mxu0 %v4984
    %v5223 = vpop.f32.mrb[0].mxu0
    %v5224 = vadd.f32 %v4868, %v5223
    %v5225 = vpop.f32.mrb[0].mxu0
    %v5226 = vpop.f32.mrb[0].mxu0
    %v5227 = vadd.f32 %v4871, %v5226
    %v5228 = vpop.f32.mrb[0].mxu0
    %5229 = vmatprep.mubr.bf16.mxu0 0
    %5230 = vmatmul.mubr.bf16.gmra.mrb[0].mxu0 %v4986
    %v5231 = vpop.f32.mrb[0].mxu0
    %v5232 = vadd.f32 %v4876, %v5231
    %v5233 = vpop.f32.mrb[0].mxu0
    %v5234 = vpop.f32.mrb[0].mxu0
    %v5235 = vadd.f32 %v4879, %v5234
    %v5236 = vpop.f32.mrb[0].mxu0
    %5237 = vmatprep.mubr.bf16.mxu0 0
    %5238 = vmatmul.mubr.bf16.gmra.mrb[0].mxu0 %v4988
    %v5239 = vpop.f32.mrb[0].mxu0
    %v5240 = vadd.f32 %v4884, %v5239
    %v5241 = vpop.f32.mrb[0].mxu0
    %v5242 = vpop.f32.mrb[0].mxu0
    %v5243 = vadd.f32 %v4887, %v5242
    %v5244 = vpop.f32.mrb[0].mxu0
    %5245 = vmatprep.mubr.bf16.mxu0 0
    %5246 = vmatmul.mubr.bf16.gmra.mrb[0].mxu0 %v4990
    %v5247 = vpop.f32.mrb[0].mxu0
    %v5248 = vadd.f32 %v4892, %v5247
    %v5249 = vpop.f32.mrb[0].mxu0
    %v5250 = vpop.f32.mrb[0].mxu0
    %v5251 = vadd.f32 %v4895, %v5250
    %v5252 = vpop.f32.mrb[0].mxu0
    %5253 = vmatprep.mubr.bf16.mxu0 0
    %5254 = vmatmul.mubr.bf16.gmra.mrb[0].mxu0 %v4992
    %v5255 = vpop.f32.mrb[0].mxu0
    %v5256 = vadd.f32 %v4900, %v5255
    %v5257 = vpop.f32.mrb[0].mxu0
    %v5258 = vpop.f32.mrb[0].mxu0
    %v5259 = vadd.f32 %v4903, %v5258
    %v5260 = vpop.f32.mrb[0].mxu0
    %5261 = vmatprep.mubr.bf16.mxu0 0
    %5262 = vmatmul.mubr.bf16.gmra.mrb[0].mxu0 %v4994
    %v5263 = vpop.f32.mrb[0].mxu0
    %v5264 = vadd.f32 %v4908, %v5263
    %v5265 = vpop.f32.mrb[0].mxu0
    %v5266 = vpop.f32.mrb[0].mxu0
    %v5267 = vadd.f32 %v4911, %v5266
    %v5268 = vpop.f32.mrb[0].mxu0
    %5269 = vmatprep.mubr.bf16.mxu0 0
    %5270 = vmatmul.mubr.bf16.gmra.mrb[0].mxu0 %v4996
    %v5271 = vpop.f32.mrb[0].mxu0
    %v5272 = vadd.f32 %v4916, %v5271
    %v5273 = vpop.f32.mrb[0].mxu0
    %v5274 = vpop.f32.mrb[0].mxu0
    %v5275 = vadd.f32 %v4919, %v5274
    %v5276 = vpop.f32.mrb[0].mxu0
    %5277 = vmatprep.mubr.bf16.mxu0 0
    %5278 = vmatmul.mubr.bf16.gmra.mrb[0].mxu0 %v4998
    %v5279 = vpop.f32.mrb[0].mxu0
    %v5280 = vadd.f32 %v4924, %v5279
    %v5281 = vpop.f32.mrb[0].mxu0
    %v5282 = vpop.f32.mrb[0].mxu0
    %v5283 = vadd.f32 %v4927, %v5282
    %v5284 = vpop.f32.mrb[0].mxu0
    %5285 = vmatprep.mubr.bf16.mxu0 0
    %5286 = vmatmul.mubr.bf16.gmra.mrb[0].mxu0 %v5000
    %v5287 = vpop.f32.mrb[0].mxu0
    %v5288 = vadd.f32 %v4932, %v5287
    %v5289 = vpop.f32.mrb[0].mxu0
    %v5290 = vpop.f32.mrb[0].mxu0
    %v5291 = vadd.f32 %v4935, %v5290
    %v5292 = vpop.f32.mrb[0].mxu0
    %5293 = vdwg.mxu0
    %vm5358 = vcmask 1046528
    %v5359 = vrot.slane %v4086, 1
    %v5360 = vrot.slane %v4087, 1
    %v5361 = vsel %vm5358, %v5359, %v5360
    %v5362 = vrot.slane %v4088, 1
    %v5363 = vrot.slane %v4089, 1
    %v5364 = vsel %vm5358, %v5362, %v5363
    %v5365 = vrot.slane %v4090, 1
    %v5366 = vrot.slane %v4091, 1
    %v5367 = vsel %vm5358, %v5365, %v5366
    %v5368 = vrot.slane %v4092, 1
    %v5369 = vrot.slane %v4093, 1
    %v5370 = vsel %vm5358, %v5368, %v5369
    %v5371 = vrot.slane %v4094, 1
    %v5372 = vrot.slane %v4095, 1
    %v5373 = vsel %vm5358, %v5371, %v5372
    %v5374 = vrot.slane %v4096, 1
    %v5375 = vrot.slane %v4097, 1
    %v5376 = vsel %vm5358, %v5374, %v5375
    %v5377 = vrot.slane %v4098, 1
    %v5378 = vrot.slane %v4099, 1
    %v5379 = vsel %vm5358, %v5377, %v5378
    %v5380 = vrot.slane %v4100, 1
    %v5381 = vrot.slane %v4101, 1
    %v5382 = vsel %vm5358, %v5380, %v5381
    %v5383 = vrot.slane %v4102, 1
    %v5384 = vrot.slane %v4103, 1
    %v5385 = vsel %vm5358, %v5383, %v5384
    %v5386 = vrot.slane %v4104, 1
    %v5387 = vrot.slane %v4105, 1
    %v5388 = vsel %vm5358, %v5386, %v5387
    %v5389 = vrot.slane %v4106, 1
    %v5390 = vrot.slane %v4107, 1
    %v5391 = vsel %vm5358, %v5389, %v5390
    %v5392 = vrot.slane %v4108, 1
    %v5393 = vrot.slane %v4109, 1
    %v5394 = vsel %vm5358, %v5392, %v5393
    %v5395 = vrot.slane %v4110, 1
    %v5396 = vrot.slane %v4111, 1
    %v5397 = vsel %vm5358, %v5395, %v5396
    %v5398 = vrot.slane %v4112, 1
    %v5399 = vrot.slane %v4113, 1
    %v5400 = vsel %vm5358, %v5398, %v5399
    %v5401 = vrot.slane %v4114, 1
    %v5402 = vrot.slane %v4115, 1
    %v5403 = vsel %vm5358, %v5401, %v5402
    %v5404 = vrot.slane %v4116, 1
    %v5405 = vrot.slane %v4117, 1
    %v5406 = vsel %vm5358, %v5404, %v5405
    %v5407 = vrot.slane %v4122, 1
    %v5408 = vrot.slane %v4123, 1
    %v5409 = vsel %vm5358, %v5407, %v5408
    %v5410 = vrot.slane %v4124, 1
    %v5411 = vrot.slane %v4125, 1
    %v5412 = vsel %vm5358, %v5410, %v5411
    %v5413 = vrot.slane %v4126, 1
    %v5414 = vrot.slane %v4127, 1
    %v5415 = vsel %vm5358, %v5413, %v5414
    %v5416 = vrot.slane %v4128, 1
    %v5417 = vrot.slane %v4129, 1
    %v5418 = vsel %vm5358, %v5416, %v5417
    %v5419 = vrot.slane %v4130, 1
    %v5420 = vrot.slane %v4131, 1
    %v5421 = vsel %vm5358, %v5419, %v5420
    %v5422 = vrot.slane %v4132, 1
    %v5423 = vrot.slane %v4133, 1
    %v5424 = vsel %vm5358, %v5422, %v5423
    %v5425 = vrot.slane %v4134, 1
    %v5426 = vrot.slane %v4135, 1
    %v5427 = vsel %vm5358, %v5425, %v5426
    %v5428 = vrot.slane %v4136, 1
    %v5429 = vrot.slane %v4137, 1
    %v5430 = vsel %vm5358, %v5428, %v5429
    %v5431 = vrot.slane %v4138, 1
    %v5432 = vrot.slane %v4139, 1
    %v5433 = vsel %vm5358, %v5431, %v5432
    %v5434 = vrot.slane %v4140, 1
    %v5435 = vrot.slane %v4141, 1
    %v5436 = vsel %vm5358, %v5434, %v5435
    %v5437 = vrot.slane %v4142, 1
    %v5438 = vrot.slane %v4143, 1
    %v5439 = vsel %vm5358, %v5437, %v5438
    %v5440 = vrot.slane %v4144, 1
    %v5441 = vrot.slane %v4145, 1
    %v5442 = vsel %vm5358, %v5440, %v5441
    %v5443 = vrot.slane %v4146, 1
    %v5444 = vrot.slane %v4147, 1
    %v5445 = vsel %vm5358, %v5443, %v5444
    %v5446 = vrot.slane %v4148, 1
    %v5447 = vrot.slane %v4149, 1
    %v5448 = vsel %vm5358, %v5446, %v5447
    %v5449 = vrot.slane %v4150, 1
    %v5450 = vrot.slane %v4151, 1
    %v5451 = vsel %vm5358, %v5449, %v5450
    %v5452 = vrot.slane %v4152, 1
    %v5453 = vrot.slane %v4153, 1
    %v5454 = vsel %vm5358, %v5452, %v5453
    %v5455 = vld [vmem:[%s3 + $0x4] sm:$0x3]
    %v5457 = vsel %vm4549, %v5361, 0
    %v5460 = vsel %vm4549, %v5364, 0
    %v5463 = vsel %vm4549, %v5367, 0
    %v5466 = vsel %vm4549, %v5370, 0
    %v5469 = vsel %vm4549, %v5373, 0
    %v5472 = vsel %vm4549, %v5376, 0
    %v5475 = vsel %vm4549, %v5379, 0
    %v5478 = vsel %vm4549, %v5382, 0
    %v5481 = vsel %vm4549, %v5385, 0
    %v5484 = vsel %vm4549, %v5388, 0
    %v5487 = vsel %vm4549, %v5391, 0
    %v5490 = vsel %vm4549, %v5394, 0
    %v5493 = vsel %vm4549, %v5397, 0
    %v5496 = vsel %vm4549, %v5400, 0
    %v5499 = vsel %vm4549, %v5403, 0
    %v5502 = vsel %vm4549, %v5406, 0
    %v5505 = vsel %vm4549, %v5409, 0
    %v5508 = vsel %vm4549, %v5412, 0
    %v5511 = vsel %vm4549, %v5415, 0
    %v5514 = vsel %vm4549, %v5418, 0
    %v5517 = vsel %vm4549, %v5421, 0
    %v5520 = vsel %vm4549, %v5424, 0
    %v5523 = vsel %vm4549, %v5427, 0
    %v5526 = vsel %vm4549, %v5430, 0
    %v5529 = vsel %vm4549, %v5433, 0
    %v5532 = vsel %vm4549, %v5436, 0
    %v5535 = vsel %vm4549, %v5439, 0
    %v5538 = vsel %vm4549, %v5442, 0
    %v5541 = vsel %vm4549, %v5445, 0
    %v5544 = vsel %vm4549, %v5448, 0
    %v5547 = vsel %vm4549, %v5451, 0
    %v5550 = vsel %vm4549, %v5454, 0
    %v5553 = vsel %vm4549, %v5455, 0
    %5555 = vmatprep.subr.bf16.mxu0 0
    %5556 = vmatpush1.bf16.xpose.msra.mxu0 %v5553
    %5557 = vmatprep.subr.bf16.mxu0 0
    %5558 = vmatpush1.bf16.xpose.msra.mxu0 0
    %5559 = vmatprep.subr.bf16.mxu0 0
    %5560 = vmatpush1.bf16.xpose.msra.mxu0 0
    %5561 = vmatprep.subr.bf16.mxu0 0
    %5562 = vmatpush1.bf16.xpose.msra.mxu0 0
    %5563 = vmatprep.subr.bf16.mxu0 0
    %5564 = vmatpush1.bf16.xpose.msra.mxu0 0
    %5565 = vmatprep.subr.bf16.mxu0 0
    %5566 = vmatpush1.bf16.xpose.msra.mxu0 0
    %5567 = vmatprep.subr.bf16.mxu0 0
    %5568 = vmatpush1.bf16.xpose.msra.mxu0 0
    %5569 = vmatprep.subr.bf16.mxu0 0
    %5570 = vmatpush1.bf16.xpose.msra.mxu0 0
    %5571 = vmatprep.subr.bf16.mxu0 0
    %5572 = vmatpush1.bf16.xpose.msra.mxu0 0
    %5573 = vmatprep.subr.bf16.mxu0 0
    %5574 = vmatpush1.bf16.xpose.msra.mxu0 0
    %5575 = vmatprep.subr.bf16.mxu0 0
    %5576 = vmatpush1.bf16.xpose.msra.mxu0 0
    %5577 = vmatprep.subr.bf16.mxu0 0
    %5578 = vmatpush1.bf16.xpose.msra.mxu0 0
    %5579 = vmatprep.subr.bf16.mxu0 0
    %5580 = vmatpush1.bf16.xpose.msra.mxu0 0
    %5581 = vmatprep.subr.bf16.mxu0 0
    %5582 = vmatpush1.bf16.xpose.msra.mxu0 0
    %5583 = vmatprep.subr.bf16.mxu0 0
    %5584 = vmatpush1.bf16.xpose.msra.mxu0 0
    %5585 = vmatprep.subr.bf16.mxu0 0
    %5586 = vmatpush1.bf16.xpose.msra.mxu0 0
    %5587 = vmatprep.mubr.bf16.mxu0 0
    %5588 = vmatmul.mubr.bf16.gmra.mrb[0].mxu0 %v5457
    %v5589 = vpop.f32.mrb[0].mxu0
    %v5590 = vadd.f32 0.0, %v5589
    %v5591 = vpop.f32.mrb[0].mxu0
    %v5592 = vpop.f32.mrb[0].mxu0
    %v5593 = vadd.f32 0.0, %v5592
    %v5594 = vpop.f32.mrb[0].mxu0
    %5595 = vmatprep.mubr.bf16.mxu0 0
    %5596 = vmatmul.mubr.bf16.gmra.mrb[0].mxu0 %v5460
    %v5597 = vpop.f32.mrb[0].mxu0
    %v5598 = vadd.f32 0.0, %v5597
    %v5599 = vpop.f32.mrb[0].mxu0
    %v5600 = vpop.f32.mrb[0].mxu0
    %v5601 = vadd.f32 0.0, %v5600
    %v5602 = vpop.f32.mrb[0].mxu0
    %5603 = vmatprep.mubr.bf16.mxu0 0
    %5604 = vmatmul.mubr.bf16.gmra.mrb[0].mxu0 %v5463
    %v5605 = vpop.f32.mrb[0].mxu0
    %v5606 = vadd.f32 0.0, %v5605
    %v5607 = vpop.f32.mrb[0].mxu0
    %v5608 = vpop.f32.mrb[0].mxu0
    %v5609 = vadd.f32 0.0, %v5608
    %v5610 = vpop.f32.mrb[0].mxu0
    %5611 = vmatprep.mubr.bf16.mxu0 0
    %5612 = vmatmul.mubr.bf16.gmra.mrb[0].mxu0 %v5466
    %v5613 = vpop.f32.mrb[0].mxu0
    %v5614 = vadd.f32 0.0, %v5613
    %v5615 = vpop.f32.mrb[0].mxu0
    %v5616 = vpop.f32.mrb[0].mxu0
    %v5617 = vadd.f32 0.0, %v5616
    %v5618 = vpop.f32.mrb[0].mxu0
    %5619 = vmatprep.mubr.bf16.mxu0 0
    %5620 = vmatmul.mubr.bf16.gmra.mrb[0].mxu0 %v5469
    %v5621 = vpop.f32.mrb[0].mxu0
    %v5622 = vadd.f32 0.0, %v5621
    %v5623 = vpop.f32.mrb[0].mxu0
    %v5624 = vpop.f32.mrb[0].mxu0
    %v5625 = vadd.f32 0.0, %v5624
    %v5626 = vpop.f32.mrb[0].mxu0
    %5627 = vmatprep.mubr.bf16.mxu0 0
    %5628 = vmatmul.mubr.bf16.gmra.mrb[0].mxu0 %v5472
    %v5629 = vpop.f32.mrb[0].mxu0
    %v5630 = vadd.f32 0.0, %v5629
    %v5631 = vpop.f32.mrb[0].mxu0
    %v5632 = vpop.f32.mrb[0].mxu0
    %v5633 = vadd.f32 0.0, %v5632
    %v5634 = vpop.f32.mrb[0].mxu0
    %5635 = vmatprep.mubr.bf16.mxu0 0
    %5636 = vmatmul.mubr.bf16.gmra.mrb[0].mxu0 %v5475
    %v5637 = vpop.f32.mrb[0].mxu0
    %v5638 = vadd.f32 0.0, %v5637
    %v5639 = vpop.f32.mrb[0].mxu0
    %v5640 = vpop.f32.mrb[0].mxu0
    %v5641 = vadd.f32 0.0, %v5640
    %v5642 = vpop.f32.mrb[0].mxu0
    %5643 = vmatprep.mubr.bf16.mxu0 0
    %5644 = vmatmul.mubr.bf16.gmra.mrb[0].mxu0 %v5478
    %v5645 = vpop.f32.mrb[0].mxu0
    %v5646 = vadd.f32 0.0, %v5645
    %v5647 = vpop.f32.mrb[0].mxu0
    %v5648 = vpop.f32.mrb[0].mxu0
    %v5649 = vadd.f32 0.0, %v5648
    %v5650 = vpop.f32.mrb[0].mxu0
    %5651 = vmatprep.mubr.bf16.mxu0 0
    %5652 = vmatmul.mubr.bf16.gmra.mrb[0].mxu0 %v5481
    %v5653 = vpop.f32.mrb[0].mxu0
    %v5654 = vadd.f32 0.0, %v5653
    %v5655 = vpop.f32.mrb[0].mxu0
    %v5656 = vpop.f32.mrb[0].mxu0
    %v5657 = vadd.f32 0.0, %v5656
    %v5658 = vpop.f32.mrb[0].mxu0
    %5659 = vmatprep.mubr.bf16.mxu0 0
    %5660 = vmatmul.mubr.bf16.gmra.mrb[0].mxu0 %v5484
    %v5661 = vpop.f32.mrb[0].mxu0
    %v5662 = vadd.f32 0.0, %v5661
    %v5663 = vpop.f32.mrb[0].mxu0
    %v5664 = vpop.f32.mrb[0].mxu0
    %v5665 = vadd.f32 0.0, %v5664
    %v5666 = vpop.f32.mrb[0].mxu0
    %5667 = vmatprep.mubr.bf16.mxu0 0
    %5668 = vmatmul.mubr.bf16.gmra.mrb[0].mxu0 %v5487
    %v5669 = vpop.f32.mrb[0].mxu0
    %v5670 = vadd.f32 0.0, %v5669
    %v5671 = vpop.f32.mrb[0].mxu0
    %v5672 = vpop.f32.mrb[0].mxu0
    %v5673 = vadd.f32 0.0, %v5672
    %v5674 = vpop.f32.mrb[0].mxu0
    %5675 = vmatprep.mubr.bf16.mxu0 0
    %5676 = vmatmul.mubr.bf16.gmra.mrb[0].mxu0 %v5490
    %v5677 = vpop.f32.mrb[0].mxu0
    %v5678 = vadd.f32 0.0, %v5677
    %v5679 = vpop.f32.mrb[0].mxu0
    %v5680 = vpop.f32.mrb[0].mxu0
    %v5681 = vadd.f32 0.0, %v5680
    %v5682 = vpop.f32.mrb[0].mxu0
    %5683 = vmatprep.mubr.bf16.mxu0 0
    %5684 = vmatmul.mubr.bf16.gmra.mrb[0].mxu0 %v5493
    %v5685 = vpop.f32.mrb[0].mxu0
    %v5686 = vadd.f32 0.0, %v5685
    %v5687 = vpop.f32.mrb[0].mxu0
    %v5688 = vpop.f32.mrb[0].mxu0
    %v5689 = vadd.f32 0.0, %v5688
    %v5690 = vpop.f32.mrb[0].mxu0
    %5691 = vmatprep.mubr.bf16.mxu0 0
    %5692 = vmatmul.mubr.bf16.gmra.mrb[0].mxu0 %v5496
    %v5693 = vpop.f32.mrb[0].mxu0
    %v5694 = vadd.f32 0.0, %v5693
    %v5695 = vpop.f32.mrb[0].mxu0
    %v5696 = vpop.f32.mrb[0].mxu0
    %v5697 = vadd.f32 0.0, %v5696
    %v5698 = vpop.f32.mrb[0].mxu0
    %5699 = vmatprep.mubr.bf16.mxu0 0
    %5700 = vmatmul.mubr.bf16.gmra.mrb[0].mxu0 %v5499
    %v5701 = vpop.f32.mrb[0].mxu0
    %v5702 = vadd.f32 0.0, %v5701
    %v5703 = vpop.f32.mrb[0].mxu0
    %v5704 = vpop.f32.mrb[0].mxu0
    %v5705 = vadd.f32 0.0, %v5704
    %v5706 = vpop.f32.mrb[0].mxu0
    %5707 = vmatprep.mubr.bf16.mxu0 0
    %5708 = vmatmul.mubr.bf16.gmra.mrb[0].mxu0 %v5502
    %v5709 = vpop.f32.mrb[0].mxu0
    %v5710 = vadd.f32 0.0, %v5709
    %v5711 = vpop.f32.mrb[0].mxu0
    %v5712 = vpop.f32.mrb[0].mxu0
    %v5713 = vadd.f32 0.0, %v5712
    %v5714 = vpop.f32.mrb[0].mxu0
    %5715 = vmatprep.mubr.bf16.mxu0 0
    %5716 = vmatmul.mubr.bf16.gmra.mrb[0].mxu0 %v5505
    %v5717 = vpop.f32.mrb[0].mxu0
    %v5718 = vadd.f32 0.0, %v5717
    %v5719 = vpop.f32.mrb[0].mxu0
    %v5720 = vpop.f32.mrb[0].mxu0
    %v5721 = vadd.f32 0.0, %v5720
    %v5722 = vpop.f32.mrb[0].mxu0
    %5723 = vmatprep.mubr.bf16.mxu0 0
    %5724 = vmatmul.mubr.bf16.gmra.mrb[0].mxu0 %v5508
    %v5725 = vpop.f32.mrb[0].mxu0
    %v5726 = vadd.f32 0.0, %v5725
    %v5727 = vpop.f32.mrb[0].mxu0
    %v5728 = vpop.f32.mrb[0].mxu0
    %v5729 = vadd.f32 0.0, %v5728
    %v5730 = vpop.f32.mrb[0].mxu0
    %5731 = vmatprep.mubr.bf16.mxu0 0
    %5732 = vmatmul.mubr.bf16.gmra.mrb[0].mxu0 %v5511
    %v5733 = vpop.f32.mrb[0].mxu0
    %v5734 = vadd.f32 0.0, %v5733
    %v5735 = vpop.f32.mrb[0].mxu0
    %v5736 = vpop.f32.mrb[0].mxu0
    %v5737 = vadd.f32 0.0, %v5736
    %v5738 = vpop.f32.mrb[0].mxu0
    %5739 = vmatprep.mubr.bf16.mxu0 0
    %5740 = vmatmul.mubr.bf16.gmra.mrb[0].mxu0 %v5514
    %v5741 = vpop.f32.mrb[0].mxu0
    %v5742 = vadd.f32 0.0, %v5741
    %v5743 = vpop.f32.mrb[0].mxu0
    %v5744 = vpop.f32.mrb[0].mxu0
    %v5745 = vadd.f32 0.0, %v5744
    %v5746 = vpop.f32.mrb[0].mxu0
    %5747 = vmatprep.mubr.bf16.mxu0 0
    %5748 = vmatmul.mubr.bf16.gmra.mrb[0].mxu0 %v5517
    %v5749 = vpop.f32.mrb[0].mxu0
    %v5750 = vadd.f32 0.0, %v5749
    %v5751 = vpop.f32.mrb[0].mxu0
    %v5752 = vpop.f32.mrb[0].mxu0
    %v5753 = vadd.f32 0.0, %v5752
    %v5754 = vpop.f32.mrb[0].mxu0
    %5755 = vmatprep.mubr.bf16.mxu0 0
    %5756 = vmatmul.mubr.bf16.gmra.mrb[0].mxu0 %v5520
    %v5757 = vpop.f32.mrb[0].mxu0
    %v5758 = vadd.f32 0.0, %v5757
    %v5759 = vpop.f32.mrb[0].mxu0
    %v5760 = vpop.f32.mrb[0].mxu0
    %v5761 = vadd.f32 0.0, %v5760
    %v5762 = vpop.f32.mrb[0].mxu0
    %5763 = vmatprep.mubr.bf16.mxu0 0
    %5764 = vmatmul.mubr.bf16.gmra.mrb[0].mxu0 %v5523
    %v5765 = vpop.f32.mrb[0].mxu0
    %v5766 = vadd.f32 0.0, %v5765
    %v5767 = vpop.f32.mrb[0].mxu0
    %v5768 = vpop.f32.mrb[0].mxu0
    %v5769 = vadd.f32 0.0, %v5768
    %v5770 = vpop.f32.mrb[0].mxu0
    %5771 = vmatprep.mubr.bf16.mxu0 0
    %5772 = vmatmul.mubr.bf16.gmra.mrb[0].mxu0 %v5526
    %v5773 = vpop.f32.mrb[0].mxu0
    %v5774 = vadd.f32 0.0, %v5773
    %v5775 = vpop.f32.mrb[0].mxu0
    %v5776 = vpop.f32.mrb[0].mxu0
    %v5777 = vadd.f32 0.0, %v5776
    %v5778 = vpop.f32.mrb[0].mxu0
    %5779 = vmatprep.mubr.bf16.mxu0 0
    %5780 = vmatmul.mubr.bf16.gmra.mrb[0].mxu0 %v5529
    %v5781 = vpop.f32.mrb[0].mxu0
    %v5782 = vadd.f32 0.0, %v5781
    %v5783 = vpop.f32.mrb[0].mxu0
    %v5784 = vpop.f32.mrb[0].mxu0
    %v5785 = vadd.f32 0.0, %v5784
    %v5786 = vpop.f32.mrb[0].mxu0
    %5787 = vmatprep.mubr.bf16.mxu0 0
    %5788 = vmatmul.mubr.bf16.gmra.mrb[0].mxu0 %v5532
    %v5789 = vpop.f32.mrb[0].mxu0
    %v5790 = vadd.f32 0.0, %v5789
    %v5791 = vpop.f32.mrb[0].mxu0
    %v5792 = vpop.f32.mrb[0].mxu0
    %v5793 = vadd.f32 0.0, %v5792
    %v5794 = vpop.f32.mrb[0].mxu0
    %5795 = vmatprep.mubr.bf16.mxu0 0
    %5796 = vmatmul.mubr.bf16.gmra.mrb[0].mxu0 %v5535
    %v5797 = vpop.f32.mrb[0].mxu0
    %v5798 = vadd.f32 0.0, %v5797
    %v5799 = vpop.f32.mrb[0].mxu0
    %v5800 = vpop.f32.mrb[0].mxu0
    %v5801 = vadd.f32 0.0, %v5800
    %v5802 = vpop.f32.mrb[0].mxu0
    %5803 = vmatprep.mubr.bf16.mxu0 0
    %5804 = vmatmul.mubr.bf16.gmra.mrb[0].mxu0 %v5538
    %v5805 = vpop.f32.mrb[0].mxu0
    %v5806 = vadd.f32 0.0, %v5805
    %v5807 = vpop.f32.mrb[0].mxu0
    %v5808 = vpop.f32.mrb[0].mxu0
    %v5809 = vadd.f32 0.0, %v5808
    %v5810 = vpop.f32.mrb[0].mxu0
    %5811 = vmatprep.mubr.bf16.mxu0 0
    %5812 = vmatmul.mubr.bf16.gmra.mrb[0].mxu0 %v5541
    %v5813 = vpop.f32.mrb[0].mxu0
    %v5814 = vadd.f32 0.0, %v5813
    %v5815 = vpop.f32.mrb[0].mxu0
    %v5816 = vpop.f32.mrb[0].mxu0
    %v5817 = vadd.f32 0.0, %v5816
    %v5818 = vpop.f32.mrb[0].mxu0
    %5819 = vmatprep.mubr.bf16.mxu0 0
    %5820 = vmatmul.mubr.bf16.gmra.mrb[0].mxu0 %v5544
    %v5821 = vpop.f32.mrb[0].mxu0
    %v5822 = vadd.f32 0.0, %v5821
    %v5823 = vpop.f32.mrb[0].mxu0
    %v5824 = vpop.f32.mrb[0].mxu0
    %v5825 = vadd.f32 0.0, %v5824
    %v5826 = vpop.f32.mrb[0].mxu0
    %5827 = vmatprep.mubr.bf16.mxu0 0
    %5828 = vmatmul.mubr.bf16.gmra.mrb[0].mxu0 %v5547
    %v5829 = vpop.f32.mrb[0].mxu0
    %v5830 = vadd.f32 0.0, %v5829
    %v5831 = vpop.f32.mrb[0].mxu0
    %v5832 = vpop.f32.mrb[0].mxu0
    %v5833 = vadd.f32 0.0, %v5832
    %v5834 = vpop.f32.mrb[0].mxu0
    %5835 = vmatprep.mubr.bf16.mxu0 0
    %5836 = vmatmul.mubr.bf16.gmra.mrb[0].mxu0 %v5550
    %v5837 = vpop.f32.mrb[0].mxu0
    %v5838 = vadd.f32 0.0, %v5837
    %v5839 = vpop.f32.mrb[0].mxu0
    %v5840 = vpop.f32.mrb[0].mxu0
    %v5841 = vadd.f32 0.0, %v5840
    %v5842 = vpop.f32.mrb[0].mxu0
    %5843 = vdwg.mxu0
    %v5844 = vadd.f32 %v5040, %v5590
    %v5845 = vadd.f32 %v5043, %v5593
    %v5846 = vadd.f32 %v5048, %v5598
    %v5847 = vadd.f32 %v5051, %v5601
    %v5848 = vadd.f32 %v5056, %v5606
    %v5849 = vadd.f32 %v5059, %v5609
    %v5850 = vadd.f32 %v5064, %v5614
    %v5851 = vadd.f32 %v5067, %v5617
    %v5852 = vadd.f32 %v5072, %v5622
    %v5853 = vadd.f32 %v5075, %v5625
    %v5854 = vadd.f32 %v5080, %v5630
    %v5855 = vadd.f32 %v5083, %v5633
    %v5856 = vadd.f32 %v5088, %v5638
    %v5857 = vadd.f32 %v5091, %v5641
    %v5858 = vadd.f32 %v5096, %v5646
    %v5859 = vadd.f32 %v5099, %v5649
    %v5860 = vadd.f32 %v5104, %v5654
    %v5861 = vadd.f32 %v5107, %v5657
    %v5862 = vadd.f32 %v5112, %v5662
    %v5863 = vadd.f32 %v5115, %v5665
    %v5864 = vadd.f32 %v5120, %v5670
    %v5865 = vadd.f32 %v5123, %v5673
    %v5866 = vadd.f32 %v5128, %v5678
    %v5867 = vadd.f32 %v5131, %v5681
    %v5868 = vadd.f32 %v5136, %v5686
    %v5869 = vadd.f32 %v5139, %v5689
    %v5870 = vadd.f32 %v5144, %v5694
    %v5871 = vadd.f32 %v5147, %v5697
    %v5872 = vadd.f32 %v5152, %v5702
    %v5873 = vadd.f32 %v5155, %v5705
    %v5874 = vadd.f32 %v5160, %v5710
    %v5875 = vadd.f32 %v5163, %v5713
    %v5876 = vadd.f32 %v5168, %v5718
    %v5877 = vadd.f32 %v5171, %v5721
    %v5878 = vadd.f32 %v5176, %v5726
    %v5879 = vadd.f32 %v5179, %v5729
    %v5880 = vadd.f32 %v5184, %v5734
    %v5881 = vadd.f32 %v5187, %v5737
    %v5882 = vadd.f32 %v5192, %v5742
    %v5883 = vadd.f32 %v5195, %v5745
    %v5884 = vadd.f32 %v5200, %v5750
    %v5885 = vadd.f32 %v5203, %v5753
    %v5886 = vadd.f32 %v5208, %v5758
    %v5887 = vadd.f32 %v5211, %v5761
    %v5888 = vadd.f32 %v5216, %v5766
    %v5889 = vadd.f32 %v5219, %v5769
    %v5890 = vadd.f32 %v5224, %v5774
    %v5891 = vadd.f32 %v5227, %v5777
    %v5892 = vadd.f32 %v5232, %v5782
    %v5893 = vadd.f32 %v5235, %v5785
    %v5894 = vadd.f32 %v5240, %v5790
    %v5895 = vadd.f32 %v5243, %v5793
    %v5896 = vadd.f32 %v5248, %v5798
    %v5897 = vadd.f32 %v5251, %v5801
    %v5898 = vadd.f32 %v5256, %v5806
    %v5899 = vadd.f32 %v5259, %v5809
    %v5900 = vadd.f32 %v5264, %v5814
    %v5901 = vadd.f32 %v5267, %v5817
    %v5902 = vadd.f32 %v5272, %v5822
    %v5903 = vadd.f32 %v5275, %v5825
    %v5904 = vadd.f32 %v5280, %v5830
    %v5905 = vadd.f32 %v5283, %v5833
    %v5906 = vadd.f32 %v5288, %v5838
    %v5907 = vadd.f32 %v5291, %v5841
    %v5908 = vld [vmem:[%s3 + $0x4] sm:$0xc]
    %v5910 = vunpack.c.l.b16 %v5908
    %v5911 = vpack.c.b16 %v5910, %v5910
    %v5912 = vrot.slane %v5911, 2
    %v5914 = vsel %vm4549, %v4118, 0
    %v5917 = vsel %vm4549, %v4154, 0
    %v5920 = vsel %vm4549, %v5912, 0
    %5922 = vmatprep.subr.bf16.mxu0 0
    %5923 = vmatpush1.bf16.xpose.msra.mxu0 %v5920
    %5924 = vmatprep.subr.bf16.mxu0 0
    %5925 = vmatpush1.bf16.xpose.msra.mxu0 0
    %5926 = vmatprep.subr.bf16.mxu0 0
    %5927 = vmatpush1.bf16.xpose.msra.mxu0 0
    %5928 = vmatprep.subr.bf16.mxu0 0
    %5929 = vmatpush1.bf16.xpose.msra.mxu0 0
    %5930 = vmatprep.subr.bf16.mxu0 0
    %5931 = vmatpush1.bf16.xpose.msra.mxu0 0
    %5932 = vmatprep.subr.bf16.mxu0 0
    %5933 = vmatpush1.bf16.xpose.msra.mxu0 0
    %5934 = vmatprep.subr.bf16.mxu0 0
    %5935 = vmatpush1.bf16.xpose.msra.mxu0 0
    %5936 = vmatprep.subr.bf16.mxu0 0
    %5937 = vmatpush1.bf16.xpose.msra.mxu0 0
    %5938 = vmatprep.subr.bf16.mxu0 0
    %5939 = vmatpush1.bf16.xpose.msra.mxu0 0
    %5940 = vmatprep.subr.bf16.mxu0 0
    %5941 = vmatpush1.bf16.xpose.msra.mxu0 0
    %5942 = vmatprep.subr.bf16.mxu0 0
    %5943 = vmatpush1.bf16.xpose.msra.mxu0 0
    %5944 = vmatprep.subr.bf16.mxu0 0
    %5945 = vmatpush1.bf16.xpose.msra.mxu0 0
    %5946 = vmatprep.subr.bf16.mxu0 0
    %5947 = vmatpush1.bf16.xpose.msra.mxu0 0
    %5948 = vmatprep.subr.bf16.mxu0 0
    %5949 = vmatpush1.bf16.xpose.msra.mxu0 0
    %5950 = vmatprep.subr.bf16.mxu0 0
    %5951 = vmatpush1.bf16.xpose.msra.mxu0 0
    %5952 = vmatprep.subr.bf16.mxu0 0
    %5953 = vmatpush1.bf16.xpose.msra.mxu0 0
    %5954 = vmatprep.mubr.bf16.mxu0 0
    %5955 = vmatmul.mubr.bf16.gmra.mrb[0].mxu0 %v4940
    %v5956 = vpop.f32.mrb[0].mxu0
    %v5957 = vadd.f32 0.0, %v5956
    %v5958 = vpop.f32.mrb[0].mxu0
    %v5959 = vpop.f32.mrb[0].mxu0
    %v5960 = vadd.f32 0.0, %v5959
    %v5961 = vpop.f32.mrb[0].mxu0
    %5962 = vmatprep.mubr.bf16.mxu0 0
    %5963 = vmatmul.mubr.bf16.gmra.mrb[0].mxu0 %v4942
    %v5964 = vpop.f32.mrb[0].mxu0
    %v5965 = vadd.f32 0.0, %v5964
    %v5966 = vpop.f32.mrb[0].mxu0
    %v5967 = vpop.f32.mrb[0].mxu0
    %v5968 = vadd.f32 0.0, %v5967
    %v5969 = vpop.f32.mrb[0].mxu0
    %5970 = vmatprep.mubr.bf16.mxu0 0
    %5971 = vmatmul.mubr.bf16.gmra.mrb[0].mxu0 %v4944
    %v5972 = vpop.f32.mrb[0].mxu0
    %v5973 = vadd.f32 0.0, %v5972
    %v5974 = vpop.f32.mrb[0].mxu0
    %v5975 = vpop.f32.mrb[0].mxu0
    %v5976 = vadd.f32 0.0, %v5975
    %v5977 = vpop.f32.mrb[0].mxu0
    %5978 = vmatprep.mubr.bf16.mxu0 0
    %5979 = vmatmul.mubr.bf16.gmra.mrb[0].mxu0 %v4946
    %v5980 = vpop.f32.mrb[0].mxu0
    %v5981 = vadd.f32 0.0, %v5980
    %v5982 = vpop.f32.mrb[0].mxu0
    %v5983 = vpop.f32.mrb[0].mxu0
    %v5984 = vadd.f32 0.0, %v5983
    %v5985 = vpop.f32.mrb[0].mxu0
    %5986 = vmatprep.mubr.bf16.mxu0 0
    %5987 = vmatmul.mubr.bf16.gmra.mrb[0].mxu0 %v4948
    %v5988 = vpop.f32.mrb[0].mxu0
    %v5989 = vadd.f32 0.0, %v5988
    %v5990 = vpop.f32.mrb[0].mxu0
    %v5991 = vpop.f32.mrb[0].mxu0
    %v5992 = vadd.f32 0.0, %v5991
    %v5993 = vpop.f32.mrb[0].mxu0
    %5994 = vmatprep.mubr.bf16.mxu0 0
    %5995 = vmatmul.mubr.bf16.gmra.mrb[0].mxu0 %v4950
    %v5996 = vpop.f32.mrb[0].mxu0
    %v5997 = vadd.f32 0.0, %v5996
    %v5998 = vpop.f32.mrb[0].mxu0
    %v5999 = vpop.f32.mrb[0].mxu0
    %v6000 = vadd.f32 0.0, %v5999
    %v6001 = vpop.f32.mrb[0].mxu0
    %6002 = vmatprep.mubr.bf16.mxu0 0
    %6003 = vmatmul.mubr.bf16.gmra.mrb[0].mxu0 %v4952
    %v6004 = vpop.f32.mrb[0].mxu0
    %v6005 = vadd.f32 0.0, %v6004
    %v6006 = vpop.f32.mrb[0].mxu0
    %v6007 = vpop.f32.mrb[0].mxu0
    %v6008 = vadd.f32 0.0, %v6007
    %v6009 = vpop.f32.mrb[0].mxu0
    %6010 = vmatprep.mubr.bf16.mxu0 0
    %6011 = vmatmul.mubr.bf16.gmra.mrb[0].mxu0 %v4954
    %v6012 = vpop.f32.mrb[0].mxu0
    %v6013 = vadd.f32 0.0, %v6012
    %v6014 = vpop.f32.mrb[0].mxu0
    %v6015 = vpop.f32.mrb[0].mxu0
    %v6016 = vadd.f32 0.0, %v6015
    %v6017 = vpop.f32.mrb[0].mxu0
    %6018 = vmatprep.mubr.bf16.mxu0 0
    %6019 = vmatmul.mubr.bf16.gmra.mrb[0].mxu0 %v4956
    %v6020 = vpop.f32.mrb[0].mxu0
    %v6021 = vadd.f32 0.0, %v6020
    %v6022 = vpop.f32.mrb[0].mxu0
    %v6023 = vpop.f32.mrb[0].mxu0
    %v6024 = vadd.f32 0.0, %v6023
    %v6025 = vpop.f32.mrb[0].mxu0
    %6026 = vmatprep.mubr.bf16.mxu0 0
    %6027 = vmatmul.mubr.bf16.gmra.mrb[0].mxu0 %v4958
    %v6028 = vpop.f32.mrb[0].mxu0
    %v6029 = vadd.f32 0.0, %v6028
    %v6030 = vpop.f32.mrb[0].mxu0
    %v6031 = vpop.f32.mrb[0].mxu0
    %v6032 = vadd.f32 0.0, %v6031
    %v6033 = vpop.f32.mrb[0].mxu0
    %6034 = vmatprep.mubr.bf16.mxu0 0
    %6035 = vmatmul.mubr.bf16.gmra.mrb[0].mxu0 %v4960
    %v6036 = vpop.f32.mrb[0].mxu0
    %v6037 = vadd.f32 0.0, %v6036
    %v6038 = vpop.f32.mrb[0].mxu0
    %v6039 = vpop.f32.mrb[0].mxu0
    %v6040 = vadd.f32 0.0, %v6039
    %v6041 = vpop.f32.mrb[0].mxu0
    %6042 = vmatprep.mubr.bf16.mxu0 0
    %6043 = vmatmul.mubr.bf16.gmra.mrb[0].mxu0 %v4962
    %v6044 = vpop.f32.mrb[0].mxu0
    %v6045 = vadd.f32 0.0, %v6044
    %v6046 = vpop.f32.mrb[0].mxu0
    %v6047 = vpop.f32.mrb[0].mxu0
    %v6048 = vadd.f32 0.0, %v6047
    %v6049 = vpop.f32.mrb[0].mxu0
    %6050 = vmatprep.mubr.bf16.mxu0 0
    %6051 = vmatmul.mubr.bf16.gmra.mrb[0].mxu0 %v4964
    %v6052 = vpop.f32.mrb[0].mxu0
    %v6053 = vadd.f32 0.0, %v6052
    %v6054 = vpop.f32.mrb[0].mxu0
    %v6055 = vpop.f32.mrb[0].mxu0
    %v6056 = vadd.f32 0.0, %v6055
    %v6057 = vpop.f32.mrb[0].mxu0
    %6058 = vmatprep.mubr.bf16.mxu0 0
    %6059 = vmatmul.mubr.bf16.gmra.mrb[0].mxu0 %v4966
    %v6060 = vpop.f32.mrb[0].mxu0
    %v6061 = vadd.f32 0.0, %v6060
    %v6062 = vpop.f32.mrb[0].mxu0
    %v6063 = vpop.f32.mrb[0].mxu0
    %v6064 = vadd.f32 0.0, %v6063
    %v6065 = vpop.f32.mrb[0].mxu0
    %6066 = vmatprep.mubr.bf16.mxu0 0
    %6067 = vmatmul.mubr.bf16.gmra.mrb[0].mxu0 %v4968
    %v6068 = vpop.f32.mrb[0].mxu0
    %v6069 = vadd.f32 0.0, %v6068
    %v6070 = vpop.f32.mrb[0].mxu0
    %v6071 = vpop.f32.mrb[0].mxu0
    %v6072 = vadd.f32 0.0, %v6071
    %v6073 = vpop.f32.mrb[0].mxu0
    %6074 = vmatprep.mubr.bf16.mxu0 0
    %6075 = vmatmul.mubr.bf16.gmra.mrb[0].mxu0 %v5914
    %v6076 = vpop.f32.mrb[0].mxu0
    %v6077 = vadd.f32 0.0, %v6076
    %v6078 = vpop.f32.mrb[0].mxu0
    %v6079 = vpop.f32.mrb[0].mxu0
    %v6080 = vadd.f32 0.0, %v6079
    %v6081 = vpop.f32.mrb[0].mxu0
    %6082 = vmatprep.mubr.bf16.mxu0 0
    %6083 = vmatmul.mubr.bf16.gmra.mrb[0].mxu0 %v4972
    %v6084 = vpop.f32.mrb[0].mxu0
    %v6085 = vadd.f32 0.0, %v6084
    %v6086 = vpop.f32.mrb[0].mxu0
    %v6087 = vpop.f32.mrb[0].mxu0
    %v6088 = vadd.f32 0.0, %v6087
    %v6089 = vpop.f32.mrb[0].mxu0
    %6090 = vmatprep.mubr.bf16.mxu0 0
    %6091 = vmatmul.mubr.bf16.gmra.mrb[0].mxu0 %v4974
    %v6092 = vpop.f32.mrb[0].mxu0
    %v6093 = vadd.f32 0.0, %v6092
    %v6094 = vpop.f32.mrb[0].mxu0
    %v6095 = vpop.f32.mrb[0].mxu0
    %v6096 = vadd.f32 0.0, %v6095
    %v6097 = vpop.f32.mrb[0].mxu0
    %6098 = vmatprep.mubr.bf16.mxu0 0
    %6099 = vmatmul.mubr.bf16.gmra.mrb[0].mxu0 %v4976
    %v6100 = vpop.f32.mrb[0].mxu0
    %v6101 = vadd.f32 0.0, %v6100
    %v6102 = vpop.f32.mrb[0].mxu0
    %v6103 = vpop.f32.mrb[0].mxu0
    %v6104 = vadd.f32 0.0, %v6103
    %v6105 = vpop.f32.mrb[0].mxu0
    %6106 = vmatprep.mubr.bf16.mxu0 0
    %6107 = vmatmul.mubr.bf16.gmra.mrb[0].mxu0 %v4978
    %v6108 = vpop.f32.mrb[0].mxu0
    %v6109 = vadd.f32 0.0, %v6108
    %v6110 = vpop.f32.mrb[0].mxu0
    %v6111 = vpop.f32.mrb[0].mxu0
    %v6112 = vadd.f32 0.0, %v6111
    %v6113 = vpop.f32.mrb[0].mxu0
    %6114 = vmatprep.mubr.bf16.mxu0 0
    %6115 = vmatmul.mubr.bf16.gmra.mrb[0].mxu0 %v4980
    %v6116 = vpop.f32.mrb[0].mxu0
    %v6117 = vadd.f32 0.0, %v6116
    %v6118 = vpop.f32.mrb[0].mxu0
    %v6119 = vpop.f32.mrb[0].mxu0
    %v6120 = vadd.f32 0.0, %v6119
    %v6121 = vpop.f32.mrb[0].mxu0
    %6122 = vmatprep.mubr.bf16.mxu0 0
    %6123 = vmatmul.mubr.bf16.gmra.mrb[0].mxu0 %v4982
    %v6124 = vpop.f32.mrb[0].mxu0
    %v6125 = vadd.f32 0.0, %v6124
    %v6126 = vpop.f32.mrb[0].mxu0
    %v6127 = vpop.f32.mrb[0].mxu0
    %v6128 = vadd.f32 0.0, %v6127
    %v6129 = vpop.f32.mrb[0].mxu0
    %6130 = vmatprep.mubr.bf16.mxu0 0
    %6131 = vmatmul.mubr.bf16.gmra.mrb[0].mxu0 %v4984
    %v6132 = vpop.f32.mrb[0].mxu0
    %v6133 = vadd.f32 0.0, %v6132
    %v6134 = vpop.f32.mrb[0].mxu0
    %v6135 = vpop.f32.mrb[0].mxu0
    %v6136 = vadd.f32 0.0, %v6135
    %v6137 = vpop.f32.mrb[0].mxu0
    %6138 = vmatprep.mubr.bf16.mxu0 0
    %6139 = vmatmul.mubr.bf16.gmra.mrb[0].mxu0 %v4986
    %v6140 = vpop.f32.mrb[0].mxu0
    %v6141 = vadd.f32 0.0, %v6140
    %v6142 = vpop.f32.mrb[0].mxu0
    %v6143 = vpop.f32.mrb[0].mxu0
    %v6144 = vadd.f32 0.0, %v6143
    %v6145 = vpop.f32.mrb[0].mxu0
    %6146 = vmatprep.mubr.bf16.mxu0 0
    %6147 = vmatmul.mubr.bf16.gmra.mrb[0].mxu0 %v4988
    %v6148 = vpop.f32.mrb[0].mxu0
    %v6149 = vadd.f32 0.0, %v6148
    %v6150 = vpop.f32.mrb[0].mxu0
    %v6151 = vpop.f32.mrb[0].mxu0
    %v6152 = vadd.f32 0.0, %v6151
    %v6153 = vpop.f32.mrb[0].mxu0
    %6154 = vmatprep.mubr.bf16.mxu0 0
    %6155 = vmatmul.mubr.bf16.gmra.mrb[0].mxu0 %v4990
    %v6156 = vpop.f32.mrb[0].mxu0
    %v6157 = vadd.f32 0.0, %v6156
    %v6158 = vpop.f32.mrb[0].mxu0
    %v6159 = vpop.f32.mrb[0].mxu0
    %v6160 = vadd.f32 0.0, %v6159
    %v6161 = vpop.f32.mrb[0].mxu0
    %6162 = vmatprep.mubr.bf16.mxu0 0
    %6163 = vmatmul.mubr.bf16.gmra.mrb[0].mxu0 %v4992
    %v6164 = vpop.f32.mrb[0].mxu0
    %v6165 = vadd.f32 0.0, %v6164
    %v6166 = vpop.f32.mrb[0].mxu0
    %v6167 = vpop.f32.mrb[0].mxu0
    %v6168 = vadd.f32 0.0, %v6167
    %v6169 = vpop.f32.mrb[0].mxu0
    %6170 = vmatprep.mubr.bf16.mxu0 0
    %6171 = vmatmul.mubr.bf16.gmra.mrb[0].mxu0 %v4994
    %v6172 = vpop.f32.mrb[0].mxu0
    %v6173 = vadd.f32 0.0, %v6172
    %v6174 = vpop.f32.mrb[0].mxu0
    %v6175 = vpop.f32.mrb[0].mxu0
    %v6176 = vadd.f32 0.0, %v6175
    %v6177 = vpop.f32.mrb[0].mxu0
    %6178 = vmatprep.mubr.bf16.mxu0 0
    %6179 = vmatmul.mubr.bf16.gmra.mrb[0].mxu0 %v4996
    %v6180 = vpop.f32.mrb[0].mxu0
    %v6181 = vadd.f32 0.0, %v6180
    %v6182 = vpop.f32.mrb[0].mxu0
    %v6183 = vpop.f32.mrb[0].mxu0
    %v6184 = vadd.f32 0.0, %v6183
    %v6185 = vpop.f32.mrb[0].mxu0
    %6186 = vmatprep.mubr.bf16.mxu0 0
    %6187 = vmatmul.mubr.bf16.gmra.mrb[0].mxu0 %v4998
    %v6188 = vpop.f32.mrb[0].mxu0
    %v6189 = vadd.f32 0.0, %v6188
    %v6190 = vpop.f32.mrb[0].mxu0
    %v6191 = vpop.f32.mrb[0].mxu0
    %v6192 = vadd.f32 0.0, %v6191
    %v6193 = vpop.f32.mrb[0].mxu0
    %6194 = vmatprep.mubr.bf16.mxu0 0
    %6195 = vmatmul.mubr.bf16.gmra.mrb[0].mxu0 %v5000
    %v6196 = vpop.f32.mrb[0].mxu0
    %v6197 = vadd.f32 0.0, %v6196
    %v6198 = vpop.f32.mrb[0].mxu0
    %v6199 = vpop.f32.mrb[0].mxu0
    %v6200 = vadd.f32 0.0, %v6199
    %v6201 = vpop.f32.mrb[0].mxu0
    %6202 = vmatprep.mubr.bf16.mxu0 0
    %6203 = vmatmul.mubr.bf16.gmra.mrb[0].mxu0 %v5917
    %v6204 = vpop.f32.mrb[0].mxu0
    %v6205 = vadd.f32 0.0, %v6204
    %v6206 = vpop.f32.mrb[0].mxu0
    %v6207 = vpop.f32.mrb[0].mxu0
    %v6208 = vadd.f32 0.0, %v6207
    %v6209 = vpop.f32.mrb[0].mxu0
    %6210 = vdwg.mxu0
    %v6211 = vadd.f32 %v5844, %v5957
    %v6212 = vadd.f32 %v5845, %v5960
    %v6213 = vadd.f32 %v5846, %v5965
    %v6214 = vadd.f32 %v5847, %v5968
    %v6215 = vadd.f32 %v5848, %v5973
    %v6216 = vadd.f32 %v5849, %v5976
    %v6217 = vadd.f32 %v5850, %v5981
    %v6218 = vadd.f32 %v5851, %v5984
    %v6219 = vadd.f32 %v5852, %v5989
    %v6220 = vadd.f32 %v5853, %v5992
    %v6221 = vadd.f32 %v5854, %v5997
    %v6222 = vadd.f32 %v5855, %v6000
    %v6223 = vadd.f32 %v5856, %v6005
    %v6224 = vadd.f32 %v5857, %v6008
    %v6225 = vadd.f32 %v5858, %v6013
    %v6226 = vadd.f32 %v5859, %v6016
    %v6227 = vadd.f32 %v5860, %v6021
    %v6228 = vadd.f32 %v5861, %v6024
    %v6229 = vadd.f32 %v5862, %v6029
    %v6230 = vadd.f32 %v5863, %v6032
    %v6231 = vadd.f32 %v5864, %v6037
    %v6232 = vadd.f32 %v5865, %v6040
    %v6233 = vadd.f32 %v5866, %v6045
    %v6234 = vadd.f32 %v5867, %v6048
    %v6235 = vadd.f32 %v5868, %v6053
    %v6236 = vadd.f32 %v5869, %v6056
    %v6237 = vadd.f32 %v5870, %v6061
    %v6238 = vadd.f32 %v5871, %v6064
    %v6239 = vadd.f32 %v5872, %v6069
    %v6240 = vadd.f32 %v5873, %v6072
    %v6241 = vadd.f32 %v5874, %v6077
    %v6242 = vadd.f32 %v5875, %v6080
    %v6243 = vadd.f32 %v5876, %v6085
    %v6244 = vadd.f32 %v5877, %v6088
    %v6245 = vadd.f32 %v5878, %v6093
    %v6246 = vadd.f32 %v5879, %v6096
    %v6247 = vadd.f32 %v5880, %v6101
    %v6248 = vadd.f32 %v5881, %v6104
    %v6249 = vadd.f32 %v5882, %v6109
    %v6250 = vadd.f32 %v5883, %v6112
    %v6251 = vadd.f32 %v5884, %v6117
    %v6252 = vadd.f32 %v5885, %v6120
    %v6253 = vadd.f32 %v5886, %v6125
    %v6254 = vadd.f32 %v5887, %v6128
    %v6255 = vadd.f32 %v5888, %v6133
    %v6256 = vadd.f32 %v5889, %v6136
    %v6257 = vadd.f32 %v5890, %v6141
    %v6258 = vadd.f32 %v5891, %v6144
    %v6259 = vadd.f32 %v5892, %v6149
    %v6260 = vadd.f32 %v5893, %v6152
    %v6261 = vadd.f32 %v5894, %v6157
    %v6262 = vadd.f32 %v5895, %v6160
    %v6263 = vadd.f32 %v5896, %v6165
    %v6264 = vadd.f32 %v5897, %v6168
    %v6265 = vadd.f32 %v5898, %v6173
    %v6266 = vadd.f32 %v5899, %v6176
    %v6267 = vadd.f32 %v5900, %v6181
    %v6268 = vadd.f32 %v5901, %v6184
    %v6269 = vadd.f32 %v5902, %v6189
    %v6270 = vadd.f32 %v5903, %v6192
    %v6271 = vadd.f32 %v5904, %v6197
    %v6272 = vadd.f32 %v5905, %v6200
    %v6273 = vadd.f32 %v5906, %v6205
    %v6274 = vadd.f32 %v5907, %v6208
    %v6275 = vshrl.u32 %v4118, 16
    %v6277 = vshll.u32 %v4118, 16
    %v6279 = vrot.slane %v6277, 1
    %v6280 = vor.u32 %v6275, %v6279
    %v6282 = vshll.u32 %v4119, 16
    %v6284 = vrot.slane %v6282, 1
    %v6285 = vsel %vm4159, %v6280, %v6284
    %v6286 = vshrl.u32 %v4154, 16
    %v6288 = vshll.u32 %v4154, 16
    %v6290 = vrot.slane %v6288, 1
    %v6291 = vor.u32 %v6286, %v6290
    %v6293 = vshll.u32 %v4155, 16
    %v6295 = vrot.slane %v6293, 1
    %v6296 = vsel %vm4159, %v6291, %v6295
    %v6297 = vld [vmem:[%s3 + $0x8] sm:$0x3]
    %v6299 = vsel %vm4549, %v6285, 0
    %v6302 = vsel %vm4549, %v6296, 0
    %v6305 = vsel %vm4549, %v6297, 0
    %6307 = vmatprep.subr.bf16.mxu0 0
    %6308 = vmatpush1.bf16.xpose.msra.mxu0 %v6305
    %6309 = vmatprep.subr.bf16.mxu0 0
    %6310 = vmatpush1.bf16.xpose.msra.mxu0 0
    %6311 = vmatprep.subr.bf16.mxu0 0
    %6312 = vmatpush1.bf16.xpose.msra.mxu0 0
    %6313 = vmatprep.subr.bf16.mxu0 0
    %6314 = vmatpush1.bf16.xpose.msra.mxu0 0
    %6315 = vmatprep.subr.bf16.mxu0 0
    %6316 = vmatpush1.bf16.xpose.msra.mxu0 0
    %6317 = vmatprep.subr.bf16.mxu0 0
    %6318 = vmatpush1.bf16.xpose.msra.mxu0 0
    %6319 = vmatprep.subr.bf16.mxu0 0
    %6320 = vmatpush1.bf16.xpose.msra.mxu0 0
    %6321 = vmatprep.subr.bf16.mxu0 0
    %6322 = vmatpush1.bf16.xpose.msra.mxu0 0
    %6323 = vmatprep.subr.bf16.mxu0 0
    %6324 = vmatpush1.bf16.xpose.msra.mxu0 0
    %6325 = vmatprep.subr.bf16.mxu0 0
    %6326 = vmatpush1.bf16.xpose.msra.mxu0 0
    %6327 = vmatprep.subr.bf16.mxu0 0
    %6328 = vmatpush1.bf16.xpose.msra.mxu0 0
    %6329 = vmatprep.subr.bf16.mxu0 0
    %6330 = vmatpush1.bf16.xpose.msra.mxu0 0
    %6331 = vmatprep.subr.bf16.mxu0 0
    %6332 = vmatpush1.bf16.xpose.msra.mxu0 0
    %6333 = vmatprep.subr.bf16.mxu0 0
    %6334 = vmatpush1.bf16.xpose.msra.mxu0 0
    %6335 = vmatprep.subr.bf16.mxu0 0
    %6336 = vmatpush1.bf16.xpose.msra.mxu0 0
    %6337 = vmatprep.subr.bf16.mxu0 0
    %6338 = vmatpush1.bf16.xpose.msra.mxu0 0
    %6339 = vmatprep.mubr.bf16.mxu0 0
    %6340 = vmatmul.mubr.bf16.gmra.mrb[0].mxu0 %v4554
    %v6341 = vpop.f32.mrb[0].mxu0
    %v6342 = vadd.f32 0.0, %v6341
    %v6343 = vpop.f32.mrb[0].mxu0
    %v6344 = vpop.f32.mrb[0].mxu0
    %v6345 = vadd.f32 0.0, %v6344
    %v6346 = vpop.f32.mrb[0].mxu0
    %6347 = vmatprep.mubr.bf16.mxu0 0
    %6348 = vmatmul.mubr.bf16.gmra.mrb[0].mxu0 %v4557
    %v6349 = vpop.f32.mrb[0].mxu0
    %v6350 = vadd.f32 0.0, %v6349
    %v6351 = vpop.f32.mrb[0].mxu0
    %v6352 = vpop.f32.mrb[0].mxu0
    %v6353 = vadd.f32 0.0, %v6352
    %v6354 = vpop.f32.mrb[0].mxu0
    %6355 = vmatprep.mubr.bf16.mxu0 0
    %6356 = vmatmul.mubr.bf16.gmra.mrb[0].mxu0 %v4560
    %v6357 = vpop.f32.mrb[0].mxu0
    %v6358 = vadd.f32 0.0, %v6357
    %v6359 = vpop.f32.mrb[0].mxu0
    %v6360 = vpop.f32.mrb[0].mxu0
    %v6361 = vadd.f32 0.0, %v6360
    %v6362 = vpop.f32.mrb[0].mxu0
    %6363 = vmatprep.mubr.bf16.mxu0 0
    %6364 = vmatmul.mubr.bf16.gmra.mrb[0].mxu0 %v4563
    %v6365 = vpop.f32.mrb[0].mxu0
    %v6366 = vadd.f32 0.0, %v6365
    %v6367 = vpop.f32.mrb[0].mxu0
    %v6368 = vpop.f32.mrb[0].mxu0
    %v6369 = vadd.f32 0.0, %v6368
    %v6370 = vpop.f32.mrb[0].mxu0
    %6371 = vmatprep.mubr.bf16.mxu0 0
    %6372 = vmatmul.mubr.bf16.gmra.mrb[0].mxu0 %v4566
    %v6373 = vpop.f32.mrb[0].mxu0
    %v6374 = vadd.f32 0.0, %v6373
    %v6375 = vpop.f32.mrb[0].mxu0
    %v6376 = vpop.f32.mrb[0].mxu0
    %v6377 = vadd.f32 0.0, %v6376
    %v6378 = vpop.f32.mrb[0].mxu0
    %6379 = vmatprep.mubr.bf16.mxu0 0
    %6380 = vmatmul.mubr.bf16.gmra.mrb[0].mxu0 %v4569
    %v6381 = vpop.f32.mrb[0].mxu0
    %v6382 = vadd.f32 0.0, %v6381
    %v6383 = vpop.f32.mrb[0].mxu0
    %v6384 = vpop.f32.mrb[0].mxu0
    %v6385 = vadd.f32 0.0, %v6384
    %v6386 = vpop.f32.mrb[0].mxu0
    %6387 = vmatprep.mubr.bf16.mxu0 0
    %6388 = vmatmul.mubr.bf16.gmra.mrb[0].mxu0 %v4572
    %v6389 = vpop.f32.mrb[0].mxu0
    %v6390 = vadd.f32 0.0, %v6389
    %v6391 = vpop.f32.mrb[0].mxu0
    %v6392 = vpop.f32.mrb[0].mxu0
    %v6393 = vadd.f32 0.0, %v6392
    %v6394 = vpop.f32.mrb[0].mxu0
    %6395 = vmatprep.mubr.bf16.mxu0 0
    %6396 = vmatmul.mubr.bf16.gmra.mrb[0].mxu0 %v4575
    %v6397 = vpop.f32.mrb[0].mxu0
    %v6398 = vadd.f32 0.0, %v6397
    %v6399 = vpop.f32.mrb[0].mxu0
    %v6400 = vpop.f32.mrb[0].mxu0
    %v6401 = vadd.f32 0.0, %v6400
    %v6402 = vpop.f32.mrb[0].mxu0
    %6403 = vmatprep.mubr.bf16.mxu0 0
    %6404 = vmatmul.mubr.bf16.gmra.mrb[0].mxu0 %v4578
    %v6405 = vpop.f32.mrb[0].mxu0
    %v6406 = vadd.f32 0.0, %v6405
    %v6407 = vpop.f32.mrb[0].mxu0
    %v6408 = vpop.f32.mrb[0].mxu0
    %v6409 = vadd.f32 0.0, %v6408
    %v6410 = vpop.f32.mrb[0].mxu0
    %6411 = vmatprep.mubr.bf16.mxu0 0
    %6412 = vmatmul.mubr.bf16.gmra.mrb[0].mxu0 %v4581
    %v6413 = vpop.f32.mrb[0].mxu0
    %v6414 = vadd.f32 0.0, %v6413
    %v6415 = vpop.f32.mrb[0].mxu0
    %v6416 = vpop.f32.mrb[0].mxu0
    %v6417 = vadd.f32 0.0, %v6416
    %v6418 = vpop.f32.mrb[0].mxu0
    %6419 = vmatprep.mubr.bf16.mxu0 0
    %6420 = vmatmul.mubr.bf16.gmra.mrb[0].mxu0 %v4584
    %v6421 = vpop.f32.mrb[0].mxu0
    %v6422 = vadd.f32 0.0, %v6421
    %v6423 = vpop.f32.mrb[0].mxu0
    %v6424 = vpop.f32.mrb[0].mxu0
    %v6425 = vadd.f32 0.0, %v6424
    %v6426 = vpop.f32.mrb[0].mxu0
    %6427 = vmatprep.mubr.bf16.mxu0 0
    %6428 = vmatmul.mubr.bf16.gmra.mrb[0].mxu0 %v4587
    %v6429 = vpop.f32.mrb[0].mxu0
    %v6430 = vadd.f32 0.0, %v6429
    %v6431 = vpop.f32.mrb[0].mxu0
    %v6432 = vpop.f32.mrb[0].mxu0
    %v6433 = vadd.f32 0.0, %v6432
    %v6434 = vpop.f32.mrb[0].mxu0
    %6435 = vmatprep.mubr.bf16.mxu0 0
    %6436 = vmatmul.mubr.bf16.gmra.mrb[0].mxu0 %v4590
    %v6437 = vpop.f32.mrb[0].mxu0
    %v6438 = vadd.f32 0.0, %v6437
    %v6439 = vpop.f32.mrb[0].mxu0
    %v6440 = vpop.f32.mrb[0].mxu0
    %v6441 = vadd.f32 0.0, %v6440
    %v6442 = vpop.f32.mrb[0].mxu0
    %6443 = vmatprep.mubr.bf16.mxu0 0
    %6444 = vmatmul.mubr.bf16.gmra.mrb[0].mxu0 %v4593
    %v6445 = vpop.f32.mrb[0].mxu0
    %v6446 = vadd.f32 0.0, %v6445
    %v6447 = vpop.f32.mrb[0].mxu0
    %v6448 = vpop.f32.mrb[0].mxu0
    %v6449 = vadd.f32 0.0, %v6448
    %v6450 = vpop.f32.mrb[0].mxu0
    %6451 = vmatprep.mubr.bf16.mxu0 0
    %6452 = vmatmul.mubr.bf16.gmra.mrb[0].mxu0 %v4596
    %v6453 = vpop.f32.mrb[0].mxu0
    %v6454 = vadd.f32 0.0, %v6453
    %v6455 = vpop.f32.mrb[0].mxu0
    %v6456 = vpop.f32.mrb[0].mxu0
    %v6457 = vadd.f32 0.0, %v6456
    %v6458 = vpop.f32.mrb[0].mxu0
    %6459 = vmatprep.mubr.bf16.mxu0 0
    %6460 = vmatmul.mubr.bf16.gmra.mrb[0].mxu0 %v6299
    %v6461 = vpop.f32.mrb[0].mxu0
    %v6462 = vadd.f32 0.0, %v6461
    %v6463 = vpop.f32.mrb[0].mxu0
    %v6464 = vpop.f32.mrb[0].mxu0
    %v6465 = vadd.f32 0.0, %v6464
    %v6466 = vpop.f32.mrb[0].mxu0
    %6467 = vmatprep.mubr.bf16.mxu0 0
    %6468 = vmatmul.mubr.bf16.gmra.mrb[0].mxu0 %v4602
    %v6469 = vpop.f32.mrb[0].mxu0
    %v6470 = vadd.f32 0.0, %v6469
    %v6471 = vpop.f32.mrb[0].mxu0
    %v6472 = vpop.f32.mrb[0].mxu0
    %v6473 = vadd.f32 0.0, %v6472
    %v6474 = vpop.f32.mrb[0].mxu0
    %6475 = vmatprep.mubr.bf16.mxu0 0
    %6476 = vmatmul.mubr.bf16.gmra.mrb[0].mxu0 %v4605
    %v6477 = vpop.f32.mrb[0].mxu0
    %v6478 = vadd.f32 0.0, %v6477
    %v6479 = vpop.f32.mrb[0].mxu0
    %v6480 = vpop.f32.mrb[0].mxu0
    %v6481 = vadd.f32 0.0, %v6480
    %v6482 = vpop.f32.mrb[0].mxu0
    %6483 = vmatprep.mubr.bf16.mxu0 0
    %6484 = vmatmul.mubr.bf16.gmra.mrb[0].mxu0 %v4608
    %v6485 = vpop.f32.mrb[0].mxu0
    %v6486 = vadd.f32 0.0, %v6485
    %v6487 = vpop.f32.mrb[0].mxu0
    %v6488 = vpop.f32.mrb[0].mxu0
    %v6489 = vadd.f32 0.0, %v6488
    %v6490 = vpop.f32.mrb[0].mxu0
    %6491 = vmatprep.mubr.bf16.mxu0 0
    %6492 = vmatmul.mubr.bf16.gmra.mrb[0].mxu0 %v4611
    %v6493 = vpop.f32.mrb[0].mxu0
    %v6494 = vadd.f32 0.0, %v6493
    %v6495 = vpop.f32.mrb[0].mxu0
    %v6496 = vpop.f32.mrb[0].mxu0
    %v6497 = vadd.f32 0.0, %v6496
    %v6498 = vpop.f32.mrb[0].mxu0
    %6499 = vmatprep.mubr.bf16.mxu0 0
    %6500 = vmatmul.mubr.bf16.gmra.mrb[0].mxu0 %v4614
    %v6501 = vpop.f32.mrb[0].mxu0
    %v6502 = vadd.f32 0.0, %v6501
    %v6503 = vpop.f32.mrb[0].mxu0
    %v6504 = vpop.f32.mrb[0].mxu0
    %v6505 = vadd.f32 0.0, %v6504
    %v6506 = vpop.f32.mrb[0].mxu0
    %6507 = vmatprep.mubr.bf16.mxu0 0
    %6508 = vmatmul.mubr.bf16.gmra.mrb[0].mxu0 %v4617
    %v6509 = vpop.f32.mrb[0].mxu0
    %v6510 = vadd.f32 0.0, %v6509
    %v6511 = vpop.f32.mrb[0].mxu0
    %v6512 = vpop.f32.mrb[0].mxu0
    %v6513 = vadd.f32 0.0, %v6512
    %v6514 = vpop.f32.mrb[0].mxu0
    %6515 = vmatprep.mubr.bf16.mxu0 0
    %6516 = vmatmul.mubr.bf16.gmra.mrb[0].mxu0 %v4620
    %v6517 = vpop.f32.mrb[0].mxu0
    %v6518 = vadd.f32 0.0, %v6517
    %v6519 = vpop.f32.mrb[0].mxu0
    %v6520 = vpop.f32.mrb[0].mxu0
    %v6521 = vadd.f32 0.0, %v6520
    %v6522 = vpop.f32.mrb[0].mxu0
    %6523 = vmatprep.mubr.bf16.mxu0 0
    %6524 = vmatmul.mubr.bf16.gmra.mrb[0].mxu0 %v4623
    %v6525 = vpop.f32.mrb[0].mxu0
    %v6526 = vadd.f32 0.0, %v6525
    %v6527 = vpop.f32.mrb[0].mxu0
    %v6528 = vpop.f32.mrb[0].mxu0
    %v6529 = vadd.f32 0.0, %v6528
    %v6530 = vpop.f32.mrb[0].mxu0
    %6531 = vmatprep.mubr.bf16.mxu0 0
    %6532 = vmatmul.mubr.bf16.gmra.mrb[0].mxu0 %v4626
    %v6533 = vpop.f32.mrb[0].mxu0
    %v6534 = vadd.f32 0.0, %v6533
    %v6535 = vpop.f32.mrb[0].mxu0
    %v6536 = vpop.f32.mrb[0].mxu0
    %v6537 = vadd.f32 0.0, %v6536
    %v6538 = vpop.f32.mrb[0].mxu0
    %6539 = vmatprep.mubr.bf16.mxu0 0
    %6540 = vmatmul.mubr.bf16.gmra.mrb[0].mxu0 %v4629
    %v6541 = vpop.f32.mrb[0].mxu0
    %v6542 = vadd.f32 0.0, %v6541
    %v6543 = vpop.f32.mrb[0].mxu0
    %v6544 = vpop.f32.mrb[0].mxu0
    %v6545 = vadd.f32 0.0, %v6544
    %v6546 = vpop.f32.mrb[0].mxu0
    %6547 = vmatprep.mubr.bf16.mxu0 0
    %6548 = vmatmul.mubr.bf16.gmra.mrb[0].mxu0 %v4632
    %v6549 = vpop.f32.mrb[0].mxu0
    %v6550 = vadd.f32 0.0, %v6549
    %v6551 = vpop.f32.mrb[0].mxu0
    %v6552 = vpop.f32.mrb[0].mxu0
    %v6553 = vadd.f32 0.0, %v6552
    %v6554 = vpop.f32.mrb[0].mxu0
    %6555 = vmatprep.mubr.bf16.mxu0 0
    %6556 = vmatmul.mubr.bf16.gmra.mrb[0].mxu0 %v4635
    %v6557 = vpop.f32.mrb[0].mxu0
    %v6558 = vadd.f32 0.0, %v6557
    %v6559 = vpop.f32.mrb[0].mxu0
    %v6560 = vpop.f32.mrb[0].mxu0
    %v6561 = vadd.f32 0.0, %v6560
    %v6562 = vpop.f32.mrb[0].mxu0
    %6563 = vmatprep.mubr.bf16.mxu0 0
    %6564 = vmatmul.mubr.bf16.gmra.mrb[0].mxu0 %v4638
    %v6565 = vpop.f32.mrb[0].mxu0
    %v6566 = vadd.f32 0.0, %v6565
    %v6567 = vpop.f32.mrb[0].mxu0
    %v6568 = vpop.f32.mrb[0].mxu0
    %v6569 = vadd.f32 0.0, %v6568
    %v6570 = vpop.f32.mrb[0].mxu0
    %6571 = vmatprep.mubr.bf16.mxu0 0
    %6572 = vmatmul.mubr.bf16.gmra.mrb[0].mxu0 %v4641
    %v6573 = vpop.f32.mrb[0].mxu0
    %v6574 = vadd.f32 0.0, %v6573
    %v6575 = vpop.f32.mrb[0].mxu0
    %v6576 = vpop.f32.mrb[0].mxu0
    %v6577 = vadd.f32 0.0, %v6576
    %v6578 = vpop.f32.mrb[0].mxu0
    %6579 = vmatprep.mubr.bf16.mxu0 0
    %6580 = vmatmul.mubr.bf16.gmra.mrb[0].mxu0 %v4644
    %v6581 = vpop.f32.mrb[0].mxu0
    %v6582 = vadd.f32 0.0, %v6581
    %v6583 = vpop.f32.mrb[0].mxu0
    %v6584 = vpop.f32.mrb[0].mxu0
    %v6585 = vadd.f32 0.0, %v6584
    %v6586 = vpop.f32.mrb[0].mxu0
    %6587 = vmatprep.mubr.bf16.mxu0 0
    %6588 = vmatmul.mubr.bf16.gmra.mrb[0].mxu0 %v6302
    %v6589 = vpop.f32.mrb[0].mxu0
    %v6590 = vadd.f32 0.0, %v6589
    %v6591 = vpop.f32.mrb[0].mxu0
    %v6592 = vpop.f32.mrb[0].mxu0
    %v6593 = vadd.f32 0.0, %v6592
    %v6594 = vpop.f32.mrb[0].mxu0
    %6595 = vdwg.mxu0
    %v6596 = vadd.f32 %v6211, %v6342
    %v6597 = vadd.f32 %v6212, %v6345
    %v6598 = vadd.f32 %v6213, %v6350
    %v6599 = vadd.f32 %v6214, %v6353
    %v6600 = vadd.f32 %v6215, %v6358
    %v6601 = vadd.f32 %v6216, %v6361
    %v6602 = vadd.f32 %v6217, %v6366
    %v6603 = vadd.f32 %v6218, %v6369
    %v6604 = vadd.f32 %v6219, %v6374
    %v6605 = vadd.f32 %v6220, %v6377
    %v6606 = vadd.f32 %v6221, %v6382
    %v6607 = vadd.f32 %v6222, %v6385
    %v6608 = vadd.f32 %v6223, %v6390
    %v6609 = vadd.f32 %v6224, %v6393
    %v6610 = vadd.f32 %v6225, %v6398
    %v6611 = vadd.f32 %v6226, %v6401
    %v6612 = vadd.f32 %v6227, %v6406
    %v6613 = vadd.f32 %v6228, %v6409
    %v6614 = vadd.f32 %v6229, %v6414
    %v6615 = vadd.f32 %v6230, %v6417
    %v6616 = vadd.f32 %v6231, %v6422
    %v6617 = vadd.f32 %v6232, %v6425
    %v6618 = vadd.f32 %v6233, %v6430
    %v6619 = vadd.f32 %v6234, %v6433
    %v6620 = vadd.f32 %v6235, %v6438
    %v6621 = vadd.f32 %v6236, %v6441
    %v6622 = vadd.f32 %v6237, %v6446
    %v6623 = vadd.f32 %v6238, %v6449
    %v6624 = vadd.f32 %v6239, %v6454
    %v6625 = vadd.f32 %v6240, %v6457
    %v6626 = vadd.f32 %v6241, %v6462
    %v6627 = vadd.f32 %v6242, %v6465
    %v6628 = vadd.f32 %v6243, %v6470
    %v6629 = vadd.f32 %v6244, %v6473
    %v6630 = vadd.f32 %v6245, %v6478
    %v6631 = vadd.f32 %v6246, %v6481
    %v6632 = vadd.f32 %v6247, %v6486
    %v6633 = vadd.f32 %v6248, %v6489
    %v6634 = vadd.f32 %v6249, %v6494
    %v6635 = vadd.f32 %v6250, %v6497
    %v6636 = vadd.f32 %v6251, %v6502
    %v6637 = vadd.f32 %v6252, %v6505
    %v6638 = vadd.f32 %v6253, %v6510
    %v6639 = vadd.f32 %v6254, %v6513
    %v6640 = vadd.f32 %v6255, %v6518
    %v6641 = vadd.f32 %v6256, %v6521
    %v6642 = vadd.f32 %v6257, %v6526
    %v6643 = vadd.f32 %v6258, %v6529
    %v6644 = vadd.f32 %v6259, %v6534
    %v6645 = vadd.f32 %v6260, %v6537
    %v6646 = vadd.f32 %v6261, %v6542
    %v6647 = vadd.f32 %v6262, %v6545
    %v6648 = vadd.f32 %v6263, %v6550
    %v6649 = vadd.f32 %v6264, %v6553
    %v6650 = vadd.f32 %v6265, %v6558
    %v6651 = vadd.f32 %v6266, %v6561
    %v6652 = vadd.f32 %v6267, %v6566
    %v6653 = vadd.f32 %v6268, %v6569
    %v6654 = vadd.f32 %v6269, %v6574
    %v6655 = vadd.f32 %v6270, %v6577
    %v6656 = vadd.f32 %v6271, %v6582
    %v6657 = vadd.f32 %v6272, %v6585
    %v6658 = vadd.f32 %v6273, %v6590
    %v6659 = vadd.f32 %v6274, %v6593
    %v6664 = vrot.slane %v4118, 1
    %v6665 = vrot.slane %v4119, 1
    %v6666 = vsel %vm5358, %v6664, %v6665
    %v6667 = vrot.slane %v4154, 1
    %v6668 = vrot.slane %v4155, 1
    %v6669 = vsel %vm5358, %v6667, %v6668
    %v6670 = vld [vmem:[%s3 + $0x8] sm:$0xc]
    %v6672 = vunpack.c.l.b16 %v6670
    %v6673 = vpack.c.b16 %v6672, %v6672
    %v6674 = vrot.slane %v6673, 2
    %v6676 = vsel %vm4549, %v6666, 0
    %v6679 = vsel %vm4549, %v6669, 0
    %v6682 = vsel %vm4549, %v6674, 0
    %6684 = vmatprep.subr.bf16.mxu0 0
    %6685 = vmatpush1.bf16.xpose.msra.mxu0 %v6682
    %6686 = vmatprep.subr.bf16.mxu0 0
    %6687 = vmatpush1.bf16.xpose.msra.mxu0 0
    %6688 = vmatprep.subr.bf16.mxu0 0
    %6689 = vmatpush1.bf16.xpose.msra.mxu0 0
    %6690 = vmatprep.subr.bf16.mxu0 0
    %6691 = vmatpush1.bf16.xpose.msra.mxu0 0
    %6692 = vmatprep.subr.bf16.mxu0 0
    %6693 = vmatpush1.bf16.xpose.msra.mxu0 0
    %6694 = vmatprep.subr.bf16.mxu0 0
    %6695 = vmatpush1.bf16.xpose.msra.mxu0 0
    %6696 = vmatprep.subr.bf16.mxu0 0
    %6697 = vmatpush1.bf16.xpose.msra.mxu0 0
    %6698 = vmatprep.subr.bf16.mxu0 0
    %6699 = vmatpush1.bf16.xpose.msra.mxu0 0
    %6700 = vmatprep.subr.bf16.mxu0 0
    %6701 = vmatpush1.bf16.xpose.msra.mxu0 0
    %6702 = vmatprep.subr.bf16.mxu0 0
    %6703 = vmatpush1.bf16.xpose.msra.mxu0 0
    %6704 = vmatprep.subr.bf16.mxu0 0
    %6705 = vmatpush1.bf16.xpose.msra.mxu0 0
    %6706 = vmatprep.subr.bf16.mxu0 0
    %6707 = vmatpush1.bf16.xpose.msra.mxu0 0
    %6708 = vmatprep.subr.bf16.mxu0 0
    %6709 = vmatpush1.bf16.xpose.msra.mxu0 0
    %6710 = vmatprep.subr.bf16.mxu0 0
    %6711 = vmatpush1.bf16.xpose.msra.mxu0 0
    %6712 = vmatprep.subr.bf16.mxu0 0
    %6713 = vmatpush1.bf16.xpose.msra.mxu0 0
    %6714 = vmatprep.subr.bf16.mxu0 0
    %6715 = vmatpush1.bf16.xpose.msra.mxu0 0
    %6716 = vmatprep.mubr.bf16.mxu0 0
    %6717 = vmatmul.mubr.bf16.gmra.mrb[0].mxu0 %v5460
    %v6718 = vpop.f32.mrb[0].mxu0
    %v6719 = vadd.f32 0.0, %v6718
    %v6720 = vpop.f32.mrb[0].mxu0
    %v6721 = vpop.f32.mrb[0].mxu0
    %v6722 = vadd.f32 0.0, %v6721
    %v6723 = vpop.f32.mrb[0].mxu0
    %6724 = vmatprep.mubr.bf16.mxu0 0
    %6725 = vmatmul.mubr.bf16.gmra.mrb[0].mxu0 %v5463
    %v6726 = vpop.f32.mrb[0].mxu0
    %v6727 = vadd.f32 0.0, %v6726
    %v6728 = vpop.f32.mrb[0].mxu0
    %v6729 = vpop.f32.mrb[0].mxu0
    %v6730 = vadd.f32 0.0, %v6729
    %v6731 = vpop.f32.mrb[0].mxu0
    %6732 = vmatprep.mubr.bf16.mxu0 0
    %6733 = vmatmul.mubr.bf16.gmra.mrb[0].mxu0 %v5466
    %v6734 = vpop.f32.mrb[0].mxu0
    %v6735 = vadd.f32 0.0, %v6734
    %v6736 = vpop.f32.mrb[0].mxu0
    %v6737 = vpop.f32.mrb[0].mxu0
    %v6738 = vadd.f32 0.0, %v6737
    %v6739 = vpop.f32.mrb[0].mxu0
    %6740 = vmatprep.mubr.bf16.mxu0 0
    %6741 = vmatmul.mubr.bf16.gmra.mrb[0].mxu0 %v5469
    %v6742 = vpop.f32.mrb[0].mxu0
    %v6743 = vadd.f32 0.0, %v6742
    %v6744 = vpop.f32.mrb[0].mxu0
    %v6745 = vpop.f32.mrb[0].mxu0
    %v6746 = vadd.f32 0.0, %v6745
    %v6747 = vpop.f32.mrb[0].mxu0
    %6748 = vmatprep.mubr.bf16.mxu0 0
    %6749 = vmatmul.mubr.bf16.gmra.mrb[0].mxu0 %v5472
    %v6750 = vpop.f32.mrb[0].mxu0
    %v6751 = vadd.f32 0.0, %v6750
    %v6752 = vpop.f32.mrb[0].mxu0
    %v6753 = vpop.f32.mrb[0].mxu0
    %v6754 = vadd.f32 0.0, %v6753
    %v6755 = vpop.f32.mrb[0].mxu0
    %6756 = vmatprep.mubr.bf16.mxu0 0
    %6757 = vmatmul.mubr.bf16.gmra.mrb[0].mxu0 %v5475
    %v6758 = vpop.f32.mrb[0].mxu0
    %v6759 = vadd.f32 0.0, %v6758
    %v6760 = vpop.f32.mrb[0].mxu0
    %v6761 = vpop.f32.mrb[0].mxu0
    %v6762 = vadd.f32 0.0, %v6761
    %v6763 = vpop.f32.mrb[0].mxu0
    %6764 = vmatprep.mubr.bf16.mxu0 0
    %6765 = vmatmul.mubr.bf16.gmra.mrb[0].mxu0 %v5478
    %v6766 = vpop.f32.mrb[0].mxu0
    %v6767 = vadd.f32 0.0, %v6766
    %v6768 = vpop.f32.mrb[0].mxu0
    %v6769 = vpop.f32.mrb[0].mxu0
    %v6770 = vadd.f32 0.0, %v6769
    %v6771 = vpop.f32.mrb[0].mxu0
    %6772 = vmatprep.mubr.bf16.mxu0 0
    %6773 = vmatmul.mubr.bf16.gmra.mrb[0].mxu0 %v5481
    %v6774 = vpop.f32.mrb[0].mxu0
    %v6775 = vadd.f32 0.0, %v6774
    %v6776 = vpop.f32.mrb[0].mxu0
    %v6777 = vpop.f32.mrb[0].mxu0
    %v6778 = vadd.f32 0.0, %v6777
    %v6779 = vpop.f32.mrb[0].mxu0
    %6780 = vmatprep.mubr.bf16.mxu0 0
    %6781 = vmatmul.mubr.bf16.gmra.mrb[0].mxu0 %v5484
    %v6782 = vpop.f32.mrb[0].mxu0
    %v6783 = vadd.f32 0.0, %v6782
    %v6784 = vpop.f32.mrb[0].mxu0
    %v6785 = vpop.f32.mrb[0].mxu0
    %v6786 = vadd.f32 0.0, %v6785
    %v6787 = vpop.f32.mrb[0].mxu0
    %6788 = vmatprep.mubr.bf16.mxu0 0
    %6789 = vmatmul.mubr.bf16.gmra.mrb[0].mxu0 %v5487
    %v6790 = vpop.f32.mrb[0].mxu0
    %v6791 = vadd.f32 0.0, %v6790
    %v6792 = vpop.f32.mrb[0].mxu0
    %v6793 = vpop.f32.mrb[0].mxu0
    %v6794 = vadd.f32 0.0, %v6793
    %v6795 = vpop.f32.mrb[0].mxu0
    %6796 = vmatprep.mubr.bf16.mxu0 0
    %6797 = vmatmul.mubr.bf16.gmra.mrb[0].mxu0 %v5490
    %v6798 = vpop.f32.mrb[0].mxu0
    %v6799 = vadd.f32 0.0, %v6798
    %v6800 = vpop.f32.mrb[0].mxu0
    %v6801 = vpop.f32.mrb[0].mxu0
    %v6802 = vadd.f32 0.0, %v6801
    %v6803 = vpop.f32.mrb[0].mxu0
    %6804 = vmatprep.mubr.bf16.mxu0 0
    %6805 = vmatmul.mubr.bf16.gmra.mrb[0].mxu0 %v5493
    %v6806 = vpop.f32.mrb[0].mxu0
    %v6807 = vadd.f32 0.0, %v6806
    %v6808 = vpop.f32.mrb[0].mxu0
    %v6809 = vpop.f32.mrb[0].mxu0
    %v6810 = vadd.f32 0.0, %v6809
    %v6811 = vpop.f32.mrb[0].mxu0
    %6812 = vmatprep.mubr.bf16.mxu0 0
    %6813 = vmatmul.mubr.bf16.gmra.mrb[0].mxu0 %v5496
    %v6814 = vpop.f32.mrb[0].mxu0
    %v6815 = vadd.f32 0.0, %v6814
    %v6816 = vpop.f32.mrb[0].mxu0
    %v6817 = vpop.f32.mrb[0].mxu0
    %v6818 = vadd.f32 0.0, %v6817
    %v6819 = vpop.f32.mrb[0].mxu0
    %6820 = vmatprep.mubr.bf16.mxu0 0
    %6821 = vmatmul.mubr.bf16.gmra.mrb[0].mxu0 %v5499
    %v6822 = vpop.f32.mrb[0].mxu0
    %v6823 = vadd.f32 0.0, %v6822
    %v6824 = vpop.f32.mrb[0].mxu0
    %v6825 = vpop.f32.mrb[0].mxu0
    %v6826 = vadd.f32 0.0, %v6825
    %v6827 = vpop.f32.mrb[0].mxu0
    %6828 = vmatprep.mubr.bf16.mxu0 0
    %6829 = vmatmul.mubr.bf16.gmra.mrb[0].mxu0 %v5502
    %v6830 = vpop.f32.mrb[0].mxu0
    %v6831 = vadd.f32 0.0, %v6830
    %v6832 = vpop.f32.mrb[0].mxu0
    %v6833 = vpop.f32.mrb[0].mxu0
    %v6834 = vadd.f32 0.0, %v6833
    %v6835 = vpop.f32.mrb[0].mxu0
    %6836 = vmatprep.mubr.bf16.mxu0 0
    %6837 = vmatmul.mubr.bf16.gmra.mrb[0].mxu0 %v6676
    %v6838 = vpop.f32.mrb[0].mxu0
    %v6839 = vadd.f32 0.0, %v6838
    %v6840 = vpop.f32.mrb[0].mxu0
    %v6841 = vpop.f32.mrb[0].mxu0
    %v6842 = vadd.f32 0.0, %v6841
    %v6843 = vpop.f32.mrb[0].mxu0
    %6844 = vmatprep.mubr.bf16.mxu0 0
    %6845 = vmatmul.mubr.bf16.gmra.mrb[0].mxu0 %v5508
    %v6846 = vpop.f32.mrb[0].mxu0
    %v6847 = vadd.f32 0.0, %v6846
    %v6848 = vpop.f32.mrb[0].mxu0
    %v6849 = vpop.f32.mrb[0].mxu0
    %v6850 = vadd.f32 0.0, %v6849
    %v6851 = vpop.f32.mrb[0].mxu0
    %6852 = vmatprep.mubr.bf16.mxu0 0
    %6853 = vmatmul.mubr.bf16.gmra.mrb[0].mxu0 %v5511
    %v6854 = vpop.f32.mrb[0].mxu0
    %v6855 = vadd.f32 0.0, %v6854
    %v6856 = vpop.f32.mrb[0].mxu0
    %v6857 = vpop.f32.mrb[0].mxu0
    %v6858 = vadd.f32 0.0, %v6857
    %v6859 = vpop.f32.mrb[0].mxu0
    %6860 = vmatprep.mubr.bf16.mxu0 0
    %6861 = vmatmul.mubr.bf16.gmra.mrb[0].mxu0 %v5514
    %v6862 = vpop.f32.mrb[0].mxu0
    %v6863 = vadd.f32 0.0, %v6862
    %v6864 = vpop.f32.mrb[0].mxu0
    %v6865 = vpop.f32.mrb[0].mxu0
    %v6866 = vadd.f32 0.0, %v6865
    %v6867 = vpop.f32.mrb[0].mxu0
    %6868 = vmatprep.mubr.bf16.mxu0 0
    %6869 = vmatmul.mubr.bf16.gmra.mrb[0].mxu0 %v5517
    %v6870 = vpop.f32.mrb[0].mxu0
    %v6871 = vadd.f32 0.0, %v6870
    %v6872 = vpop.f32.mrb[0].mxu0
    %v6873 = vpop.f32.mrb[0].mxu0
    %v6874 = vadd.f32 0.0, %v6873
    %v6875 = vpop.f32.mrb[0].mxu0
    %6876 = vmatprep.mubr.bf16.mxu0 0
    %6877 = vmatmul.mubr.bf16.gmra.mrb[0].mxu0 %v5520
    %v6878 = vpop.f32.mrb[0].mxu0
    %v6879 = vadd.f32 0.0, %v6878
    %v6880 = vpop.f32.mrb[0].mxu0
    %v6881 = vpop.f32.mrb[0].mxu0
    %v6882 = vadd.f32 0.0, %v6881
    %v6883 = vpop.f32.mrb[0].mxu0
    %6884 = vmatprep.mubr.bf16.mxu0 0
    %6885 = vmatmul.mubr.bf16.gmra.mrb[0].mxu0 %v5523
    %v6886 = vpop.f32.mrb[0].mxu0
    %v6887 = vadd.f32 0.0, %v6886
    %v6888 = vpop.f32.mrb[0].mxu0
    %v6889 = vpop.f32.mrb[0].mxu0
    %v6890 = vadd.f32 0.0, %v6889
    %v6891 = vpop.f32.mrb[0].mxu0
    %6892 = vmatprep.mubr.bf16.mxu0 0
    %6893 = vmatmul.mubr.bf16.gmra.mrb[0].mxu0 %v5526
    %v6894 = vpop.f32.mrb[0].mxu0
    %v6895 = vadd.f32 0.0, %v6894
    %v6896 = vpop.f32.mrb[0].mxu0
    %v6897 = vpop.f32.mrb[0].mxu0
    %v6898 = vadd.f32 0.0, %v6897
    %v6899 = vpop.f32.mrb[0].mxu0
    %6900 = vmatprep.mubr.bf16.mxu0 0
    %6901 = vmatmul.mubr.bf16.gmra.mrb[0].mxu0 %v5529
    %v6902 = vpop.f32.mrb[0].mxu0
    %v6903 = vadd.f32 0.0, %v6902
    %v6904 = vpop.f32.mrb[0].mxu0
    %v6905 = vpop.f32.mrb[0].mxu0
    %v6906 = vadd.f32 0.0, %v6905
    %v6907 = vpop.f32.mrb[0].mxu0
    %6908 = vmatprep.mubr.bf16.mxu0 0
    %6909 = vmatmul.mubr.bf16.gmra.mrb[0].mxu0 %v5532
    %v6910 = vpop.f32.mrb[0].mxu0
    %v6911 = vadd.f32 0.0, %v6910
    %v6912 = vpop.f32.mrb[0].mxu0
    %v6913 = vpop.f32.mrb[0].mxu0
    %v6914 = vadd.f32 0.0, %v6913
    %v6915 = vpop.f32.mrb[0].mxu0
    %6916 = vmatprep.mubr.bf16.mxu0 0
    %6917 = vmatmul.mubr.bf16.gmra.mrb[0].mxu0 %v5535
    %v6918 = vpop.f32.mrb[0].mxu0
    %v6919 = vadd.f32 0.0, %v6918
    %v6920 = vpop.f32.mrb[0].mxu0
    %v6921 = vpop.f32.mrb[0].mxu0
    %v6922 = vadd.f32 0.0, %v6921
    %v6923 = vpop.f32.mrb[0].mxu0
    %6924 = vmatprep.mubr.bf16.mxu0 0
    %6925 = vmatmul.mubr.bf16.gmra.mrb[0].mxu0 %v5538
    %v6926 = vpop.f32.mrb[0].mxu0
    %v6927 = vadd.f32 0.0, %v6926
    %v6928 = vpop.f32.mrb[0].mxu0
    %v6929 = vpop.f32.mrb[0].mxu0
    %v6930 = vadd.f32 0.0, %v6929
    %v6931 = vpop.f32.mrb[0].mxu0
    %6932 = vmatprep.mubr.bf16.mxu0 0
    %6933 = vmatmul.mubr.bf16.gmra.mrb[0].mxu0 %v5541
    %v6934 = vpop.f32.mrb[0].mxu0
    %v6935 = vadd.f32 0.0, %v6934
    %v6936 = vpop.f32.mrb[0].mxu0
    %v6937 = vpop.f32.mrb[0].mxu0
    %v6938 = vadd.f32 0.0, %v6937
    %v6939 = vpop.f32.mrb[0].mxu0
    %6940 = vmatprep.mubr.bf16.mxu0 0
    %6941 = vmatmul.mubr.bf16.gmra.mrb[0].mxu0 %v5544
    %v6942 = vpop.f32.mrb[0].mxu0
    %v6943 = vadd.f32 0.0, %v6942
    %v6944 = vpop.f32.mrb[0].mxu0
    %v6945 = vpop.f32.mrb[0].mxu0
    %v6946 = vadd.f32 0.0, %v6945
    %v6947 = vpop.f32.mrb[0].mxu0
    %6948 = vmatprep.mubr.bf16.mxu0 0
    %6949 = vmatmul.mubr.bf16.gmra.mrb[0].mxu0 %v5547
    %v6950 = vpop.f32.mrb[0].mxu0
    %v6951 = vadd.f32 0.0, %v6950
    %v6952 = vpop.f32.mrb[0].mxu0
    %v6953 = vpop.f32.mrb[0].mxu0
    %v6954 = vadd.f32 0.0, %v6953
    %v6955 = vpop.f32.mrb[0].mxu0
    %6956 = vmatprep.mubr.bf16.mxu0 0
    %6957 = vmatmul.mubr.bf16.gmra.mrb[0].mxu0 %v5550
    %v6958 = vpop.f32.mrb[0].mxu0
    %v6959 = vadd.f32 0.0, %v6958
    %v6960 = vpop.f32.mrb[0].mxu0
    %v6961 = vpop.f32.mrb[0].mxu0
    %v6962 = vadd.f32 0.0, %v6961
    %v6963 = vpop.f32.mrb[0].mxu0
    %6964 = vmatprep.mubr.bf16.mxu0 0
    %6965 = vmatmul.mubr.bf16.gmra.mrb[0].mxu0 %v6679
    %v6966 = vpop.f32.mrb[0].mxu0
    %v6967 = vadd.f32 0.0, %v6966
    %v6968 = vpop.f32.mrb[0].mxu0
    %v6969 = vpop.f32.mrb[0].mxu0
    %v6970 = vadd.f32 0.0, %v6969
    %v6971 = vpop.f32.mrb[0].mxu0
    %6972 = vdwg.mxu0
    %v6973 = vadd.f32 %v6596, %v6719
    %v6974 = vadd.f32 %v6597, %v6722
    %v6975 = vadd.f32 %v6598, %v6727
    %v6976 = vadd.f32 %v6599, %v6730
    %v6977 = vadd.f32 %v6600, %v6735
    %v6978 = vadd.f32 %v6601, %v6738
    %v6979 = vadd.f32 %v6602, %v6743
    %v6980 = vadd.f32 %v6603, %v6746
    %v6981 = vadd.f32 %v6604, %v6751
    %v6982 = vadd.f32 %v6605, %v6754
    %v6983 = vadd.f32 %v6606, %v6759
    %v6984 = vadd.f32 %v6607, %v6762
    %v6985 = vadd.f32 %v6608, %v6767
    %v6986 = vadd.f32 %v6609, %v6770
    %v6987 = vadd.f32 %v6610, %v6775
    %v6988 = vadd.f32 %v6611, %v6778
    %v6989 = vadd.f32 %v6612, %v6783
    %v6990 = vadd.f32 %v6613, %v6786
    %v6991 = vadd.f32 %v6614, %v6791
    %v6992 = vadd.f32 %v6615, %v6794
    %v6993 = vadd.f32 %v6616, %v6799
    %v6994 = vadd.f32 %v6617, %v6802
    %v6995 = vadd.f32 %v6618, %v6807
    %v6996 = vadd.f32 %v6619, %v6810
    %v6997 = vadd.f32 %v6620, %v6815
    %v6998 = vadd.f32 %v6621, %v6818
    %v6999 = vadd.f32 %v6622, %v6823
    %v7000 = vadd.f32 %v6623, %v6826
    %v7001 = vadd.f32 %v6624, %v6831
    %v7002 = vadd.f32 %v6625, %v6834
    %v7003 = vadd.f32 %v6626, %v6839
    %v7004 = vadd.f32 %v6627, %v6842
    %v7005 = vadd.f32 %v6628, %v6847
    %v7006 = vadd.f32 %v6629, %v6850
    %v7007 = vadd.f32 %v6630, %v6855
    %v7008 = vadd.f32 %v6631, %v6858
    %v7009 = vadd.f32 %v6632, %v6863
    %v7010 = vadd.f32 %v6633, %v6866
    %v7011 = vadd.f32 %v6634, %v6871
    %v7012 = vadd.f32 %v6635, %v6874
    %v7013 = vadd.f32 %v6636, %v6879
    %v7014 = vadd.f32 %v6637, %v6882
    %v7015 = vadd.f32 %v6638, %v6887
    %v7016 = vadd.f32 %v6639, %v6890
    %v7017 = vadd.f32 %v6640, %v6895
    %v7018 = vadd.f32 %v6641, %v6898
    %v7019 = vadd.f32 %v6642, %v6903
    %v7020 = vadd.f32 %v6643, %v6906
    %v7021 = vadd.f32 %v6644, %v6911
    %v7022 = vadd.f32 %v6645, %v6914
    %v7023 = vadd.f32 %v6646, %v6919
    %v7024 = vadd.f32 %v6647, %v6922
    %v7025 = vadd.f32 %v6648, %v6927
    %v7026 = vadd.f32 %v6649, %v6930
    %v7027 = vadd.f32 %v6650, %v6935
    %v7028 = vadd.f32 %v6651, %v6938
    %v7029 = vadd.f32 %v6652, %v6943
    %v7030 = vadd.f32 %v6653, %v6946
    %v7031 = vadd.f32 %v6654, %v6951
    %v7032 = vadd.f32 %v6655, %v6954
    %v7033 = vadd.f32 %v6656, %v6959
    %v7034 = vadd.f32 %v6657, %v6962
    %v7035 = vadd.f32 %v6658, %v6967
    %v7036 = vadd.f32 %v6659, %v6970
    %v7037 = vld [vmem:[%s3 + $0xc] sm:$0x3]
    %v7039 = vsel %vm4549, %v4120, 0
    %v7042 = vsel %vm4549, %v4156, 0
    %v7045 = vsel %vm4549, %v7037, 0
    %7047 = vmatprep.subr.bf16.mxu0 0
    %7048 = vmatpush1.bf16.xpose.msra.mxu0 %v7045
    %7049 = vmatprep.subr.bf16.mxu0 0
    %7050 = vmatpush1.bf16.xpose.msra.mxu0 0
    %7051 = vmatprep.subr.bf16.mxu0 0
    %7052 = vmatpush1.bf16.xpose.msra.mxu0 0
    %7053 = vmatprep.subr.bf16.mxu0 0
    %7054 = vmatpush1.bf16.xpose.msra.mxu0 0
    %7055 = vmatprep.subr.bf16.mxu0 0
    %7056 = vmatpush1.bf16.xpose.msra.mxu0 0
    %7057 = vmatprep.subr.bf16.mxu0 0
    %7058 = vmatpush1.bf16.xpose.msra.mxu0 0
    %7059 = vmatprep.subr.bf16.mxu0 0
    %7060 = vmatpush1.bf16.xpose.msra.mxu0 0
    %7061 = vmatprep.subr.bf16.mxu0 0
    %7062 = vmatpush1.bf16.xpose.msra.mxu0 0
    %7063 = vmatprep.subr.bf16.mxu0 0
    %7064 = vmatpush1.bf16.xpose.msra.mxu0 0
    %7065 = vmatprep.subr.bf16.mxu0 0
    %7066 = vmatpush1.bf16.xpose.msra.mxu0 0
    %7067 = vmatprep.subr.bf16.mxu0 0
    %7068 = vmatpush1.bf16.xpose.msra.mxu0 0
    %7069 = vmatprep.subr.bf16.mxu0 0
    %7070 = vmatpush1.bf16.xpose.msra.mxu0 0
    %7071 = vmatprep.subr.bf16.mxu0 0
    %7072 = vmatpush1.bf16.xpose.msra.mxu0 0
    %7073 = vmatprep.subr.bf16.mxu0 0
    %7074 = vmatpush1.bf16.xpose.msra.mxu0 0
    %7075 = vmatprep.subr.bf16.mxu0 0
    %7076 = vmatpush1.bf16.xpose.msra.mxu0 0
    %7077 = vmatprep.subr.bf16.mxu0 0
    %7078 = vmatpush1.bf16.xpose.msra.mxu0 0
    %7079 = vmatprep.mubr.bf16.mxu0 0
    %7080 = vmatmul.mubr.bf16.gmra.mrb[0].mxu0 %v4942
    %v7081 = vpop.f32.mrb[0].mxu0
    %v7082 = vadd.f32 0.0, %v7081
    %v7083 = vpop.f32.mrb[0].mxu0
    %v7084 = vpop.f32.mrb[0].mxu0
    %v7085 = vadd.f32 0.0, %v7084
    %v7086 = vpop.f32.mrb[0].mxu0
    %7087 = vmatprep.mubr.bf16.mxu0 0
    %7088 = vmatmul.mubr.bf16.gmra.mrb[0].mxu0 %v4944
    %v7089 = vpop.f32.mrb[0].mxu0
    %v7090 = vadd.f32 0.0, %v7089
    %v7091 = vpop.f32.mrb[0].mxu0
    %v7092 = vpop.f32.mrb[0].mxu0
    %v7093 = vadd.f32 0.0, %v7092
    %v7094 = vpop.f32.mrb[0].mxu0
    %7095 = vmatprep.mubr.bf16.mxu0 0
    %7096 = vmatmul.mubr.bf16.gmra.mrb[0].mxu0 %v4946
    %v7097 = vpop.f32.mrb[0].mxu0
    %v7098 = vadd.f32 0.0, %v7097
    %v7099 = vpop.f32.mrb[0].mxu0
    %v7100 = vpop.f32.mrb[0].mxu0
    %v7101 = vadd.f32 0.0, %v7100
    %v7102 = vpop.f32.mrb[0].mxu0
    %7103 = vmatprep.mubr.bf16.mxu0 0
    %7104 = vmatmul.mubr.bf16.gmra.mrb[0].mxu0 %v4948
    %v7105 = vpop.f32.mrb[0].mxu0
    %v7106 = vadd.f32 0.0, %v7105
    %v7107 = vpop.f32.mrb[0].mxu0
    %v7108 = vpop.f32.mrb[0].mxu0
    %v7109 = vadd.f32 0.0, %v7108
    %v7110 = vpop.f32.mrb[0].mxu0
    %7111 = vmatprep.mubr.bf16.mxu0 0
    %7112 = vmatmul.mubr.bf16.gmra.mrb[0].mxu0 %v4950
    %v7113 = vpop.f32.mrb[0].mxu0
    %v7114 = vadd.f32 0.0, %v7113
    %v7115 = vpop.f32.mrb[0].mxu0
    %v7116 = vpop.f32.mrb[0].mxu0
    %v7117 = vadd.f32 0.0, %v7116
    %v7118 = vpop.f32.mrb[0].mxu0
    %7119 = vmatprep.mubr.bf16.mxu0 0
    %7120 = vmatmul.mubr.bf16.gmra.mrb[0].mxu0 %v4952
    %v7121 = vpop.f32.mrb[0].mxu0
    %v7122 = vadd.f32 0.0, %v7121
    %v7123 = vpop.f32.mrb[0].mxu0
    %v7124 = vpop.f32.mrb[0].mxu0
    %v7125 = vadd.f32 0.0, %v7124
    %v7126 = vpop.f32.mrb[0].mxu0
    %7127 = vmatprep.mubr.bf16.mxu0 0
    %7128 = vmatmul.mubr.bf16.gmra.mrb[0].mxu0 %v4954
    %v7129 = vpop.f32.mrb[0].mxu0
    %v7130 = vadd.f32 0.0, %v7129
    %v7131 = vpop.f32.mrb[0].mxu0
    %v7132 = vpop.f32.mrb[0].mxu0
    %v7133 = vadd.f32 0.0, %v7132
    %v7134 = vpop.f32.mrb[0].mxu0
    %7135 = vmatprep.mubr.bf16.mxu0 0
    %7136 = vmatmul.mubr.bf16.gmra.mrb[0].mxu0 %v4956
    %v7137 = vpop.f32.mrb[0].mxu0
    %v7138 = vadd.f32 0.0, %v7137
    %v7139 = vpop.f32.mrb[0].mxu0
    %v7140 = vpop.f32.mrb[0].mxu0
    %v7141 = vadd.f32 0.0, %v7140
    %v7142 = vpop.f32.mrb[0].mxu0
    %7143 = vmatprep.mubr.bf16.mxu0 0
    %7144 = vmatmul.mubr.bf16.gmra.mrb[0].mxu0 %v4958
    %v7145 = vpop.f32.mrb[0].mxu0
    %v7146 = vadd.f32 0.0, %v7145
    %v7147 = vpop.f32.mrb[0].mxu0
    %v7148 = vpop.f32.mrb[0].mxu0
    %v7149 = vadd.f32 0.0, %v7148
    %v7150 = vpop.f32.mrb[0].mxu0
    %7151 = vmatprep.mubr.bf16.mxu0 0
    %7152 = vmatmul.mubr.bf16.gmra.mrb[0].mxu0 %v4960
    %v7153 = vpop.f32.mrb[0].mxu0
    %v7154 = vadd.f32 0.0, %v7153
    %v7155 = vpop.f32.mrb[0].mxu0
    %v7156 = vpop.f32.mrb[0].mxu0
    %v7157 = vadd.f32 0.0, %v7156
    %v7158 = vpop.f32.mrb[0].mxu0
    %7159 = vmatprep.mubr.bf16.mxu0 0
    %7160 = vmatmul.mubr.bf16.gmra.mrb[0].mxu0 %v4962
    %v7161 = vpop.f32.mrb[0].mxu0
    %v7162 = vadd.f32 0.0, %v7161
    %v7163 = vpop.f32.mrb[0].mxu0
    %v7164 = vpop.f32.mrb[0].mxu0
    %v7165 = vadd.f32 0.0, %v7164
    %v7166 = vpop.f32.mrb[0].mxu0
    %7167 = vmatprep.mubr.bf16.mxu0 0
    %7168 = vmatmul.mubr.bf16.gmra.mrb[0].mxu0 %v4964
    %v7169 = vpop.f32.mrb[0].mxu0
    %v7170 = vadd.f32 0.0, %v7169
    %v7171 = vpop.f32.mrb[0].mxu0
    %v7172 = vpop.f32.mrb[0].mxu0
    %v7173 = vadd.f32 0.0, %v7172
    %v7174 = vpop.f32.mrb[0].mxu0
    %7175 = vmatprep.mubr.bf16.mxu0 0
    %7176 = vmatmul.mubr.bf16.gmra.mrb[0].mxu0 %v4966
    %v7177 = vpop.f32.mrb[0].mxu0
    %v7178 = vadd.f32 0.0, %v7177
    %v7179 = vpop.f32.mrb[0].mxu0
    %v7180 = vpop.f32.mrb[0].mxu0
    %v7181 = vadd.f32 0.0, %v7180
    %v7182 = vpop.f32.mrb[0].mxu0
    %7183 = vmatprep.mubr.bf16.mxu0 0
    %7184 = vmatmul.mubr.bf16.gmra.mrb[0].mxu0 %v4968
    %v7185 = vpop.f32.mrb[0].mxu0
    %v7186 = vadd.f32 0.0, %v7185
    %v7187 = vpop.f32.mrb[0].mxu0
    %v7188 = vpop.f32.mrb[0].mxu0
    %v7189 = vadd.f32 0.0, %v7188
    %v7190 = vpop.f32.mrb[0].mxu0
    %7191 = vmatprep.mubr.bf16.mxu0 0
    %7192 = vmatmul.mubr.bf16.gmra.mrb[0].mxu0 %v5914
    %v7193 = vpop.f32.mrb[0].mxu0
    %v7194 = vadd.f32 0.0, %v7193
    %v7195 = vpop.f32.mrb[0].mxu0
    %v7196 = vpop.f32.mrb[0].mxu0
    %v7197 = vadd.f32 0.0, %v7196
    %v7198 = vpop.f32.mrb[0].mxu0
    %7199 = vmatprep.mubr.bf16.mxu0 0
    %7200 = vmatmul.mubr.bf16.gmra.mrb[0].mxu0 %v7039
    %v7201 = vpop.f32.mrb[0].mxu0
    %v7202 = vadd.f32 0.0, %v7201
    %v7203 = vpop.f32.mrb[0].mxu0
    %v7204 = vpop.f32.mrb[0].mxu0
    %v7205 = vadd.f32 0.0, %v7204
    %v7206 = vpop.f32.mrb[0].mxu0
    %7207 = vmatprep.mubr.bf16.mxu0 0
    %7208 = vmatmul.mubr.bf16.gmra.mrb[0].mxu0 %v4974
    %v7209 = vpop.f32.mrb[0].mxu0
    %v7210 = vadd.f32 0.0, %v7209
    %v7211 = vpop.f32.mrb[0].mxu0
    %v7212 = vpop.f32.mrb[0].mxu0
    %v7213 = vadd.f32 0.0, %v7212
    %v7214 = vpop.f32.mrb[0].mxu0
    %7215 = vmatprep.mubr.bf16.mxu0 0
    %7216 = vmatmul.mubr.bf16.gmra.mrb[0].mxu0 %v4976
    %v7217 = vpop.f32.mrb[0].mxu0
    %v7218 = vadd.f32 0.0, %v7217
    %v7219 = vpop.f32.mrb[0].mxu0
    %v7220 = vpop.f32.mrb[0].mxu0
    %v7221 = vadd.f32 0.0, %v7220
    %v7222 = vpop.f32.mrb[0].mxu0
    %7223 = vmatprep.mubr.bf16.mxu0 0
    %7224 = vmatmul.mubr.bf16.gmra.mrb[0].mxu0 %v4978
    %v7225 = vpop.f32.mrb[0].mxu0
    %v7226 = vadd.f32 0.0, %v7225
    %v7227 = vpop.f32.mrb[0].mxu0
    %v7228 = vpop.f32.mrb[0].mxu0
    %v7229 = vadd.f32 0.0, %v7228
    %v7230 = vpop.f32.mrb[0].mxu0
    %7231 = vmatprep.mubr.bf16.mxu0 0
    %7232 = vmatmul.mubr.bf16.gmra.mrb[0].mxu0 %v4980
    %v7233 = vpop.f32.mrb[0].mxu0
    %v7234 = vadd.f32 0.0, %v7233
    %v7235 = vpop.f32.mrb[0].mxu0
    %v7236 = vpop.f32.mrb[0].mxu0
    %v7237 = vadd.f32 0.0, %v7236
    %v7238 = vpop.f32.mrb[0].mxu0
    %7239 = vmatprep.mubr.bf16.mxu0 0
    %7240 = vmatmul.mubr.bf16.gmra.mrb[0].mxu0 %v4982
    %v7241 = vpop.f32.mrb[0].mxu0
    %v7242 = vadd.f32 0.0, %v7241
    %v7243 = vpop.f32.mrb[0].mxu0
    %v7244 = vpop.f32.mrb[0].mxu0
    %v7245 = vadd.f32 0.0, %v7244
    %v7246 = vpop.f32.mrb[0].mxu0
    %7247 = vmatprep.mubr.bf16.mxu0 0
    %7248 = vmatmul.mubr.bf16.gmra.mrb[0].mxu0 %v4984
    %v7249 = vpop.f32.mrb[0].mxu0
    %v7250 = vadd.f32 0.0, %v7249
    %v7251 = vpop.f32.mrb[0].mxu0
    %v7252 = vpop.f32.mrb[0].mxu0
    %v7253 = vadd.f32 0.0, %v7252
    %v7254 = vpop.f32.mrb[0].mxu0
    %7255 = vmatprep.mubr.bf16.mxu0 0
    %7256 = vmatmul.mubr.bf16.gmra.mrb[0].mxu0 %v4986
    %v7257 = vpop.f32.mrb[0].mxu0
    %v7258 = vadd.f32 0.0, %v7257
    %v7259 = vpop.f32.mrb[0].mxu0
    %v7260 = vpop.f32.mrb[0].mxu0
    %v7261 = vadd.f32 0.0, %v7260
    %v7262 = vpop.f32.mrb[0].mxu0
    %7263 = vmatprep.mubr.bf16.mxu0 0
    %7264 = vmatmul.mubr.bf16.gmra.mrb[0].mxu0 %v4988
    %v7265 = vpop.f32.mrb[0].mxu0
    %v7266 = vadd.f32 0.0, %v7265
    %v7267 = vpop.f32.mrb[0].mxu0
    %v7268 = vpop.f32.mrb[0].mxu0
    %v7269 = vadd.f32 0.0, %v7268
    %v7270 = vpop.f32.mrb[0].mxu0
    %7271 = vmatprep.mubr.bf16.mxu0 0
    %7272 = vmatmul.mubr.bf16.gmra.mrb[0].mxu0 %v4990
    %v7273 = vpop.f32.mrb[0].mxu0
    %v7274 = vadd.f32 0.0, %v7273
    %v7275 = vpop.f32.mrb[0].mxu0
    %v7276 = vpop.f32.mrb[0].mxu0
    %v7277 = vadd.f32 0.0, %v7276
    %v7278 = vpop.f32.mrb[0].mxu0
    %7279 = vmatprep.mubr.bf16.mxu0 0
    %7280 = vmatmul.mubr.bf16.gmra.mrb[0].mxu0 %v4992
    %v7281 = vpop.f32.mrb[0].mxu0
    %v7282 = vadd.f32 0.0, %v7281
    %v7283 = vpop.f32.mrb[0].mxu0
    %v7284 = vpop.f32.mrb[0].mxu0
    %v7285 = vadd.f32 0.0, %v7284
    %v7286 = vpop.f32.mrb[0].mxu0
    %7287 = vmatprep.mubr.bf16.mxu0 0
    %7288 = vmatmul.mubr.bf16.gmra.mrb[0].mxu0 %v4994
    %v7289 = vpop.f32.mrb[0].mxu0
    %v7290 = vadd.f32 0.0, %v7289
    %v7291 = vpop.f32.mrb[0].mxu0
    %v7292 = vpop.f32.mrb[0].mxu0
    %v7293 = vadd.f32 0.0, %v7292
    %v7294 = vpop.f32.mrb[0].mxu0
    %7295 = vmatprep.mubr.bf16.mxu0 0
    %7296 = vmatmul.mubr.bf16.gmra.mrb[0].mxu0 %v4996
    %v7297 = vpop.f32.mrb[0].mxu0
    %v7298 = vadd.f32 0.0, %v7297
    %v7299 = vpop.f32.mrb[0].mxu0
    %v7300 = vpop.f32.mrb[0].mxu0
    %v7301 = vadd.f32 0.0, %v7300
    %v7302 = vpop.f32.mrb[0].mxu0
    %7303 = vmatprep.mubr.bf16.mxu0 0
    %7304 = vmatmul.mubr.bf16.gmra.mrb[0].mxu0 %v4998
    %v7305 = vpop.f32.mrb[0].mxu0
    %v7306 = vadd.f32 0.0, %v7305
    %v7307 = vpop.f32.mrb[0].mxu0
    %v7308 = vpop.f32.mrb[0].mxu0
    %v7309 = vadd.f32 0.0, %v7308
    %v7310 = vpop.f32.mrb[0].mxu0
    %7311 = vmatprep.mubr.bf16.mxu0 0
    %7312 = vmatmul.mubr.bf16.gmra.mrb[0].mxu0 %v5000
    %v7313 = vpop.f32.mrb[0].mxu0
    %v7314 = vadd.f32 0.0, %v7313
    %v7315 = vpop.f32.mrb[0].mxu0
    %v7316 = vpop.f32.mrb[0].mxu0
    %v7317 = vadd.f32 0.0, %v7316
    %v7318 = vpop.f32.mrb[0].mxu0
    %7319 = vmatprep.mubr.bf16.mxu0 0
    %7320 = vmatmul.mubr.bf16.gmra.mrb[0].mxu0 %v5917
    %v7321 = vpop.f32.mrb[0].mxu0
    %v7322 = vadd.f32 0.0, %v7321
    %v7323 = vpop.f32.mrb[0].mxu0
    %v7324 = vpop.f32.mrb[0].mxu0
    %v7325 = vadd.f32 0.0, %v7324
    %v7326 = vpop.f32.mrb[0].mxu0
    %7327 = vmatprep.mubr.bf16.mxu0 0
    %7328 = vmatmul.mubr.bf16.gmra.mrb[0].mxu0 %v7042
    %v7329 = vpop.f32.mrb[0].mxu0
    %v7330 = vadd.f32 0.0, %v7329
    %v7331 = vpop.f32.mrb[0].mxu0
    %v7332 = vpop.f32.mrb[0].mxu0
    %v7333 = vadd.f32 0.0, %v7332
    %v7334 = vpop.f32.mrb[0].mxu0
    %7335 = vdwg.mxu0
    %v7336 = vadd.f32 %v6973, %v7082
    %v7337 = vadd.f32 %v6974, %v7085
    %v7338 = vadd.f32 %v6975, %v7090
    %v7339 = vadd.f32 %v6976, %v7093
    %v7340 = vadd.f32 %v6977, %v7098
    %v7341 = vadd.f32 %v6978, %v7101
    %v7342 = vadd.f32 %v6979, %v7106
    %v7343 = vadd.f32 %v6980, %v7109
    %v7344 = vadd.f32 %v6981, %v7114
    %v7345 = vadd.f32 %v6982, %v7117
    %v7346 = vadd.f32 %v6983, %v7122
    %v7347 = vadd.f32 %v6984, %v7125
    %v7348 = vadd.f32 %v6985, %v7130
    %v7349 = vadd.f32 %v6986, %v7133
    %v7350 = vadd.f32 %v6987, %v7138
    %v7351 = vadd.f32 %v6988, %v7141
    %v7352 = vadd.f32 %v6989, %v7146
    %v7353 = vadd.f32 %v6990, %v7149
    %v7354 = vadd.f32 %v6991, %v7154
    %v7355 = vadd.f32 %v6992, %v7157
    %v7356 = vadd.f32 %v6993, %v7162
    %v7357 = vadd.f32 %v6994, %v7165
    %v7358 = vadd.f32 %v6995, %v7170
    %v7359 = vadd.f32 %v6996, %v7173
    %v7360 = vadd.f32 %v6997, %v7178
    %v7361 = vadd.f32 %v6998, %v7181
    %v7362 = vadd.f32 %v6999, %v7186
    %v7363 = vadd.f32 %v7000, %v7189
    %v7364 = vadd.f32 %v7001, %v7194
    %v7365 = vadd.f32 %v7002, %v7197
    %v7366 = vadd.f32 %v7003, %v7202
    %v7367 = vadd.f32 %v7004, %v7205
    %v7368 = vadd.f32 %v7005, %v7210
    %v7369 = vadd.f32 %v7006, %v7213
    %v7370 = vadd.f32 %v7007, %v7218
    %v7371 = vadd.f32 %v7008, %v7221
    %v7372 = vadd.f32 %v7009, %v7226
    %v7373 = vadd.f32 %v7010, %v7229
    %v7374 = vadd.f32 %v7011, %v7234
    %v7375 = vadd.f32 %v7012, %v7237
    %v7376 = vadd.f32 %v7013, %v7242
    %v7377 = vadd.f32 %v7014, %v7245
    %v7378 = vadd.f32 %v7015, %v7250
    %v7379 = vadd.f32 %v7016, %v7253
    %v7380 = vadd.f32 %v7017, %v7258
    %v7381 = vadd.f32 %v7018, %v7261
    %v7382 = vadd.f32 %v7019, %v7266
    %v7383 = vadd.f32 %v7020, %v7269
    %v7384 = vadd.f32 %v7021, %v7274
    %v7385 = vadd.f32 %v7022, %v7277
    %v7386 = vadd.f32 %v7023, %v7282
    %v7387 = vadd.f32 %v7024, %v7285
    %v7388 = vadd.f32 %v7025, %v7290
    %v7389 = vadd.f32 %v7026, %v7293
    %v7390 = vadd.f32 %v7027, %v7298
    %v7391 = vadd.f32 %v7028, %v7301
    %v7392 = vadd.f32 %v7029, %v7306
    %v7393 = vadd.f32 %v7030, %v7309
    %v7394 = vadd.f32 %v7031, %v7314
    %v7395 = vadd.f32 %v7032, %v7317
    %v7396 = vadd.f32 %v7033, %v7322
    %v7397 = vadd.f32 %v7034, %v7325
    %v7398 = vadd.f32 %v7035, %v7330
    %v7399 = vadd.f32 %v7036, %v7333
    %v7400 = vshrl.u32 %v4120, 16
    %v7402 = vshll.u32 %v4120, 16
    %v7404 = vrot.slane %v7402, 1
    %v7405 = vor.u32 %v7400, %v7404
    %v7407 = vshll.u32 %v4121, 16
    %v7409 = vrot.slane %v7407, 1
    %v7410 = vsel %vm4159, %v7405, %v7409
    %v7411 = vshrl.u32 %v4156, 16
    %v7413 = vshll.u32 %v4156, 16
    %v7415 = vrot.slane %v7413, 1
    %v7416 = vor.u32 %v7411, %v7415
    %v7418 = vshll.u32 %v4157, 16
    %v7420 = vrot.slane %v7418, 1
    %v7421 = vsel %vm4159, %v7416, %v7420
    %v7422 = vld [vmem:[%s3 + $0xc] sm:$0xc]
    %v7424 = vunpack.c.l.b16 %v7422
    %v7425 = vpack.c.b16 %v7424, %v7424
    %v7426 = vrot.slane %v7425, 2
    %v7428 = vsel %vm4549, %v7410, 0
    %v7431 = vsel %vm4549, %v7421, 0
    %v7434 = vsel %vm4549, %v7426, 0
    %7436 = vmatprep.subr.bf16.mxu0 0
    %7437 = vmatpush1.bf16.xpose.msra.mxu0 %v7434
    %7438 = vmatprep.subr.bf16.mxu0 0
    %7439 = vmatpush1.bf16.xpose.msra.mxu0 0
    %7440 = vmatprep.subr.bf16.mxu0 0
    %7441 = vmatpush1.bf16.xpose.msra.mxu0 0
    %7442 = vmatprep.subr.bf16.mxu0 0
    %7443 = vmatpush1.bf16.xpose.msra.mxu0 0
    %7444 = vmatprep.subr.bf16.mxu0 0
    %7445 = vmatpush1.bf16.xpose.msra.mxu0 0
    %7446 = vmatprep.subr.bf16.mxu0 0
    %7447 = vmatpush1.bf16.xpose.msra.mxu0 0
    %7448 = vmatprep.subr.bf16.mxu0 0
    %7449 = vmatpush1.bf16.xpose.msra.mxu0 0
    %7450 = vmatprep.subr.bf16.mxu0 0
    %7451 = vmatpush1.bf16.xpose.msra.mxu0 0
    %7452 = vmatprep.subr.bf16.mxu0 0
    %7453 = vmatpush1.bf16.xpose.msra.mxu0 0
    %7454 = vmatprep.subr.bf16.mxu0 0
    %7455 = vmatpush1.bf16.xpose.msra.mxu0 0
    %7456 = vmatprep.subr.bf16.mxu0 0
    %7457 = vmatpush1.bf16.xpose.msra.mxu0 0
    %7458 = vmatprep.subr.bf16.mxu0 0
    %7459 = vmatpush1.bf16.xpose.msra.mxu0 0
    %7460 = vmatprep.subr.bf16.mxu0 0
    %7461 = vmatpush1.bf16.xpose.msra.mxu0 0
    %7462 = vmatprep.subr.bf16.mxu0 0
    %7463 = vmatpush1.bf16.xpose.msra.mxu0 0
    %7464 = vmatprep.subr.bf16.mxu0 0
    %7465 = vmatpush1.bf16.xpose.msra.mxu0 0
    %7466 = vmatprep.subr.bf16.mxu0 0
    %7467 = vmatpush1.bf16.xpose.msra.mxu0 0
    %7468 = vmatprep.mubr.bf16.mxu0 0
    %7469 = vmatmul.mubr.bf16.gmra.mrb[0].mxu0 %v4557
    %v7470 = vpop.f32.mrb[0].mxu0
    %v7471 = vadd.f32 0.0, %v7470
    %v7472 = vpop.f32.mrb[0].mxu0
    %v7473 = vpop.f32.mrb[0].mxu0
    %v7474 = vadd.f32 0.0, %v7473
    %v7475 = vpop.f32.mrb[0].mxu0
    %7476 = vmatprep.mubr.bf16.mxu0 0
    %7477 = vmatmul.mubr.bf16.gmra.mrb[0].mxu0 %v4560
    %v7478 = vpop.f32.mrb[0].mxu0
    %v7479 = vadd.f32 0.0, %v7478
    %v7480 = vpop.f32.mrb[0].mxu0
    %v7481 = vpop.f32.mrb[0].mxu0
    %v7482 = vadd.f32 0.0, %v7481
    %v7483 = vpop.f32.mrb[0].mxu0
    %7484 = vmatprep.mubr.bf16.mxu0 0
    %7485 = vmatmul.mubr.bf16.gmra.mrb[0].mxu0 %v4563
    %v7486 = vpop.f32.mrb[0].mxu0
    %v7487 = vadd.f32 0.0, %v7486
    %v7488 = vpop.f32.mrb[0].mxu0
    %v7489 = vpop.f32.mrb[0].mxu0
    %v7490 = vadd.f32 0.0, %v7489
    %v7491 = vpop.f32.mrb[0].mxu0
    %7492 = vmatprep.mubr.bf16.mxu0 0
    %7493 = vmatmul.mubr.bf16.gmra.mrb[0].mxu0 %v4566
    %v7494 = vpop.f32.mrb[0].mxu0
    %v7495 = vadd.f32 0.0, %v7494
    %v7496 = vpop.f32.mrb[0].mxu0
    %v7497 = vpop.f32.mrb[0].mxu0
    %v7498 = vadd.f32 0.0, %v7497
    %v7499 = vpop.f32.mrb[0].mxu0
    %7500 = vmatprep.mubr.bf16.mxu0 0
    %7501 = vmatmul.mubr.bf16.gmra.mrb[0].mxu0 %v4569
    %v7502 = vpop.f32.mrb[0].mxu0
    %v7503 = vadd.f32 0.0, %v7502
    %v7504 = vpop.f32.mrb[0].mxu0
    %v7505 = vpop.f32.mrb[0].mxu0
    %v7506 = vadd.f32 0.0, %v7505
    %v7507 = vpop.f32.mrb[0].mxu0
    %7508 = vmatprep.mubr.bf16.mxu0 0
    %7509 = vmatmul.mubr.bf16.gmra.mrb[0].mxu0 %v4572
    %v7510 = vpop.f32.mrb[0].mxu0
    %v7511 = vadd.f32 0.0, %v7510
    %v7512 = vpop.f32.mrb[0].mxu0
    %v7513 = vpop.f32.mrb[0].mxu0
    %v7514 = vadd.f32 0.0, %v7513
    %v7515 = vpop.f32.mrb[0].mxu0
    %7516 = vmatprep.mubr.bf16.mxu0 0
    %7517 = vmatmul.mubr.bf16.gmra.mrb[0].mxu0 %v4575
    %v7518 = vpop.f32.mrb[0].mxu0
    %v7519 = vadd.f32 0.0, %v7518
    %v7520 = vpop.f32.mrb[0].mxu0
    %v7521 = vpop.f32.mrb[0].mxu0
    %v7522 = vadd.f32 0.0, %v7521
    %v7523 = vpop.f32.mrb[0].mxu0
    %7524 = vmatprep.mubr.bf16.mxu0 0
    %7525 = vmatmul.mubr.bf16.gmra.mrb[0].mxu0 %v4578
    %v7526 = vpop.f32.mrb[0].mxu0
    %v7527 = vadd.f32 0.0, %v7526
    %v7528 = vpop.f32.mrb[0].mxu0
    %v7529 = vpop.f32.mrb[0].mxu0
    %v7530 = vadd.f32 0.0, %v7529
    %v7531 = vpop.f32.mrb[0].mxu0
    %7532 = vmatprep.mubr.bf16.mxu0 0
    %7533 = vmatmul.mubr.bf16.gmra.mrb[0].mxu0 %v4581
    %v7534 = vpop.f32.mrb[0].mxu0
    %v7535 = vadd.f32 0.0, %v7534
    %v7536 = vpop.f32.mrb[0].mxu0
    %v7537 = vpop.f32.mrb[0].mxu0
    %v7538 = vadd.f32 0.0, %v7537
    %v7539 = vpop.f32.mrb[0].mxu0
    %7540 = vmatprep.mubr.bf16.mxu0 0
    %7541 = vmatmul.mubr.bf16.gmra.mrb[0].mxu0 %v4584
    %v7542 = vpop.f32.mrb[0].mxu0
    %v7543 = vadd.f32 0.0, %v7542
    %v7544 = vpop.f32.mrb[0].mxu0
    %v7545 = vpop.f32.mrb[0].mxu0
    %v7546 = vadd.f32 0.0, %v7545
    %v7547 = vpop.f32.mrb[0].mxu0
    %7548 = vmatprep.mubr.bf16.mxu0 0
    %7549 = vmatmul.mubr.bf16.gmra.mrb[0].mxu0 %v4587
    %v7550 = vpop.f32.mrb[0].mxu0
    %v7551 = vadd.f32 0.0, %v7550
    %v7552 = vpop.f32.mrb[0].mxu0
    %v7553 = vpop.f32.mrb[0].mxu0
    %v7554 = vadd.f32 0.0, %v7553
    %v7555 = vpop.f32.mrb[0].mxu0
    %7556 = vmatprep.mubr.bf16.mxu0 0
    %7557 = vmatmul.mubr.bf16.gmra.mrb[0].mxu0 %v4590
    %v7558 = vpop.f32.mrb[0].mxu0
    %v7559 = vadd.f32 0.0, %v7558
    %v7560 = vpop.f32.mrb[0].mxu0
    %v7561 = vpop.f32.mrb[0].mxu0
    %v7562 = vadd.f32 0.0, %v7561
    %v7563 = vpop.f32.mrb[0].mxu0
    %7564 = vmatprep.mubr.bf16.mxu0 0
    %7565 = vmatmul.mubr.bf16.gmra.mrb[0].mxu0 %v4593
    %v7566 = vpop.f32.mrb[0].mxu0
    %v7567 = vadd.f32 0.0, %v7566
    %v7568 = vpop.f32.mrb[0].mxu0
    %v7569 = vpop.f32.mrb[0].mxu0
    %v7570 = vadd.f32 0.0, %v7569
    %v7571 = vpop.f32.mrb[0].mxu0
    %7572 = vmatprep.mubr.bf16.mxu0 0
    %7573 = vmatmul.mubr.bf16.gmra.mrb[0].mxu0 %v4596
    %v7574 = vpop.f32.mrb[0].mxu0
    %v7575 = vadd.f32 0.0, %v7574
    %v7576 = vpop.f32.mrb[0].mxu0
    %v7577 = vpop.f32.mrb[0].mxu0
    %v7578 = vadd.f32 0.0, %v7577
    %v7579 = vpop.f32.mrb[0].mxu0
    %7580 = vmatprep.mubr.bf16.mxu0 0
    %7581 = vmatmul.mubr.bf16.gmra.mrb[0].mxu0 %v6299
    %v7582 = vpop.f32.mrb[0].mxu0
    %v7583 = vadd.f32 0.0, %v7582
    %v7584 = vpop.f32.mrb[0].mxu0
    %v7585 = vpop.f32.mrb[0].mxu0
    %v7586 = vadd.f32 0.0, %v7585
    %v7587 = vpop.f32.mrb[0].mxu0
    %7588 = vmatprep.mubr.bf16.mxu0 0
    %7589 = vmatmul.mubr.bf16.gmra.mrb[0].mxu0 %v7428
    %v7590 = vpop.f32.mrb[0].mxu0
    %v7591 = vadd.f32 0.0, %v7590
    %v7592 = vpop.f32.mrb[0].mxu0
    %v7593 = vpop.f32.mrb[0].mxu0
    %v7594 = vadd.f32 0.0, %v7593
    %v7595 = vpop.f32.mrb[0].mxu0
    %7596 = vmatprep.mubr.bf16.mxu0 0
    %7597 = vmatmul.mubr.bf16.gmra.mrb[0].mxu0 %v4605
    %v7598 = vpop.f32.mrb[0].mxu0
    %v7599 = vadd.f32 0.0, %v7598
    %v7600 = vpop.f32.mrb[0].mxu0
    %v7601 = vpop.f32.mrb[0].mxu0
    %v7602 = vadd.f32 0.0, %v7601
    %v7603 = vpop.f32.mrb[0].mxu0
    %7604 = vmatprep.mubr.bf16.mxu0 0
    %7605 = vmatmul.mubr.bf16.gmra.mrb[0].mxu0 %v4608
    %v7606 = vpop.f32.mrb[0].mxu0
    %v7607 = vadd.f32 0.0, %v7606
    %v7608 = vpop.f32.mrb[0].mxu0
    %v7609 = vpop.f32.mrb[0].mxu0
    %v7610 = vadd.f32 0.0, %v7609
    %v7611 = vpop.f32.mrb[0].mxu0
    %7612 = vmatprep.mubr.bf16.mxu0 0
    %7613 = vmatmul.mubr.bf16.gmra.mrb[0].mxu0 %v4611
    %v7614 = vpop.f32.mrb[0].mxu0
    %v7615 = vadd.f32 0.0, %v7614
    %v7616 = vpop.f32.mrb[0].mxu0
    %v7617 = vpop.f32.mrb[0].mxu0
    %v7618 = vadd.f32 0.0, %v7617
    %v7619 = vpop.f32.mrb[0].mxu0
    %7620 = vmatprep.mubr.bf16.mxu0 0
    %7621 = vmatmul.mubr.bf16.gmra.mrb[0].mxu0 %v4614
    %v7622 = vpop.f32.mrb[0].mxu0
    %v7623 = vadd.f32 0.0, %v7622
    %v7624 = vpop.f32.mrb[0].mxu0
    %v7625 = vpop.f32.mrb[0].mxu0
    %v7626 = vadd.f32 0.0, %v7625
    %v7627 = vpop.f32.mrb[0].mxu0
    %7628 = vmatprep.mubr.bf16.mxu0 0
    %7629 = vmatmul.mubr.bf16.gmra.mrb[0].mxu0 %v4617
    %v7630 = vpop.f32.mrb[0].mxu0
    %v7631 = vadd.f32 0.0, %v7630
    %v7632 = vpop.f32.mrb[0].mxu0
    %v7633 = vpop.f32.mrb[0].mxu0
    %v7634 = vadd.f32 0.0, %v7633
    %v7635 = vpop.f32.mrb[0].mxu0
    %7636 = vmatprep.mubr.bf16.mxu0 0
    %7637 = vmatmul.mubr.bf16.gmra.mrb[0].mxu0 %v4620
    %v7638 = vpop.f32.mrb[0].mxu0
    %v7639 = vadd.f32 0.0, %v7638
    %v7640 = vpop.f32.mrb[0].mxu0
    %v7641 = vpop.f32.mrb[0].mxu0
    %v7642 = vadd.f32 0.0, %v7641
    %v7643 = vpop.f32.mrb[0].mxu0
    %7644 = vmatprep.mubr.bf16.mxu0 0
    %7645 = vmatmul.mubr.bf16.gmra.mrb[0].mxu0 %v4623
    %v7646 = vpop.f32.mrb[0].mxu0
    %v7647 = vadd.f32 0.0, %v7646
    %v7648 = vpop.f32.mrb[0].mxu0
    %v7649 = vpop.f32.mrb[0].mxu0
    %v7650 = vadd.f32 0.0, %v7649
    %v7651 = vpop.f32.mrb[0].mxu0
    %7652 = vmatprep.mubr.bf16.mxu0 0
    %7653 = vmatmul.mubr.bf16.gmra.mrb[0].mxu0 %v4626
    %v7654 = vpop.f32.mrb[0].mxu0
    %v7655 = vadd.f32 0.0, %v7654
    %v7656 = vpop.f32.mrb[0].mxu0
    %v7657 = vpop.f32.mrb[0].mxu0
    %v7658 = vadd.f32 0.0, %v7657
    %v7659 = vpop.f32.mrb[0].mxu0
    %7660 = vmatprep.mubr.bf16.mxu0 0
    %7661 = vmatmul.mubr.bf16.gmra.mrb[0].mxu0 %v4629
    %v7662 = vpop.f32.mrb[0].mxu0
    %v7663 = vadd.f32 0.0, %v7662
    %v7664 = vpop.f32.mrb[0].mxu0
    %v7665 = vpop.f32.mrb[0].mxu0
    %v7666 = vadd.f32 0.0, %v7665
    %v7667 = vpop.f32.mrb[0].mxu0
    %7668 = vmatprep.mubr.bf16.mxu0 0
    %7669 = vmatmul.mubr.bf16.gmra.mrb[0].mxu0 %v4632
    %v7670 = vpop.f32.mrb[0].mxu0
    %v7671 = vadd.f32 0.0, %v7670
    %v7672 = vpop.f32.mrb[0].mxu0
    %v7673 = vpop.f32.mrb[0].mxu0
    %v7674 = vadd.f32 0.0, %v7673
    %v7675 = vpop.f32.mrb[0].mxu0
    %7676 = vmatprep.mubr.bf16.mxu0 0
    %7677 = vmatmul.mubr.bf16.gmra.mrb[0].mxu0 %v4635
    %v7678 = vpop.f32.mrb[0].mxu0
    %v7679 = vadd.f32 0.0, %v7678
    %v7680 = vpop.f32.mrb[0].mxu0
    %v7681 = vpop.f32.mrb[0].mxu0
    %v7682 = vadd.f32 0.0, %v7681
    %v7683 = vpop.f32.mrb[0].mxu0
    %7684 = vmatprep.mubr.bf16.mxu0 0
    %7685 = vmatmul.mubr.bf16.gmra.mrb[0].mxu0 %v4638
    %v7686 = vpop.f32.mrb[0].mxu0
    %v7687 = vadd.f32 0.0, %v7686
    %v7688 = vpop.f32.mrb[0].mxu0
    %v7689 = vpop.f32.mrb[0].mxu0
    %v7690 = vadd.f32 0.0, %v7689
    %v7691 = vpop.f32.mrb[0].mxu0
    %7692 = vmatprep.mubr.bf16.mxu0 0
    %7693 = vmatmul.mubr.bf16.gmra.mrb[0].mxu0 %v4641
    %v7694 = vpop.f32.mrb[0].mxu0
    %v7695 = vadd.f32 0.0, %v7694
    %v7696 = vpop.f32.mrb[0].mxu0
    %v7697 = vpop.f32.mrb[0].mxu0
    %v7698 = vadd.f32 0.0, %v7697
    %v7699 = vpop.f32.mrb[0].mxu0
    %7700 = vmatprep.mubr.bf16.mxu0 0
    %7701 = vmatmul.mubr.bf16.gmra.mrb[0].mxu0 %v4644
    %v7702 = vpop.f32.mrb[0].mxu0
    %v7703 = vadd.f32 0.0, %v7702
    %v7704 = vpop.f32.mrb[0].mxu0
    %v7705 = vpop.f32.mrb[0].mxu0
    %v7706 = vadd.f32 0.0, %v7705
    %v7707 = vpop.f32.mrb[0].mxu0
    %7708 = vmatprep.mubr.bf16.mxu0 0
    %7709 = vmatmul.mubr.bf16.gmra.mrb[0].mxu0 %v6302
    %v7710 = vpop.f32.mrb[0].mxu0
    %v7711 = vadd.f32 0.0, %v7710
    %v7712 = vpop.f32.mrb[0].mxu0
    %v7713 = vpop.f32.mrb[0].mxu0
    %v7714 = vadd.f32 0.0, %v7713
    %v7715 = vpop.f32.mrb[0].mxu0
    %7716 = vmatprep.mubr.bf16.mxu0 0
    %7717 = vmatmul.mubr.bf16.gmra.mrb[0].mxu0 %v7431
    %v7718 = vpop.f32.mrb[0].mxu0
    %v7719 = vadd.f32 0.0, %v7718
    %v7720 = vpop.f32.mrb[0].mxu0
    %v7721 = vpop.f32.mrb[0].mxu0
    %v7722 = vadd.f32 0.0, %v7721
    %v7723 = vpop.f32.mrb[0].mxu0
    %7724 = vdwg.mxu0
    %v7725 = vadd.f32 %v7336, %v7471
    %v7726 = vadd.f32 %v7337, %v7474
    %v7727 = vadd.f32 %v7338, %v7479
    %v7728 = vadd.f32 %v7339, %v7482
    %v7729 = vadd.f32 %v7340, %v7487
    %v7730 = vadd.f32 %v7341, %v7490
    %v7731 = vadd.f32 %v7342, %v7495
    %v7732 = vadd.f32 %v7343, %v7498
    %v7733 = vadd.f32 %v7344, %v7503
    %v7734 = vadd.f32 %v7345, %v7506
    %v7735 = vadd.f32 %v7346, %v7511
    %v7736 = vadd.f32 %v7347, %v7514
    %v7737 = vadd.f32 %v7348, %v7519
    %v7738 = vadd.f32 %v7349, %v7522
    %v7739 = vadd.f32 %v7350, %v7527
    %v7740 = vadd.f32 %v7351, %v7530
    %v7741 = vadd.f32 %v7352, %v7535
    %v7742 = vadd.f32 %v7353, %v7538
    %v7743 = vadd.f32 %v7354, %v7543
    %v7744 = vadd.f32 %v7355, %v7546
    %v7745 = vadd.f32 %v7356, %v7551
    %v7746 = vadd.f32 %v7357, %v7554
    %v7747 = vadd.f32 %v7358, %v7559
    %v7748 = vadd.f32 %v7359, %v7562
    %v7749 = vadd.f32 %v7360, %v7567
    %v7750 = vadd.f32 %v7361, %v7570
    %v7751 = vadd.f32 %v7362, %v7575
    %v7752 = vadd.f32 %v7363, %v7578
    %v7753 = vadd.f32 %v7364, %v7583
    %v7754 = vadd.f32 %v7365, %v7586
    %v7755 = vadd.f32 %v7366, %v7591
    %v7756 = vadd.f32 %v7367, %v7594
    %v7757 = vadd.f32 %v7368, %v7599
    %v7758 = vadd.f32 %v7369, %v7602
    %v7759 = vadd.f32 %v7370, %v7607
    %v7760 = vadd.f32 %v7371, %v7610
    %v7761 = vadd.f32 %v7372, %v7615
    %v7762 = vadd.f32 %v7373, %v7618
    %v7763 = vadd.f32 %v7374, %v7623
    %v7764 = vadd.f32 %v7375, %v7626
    %v7765 = vadd.f32 %v7376, %v7631
    %v7766 = vadd.f32 %v7377, %v7634
    %v7767 = vadd.f32 %v7378, %v7639
    %v7768 = vadd.f32 %v7379, %v7642
    %v7769 = vadd.f32 %v7380, %v7647
    %v7770 = vadd.f32 %v7381, %v7650
    %v7771 = vadd.f32 %v7382, %v7655
    %v7772 = vadd.f32 %v7383, %v7658
    %v7773 = vadd.f32 %v7384, %v7663
    %v7774 = vadd.f32 %v7385, %v7666
    %v7775 = vadd.f32 %v7386, %v7671
    %v7776 = vadd.f32 %v7387, %v7674
    %v7777 = vadd.f32 %v7388, %v7679
    %v7778 = vadd.f32 %v7389, %v7682
    %v7779 = vadd.f32 %v7390, %v7687
    %v7780 = vadd.f32 %v7391, %v7690
    %v7781 = vadd.f32 %v7392, %v7695
    %v7782 = vadd.f32 %v7393, %v7698
    %v7783 = vadd.f32 %v7394, %v7703
    %v7784 = vadd.f32 %v7395, %v7706
    %v7785 = vadd.f32 %v7396, %v7711
    %v7786 = vadd.f32 %v7397, %v7714
    %v7787 = vadd.f32 %v7398, %v7719
    %v7788 = vadd.f32 %v7399, %v7722
    %v7793 = vrot.slane %v4120, 1
    %v7794 = vrot.slane %v4121, 1
    %v7795 = vsel %vm5358, %v7793, %v7794
    %v7796 = vrot.slane %v4156, 1
    %v7797 = vrot.slane %v4157, 1
    %v7798 = vsel %vm5358, %v7796, %v7797
    %v7799 = vld [vmem:[%s3 + $0x10] sm:$0x3]
    %v7801 = vsel %vm4549, %v7795, 0
    %v7804 = vsel %vm4549, %v7798, 0
    %v7807 = vsel %vm4549, %v7799, 0
    %7809 = vmatprep.subr.bf16.mxu0 0
    %7810 = vmatpush1.bf16.xpose.msra.mxu0 %v7807
    %7811 = vmatprep.subr.bf16.mxu0 0
    %7812 = vmatpush1.bf16.xpose.msra.mxu0 0
    %7813 = vmatprep.subr.bf16.mxu0 0
    %7814 = vmatpush1.bf16.xpose.msra.mxu0 0
    %7815 = vmatprep.subr.bf16.mxu0 0
    %7816 = vmatpush1.bf16.xpose.msra.mxu0 0
    %7817 = vmatprep.subr.bf16.mxu0 0
    %7818 = vmatpush1.bf16.xpose.msra.mxu0 0
    %7819 = vmatprep.subr.bf16.mxu0 0
    %7820 = vmatpush1.bf16.xpose.msra.mxu0 0
    %7821 = vmatprep.subr.bf16.mxu0 0
    %7822 = vmatpush1.bf16.xpose.msra.mxu0 0
    %7823 = vmatprep.subr.bf16.mxu0 0
    %7824 = vmatpush1.bf16.xpose.msra.mxu0 0
    %7825 = vmatprep.subr.bf16.mxu0 0
    %7826 = vmatpush1.bf16.xpose.msra.mxu0 0
    %7827 = vmatprep.subr.bf16.mxu0 0
    %7828 = vmatpush1.bf16.xpose.msra.mxu0 0
    %7829 = vmatprep.subr.bf16.mxu0 0
    %7830 = vmatpush1.bf16.xpose.msra.mxu0 0
    %7831 = vmatprep.subr.bf16.mxu0 0
    %7832 = vmatpush1.bf16.xpose.msra.mxu0 0
    %7833 = vmatprep.subr.bf16.mxu0 0
    %7834 = vmatpush1.bf16.xpose.msra.mxu0 0
    %7835 = vmatprep.subr.bf16.mxu0 0
    %7836 = vmatpush1.bf16.xpose.msra.mxu0 0
    %7837 = vmatprep.subr.bf16.mxu0 0
    %7838 = vmatpush1.bf16.xpose.msra.mxu0 0
    %7839 = vmatprep.subr.bf16.mxu0 0
    %7840 = vmatpush1.bf16.xpose.msra.mxu0 0
    %7841 = vmatprep.mubr.bf16.mxu0 0
    %7842 = vmatmul.mubr.bf16.gmra.mrb[0].mxu0 %v5463
    %v7843 = vpop.f32.mrb[0].mxu0
    %v7844 = vadd.f32 0.0, %v7843
    %v7845 = vpop.f32.mrb[0].mxu0
    %v7846 = vpop.f32.mrb[0].mxu0
    %v7847 = vadd.f32 0.0, %v7846
    %v7848 = vpop.f32.mrb[0].mxu0
    %7849 = vmatprep.mubr.bf16.mxu0 0
    %7850 = vmatmul.mubr.bf16.gmra.mrb[0].mxu0 %v5466
    %v7851 = vpop.f32.mrb[0].mxu0
    %v7852 = vadd.f32 0.0, %v7851
    %v7853 = vpop.f32.mrb[0].mxu0
    %v7854 = vpop.f32.mrb[0].mxu0
    %v7855 = vadd.f32 0.0, %v7854
    %v7856 = vpop.f32.mrb[0].mxu0
    %7857 = vmatprep.mubr.bf16.mxu0 0
    %7858 = vmatmul.mubr.bf16.gmra.mrb[0].mxu0 %v5469
    %v7859 = vpop.f32.mrb[0].mxu0
    %v7860 = vadd.f32 0.0, %v7859
    %v7861 = vpop.f32.mrb[0].mxu0
    %v7862 = vpop.f32.mrb[0].mxu0
    %v7863 = vadd.f32 0.0, %v7862
    %v7864 = vpop.f32.mrb[0].mxu0
    %7865 = vmatprep.mubr.bf16.mxu0 0
    %7866 = vmatmul.mubr.bf16.gmra.mrb[0].mxu0 %v5472
    %v7867 = vpop.f32.mrb[0].mxu0
    %v7868 = vadd.f32 0.0, %v7867
    %v7869 = vpop.f32.mrb[0].mxu0
    %v7870 = vpop.f32.mrb[0].mxu0
    %v7871 = vadd.f32 0.0, %v7870
    %v7872 = vpop.f32.mrb[0].mxu0
    %7873 = vmatprep.mubr.bf16.mxu0 0
    %7874 = vmatmul.mubr.bf16.gmra.mrb[0].mxu0 %v5475
    %v7875 = vpop.f32.mrb[0].mxu0
    %v7876 = vadd.f32 0.0, %v7875
    %v7877 = vpop.f32.mrb[0].mxu0
    %v7878 = vpop.f32.mrb[0].mxu0
    %v7879 = vadd.f32 0.0, %v7878
    %v7880 = vpop.f32.mrb[0].mxu0
    %7881 = vmatprep.mubr.bf16.mxu0 0
    %7882 = vmatmul.mubr.bf16.gmra.mrb[0].mxu0 %v5478
    %v7883 = vpop.f32.mrb[0].mxu0
    %v7884 = vadd.f32 0.0, %v7883
    %v7885 = vpop.f32.mrb[0].mxu0
    %v7886 = vpop.f32.mrb[0].mxu0
    %v7887 = vadd.f32 0.0, %v7886
    %v7888 = vpop.f32.mrb[0].mxu0
    %7889 = vmatprep.mubr.bf16.mxu0 0
    %7890 = vmatmul.mubr.bf16.gmra.mrb[0].mxu0 %v5481
    %v7891 = vpop.f32.mrb[0].mxu0
    %v7892 = vadd.f32 0.0, %v7891
    %v7893 = vpop.f32.mrb[0].mxu0
    %v7894 = vpop.f32.mrb[0].mxu0
    %v7895 = vadd.f32 0.0, %v7894
    %v7896 = vpop.f32.mrb[0].mxu0
    %7897 = vmatprep.mubr.bf16.mxu0 0
    %7898 = vmatmul.mubr.bf16.gmra.mrb[0].mxu0 %v5484
    %v7899 = vpop.f32.mrb[0].mxu0
    %v7900 = vadd.f32 0.0, %v7899
    %v7901 = vpop.f32.mrb[0].mxu0
    %v7902 = vpop.f32.mrb[0].mxu0
    %v7903 = vadd.f32 0.0, %v7902
    %v7904 = vpop.f32.mrb[0].mxu0
    %7905 = vmatprep.mubr.bf16.mxu0 0
    %7906 = vmatmul.mubr.bf16.gmra.mrb[0].mxu0 %v5487
    %v7907 = vpop.f32.mrb[0].mxu0
    %v7908 = vadd.f32 0.0, %v7907
    %v7909 = vpop.f32.mrb[0].mxu0
    %v7910 = vpop.f32.mrb[0].mxu0
    %v7911 = vadd.f32 0.0, %v7910
    %v7912 = vpop.f32.mrb[0].mxu0
    %7913 = vmatprep.mubr.bf16.mxu0 0
    %7914 = vmatmul.mubr.bf16.gmra.mrb[0].mxu0 %v5490
    %v7915 = vpop.f32.mrb[0].mxu0
    %v7916 = vadd.f32 0.0, %v7915
    %v7917 = vpop.f32.mrb[0].mxu0
    %v7918 = vpop.f32.mrb[0].mxu0
    %v7919 = vadd.f32 0.0, %v7918
    %v7920 = vpop.f32.mrb[0].mxu0
    %7921 = vmatprep.mubr.bf16.mxu0 0
    %7922 = vmatmul.mubr.bf16.gmra.mrb[0].mxu0 %v5493
    %v7923 = vpop.f32.mrb[0].mxu0
    %v7924 = vadd.f32 0.0, %v7923
    %v7925 = vpop.f32.mrb[0].mxu0
    %v7926 = vpop.f32.mrb[0].mxu0
    %v7927 = vadd.f32 0.0, %v7926
    %v7928 = vpop.f32.mrb[0].mxu0
    %7929 = vmatprep.mubr.bf16.mxu0 0
    %7930 = vmatmul.mubr.bf16.gmra.mrb[0].mxu0 %v5496
    %v7931 = vpop.f32.mrb[0].mxu0
    %v7932 = vadd.f32 0.0, %v7931
    %v7933 = vpop.f32.mrb[0].mxu0
    %v7934 = vpop.f32.mrb[0].mxu0
    %v7935 = vadd.f32 0.0, %v7934
    %v7936 = vpop.f32.mrb[0].mxu0
    %7937 = vmatprep.mubr.bf16.mxu0 0
    %7938 = vmatmul.mubr.bf16.gmra.mrb[0].mxu0 %v5499
    %v7939 = vpop.f32.mrb[0].mxu0
    %v7940 = vadd.f32 0.0, %v7939
    %v7941 = vpop.f32.mrb[0].mxu0
    %v7942 = vpop.f32.mrb[0].mxu0
    %v7943 = vadd.f32 0.0, %v7942
    %v7944 = vpop.f32.mrb[0].mxu0
    %7945 = vmatprep.mubr.bf16.mxu0 0
    %7946 = vmatmul.mubr.bf16.gmra.mrb[0].mxu0 %v5502
    %v7947 = vpop.f32.mrb[0].mxu0
    %v7948 = vadd.f32 0.0, %v7947
    %v7949 = vpop.f32.mrb[0].mxu0
    %v7950 = vpop.f32.mrb[0].mxu0
    %v7951 = vadd.f32 0.0, %v7950
    %v7952 = vpop.f32.mrb[0].mxu0
    %7953 = vmatprep.mubr.bf16.mxu0 0
    %7954 = vmatmul.mubr.bf16.gmra.mrb[0].mxu0 %v6676
    %v7955 = vpop.f32.mrb[0].mxu0
    %v7956 = vadd.f32 0.0, %v7955
    %v7957 = vpop.f32.mrb[0].mxu0
    %v7958 = vpop.f32.mrb[0].mxu0
    %v7959 = vadd.f32 0.0, %v7958
    %v7960 = vpop.f32.mrb[0].mxu0
    %7961 = vmatprep.mubr.bf16.mxu0 0
    %7962 = vmatmul.mubr.bf16.gmra.mrb[0].mxu0 %v7801
    %v7963 = vpop.f32.mrb[0].mxu0
    %v7964 = vadd.f32 0.0, %v7963
    %v7965 = vpop.f32.mrb[0].mxu0
    %v7966 = vpop.f32.mrb[0].mxu0
    %v7967 = vadd.f32 0.0, %v7966
    %v7968 = vpop.f32.mrb[0].mxu0
    %7969 = vmatprep.mubr.bf16.mxu0 0
    %7970 = vmatmul.mubr.bf16.gmra.mrb[0].mxu0 %v5511
    %v7971 = vpop.f32.mrb[0].mxu0
    %v7972 = vadd.f32 0.0, %v7971
    %v7973 = vpop.f32.mrb[0].mxu0
    %v7974 = vpop.f32.mrb[0].mxu0
    %v7975 = vadd.f32 0.0, %v7974
    %v7976 = vpop.f32.mrb[0].mxu0
    %7977 = vmatprep.mubr.bf16.mxu0 0
    %7978 = vmatmul.mubr.bf16.gmra.mrb[0].mxu0 %v5514
    %v7979 = vpop.f32.mrb[0].mxu0
    %v7980 = vadd.f32 0.0, %v7979
    %v7981 = vpop.f32.mrb[0].mxu0
    %v7982 = vpop.f32.mrb[0].mxu0
    %v7983 = vadd.f32 0.0, %v7982
    %v7984 = vpop.f32.mrb[0].mxu0
    %7985 = vmatprep.mubr.bf16.mxu0 0
    %7986 = vmatmul.mubr.bf16.gmra.mrb[0].mxu0 %v5517
    %v7987 = vpop.f32.mrb[0].mxu0
    %v7988 = vadd.f32 0.0, %v7987
    %v7989 = vpop.f32.mrb[0].mxu0
    %v7990 = vpop.f32.mrb[0].mxu0
    %v7991 = vadd.f32 0.0, %v7990
    %v7992 = vpop.f32.mrb[0].mxu0
    %7993 = vmatprep.mubr.bf16.mxu0 0
    %7994 = vmatmul.mubr.bf16.gmra.mrb[0].mxu0 %v5520
    %v7995 = vpop.f32.mrb[0].mxu0
    %v7996 = vadd.f32 0.0, %v7995
    %v7997 = vpop.f32.mrb[0].mxu0
    %v7998 = vpop.f32.mrb[0].mxu0
    %v7999 = vadd.f32 0.0, %v7998
    %v8000 = vpop.f32.mrb[0].mxu0
    %8001 = vmatprep.mubr.bf16.mxu0 0
    %8002 = vmatmul.mubr.bf16.gmra.mrb[0].mxu0 %v5523
    %v8003 = vpop.f32.mrb[0].mxu0
    %v8004 = vadd.f32 0.0, %v8003
    %v8005 = vpop.f32.mrb[0].mxu0
    %v8006 = vpop.f32.mrb[0].mxu0
    %v8007 = vadd.f32 0.0, %v8006
    %v8008 = vpop.f32.mrb[0].mxu0
    %8009 = vmatprep.mubr.bf16.mxu0 0
    %8010 = vmatmul.mubr.bf16.gmra.mrb[0].mxu0 %v5526
    %v8011 = vpop.f32.mrb[0].mxu0
    %v8012 = vadd.f32 0.0, %v8011
    %v8013 = vpop.f32.mrb[0].mxu0
    %v8014 = vpop.f32.mrb[0].mxu0
    %v8015 = vadd.f32 0.0, %v8014
    %v8016 = vpop.f32.mrb[0].mxu0
    %8017 = vmatprep.mubr.bf16.mxu0 0
    %8018 = vmatmul.mubr.bf16.gmra.mrb[0].mxu0 %v5529
    %v8019 = vpop.f32.mrb[0].mxu0
    %v8020 = vadd.f32 0.0, %v8019
    %v8021 = vpop.f32.mrb[0].mxu0
    %v8022 = vpop.f32.mrb[0].mxu0
    %v8023 = vadd.f32 0.0, %v8022
    %v8024 = vpop.f32.mrb[0].mxu0
    %8025 = vmatprep.mubr.bf16.mxu0 0
    %8026 = vmatmul.mubr.bf16.gmra.mrb[0].mxu0 %v5532
    %v8027 = vpop.f32.mrb[0].mxu0
    %v8028 = vadd.f32 0.0, %v8027
    %v8029 = vpop.f32.mrb[0].mxu0
    %v8030 = vpop.f32.mrb[0].mxu0
    %v8031 = vadd.f32 0.0, %v8030
    %v8032 = vpop.f32.mrb[0].mxu0
    %8033 = vmatprep.mubr.bf16.mxu0 0
    %8034 = vmatmul.mubr.bf16.gmra.mrb[0].mxu0 %v5535
    %v8035 = vpop.f32.mrb[0].mxu0
    %v8036 = vadd.f32 0.0, %v8035
    %v8037 = vpop.f32.mrb[0].mxu0
    %v8038 = vpop.f32.mrb[0].mxu0
    %v8039 = vadd.f32 0.0, %v8038
    %v8040 = vpop.f32.mrb[0].mxu0
    %8041 = vmatprep.mubr.bf16.mxu0 0
    %8042 = vmatmul.mubr.bf16.gmra.mrb[0].mxu0 %v5538
    %v8043 = vpop.f32.mrb[0].mxu0
    %v8044 = vadd.f32 0.0, %v8043
    %v8045 = vpop.f32.mrb[0].mxu0
    %v8046 = vpop.f32.mrb[0].mxu0
    %v8047 = vadd.f32 0.0, %v8046
    %v8048 = vpop.f32.mrb[0].mxu0
    %8049 = vmatprep.mubr.bf16.mxu0 0
    %8050 = vmatmul.mubr.bf16.gmra.mrb[0].mxu0 %v5541
    %v8051 = vpop.f32.mrb[0].mxu0
    %v8052 = vadd.f32 0.0, %v8051
    %v8053 = vpop.f32.mrb[0].mxu0
    %v8054 = vpop.f32.mrb[0].mxu0
    %v8055 = vadd.f32 0.0, %v8054
    %v8056 = vpop.f32.mrb[0].mxu0
    %8057 = vmatprep.mubr.bf16.mxu0 0
    %8058 = vmatmul.mubr.bf16.gmra.mrb[0].mxu0 %v5544
    %v8059 = vpop.f32.mrb[0].mxu0
    %v8060 = vadd.f32 0.0, %v8059
    %v8061 = vpop.f32.mrb[0].mxu0
    %v8062 = vpop.f32.mrb[0].mxu0
    %v8063 = vadd.f32 0.0, %v8062
    %v8064 = vpop.f32.mrb[0].mxu0
    %8065 = vmatprep.mubr.bf16.mxu0 0
    %8066 = vmatmul.mubr.bf16.gmra.mrb[0].mxu0 %v5547
    %v8067 = vpop.f32.mrb[0].mxu0
    %v8068 = vadd.f32 0.0, %v8067
    %v8069 = vpop.f32.mrb[0].mxu0
    %v8070 = vpop.f32.mrb[0].mxu0
    %v8071 = vadd.f32 0.0, %v8070
    %v8072 = vpop.f32.mrb[0].mxu0
    %8073 = vmatprep.mubr.bf16.mxu0 0
    %8074 = vmatmul.mubr.bf16.gmra.mrb[0].mxu0 %v5550
    %v8075 = vpop.f32.mrb[0].mxu0
    %v8076 = vadd.f32 0.0, %v8075
    %v8077 = vpop.f32.mrb[0].mxu0
    %v8078 = vpop.f32.mrb[0].mxu0
    %v8079 = vadd.f32 0.0, %v8078
    %v8080 = vpop.f32.mrb[0].mxu0
    %8081 = vmatprep.mubr.bf16.mxu0 0
    %8082 = vmatmul.mubr.bf16.gmra.mrb[0].mxu0 %v6679
    %v8083 = vpop.f32.mrb[0].mxu0
    %v8084 = vadd.f32 0.0, %v8083
    %v8085 = vpop.f32.mrb[0].mxu0
    %v8086 = vpop.f32.mrb[0].mxu0
    %v8087 = vadd.f32 0.0, %v8086
    %v8088 = vpop.f32.mrb[0].mxu0
    %8089 = vmatprep.mubr.bf16.mxu0 0
    %8090 = vmatmul.mubr.bf16.gmra.mrb[0].mxu0 %v7804
    %v8091 = vpop.f32.mrb[0].mxu0
    %v8092 = vadd.f32 0.0, %v8091
    %v8093 = vpop.f32.mrb[0].mxu0
    %v8094 = vpop.f32.mrb[0].mxu0
    %v8095 = vadd.f32 0.0, %v8094
    %v8096 = vpop.f32.mrb[0].mxu0
    %8097 = vdwg.mxu0
    %v8098 = vadd.f32 %v7725, %v7844
    %v8099 = vadd.f32 %v7726, %v7847
    %v8100 = vadd.f32 %v7727, %v7852
    %v8101 = vadd.f32 %v7728, %v7855
    %v8102 = vadd.f32 %v7729, %v7860
    %v8103 = vadd.f32 %v7730, %v7863
    %v8104 = vadd.f32 %v7731, %v7868
    %v8105 = vadd.f32 %v7732, %v7871
    %v8106 = vadd.f32 %v7733, %v7876
    %v8107 = vadd.f32 %v7734, %v7879
    %v8108 = vadd.f32 %v7735, %v7884
    %v8109 = vadd.f32 %v7736, %v7887
    %v8110 = vadd.f32 %v7737, %v7892
    %v8111 = vadd.f32 %v7738, %v7895
    %v8112 = vadd.f32 %v7739, %v7900
    %v8113 = vadd.f32 %v7740, %v7903
    %v8114 = vadd.f32 %v7741, %v7908
    %v8115 = vadd.f32 %v7742, %v7911
    %v8116 = vadd.f32 %v7743, %v7916
    %v8117 = vadd.f32 %v7744, %v7919
    %v8118 = vadd.f32 %v7745, %v7924
    %v8119 = vadd.f32 %v7746, %v7927
    %v8120 = vadd.f32 %v7747, %v7932
    %v8121 = vadd.f32 %v7748, %v7935
    %v8122 = vadd.f32 %v7749, %v7940
    %v8123 = vadd.f32 %v7750, %v7943
    %v8124 = vadd.f32 %v7751, %v7948
    %v8125 = vadd.f32 %v7752, %v7951
    %v8126 = vadd.f32 %v7753, %v7956
    %v8127 = vadd.f32 %v7754, %v7959
    %v8128 = vadd.f32 %v7755, %v7964
    %v8129 = vadd.f32 %v7756, %v7967
    %v8130 = vadd.f32 %v7757, %v7972
    %v8131 = vadd.f32 %v7758, %v7975
    %v8132 = vadd.f32 %v7759, %v7980
    %v8133 = vadd.f32 %v7760, %v7983
    %v8134 = vadd.f32 %v7761, %v7988
    %v8135 = vadd.f32 %v7762, %v7991
    %v8136 = vadd.f32 %v7763, %v7996
    %v8137 = vadd.f32 %v7764, %v7999
    %v8138 = vadd.f32 %v7765, %v8004
    %v8139 = vadd.f32 %v7766, %v8007
    %v8140 = vadd.f32 %v7767, %v8012
    %v8141 = vadd.f32 %v7768, %v8015
    %v8142 = vadd.f32 %v7769, %v8020
    %v8143 = vadd.f32 %v7770, %v8023
    %v8144 = vadd.f32 %v7771, %v8028
    %v8145 = vadd.f32 %v7772, %v8031
    %v8146 = vadd.f32 %v7773, %v8036
    %v8147 = vadd.f32 %v7774, %v8039
    %v8148 = vadd.f32 %v7775, %v8044
    %v8149 = vadd.f32 %v7776, %v8047
    %v8150 = vadd.f32 %v7777, %v8052
    %v8151 = vadd.f32 %v7778, %v8055
    %v8152 = vadd.f32 %v7779, %v8060
    %v8153 = vadd.f32 %v7780, %v8063
    %v8154 = vadd.f32 %v7781, %v8068
    %v8155 = vadd.f32 %v7782, %v8071
    %v8156 = vadd.f32 %v7783, %v8076
    %v8157 = vadd.f32 %v7784, %v8079
    %v8158 = vadd.f32 %v7785, %v8084
    %v8159 = vadd.f32 %v7786, %v8087
    %v8160 = vadd.f32 %v7787, %v8092
    %v8161 = vadd.f32 %v7788, %v8095
    %v8162 = vld [vmem:[%s4] sm:$0x1]
    %v8164 = vlaneseq
    %v8165 = vshrl.u32 %v8164, 7
    %v8166 = vsub.s32 0, %v8165
    %v8167 = vrot.slane %v8162, %v8166
    %v8169 = vadd.f32 %v8098, %v8167
    %v8170 = vadd.f32 %v8099, %v8167
    %v8171 = vadd.f32 %v8100, %v8167
    %v8172 = vadd.f32 %v8101, %v8167
    %v8173 = vadd.f32 %v8102, %v8167
    %v8174 = vadd.f32 %v8103, %v8167
    %v8175 = vadd.f32 %v8104, %v8167
    %v8176 = vadd.f32 %v8105, %v8167
    %v8177 = vadd.f32 %v8106, %v8167
    %v8178 = vadd.f32 %v8107, %v8167
    %v8179 = vadd.f32 %v8108, %v8167
    %v8180 = vadd.f32 %v8109, %v8167
    %v8181 = vadd.f32 %v8110, %v8167
    %v8182 = vadd.f32 %v8111, %v8167
    %v8183 = vadd.f32 %v8112, %v8167
    %v8184 = vadd.f32 %v8113, %v8167
    %v8185 = vadd.f32 %v8114, %v8167
    %v8186 = vadd.f32 %v8115, %v8167
    %v8187 = vadd.f32 %v8116, %v8167
    %v8188 = vadd.f32 %v8117, %v8167
    %v8189 = vadd.f32 %v8118, %v8167
    %v8190 = vadd.f32 %v8119, %v8167
    %v8191 = vadd.f32 %v8120, %v8167
    %v8192 = vadd.f32 %v8121, %v8167
    %v8193 = vadd.f32 %v8122, %v8167
    %v8194 = vadd.f32 %v8123, %v8167
    %v8195 = vadd.f32 %v8124, %v8167
    %v8196 = vadd.f32 %v8125, %v8167
    %v8197 = vadd.f32 %v8126, %v8167
    %v8198 = vadd.f32 %v8127, %v8167
    %v8199 = vadd.f32 %v8128, %v8167
    %v8200 = vadd.f32 %v8129, %v8167
    %v8201 = vadd.f32 %v8130, %v8167
    %v8202 = vadd.f32 %v8131, %v8167
    %v8203 = vadd.f32 %v8132, %v8167
    %v8204 = vadd.f32 %v8133, %v8167
    %v8205 = vadd.f32 %v8134, %v8167
    %v8206 = vadd.f32 %v8135, %v8167
    %v8207 = vadd.f32 %v8136, %v8167
    %v8208 = vadd.f32 %v8137, %v8167
    %v8209 = vadd.f32 %v8138, %v8167
    %v8210 = vadd.f32 %v8139, %v8167
    %v8211 = vadd.f32 %v8140, %v8167
    %v8212 = vadd.f32 %v8141, %v8167
    %v8213 = vadd.f32 %v8142, %v8167
    %v8214 = vadd.f32 %v8143, %v8167
    %v8215 = vadd.f32 %v8144, %v8167
    %v8216 = vadd.f32 %v8145, %v8167
    %v8217 = vadd.f32 %v8146, %v8167
    %v8218 = vadd.f32 %v8147, %v8167
    %v8219 = vadd.f32 %v8148, %v8167
    %v8220 = vadd.f32 %v8149, %v8167
    %v8221 = vadd.f32 %v8150, %v8167
    %v8222 = vadd.f32 %v8151, %v8167
    %v8223 = vadd.f32 %v8152, %v8167
    %v8224 = vadd.f32 %v8153, %v8167
    %v8225 = vadd.f32 %v8154, %v8167
    %v8226 = vadd.f32 %v8155, %v8167
    %v8227 = vadd.f32 %v8156, %v8167
    %v8228 = vadd.f32 %v8157, %v8167
    %v8229 = vadd.f32 %v8158, %v8167
    %v8230 = vadd.f32 %v8159, %v8167
    %v8231 = vadd.f32 %v8160, %v8167
    %v8232 = vadd.f32 %v8161, %v8167
    %8233 = vxpose.xlu0.b32.start [1/16] %v8169, 128
    %8234 = vxpose.xlu0.b32.cont [2/16] %v8170, 128
    %8235 = vxpose.xlu0.b32.cont [3/16] %v8171, 128
    %8236 = vxpose.xlu0.b32.cont [4/16] %v8172, 128
    %8237 = vxpose.xlu0.b32.cont [5/16] %v8173, 128
    %8238 = vxpose.xlu0.b32.cont [6/16] %v8174, 128
    %8239 = vxpose.xlu0.b32.cont [7/16] %v8175, 128
    %8240 = vxpose.xlu0.b32.cont [8/16] %v8176, 128
    %8241 = vxpose.xlu0.b32.cont [9/16] %v8177, 128
    %8242 = vxpose.xlu0.b32.cont [10/16] %v8178, 128
    %8243 = vxpose.xlu0.b32.cont [11/16] %v8179, 128
    %8244 = vxpose.xlu0.b32.cont [12/16] %v8180, 128
    %8245 = vxpose.xlu0.b32.cont [13/16] %v8181, 128
    %8246 = vxpose.xlu0.b32.cont [14/16] %v8182, 128
    %8247 = vxpose.xlu0.b32.cont [15/16] %v8183, 128
    %8248 = vxpose.xlu0.b32.end [16/16] %v8184, 128
    %v8249 = vpop.trf.xlu0
    %v8250 = vpop.trf.xlu0
    %v8251 = vpop.trf.xlu0
    %v8252 = vpop.trf.xlu0
    %v8253 = vpop.trf.xlu0
    %v8254 = vpop.trf.xlu0
    %v8255 = vpop.trf.xlu0
    %v8256 = vpop.trf.xlu0
    %v8257 = vpop.trf.xlu0
    %v8258 = vpop.trf.xlu0
    %v8259 = vpop.trf.xlu0
    %v8260 = vpop.trf.xlu0
    %v8261 = vpop.trf.xlu0
    %v8262 = vpop.trf.xlu0
    %v8263 = vpop.trf.xlu0
    %v8264 = vpop.trf.xlu0
    %8265 = vxpose.xlu0.b32.start [1/16] %v8185, 128
    %8266 = vxpose.xlu0.b32.cont [2/16] %v8186, 128
    %8267 = vxpose.xlu0.b32.cont [3/16] %v8187, 128
    %8268 = vxpose.xlu0.b32.cont [4/16] %v8188, 128
    %8269 = vxpose.xlu0.b32.cont [5/16] %v8189, 128
    %8270 = vxpose.xlu0.b32.cont [6/16] %v8190, 128
    %8271 = vxpose.xlu0.b32.cont [7/16] %v8191, 128
    %8272 = vxpose.xlu0.b32.cont [8/16] %v8192, 128
    %8273 = vxpose.xlu0.b32.cont [9/16] %v8193, 128
    %8274 = vxpose.xlu0.b32.cont [10/16] %v8194, 128
    %8275 = vxpose.xlu0.b32.cont [11/16] %v8195, 128
    %8276 = vxpose.xlu0.b32.cont [12/16] %v8196, 128
    %8277 = vxpose.xlu0.b32.cont [13/16] %v8197, 128
    %8278 = vxpose.xlu0.b32.cont [14/16] %v8198, 128
    %8279 = vxpose.xlu0.b32.cont [15/16] %v8199, 128
    %8280 = vxpose.xlu0.b32.end [16/16] %v8200, 128
    %v8281 = vpop.trf.xlu0
    %v8282 = vpop.trf.xlu0
    %v8283 = vpop.trf.xlu0
    %v8284 = vpop.trf.xlu0
    %v8285 = vpop.trf.xlu0
    %v8286 = vpop.trf.xlu0
    %v8287 = vpop.trf.xlu0
    %v8288 = vpop.trf.xlu0
    %v8289 = vpop.trf.xlu0
    %v8290 = vpop.trf.xlu0
    %v8291 = vpop.trf.xlu0
    %v8292 = vpop.trf.xlu0
    %v8293 = vpop.trf.xlu0
    %v8294 = vpop.trf.xlu0
    %v8295 = vpop.trf.xlu0
    %v8296 = vpop.trf.xlu0
    %8297 = vxpose.xlu0.b32.start [1/16] %v8201, 128
    %8298 = vxpose.xlu0.b32.cont [2/16] %v8202, 128
    %8299 = vxpose.xlu0.b32.cont [3/16] %v8203, 128
    %8300 = vxpose.xlu0.b32.cont [4/16] %v8204, 128
    %8301 = vxpose.xlu0.b32.cont [5/16] %v8205, 128
    %8302 = vxpose.xlu0.b32.cont [6/16] %v8206, 128
    %8303 = vxpose.xlu0.b32.cont [7/16] %v8207, 128
    %8304 = vxpose.xlu0.b32.cont [8/16] %v8208, 128
    %8305 = vxpose.xlu0.b32.cont [9/16] %v8209, 128
    %8306 = vxpose.xlu0.b32.cont [10/16] %v8210, 128
    %8307 = vxpose.xlu0.b32.cont [11/16] %v8211, 128
    %8308 = vxpose.xlu0.b32.cont [12/16] %v8212, 128
    %8309 = vxpose.xlu0.b32.cont [13/16] %v8213, 128
    %8310 = vxpose.xlu0.b32.cont [14/16] %v8214, 128
    %8311 = vxpose.xlu0.b32.cont [15/16] %v8215, 128
    %8312 = vxpose.xlu0.b32.end [16/16] %v8216, 128
    %v8313 = vpop.trf.xlu0
    %v8314 = vpop.trf.xlu0
    %v8315 = vpop.trf.xlu0
    %v8316 = vpop.trf.xlu0
    %v8317 = vpop.trf.xlu0
    %v8318 = vpop.trf.xlu0
    %v8319 = vpop.trf.xlu0
    %v8320 = vpop.trf.xlu0
    %v8321 = vpop.trf.xlu0
    %v8322 = vpop.trf.xlu0
    %v8323 = vpop.trf.xlu0
    %v8324 = vpop.trf.xlu0
    %v8325 = vpop.trf.xlu0
    %v8326 = vpop.trf.xlu0
    %v8327 = vpop.trf.xlu0
    %v8328 = vpop.trf.xlu0
    %8329 = vxpose.xlu0.b32.start [1/16] %v8217, 128
    %8330 = vxpose.xlu0.b32.cont [2/16] %v8218, 128
    %8331 = vxpose.xlu0.b32.cont [3/16] %v8219, 128
    %8332 = vxpose.xlu0.b32.cont [4/16] %v8220, 128
    %8333 = vxpose.xlu0.b32.cont [5/16] %v8221, 128
    %8334 = vxpose.xlu0.b32.cont [6/16] %v8222, 128
    %8335 = vxpose.xlu0.b32.cont [7/16] %v8223, 128
    %8336 = vxpose.xlu0.b32.cont [8/16] %v8224, 128
    %8337 = vxpose.xlu0.b32.cont [9/16] %v8225, 128
    %8338 = vxpose.xlu0.b32.cont [10/16] %v8226, 128
    %8339 = vxpose.xlu0.b32.cont [11/16] %v8227, 128
    %8340 = vxpose.xlu0.b32.cont [12/16] %v8228, 128
    %8341 = vxpose.xlu0.b32.cont [13/16] %v8229, 128
    %8342 = vxpose.xlu0.b32.cont [14/16] %v8230, 128
    %8343 = vxpose.xlu0.b32.cont [15/16] %v8231, 128
    %8344 = vxpose.xlu0.b32.end [16/16] %v8232, 128
    %v8345 = vpop.trf.xlu0
    %v8346 = vpop.trf.xlu0
    %v8347 = vpop.trf.xlu0
    %v8348 = vpop.trf.xlu0
    %v8349 = vpop.trf.xlu0
    %v8350 = vpop.trf.xlu0
    %v8351 = vpop.trf.xlu0
    %v8352 = vpop.trf.xlu0
    %v8353 = vpop.trf.xlu0
    %v8354 = vpop.trf.xlu0
    %v8355 = vpop.trf.xlu0
    %v8356 = vpop.trf.xlu0
    %v8357 = vpop.trf.xlu0
    %v8358 = vpop.trf.xlu0
    %v8359 = vpop.trf.xlu0
    %v8360 = vpop.trf.xlu0
    %v8363 = vrot.slane %v8313, 4
    %v8364 = vrot.slane %v8345, 4
    %vm8367 = vcmask 1043456
    %v8368 = vsel %vm8367, %v8249, %v8363
    %v8369 = vsel %vm8367, %v8281, %v8364
    %8370 = vst [vmem:[#allocation2] sm:$0xff] %v8368
    %8371 = vst [vmem:[#allocation2 + $0x8] sm:$0xff] %v8369
    // Predicated region
    $region22: #{tpu_custom_call.1} parent=1 // pred_check
      _
    $region23: #{tpu_custom_call.1} parent=1 // pred_check_branch
      %8373 = sbr.rel (0) target = $region25
    $region24: #{tpu_custom_call.1} parent=1 // pred_region
      %s8375 = ssub.s32 256, 256
      %8376 = vsyncadd [#allocation3], %s8375
      %s8378 = sshll.u32 [#allocation2], 4
      %s8379 = int_to_ptr.vmem [resolvable:$true] %s8378
      %8381 = dma.vmem_to_hbm [thread:$0]  %s8379, 256, %s5, [#allocation3]
    $region25: #{tpu_custom_call.1} parent=1 // pred_fallthru
      _
    // Predicated region
    $region26: #{tpu_custom_call.1} parent=1 // pred_check
      _
    $region27: #{tpu_custom_call.1} parent=1 // pred_check_branch
      %8383 = sbr.rel (0) target = $region29
    $region28: #{tpu_custom_call.1} parent=1 // pred_region
      %8384 = dma.done [#allocation3], 256
    $region29: #{tpu_custom_call.1} parent=1 // pred_fallthru
      _
    %8385 = vsyncpa [#allocation3], 1

</llo_original>
